<compile_context>
chip_gen: v7x
topology: tpu7x:2x2x1
jax: 0.10.0
libtpu: 0.0.40
codegen_flags: <defaults>
</compile_context>

<pallas_src>
import functools
import numpy as np
import jax
import jax.numpy as jnp
from jax.experimental import pallas as pl
from jax.experimental.pallas import tpu as pltpu

# ---- hyperparameters hard-coded inside _TreeDRNetBlock -------------------
N_TIME_IN = 16    # backcast_length  (n_time_in)
N_TIME_OUT = 8    # forecast_length  (n_time_out)
INNER = 128       # inner_size
DUP = 2           # duplicate == controler_size == heads (groups)
N_BLOCKS = 4      # stacks(2) * blocks_per_stack(2)
N_TRI = 3         # 2**outer_loop - 1, outer_loop = 2
BATCH = 4

PACK_L = DUP * N_TIME_IN            # 32: packed (both groups) backcast width
PACK_F = DUP * (N_TIME_OUT // 2)    # 8:  packed pair-summed forecast width

KP_KEYS = ('Wc0', 'Bc0', 'Wc1', 'Bc1', 'Wc2', 'Bc2',
           'Wb0', 'Bb0', 'Wb1', 'Bb1', 'Wbf', 'Bbf', 'psl',
           'rw1', 'rb1', 'rw2', 'rb2', 'rw3', 'rb3')


# ---------------------------------------------------------------------------
# Fused Pallas kernel: no grid, everything VMEM-resident, fully unrolled.
# ---------------------------------------------------------------------------
def fused_kernel(x_ref,
                 Wc0, Bc0, Wc1, Bc1, Wc2, Bc2,
                 Wb0, Bb0, Wb1, Bb1, Wbf, Bbf, psl_ref,
                 rw1, rb1, rw2, rb2, rw3, rb3,
                 fc_ref, bc_ref):
    f32 = jnp.float32
    bf16 = jnp.bfloat16
    B = x_ref.shape[0]
    x = x_ref[...]                      # (B, 16) residuals, f32
    psl = psl_ref[...]                  # (32, 16) per-group adjacent-pair-sum, f32

    def mm(a, w):                       # native bf16 x bf16 -> f32 MXU matmul
        return jnp.dot(a.astype(bf16), w, preferred_element_type=f32)

    def run_tri(xin, t):
        """One Parallel_Tri_controled_NBeats_new, both duplicate groups packed."""
        xin2 = jnp.concatenate([xin, xin], axis=-1)            # (B,32) == x.repeat(1,2)
        # Parallel_Controler (depth=2): layer0 shared-input, layers 1/2 block-diag.
        h = jnp.maximum(mm(xin, Wc0[t]) + Bc0[t], 0.0)          # (B, 256)
        h = jnp.maximum(mm(h, Wc1[t]) + Bc1[t], 0.0)            # (B, 256)
        lp = mm(h, Wc2[t]) + Bc2[t]                             # (B, 64) = [logits | pair-partner]
        logit = lp[:, :PACK_L]
        partner = lp[:, PACK_L:]
        m = jnp.maximum(logit, partner)
        e = jnp.exp(logit - m)
        w = e / (e + jnp.exp(partner - m))                      # softmax over adjacent pairs
        bc_in = xin2 * w                                        # N-Beats stack input (B, 32)

        # Parallel_NBeatsNet: 4 Parallel_Block's, heads fused into one matmul.
        cur = bc_in
        fsum = jnp.zeros((B, PACK_F), f32)                      # pair-summed forecast acc
        for k in range(N_BLOCKS):
            z = jnp.maximum(mm(cur, Wb0[t, k]) + Bb0[t, k], 0.0)
            z = jnp.maximum(mm(z, Wb1[t, k]) + Bb1[t, k], 0.0)
            hd = mm(z, Wbf[t, k]) + Bbf[t, k]                   # (B,40) = [theta_b(32) | psum(theta_f)(8)]
            cur = cur - hd[:, :PACK_L]
            fsum = fsum + hd[:, PACK_L:]
        return bc_in, cur, fsum

    # tri0 consumes the residuals; tri1/tri2 both consume tri0's backcast mean,
    # so their matmul chains are mutually independent (scheduler may overlap).
    _, cur0, fsum0 = run_tri(x, 0)
    bm0 = jnp.dot(cur0, psl, preferred_element_type=f32) * 0.125   # pair-mean / 4   (B,16)
    bc1, cur1, fsum1 = run_tri(bm0, 1)
    bc2, cur2, fsum2 = run_tri(bm0, 2)
    xr1 = jnp.dot(bc1 - cur1, psl, preferred_element_type=f32)     # pair-sum of tri1 residual
    xr2 = jnp.dot(bc2 - cur2, psl, preferred_element_type=f32)     # pair-sum of tri2 residual

    y = (fsum0 + fsum1 + fsum2) * (0.125 / 3.0)     # forecast = mean of 3 tri forecasts
    xm = (bm0 + xr1 + xr2) * (1.0 / 5.0)            # x_multi  = mean of 5 backcast terms
    fc_ref[...] = y

    # reuse_forecast_stacks[0]: Linear(8,128)-ReLU-Linear(128,128)-ReLU-Linear(128,16)
    h = jnp.maximum(mm(y, rw1[...]) + rb1[...], 0.0)
    h = jnp.maximum(mm(h, rw2[...]) + rb2[...], 0.0)
    r = mm(h, rw3[...]) + rb3[...]
    bc_ref[...] = x - xm - r                        # boosting-round backcast


# ---------------------------------------------------------------------------
# pallas_call wrapper: gridless, whole-array VMEM blocks (total ~3 MiB).
# ---------------------------------------------------------------------------
def fused_forward(x, kp):
    B = x.shape[0]
    args = (x,) + tuple(kp[k] for k in KP_KEYS)
    vmem = pl.BlockSpec(memory_space=pltpu.MemorySpace.VMEM)
    return pl.pallas_call(
        fused_kernel,
        out_shape=(jax.ShapeDtypeStruct((B, N_TIME_OUT), jnp.float32),   # forecast
                   jax.ShapeDtypeStruct((B, N_TIME_IN), jnp.float32)),   # backcast
        in_specs=[vmem] * len(args),
        out_specs=(vmem, vmem),
    )(*args)


def treedrnet_forward(S, Y, X, insample_mask, outsample_mask, kp):
    """_TreeDRNet.forward(..., return_decomposition=False) for n_x = 0, n_s = 0."""
    del S, X, insample_mask          # unused in the executed path (as in PyTorch)
    insample_y = Y[:, :-N_TIME_OUT]
    outsample_y = Y[:, -N_TIME_OUT:]
    out_mask = outsample_mask[:, -N_TIME_OUT:]
    residuals = insample_y[:, ::-1]  # flip(dims=(-1,))
    forecast, _backcast = fused_forward(residuals, kp)
    return outsample_y, forecast, out_mask


# ---------------------------------------------------------------------------
# Deterministic synthetic parameters (raw, per-group, f32)
# ---------------------------------------------------------------------------
def _dense(key, fan_in, shape):
    return jax.random.normal(key, shape, jnp.float32) / np.sqrt(fan_in)


def make_tri_params(key):
    ks = jax.random.split(key, 14)
    return {
        'cW0': _dense(ks[0], N_TIME_IN, (DUP, N_TIME_IN, INNER)),
        'cB0': 0.01 * jax.random.normal(ks[1], (DUP, 1, INNER), jnp.float32),
        'cW1': _dense(ks[2], INNER, (DUP, INNER, INNER)),
        'cB1': 0.01 * jax.random.normal(ks[3], (DUP, 1, INNER), jnp.float32),
        'cW2': _dense(ks[4], INNER, (DUP, INNER, N_TIME_IN)),
        'cB2': 0.01 * jax.random.normal(ks[5], (DUP, 1, N_TIME_IN), jnp.float32),
        'bW0': _dense(ks[6], N_TIME_IN, (N_BLOCKS, DUP, N_TIME_IN, INNER)),
        'bB0': 0.01 * jax.random.normal(ks[7], (N_BLOCKS, DUP, 1, INNER), jnp.float32),
        'bW1': _dense(ks[8], INNER, (N_BLOCKS, DUP, INNER, INNER)),
        'bB1': 0.01 * jax.random.normal(ks[9], (N_BLOCKS, DUP, 1, INNER), jnp.float32),
        'bWb': _dense(ks[10], INNER, (N_BLOCKS, DUP, INNER, N_TIME_IN)),
        'bBb': 0.01 * jax.random.normal(ks[11], (N_BLOCKS, DUP, 1, N_TIME_IN), jnp.float32),
        'bWf': _dense(ks[12], INNER, (N_BLOCKS, DUP, INNER, N_TIME_OUT)),
        'bBf': 0.01 * jax.random.normal(ks[13], (N_BLOCKS, DUP, 1, N_TIME_OUT), jnp.float32),
    }


def make_reuse_params(key):
    ks = jax.random.split(key, 6)
    return {
        'w1': _dense(ks[0], N_TIME_OUT, (N_TIME_OUT, INNER)),
        'b1': 0.01 * jax.random.normal(ks[1], (1, INNER), jnp.float32),
        'w2': _dense(ks[2], INNER, (INNER, INNER)),
        'b2': 0.01 * jax.random.normal(ks[3], (1, INNER), jnp.float32),
        'w3': _dense(ks[4], INNER, (INNER, N_TIME_IN)),
        'b3': 0.01 * jax.random.normal(ks[5], (1, N_TIME_IN), jnp.float32),
    }


# ---------------------------------------------------------------------------
# Host-side packing: group block-diag, head/partner fusion, bf16 weights.
# ---------------------------------------------------------------------------
def _pair_sum_matrix(n):
    m = np.zeros((n, n // 2), np.float32)
    for i in range(n // 2):
        m[2 * i, i] = 1.0
        m[2 * i + 1, i] = 1.0
    return m


def _block_diag(mats):
    rows = sum(m.shape[0] for m in mats)
    cols = sum(m.shape[1] for m in mats)
    out = np.zeros((rows, cols), np.float32)
    r = c = 0
    for m in mats:
        out[r:r + m.shape[0], c:c + m.shape[1]] = m
        r += m.shape[0]
        c += m.shape[1]
    return out


def pack_kernel_params(tri_list, reuse):
    L, F = N_TIME_IN, N_TIME_OUT
    psl16 = _pair_sum_matrix(L)            # (16, 8)
    psf8 = _pair_sum_matrix(F)             # (8, 4)
    psl32 = _block_diag([psl16] * DUP)     # (32, 16) per-group adjacent-pair-sum
    swap32 = np.zeros((DUP * L, DUP * L), np.float32)
    for j in range(DUP * L):
        swap32[j, j ^ 1] = 1.0             # adjacent-pair partner permutation

    acc = {k: [] for k in ('Wc0', 'Bc0', 'Wc1', 'Bc1', 'Wc2', 'Bc2',
                           'Wb0', 'Bb0', 'Wb1', 'Bb1', 'Wbf', 'Bbf')}
    for p in tri_list:
        p = {k: np.asarray(v, np.float32) for k, v in p.items()}
        # controller layer 0: both groups read the same x -> concat along outputs
        acc['Wc0'].append(np.concatenate([p['cW0'][g] for g in range(DUP)], 1))   # (16,256)
        acc['Bc0'].append(np.concatenate([p['cB0'][g] for g in range(DUP)], 1))   # (1,256)
        acc['Wc1'].append(_block_diag([p['cW1'][g] for g in range(DUP)]))          # (256,256)
        acc['Bc1'].append(np.concatenate([p['cB1'][g] for g in range(DUP)], 1))
        w2 = _block_diag([p['cW2'][g] for g in range(DUP)])                        # (256,32)
        b2 = np.concatenate([p['cB2'][g] for g in range(DUP)], 1)                  # (1,32)
        # fuse the adjacent-pair "partner" logits: columns = [logits | partner]
        acc['Wc2'].append(np.concatenate([w2, w2 @ swap32], 1))                    # (256,64)
        acc['Bc2'].append(np.concatenate([b2, b2 @ swap32], 1))                    # (1,64)

        wb0, bb0, wb1, bb1, wbf, bbf = [], [], [], [], [], []
        for k in range(N_BLOCKS):
            wb0.append(_block_diag([p['bW0'][k, g] for g in range(DUP)]))          # (32,256)
            bb0.append(np.concatenate([p['bB0'][k, g] for g in range(DUP)], 1))
            wb1.append(_block_diag([p['bW1'][k, g] for g in range(DUP)]))          # (256,256)
            bb1.append(np.concatenate([p['bB1'][k, g] for g in range(DUP)], 1))
            # fused heads: [theta_b(32) | pair-summed theta_f(8)]
            wb = _block_diag([p['bWb'][k, g] for g in range(DUP)])                 # (256,32)
            wf = _block_diag([p['bWf'][k, g] @ psf8 for g in range(DUP)])          # (256,8)
            wbf.append(np.concatenate([wb, wf], 1))                                # (256,40)
            bb = np.concatenate([p['bBb'][k, g] for g in range(DUP)], 1)           # (1,32)
            bfb = np.concatenate([p['bBf'][k, g] @ psf8 for g in range(DUP)], 1)   # (1,8)
            bbf.append(np.concatenate([bb, bfb], 1))                               # (1,40)
        acc['Wb0'].append(np.stack(wb0)); acc['Bb0'].append(np.stack(bb0))
        acc['Wb1'].append(np.stack(wb1)); acc['Bb1'].append(np.stack(bb1))
        acc['Wbf'].append(np.stack(wbf)); acc['Bbf'].append(np.stack(bbf))

    def w16(key):   # stack over the 3 tris, weights -> bf16
        return jnp.asarray(np.stack(acc[key]), jnp.bfloat16)

    def b32(key):   # biases stay f32
        return jnp.asarray(np.stack(acc[key]), jnp.float32)

    return {
        'Wc0': w16('Wc0'), 'Bc0': b32('Bc0'), 'Wc1': w16('Wc1'), 'Bc1': b32('Bc1'),
        'Wc2': w16('Wc2'), 'Bc2': b32('Bc2'),
        'Wb0': w16('Wb0'), 'Bb0': b32('Bb0'), 'Wb1': w16('Wb1'), 'Bb1': b32('Bb1'),
        'Wbf': w16('Wbf'), 'Bbf': b32('Bbf'),
        'psl': jnp.asarray(psl32, jnp.float32),
        'rw1': jnp.asarray(reuse['w1'], jnp.bfloat16), 'rb1': jnp.asarray(reuse['b1'], jnp.float32),
        'rw2': jnp.asarray(reuse['w2'], jnp.bfloat16), 'rb2': jnp.asarray(reuse['b2'], jnp.float32),
        'rw3': jnp.asarray(reuse['w3'], jnp.bfloat16), 'rb3': jnp.asarray(reuse['b3'], jnp.float32),
    }


# ---------------------------------------------------------------------------
# Pure-JAX reference (torch math, same bf16 weight/activation rounding)
# ---------------------------------------------------------------------------
def _q(a):
    return a.astype(jnp.bfloat16).astype(jnp.float32)


def _qmm(a, w):
    return jnp.dot(_q(a), _q(w), precision=jax.lax.Precision.HIGHEST)


def tri_ref(x, p):
    B, L = x.shape
    F = N_TIME_OUT
    bm, fm, resid = [], [], []
    for g in range(DUP):
        h = jax.nn.relu(_qmm(x, p['cW0'][g]) + p['cB0'][g, 0])
        h = jax.nn.relu(_qmm(h, p['cW1'][g]) + p['cB1'][g, 0])
        logits = _qmm(h, p['cW2'][g]) + p['cB2'][g, 0]
        w = jax.nn.softmax(logits.reshape(B, L // 2, 2), axis=-1).reshape(B, L)
        bc_in = x * w
        cur = bc_in
        fsum = jnp.zeros((B, F), jnp.float32)
        for k in range(N_BLOCKS):
            z = jax.nn.relu(_qmm(cur, p['bW0'][k, g]) + p['bB0'][k, g, 0])
            z = jax.nn.relu(_qmm(z, p['bW1'][k, g]) + p['bB1'][k, g, 0])
            f = _qmm(z, p['bWf'][k, g]) + p['bBf'][k, g, 0]
            b = _qmm(z, p['bWb'][k, g]) + p['bBb'][k, g, 0]
            cur = cur - b
            fsum = fsum + f
        bm.append(cur.reshape(B, L // 2, 2).mean(-1) / N_BLOCKS)
        fm.append(fsum.reshape(B, F // 2, 2).mean(-1) / N_BLOCKS)
        resid.append(bc_in - cur)
    return (jnp.concatenate(bm, 1), jnp.concatenate(fm, 1), resid[0], resid[1])


def _pair_sum_concat(ra, rb):
    def ps(r):
        B, L = r.shape
        return r.reshape(B, L // 2, 2).sum(-1)
    return jnp.concatenate([ps(ra), ps(rb)], axis=1)


def reference_forward(residuals, tri_params, reuse):
    bm0, fm0, _r0a, _r0b = tri_ref(residuals, tri_params[0])
    bm1, fm1, r1a, r1b = tri_ref(bm0, tri_params[1])
    bm2, fm2, r2a, r2b = tri_ref(bm0, tri_params[2])
    y = (fm0 + fm1 + fm2) / 3.0
    xm = (bm0 + _pair_sum_concat(r1a, r1b) + _pair_sum_concat(r2a, r2b)) / 5.0
    h = jax.nn.relu(_qmm(y, reuse['w1']) + reuse['b1'])
    h = jax.nn.relu(_qmm(h, reuse['w2']) + reuse['b2'])
    r = _qmm(h, reuse['w3']) + reuse['b3']
    return y, residuals - xm - r


# ---------------------------------------------------------------------------
if __name__ == "__main__":
    key = jax.random.PRNGKey(0)
    k_param, k_y = jax.random.split(key, 2)
    pkeys = jax.random.split(k_param, N_TRI + 1)
    tri_params = [make_tri_params(pkeys[i]) for i in range(N_TRI)]
    reuse_params = make_reuse_params(pkeys[N_TRI])
    kp = pack_kernel_params(tri_params, reuse_params)

    T = N_TIME_IN + N_TIME_OUT
    Y = jax.random.normal(k_y, (BATCH, T), jnp.float32)
    X = jnp.zeros((BATCH, 0, T), jnp.float32)       # n_x = 0
    S = jnp.zeros((BATCH, 0), jnp.float32)          # n_s = 0
    insample_mask = jnp.ones((BATCH, T), jnp.float32)
    outsample_mask = jnp.ones((BATCH, T), jnp.float32)

    fwd = jax.jit(functools.partial(treedrnet_forward, kp=kp))
    outsample_y, forecast, out_mask = fwd(S, Y, X, insample_mask, outsample_mask)
    jax.block_until_ready(forecast)

    # also grab the (discarded-by-the-module) backcast for extra coverage
    residuals = Y[:, :-N_TIME_OUT][:, ::-1]
    fc_k, bc_k = jax.jit(functools.partial(fused_forward, kp=kp))(residuals)
    jax.block_until_ready(fc_k)

    # sanity check against a pure-JAX reference using the same quantization
    fc_ref, bc_ref = reference_forward(residuals, tri_params, reuse_params)

    assert forecast.shape == (BATCH, N_TIME_OUT)
    assert outsample_y.shape == (BATCH, N_TIME_OUT)
    assert out_mask.shape == (BATCH, N_TIME_OUT)
    np.testing.assert_allclose(np.asarray(forecast), np.asarray(fc_ref),
                               rtol=2e-2, atol=2e-2)
    np.testing.assert_allclose(np.asarray(fc_k), np.asarray(fc_ref),
                               rtol=2e-2, atol=2e-2)
    np.testing.assert_allclose(np.asarray(bc_k), np.asarray(bc_ref),
                               rtol=2e-2, atol=3e-2)
    print("KERNEL_OK")
</pallas_src>

<mosaic_0001>
module attributes {stable_mosaic.version = 11 : i64} {
  func.func @fused_kernel(%arg0: memref<4x16xf32, #tpu.memory_space<vmem>>, %arg1: memref<3x16x256xbf16, #tpu.memory_space<vmem>>, %arg2: memref<3x1x256xf32, #tpu.memory_space<vmem>>, %arg3: memref<3x256x256xbf16, #tpu.memory_space<vmem>>, %arg4: memref<3x1x256xf32, #tpu.memory_space<vmem>>, %arg5: memref<3x256x64xbf16, #tpu.memory_space<vmem>>, %arg6: memref<3x1x64xf32, #tpu.memory_space<vmem>>, %arg7: memref<3x4x32x256xbf16, #tpu.memory_space<vmem>>, %arg8: memref<3x4x1x256xf32, #tpu.memory_space<vmem>>, %arg9: memref<3x4x256x256xbf16, #tpu.memory_space<vmem>>, %arg10: memref<3x4x1x256xf32, #tpu.memory_space<vmem>>, %arg11: memref<3x4x256x40xbf16, #tpu.memory_space<vmem>>, %arg12: memref<3x4x1x40xf32, #tpu.memory_space<vmem>>, %arg13: memref<32x16xf32, #tpu.memory_space<vmem>>, %arg14: memref<8x128xbf16, #tpu.memory_space<vmem>>, %arg15: memref<1x128xf32, #tpu.memory_space<vmem>>, %arg16: memref<128x128xbf16, #tpu.memory_space<vmem>>, %arg17: memref<1x128xf32, #tpu.memory_space<vmem>>, %arg18: memref<128x16xbf16, #tpu.memory_space<vmem>>, %arg19: memref<1x16xf32, #tpu.memory_space<vmem>>, %arg20: memref<4x8xf32, #tpu.memory_space<vmem>>, %arg21: memref<4x16xf32, #tpu.memory_space<vmem>>) attributes {dimension_semantics = [], scalar_prefetch = 0 : i64, scratch_operands = 0 : i64, tpu.core_type = #tpu.core_type<tc>} {
    %c0 = arith.constant 0 : index
    %c0_0 = arith.constant 0 : index
    %0 = vector.load %arg0[%c0, %c0_0] : memref<4x16xf32, #tpu.memory_space<vmem>>, vector<4x16xf32>
    %c0_1 = arith.constant 0 : index
    %c0_2 = arith.constant 0 : index
    %1 = vector.load %arg13[%c0_1, %c0_2] : memref<32x16xf32, #tpu.memory_space<vmem>>, vector<32x16xf32>
    %2 = tpu.concatenate %0, %0 in 1 : vector<4x16xf32>, vector<4x16xf32> -> vector<4x32xf32>
    %c0_3 = arith.constant 0 : index
    %c0_4 = arith.constant 0 : index
    %c0_5 = arith.constant 0 : index
    %3 = vector.load %arg1[%c0_3, %c0_4, %c0_5] : memref<3x16x256xbf16, #tpu.memory_space<vmem>>, vector<1x16x256xbf16>
    %4 = vector.shape_cast %3 : vector<1x16x256xbf16> to vector<16x256xbf16>
    %5 = arith.truncf %0 : vector<4x16xf32> to vector<4x16xbf16>
    %cst = arith.constant dense<0.000000e+00> : vector<4x256xf32>
    %6 = tpu.matmul %5, %4, %cst {dimension_numbers = #tpu.dot_dimension_numbers<[1], [0], [0], [1], [0, 0, 1, 1], [], []>} : vector<4x16xbf16>, vector<16x256xbf16>, vector<4x256xf32> -> vector<4x256xf32>
    %c0_6 = arith.constant 0 : index
    %c0_7 = arith.constant 0 : index
    %c0_8 = arith.constant 0 : index
    %7 = vector.load %arg2[%c0_6, %c0_7, %c0_8] : memref<3x1x256xf32, #tpu.memory_space<vmem>>, vector<1x1x256xf32>
    %8 = vector.shape_cast %7 : vector<1x1x256xf32> to vector<1x256xf32>
    %9 = vector.broadcast %8 : vector<1x256xf32> to vector<4x256xf32>
    %10 = arith.addf %6, %9 : vector<4x256xf32>
    %cst_9 = arith.constant 0.000000e+00 : f32
    %11 = vector.broadcast %cst_9 : f32 to vector<4x256xf32>
    %12 = arith.maximumf %10, %11 : vector<4x256xf32>
    %c0_10 = arith.constant 0 : index
    %c0_11 = arith.constant 0 : index
    %c0_12 = arith.constant 0 : index
    %13 = vector.load %arg3[%c0_10, %c0_11, %c0_12] : memref<3x256x256xbf16, #tpu.memory_space<vmem>>, vector<1x256x256xbf16>
    %14 = vector.shape_cast %13 : vector<1x256x256xbf16> to vector<256x256xbf16>
    %15 = arith.truncf %12 : vector<4x256xf32> to vector<4x256xbf16>
    %cst_13 = arith.constant dense<0.000000e+00> : vector<4x256xf32>
    %16 = tpu.matmul %15, %14, %cst_13 {dimension_numbers = #tpu.dot_dimension_numbers<[1], [0], [0], [1], [0, 0, 1, 1], [], []>} : vector<4x256xbf16>, vector<256x256xbf16>, vector<4x256xf32> -> vector<4x256xf32>
    %c0_14 = arith.constant 0 : index
    %c0_15 = arith.constant 0 : index
    %c0_16 = arith.constant 0 : index
    %17 = vector.load %arg4[%c0_14, %c0_15, %c0_16] : memref<3x1x256xf32, #tpu.memory_space<vmem>>, vector<1x1x256xf32>
    %18 = vector.shape_cast %17 : vector<1x1x256xf32> to vector<1x256xf32>
    %19 = vector.broadcast %18 : vector<1x256xf32> to vector<4x256xf32>
    %20 = arith.addf %16, %19 : vector<4x256xf32>
    %cst_17 = arith.constant 0.000000e+00 : f32
    %21 = vector.broadcast %cst_17 : f32 to vector<4x256xf32>
    %22 = arith.maximumf %20, %21 : vector<4x256xf32>
    %c0_18 = arith.constant 0 : index
    %c0_19 = arith.constant 0 : index
    %c0_20 = arith.constant 0 : index
    %23 = vector.load %arg5[%c0_18, %c0_19, %c0_20] : memref<3x256x64xbf16, #tpu.memory_space<vmem>>, vector<1x256x64xbf16>
    %24 = vector.shape_cast %23 : vector<1x256x64xbf16> to vector<256x64xbf16>
    %25 = arith.truncf %22 : vector<4x256xf32> to vector<4x256xbf16>
    %cst_21 = arith.constant dense<0.000000e+00> : vector<4x64xf32>
    %26 = tpu.matmul %25, %24, %cst_21 {dimension_numbers = #tpu.dot_dimension_numbers<[1], [0], [0], [1], [0, 0, 1, 1], [], []>} : vector<4x256xbf16>, vector<256x64xbf16>, vector<4x64xf32> -> vector<4x64xf32>
    %c0_22 = arith.constant 0 : index
    %c0_23 = arith.constant 0 : index
    %c0_24 = arith.constant 0 : index
    %27 = vector.load %arg6[%c0_22, %c0_23, %c0_24] : memref<3x1x64xf32, #tpu.memory_space<vmem>>, vector<1x1x64xf32>
    %28 = vector.shape_cast %27 : vector<1x1x64xf32> to vector<1x64xf32>
    %29 = vector.broadcast %28 : vector<1x64xf32> to vector<4x64xf32>
    %30 = arith.addf %26, %29 : vector<4x64xf32>
    %31 = vector.extract_strided_slice %30 {offsets = [0, 0], sizes = [4, 32], strides = [1, 1]} : vector<4x64xf32> to vector<4x32xf32>
    %32 = vector.extract_strided_slice %30 {offsets = [0, 32], sizes = [4, 32], strides = [1, 1]} : vector<4x64xf32> to vector<4x32xf32>
    %33 = arith.maximumf %31, %32 : vector<4x32xf32>
    %34 = arith.subf %31, %33 : vector<4x32xf32>
    %35 = math.exp %34 : vector<4x32xf32>
    %36 = arith.subf %32, %33 : vector<4x32xf32>
    %37 = math.exp %36 : vector<4x32xf32>
    %38 = arith.addf %35, %37 : vector<4x32xf32>
    %39 = arith.divf %35, %38 : vector<4x32xf32>
    %40 = arith.mulf %2, %39 : vector<4x32xf32>
    %cst_25 = arith.constant 0.000000e+00 : f32
    %41 = vector.broadcast %cst_25 : f32 to vector<4x8xf32>
    %c0_26 = arith.constant 0 : index
    %c0_27 = arith.constant 0 : index
    %c0_28 = arith.constant 0 : index
    %c0_29 = arith.constant 0 : index
    %42 = vector.load %arg7[%c0_26, %c0_27, %c0_28, %c0_29] : memref<3x4x32x256xbf16, #tpu.memory_space<vmem>>, vector<1x1x32x256xbf16>
    %43 = vector.shape_cast %42 : vector<1x1x32x256xbf16> to vector<32x256xbf16>
    %44 = arith.truncf %40 : vector<4x32xf32> to vector<4x32xbf16>
    %cst_30 = arith.constant dense<0.000000e+00> : vector<4x256xf32>
    %45 = tpu.matmul %44, %43, %cst_30 {dimension_numbers = #tpu.dot_dimension_numbers<[1], [0], [0], [1], [0, 0, 1, 1], [], []>} : vector<4x32xbf16>, vector<32x256xbf16>, vector<4x256xf32> -> vector<4x256xf32>
    %c0_31 = arith.constant 0 : index
    %c0_32 = arith.constant 0 : index
    %c0_33 = arith.constant 0 : index
    %c0_34 = arith.constant 0 : index
    %46 = vector.load %arg8[%c0_31, %c0_32, %c0_33, %c0_34] : memref<3x4x1x256xf32, #tpu.memory_space<vmem>>, vector<1x1x1x256xf32>
    %47 = vector.shape_cast %46 : vector<1x1x1x256xf32> to vector<1x256xf32>
    %48 = vector.broadcast %47 : vector<1x256xf32> to vector<4x256xf32>
    %49 = arith.addf %45, %48 : vector<4x256xf32>
    %cst_35 = arith.constant 0.000000e+00 : f32
    %50 = vector.broadcast %cst_35 : f32 to vector<4x256xf32>
    %51 = arith.maximumf %49, %50 : vector<4x256xf32>
    %c0_36 = arith.constant 0 : index
    %c0_37 = arith.constant 0 : index
    %c0_38 = arith.constant 0 : index
    %c0_39 = arith.constant 0 : index
    %52 = vector.load %arg9[%c0_36, %c0_37, %c0_38, %c0_39] : memref<3x4x256x256xbf16, #tpu.memory_space<vmem>>, vector<1x1x256x256xbf16>
    %53 = vector.shape_cast %52 : vector<1x1x256x256xbf16> to vector<256x256xbf16>
    %54 = arith.truncf %51 : vector<4x256xf32> to vector<4x256xbf16>
    %cst_40 = arith.constant dense<0.000000e+00> : vector<4x256xf32>
    %55 = tpu.matmul %54, %53, %cst_40 {dimension_numbers = #tpu.dot_dimension_numbers<[1], [0], [0], [1], [0, 0, 1, 1], [], []>} : vector<4x256xbf16>, vector<256x256xbf16>, vector<4x256xf32> -> vector<4x256xf32>
    %c0_41 = arith.constant 0 : index
    %c0_42 = arith.constant 0 : index
    %c0_43 = arith.constant 0 : index
    %c0_44 = arith.constant 0 : index
    %56 = vector.load %arg10[%c0_41, %c0_42, %c0_43, %c0_44] : memref<3x4x1x256xf32, #tpu.memory_space<vmem>>, vector<1x1x1x256xf32>
    %57 = vector.shape_cast %56 : vector<1x1x1x256xf32> to vector<1x256xf32>
    %58 = vector.broadcast %57 : vector<1x256xf32> to vector<4x256xf32>
    %59 = arith.addf %55, %58 : vector<4x256xf32>
    %cst_45 = arith.constant 0.000000e+00 : f32
    %60 = vector.broadcast %cst_45 : f32 to vector<4x256xf32>
    %61 = arith.maximumf %59, %60 : vector<4x256xf32>
    %c0_46 = arith.constant 0 : index
    %c0_47 = arith.constant 0 : index
    %c0_48 = arith.constant 0 : index
    %c0_49 = arith.constant 0 : index
    %62 = vector.load %arg11[%c0_46, %c0_47, %c0_48, %c0_49] : memref<3x4x256x40xbf16, #tpu.memory_space<vmem>>, vector<1x1x256x40xbf16>
    %63 = vector.shape_cast %62 : vector<1x1x256x40xbf16> to vector<256x40xbf16>
    %64 = arith.truncf %61 : vector<4x256xf32> to vector<4x256xbf16>
    %cst_50 = arith.constant dense<0.000000e+00> : vector<4x40xf32>
    %65 = tpu.matmul %64, %63, %cst_50 {dimension_numbers = #tpu.dot_dimension_numbers<[1], [0], [0], [1], [0, 0, 1, 1], [], []>} : vector<4x256xbf16>, vector<256x40xbf16>, vector<4x40xf32> -> vector<4x40xf32>
    %c0_51 = arith.constant 0 : index
    %c0_52 = arith.constant 0 : index
    %c0_53 = arith.constant 0 : index
    %c0_54 = arith.constant 0 : index
    %66 = vector.load %arg12[%c0_51, %c0_52, %c0_53, %c0_54] : memref<3x4x1x40xf32, #tpu.memory_space<vmem>>, vector<1x1x1x40xf32>
    %67 = vector.shape_cast %66 : vector<1x1x1x40xf32> to vector<1x40xf32>
    %68 = vector.broadcast %67 : vector<1x40xf32> to vector<4x40xf32>
    %69 = arith.addf %65, %68 : vector<4x40xf32>
    %70 = vector.extract_strided_slice %69 {offsets = [0, 0], sizes = [4, 32], strides = [1, 1]} : vector<4x40xf32> to vector<4x32xf32>
    %71 = arith.subf %40, %70 : vector<4x32xf32>
    %72 = vector.extract_strided_slice %69 {offsets = [0, 32], sizes = [4, 8], strides = [1, 1]} : vector<4x40xf32> to vector<4x8xf32>
    %73 = arith.addf %41, %72 : vector<4x8xf32>
    %c0_55 = arith.constant 0 : index
    %c1 = arith.constant 1 : index
    %c0_56 = arith.constant 0 : index
    %c0_57 = arith.constant 0 : index
    %74 = vector.load %arg7[%c0_55, %c1, %c0_56, %c0_57] : memref<3x4x32x256xbf16, #tpu.memory_space<vmem>>, vector<1x1x32x256xbf16>
    %75 = vector.shape_cast %74 : vector<1x1x32x256xbf16> to vector<32x256xbf16>
    %76 = arith.truncf %71 : vector<4x32xf32> to vector<4x32xbf16>
    %cst_58 = arith.constant dense<0.000000e+00> : vector<4x256xf32>
    %77 = tpu.matmul %76, %75, %cst_58 {dimension_numbers = #tpu.dot_dimension_numbers<[1], [0], [0], [1], [0, 0, 1, 1], [], []>} : vector<4x32xbf16>, vector<32x256xbf16>, vector<4x256xf32> -> vector<4x256xf32>
    %c0_59 = arith.constant 0 : index
    %c1_60 = arith.constant 1 : index
    %c0_61 = arith.constant 0 : index
    %c0_62 = arith.constant 0 : index
    %78 = vector.load %arg8[%c0_59, %c1_60, %c0_61, %c0_62] : memref<3x4x1x256xf32, #tpu.memory_space<vmem>>, vector<1x1x1x256xf32>
    %79 = vector.shape_cast %78 : vector<1x1x1x256xf32> to vector<1x256xf32>
    %80 = vector.broadcast %79 : vector<1x256xf32> to vector<4x256xf32>
    %81 = arith.addf %77, %80 : vector<4x256xf32>
    %cst_63 = arith.constant 0.000000e+00 : f32
    %82 = vector.broadcast %cst_63 : f32 to vector<4x256xf32>
    %83 = arith.maximumf %81, %82 : vector<4x256xf32>
    %c0_64 = arith.constant 0 : index
    %c1_65 = arith.constant 1 : index
    %c0_66 = arith.constant 0 : index
    %c0_67 = arith.constant 0 : index
    %84 = vector.load %arg9[%c0_64, %c1_65, %c0_66, %c0_67] : memref<3x4x256x256xbf16, #tpu.memory_space<vmem>>, vector<1x1x256x256xbf16>
    %85 = vector.shape_cast %84 : vector<1x1x256x256xbf16> to vector<256x256xbf16>
    %86 = arith.truncf %83 : vector<4x256xf32> to vector<4x256xbf16>
    %cst_68 = arith.constant dense<0.000000e+00> : vector<4x256xf32>
    %87 = tpu.matmul %86, %85, %cst_68 {dimension_numbers = #tpu.dot_dimension_numbers<[1], [0], [0], [1], [0, 0, 1, 1], [], []>} : vector<4x256xbf16>, vector<256x256xbf16>, vector<4x256xf32> -> vector<4x256xf32>
    %c0_69 = arith.constant 0 : index
    %c1_70 = arith.constant 1 : index
    %c0_71 = arith.constant 0 : index
    %c0_72 = arith.constant 0 : index
    %88 = vector.load %arg10[%c0_69, %c1_70, %c0_71, %c0_72] : memref<3x4x1x256xf32, #tpu.memory_space<vmem>>, vector<1x1x1x256xf32>
    %89 = vector.shape_cast %88 : vector<1x1x1x256xf32> to vector<1x256xf32>
    %90 = vector.broadcast %89 : vector<1x256xf32> to vector<4x256xf32>
    %91 = arith.addf %87, %90 : vector<4x256xf32>
    %cst_73 = arith.constant 0.000000e+00 : f32
    %92 = vector.broadcast %cst_73 : f32 to vector<4x256xf32>
    %93 = arith.maximumf %91, %92 : vector<4x256xf32>
    %c0_74 = arith.constant 0 : index
    %c1_75 = arith.constant 1 : index
    %c0_76 = arith.constant 0 : index
    %c0_77 = arith.constant 0 : index
    %94 = vector.load %arg11[%c0_74, %c1_75, %c0_76, %c0_77] : memref<3x4x256x40xbf16, #tpu.memory_space<vmem>>, vector<1x1x256x40xbf16>
    %95 = vector.shape_cast %94 : vector<1x1x256x40xbf16> to vector<256x40xbf16>
    %96 = arith.truncf %93 : vector<4x256xf32> to vector<4x256xbf16>
    %cst_78 = arith.constant dense<0.000000e+00> : vector<4x40xf32>
    %97 = tpu.matmul %96, %95, %cst_78 {dimension_numbers = #tpu.dot_dimension_numbers<[1], [0], [0], [1], [0, 0, 1, 1], [], []>} : vector<4x256xbf16>, vector<256x40xbf16>, vector<4x40xf32> -> vector<4x40xf32>
    %c0_79 = arith.constant 0 : index
    %c1_80 = arith.constant 1 : index
    %c0_81 = arith.constant 0 : index
    %c0_82 = arith.constant 0 : index
    %98 = vector.load %arg12[%c0_79, %c1_80, %c0_81, %c0_82] : memref<3x4x1x40xf32, #tpu.memory_space<vmem>>, vector<1x1x1x40xf32>
    %99 = vector.shape_cast %98 : vector<1x1x1x40xf32> to vector<1x40xf32>
    %100 = vector.broadcast %99 : vector<1x40xf32> to vector<4x40xf32>
    %101 = arith.addf %97, %100 : vector<4x40xf32>
    %102 = vector.extract_strided_slice %101 {offsets = [0, 0], sizes = [4, 32], strides = [1, 1]} : vector<4x40xf32> to vector<4x32xf32>
    %103 = arith.subf %71, %102 : vector<4x32xf32>
    %104 = vector.extract_strided_slice %101 {offsets = [0, 32], sizes = [4, 8], strides = [1, 1]} : vector<4x40xf32> to vector<4x8xf32>
    %105 = arith.addf %73, %104 : vector<4x8xf32>
    %c0_83 = arith.constant 0 : index
    %c2 = arith.constant 2 : index
    %c0_84 = arith.constant 0 : index
    %c0_85 = arith.constant 0 : index
    %106 = vector.load %arg7[%c0_83, %c2, %c0_84, %c0_85] : memref<3x4x32x256xbf16, #tpu.memory_space<vmem>>, vector<1x1x32x256xbf16>
    %107 = vector.shape_cast %106 : vector<1x1x32x256xbf16> to vector<32x256xbf16>
    %108 = arith.truncf %103 : vector<4x32xf32> to vector<4x32xbf16>
    %cst_86 = arith.constant dense<0.000000e+00> : vector<4x256xf32>
    %109 = tpu.matmul %108, %107, %cst_86 {dimension_numbers = #tpu.dot_dimension_numbers<[1], [0], [0], [1], [0, 0, 1, 1], [], []>} : vector<4x32xbf16>, vector<32x256xbf16>, vector<4x256xf32> -> vector<4x256xf32>
    %c0_87 = arith.constant 0 : index
    %c2_88 = arith.constant 2 : index
    %c0_89 = arith.constant 0 : index
    %c0_90 = arith.constant 0 : index
    %110 = vector.load %arg8[%c0_87, %c2_88, %c0_89, %c0_90] : memref<3x4x1x256xf32, #tpu.memory_space<vmem>>, vector<1x1x1x256xf32>
    %111 = vector.shape_cast %110 : vector<1x1x1x256xf32> to vector<1x256xf32>
    %112 = vector.broadcast %111 : vector<1x256xf32> to vector<4x256xf32>
    %113 = arith.addf %109, %112 : vector<4x256xf32>
    %cst_91 = arith.constant 0.000000e+00 : f32
    %114 = vector.broadcast %cst_91 : f32 to vector<4x256xf32>
    %115 = arith.maximumf %113, %114 : vector<4x256xf32>
    %c0_92 = arith.constant 0 : index
    %c2_93 = arith.constant 2 : index
    %c0_94 = arith.constant 0 : index
    %c0_95 = arith.constant 0 : index
    %116 = vector.load %arg9[%c0_92, %c2_93, %c0_94, %c0_95] : memref<3x4x256x256xbf16, #tpu.memory_space<vmem>>, vector<1x1x256x256xbf16>
    %117 = vector.shape_cast %116 : vector<1x1x256x256xbf16> to vector<256x256xbf16>
    %118 = arith.truncf %115 : vector<4x256xf32> to vector<4x256xbf16>
    %cst_96 = arith.constant dense<0.000000e+00> : vector<4x256xf32>
    %119 = tpu.matmul %118, %117, %cst_96 {dimension_numbers = #tpu.dot_dimension_numbers<[1], [0], [0], [1], [0, 0, 1, 1], [], []>} : vector<4x256xbf16>, vector<256x256xbf16>, vector<4x256xf32> -> vector<4x256xf32>
    %c0_97 = arith.constant 0 : index
    %c2_98 = arith.constant 2 : index
    %c0_99 = arith.constant 0 : index
    %c0_100 = arith.constant 0 : index
    %120 = vector.load %arg10[%c0_97, %c2_98, %c0_99, %c0_100] : memref<3x4x1x256xf32, #tpu.memory_space<vmem>>, vector<1x1x1x256xf32>
    %121 = vector.shape_cast %120 : vector<1x1x1x256xf32> to vector<1x256xf32>
    %122 = vector.broadcast %121 : vector<1x256xf32> to vector<4x256xf32>
    %123 = arith.addf %119, %122 : vector<4x256xf32>
    %cst_101 = arith.constant 0.000000e+00 : f32
    %124 = vector.broadcast %cst_101 : f32 to vector<4x256xf32>
    %125 = arith.maximumf %123, %124 : vector<4x256xf32>
    %c0_102 = arith.constant 0 : index
    %c2_103 = arith.constant 2 : index
    %c0_104 = arith.constant 0 : index
    %c0_105 = arith.constant 0 : index
    %126 = vector.load %arg11[%c0_102, %c2_103, %c0_104, %c0_105] : memref<3x4x256x40xbf16, #tpu.memory_space<vmem>>, vector<1x1x256x40xbf16>
    %127 = vector.shape_cast %126 : vector<1x1x256x40xbf16> to vector<256x40xbf16>
    %128 = arith.truncf %125 : vector<4x256xf32> to vector<4x256xbf16>
    %cst_106 = arith.constant dense<0.000000e+00> : vector<4x40xf32>
    %129 = tpu.matmul %128, %127, %cst_106 {dimension_numbers = #tpu.dot_dimension_numbers<[1], [0], [0], [1], [0, 0, 1, 1], [], []>} : vector<4x256xbf16>, vector<256x40xbf16>, vector<4x40xf32> -> vector<4x40xf32>
    %c0_107 = arith.constant 0 : index
    %c2_108 = arith.constant 2 : index
    %c0_109 = arith.constant 0 : index
    %c0_110 = arith.constant 0 : index
    %130 = vector.load %arg12[%c0_107, %c2_108, %c0_109, %c0_110] : memref<3x4x1x40xf32, #tpu.memory_space<vmem>>, vector<1x1x1x40xf32>
    %131 = vector.shape_cast %130 : vector<1x1x1x40xf32> to vector<1x40xf32>
    %132 = vector.broadcast %131 : vector<1x40xf32> to vector<4x40xf32>
    %133 = arith.addf %129, %132 : vector<4x40xf32>
    %134 = vector.extract_strided_slice %133 {offsets = [0, 0], sizes = [4, 32], strides = [1, 1]} : vector<4x40xf32> to vector<4x32xf32>
    %135 = arith.subf %103, %134 : vector<4x32xf32>
    %136 = vector.extract_strided_slice %133 {offsets = [0, 32], sizes = [4, 8], strides = [1, 1]} : vector<4x40xf32> to vector<4x8xf32>
    %137 = arith.addf %105, %136 : vector<4x8xf32>
    %c0_111 = arith.constant 0 : index
    %c3 = arith.constant 3 : index
    %c0_112 = arith.constant 0 : index
    %c0_113 = arith.constant 0 : index
    %138 = vector.load %arg7[%c0_111, %c3, %c0_112, %c0_113] : memref<3x4x32x256xbf16, #tpu.memory_space<vmem>>, vector<1x1x32x256xbf16>
    %139 = vector.shape_cast %138 : vector<1x1x32x256xbf16> to vector<32x256xbf16>
    %140 = arith.truncf %135 : vector<4x32xf32> to vector<4x32xbf16>
    %cst_114 = arith.constant dense<0.000000e+00> : vector<4x256xf32>
    %141 = tpu.matmul %140, %139, %cst_114 {dimension_numbers = #tpu.dot_dimension_numbers<[1], [0], [0], [1], [0, 0, 1, 1], [], []>} : vector<4x32xbf16>, vector<32x256xbf16>, vector<4x256xf32> -> vector<4x256xf32>
    %c0_115 = arith.constant 0 : index
    %c3_116 = arith.constant 3 : index
    %c0_117 = arith.constant 0 : index
    %c0_118 = arith.constant 0 : index
    %142 = vector.load %arg8[%c0_115, %c3_116, %c0_117, %c0_118] : memref<3x4x1x256xf32, #tpu.memory_space<vmem>>, vector<1x1x1x256xf32>
    %143 = vector.shape_cast %142 : vector<1x1x1x256xf32> to vector<1x256xf32>
    %144 = vector.broadcast %143 : vector<1x256xf32> to vector<4x256xf32>
    %145 = arith.addf %141, %144 : vector<4x256xf32>
    %cst_119 = arith.constant 0.000000e+00 : f32
    %146 = vector.broadcast %cst_119 : f32 to vector<4x256xf32>
    %147 = arith.maximumf %145, %146 : vector<4x256xf32>
    %c0_120 = arith.constant 0 : index
    %c3_121 = arith.constant 3 : index
    %c0_122 = arith.constant 0 : index
    %c0_123 = arith.constant 0 : index
    %148 = vector.load %arg9[%c0_120, %c3_121, %c0_122, %c0_123] : memref<3x4x256x256xbf16, #tpu.memory_space<vmem>>, vector<1x1x256x256xbf16>
    %149 = vector.shape_cast %148 : vector<1x1x256x256xbf16> to vector<256x256xbf16>
    %150 = arith.truncf %147 : vector<4x256xf32> to vector<4x256xbf16>
    %cst_124 = arith.constant dense<0.000000e+00> : vector<4x256xf32>
    %151 = tpu.matmul %150, %149, %cst_124 {dimension_numbers = #tpu.dot_dimension_numbers<[1], [0], [0], [1], [0, 0, 1, 1], [], []>} : vector<4x256xbf16>, vector<256x256xbf16>, vector<4x256xf32> -> vector<4x256xf32>
    %c0_125 = arith.constant 0 : index
    %c3_126 = arith.constant 3 : index
    %c0_127 = arith.constant 0 : index
    %c0_128 = arith.constant 0 : index
    %152 = vector.load %arg10[%c0_125, %c3_126, %c0_127, %c0_128] : memref<3x4x1x256xf32, #tpu.memory_space<vmem>>, vector<1x1x1x256xf32>
    %153 = vector.shape_cast %152 : vector<1x1x1x256xf32> to vector<1x256xf32>
    %154 = vector.broadcast %153 : vector<1x256xf32> to vector<4x256xf32>
    %155 = arith.addf %151, %154 : vector<4x256xf32>
    %cst_129 = arith.constant 0.000000e+00 : f32
    %156 = vector.broadcast %cst_129 : f32 to vector<4x256xf32>
    %157 = arith.maximumf %155, %156 : vector<4x256xf32>
    %c0_130 = arith.constant 0 : index
    %c3_131 = arith.constant 3 : index
    %c0_132 = arith.constant 0 : index
    %c0_133 = arith.constant 0 : index
    %158 = vector.load %arg11[%c0_130, %c3_131, %c0_132, %c0_133] : memref<3x4x256x40xbf16, #tpu.memory_space<vmem>>, vector<1x1x256x40xbf16>
    %159 = vector.shape_cast %158 : vector<1x1x256x40xbf16> to vector<256x40xbf16>
    %160 = arith.truncf %157 : vector<4x256xf32> to vector<4x256xbf16>
    %cst_134 = arith.constant dense<0.000000e+00> : vector<4x40xf32>
    %161 = tpu.matmul %160, %159, %cst_134 {dimension_numbers = #tpu.dot_dimension_numbers<[1], [0], [0], [1], [0, 0, 1, 1], [], []>} : vector<4x256xbf16>, vector<256x40xbf16>, vector<4x40xf32> -> vector<4x40xf32>
    %c0_135 = arith.constant 0 : index
    %c3_136 = arith.constant 3 : index
    %c0_137 = arith.constant 0 : index
    %c0_138 = arith.constant 0 : index
    %162 = vector.load %arg12[%c0_135, %c3_136, %c0_137, %c0_138] : memref<3x4x1x40xf32, #tpu.memory_space<vmem>>, vector<1x1x1x40xf32>
    %163 = vector.shape_cast %162 : vector<1x1x1x40xf32> to vector<1x40xf32>
    %164 = vector.broadcast %163 : vector<1x40xf32> to vector<4x40xf32>
    %165 = arith.addf %161, %164 : vector<4x40xf32>
    %166 = vector.extract_strided_slice %165 {offsets = [0, 0], sizes = [4, 32], strides = [1, 1]} : vector<4x40xf32> to vector<4x32xf32>
    %167 = arith.subf %135, %166 : vector<4x32xf32>
    %168 = vector.extract_strided_slice %165 {offsets = [0, 32], sizes = [4, 8], strides = [1, 1]} : vector<4x40xf32> to vector<4x8xf32>
    %169 = arith.addf %137, %168 : vector<4x8xf32>
    %cst_139 = arith.constant dense<0.000000e+00> : vector<4x16xf32>
    %170 = tpu.matmul %167, %1, %cst_139 {dimension_numbers = #tpu.dot_dimension_numbers<[1], [0], [0], [1], [0, 0, 1, 1], [], []>} : vector<4x32xf32>, vector<32x16xf32>, vector<4x16xf32> -> vector<4x16xf32>
    %cst_140 = arith.constant 1.250000e-01 : f32
    %171 = vector.broadcast %cst_140 : f32 to vector<4x16xf32>
    %172 = arith.mulf %170, %171 : vector<4x16xf32>
    %173 = tpu.concatenate %172, %172 in 1 : vector<4x16xf32>, vector<4x16xf32> -> vector<4x32xf32>
    %c1_141 = arith.constant 1 : index
    %c0_142 = arith.constant 0 : index
    %c0_143 = arith.constant 0 : index
    %174 = vector.load %arg1[%c1_141, %c0_142, %c0_143] : memref<3x16x256xbf16, #tpu.memory_space<vmem>>, vector<1x16x256xbf16>
    %175 = vector.shape_cast %174 : vector<1x16x256xbf16> to vector<16x256xbf16>
    %176 = arith.truncf %172 : vector<4x16xf32> to vector<4x16xbf16>
    %cst_144 = arith.constant dense<0.000000e+00> : vector<4x256xf32>
    %177 = tpu.matmul %176, %175, %cst_144 {dimension_numbers = #tpu.dot_dimension_numbers<[1], [0], [0], [1], [0, 0, 1, 1], [], []>} : vector<4x16xbf16>, vector<16x256xbf16>, vector<4x256xf32> -> vector<4x256xf32>
    %c1_145 = arith.constant 1 : index
    %c0_146 = arith.constant 0 : index
    %c0_147 = arith.constant 0 : index
    %178 = vector.load %arg2[%c1_145, %c0_146, %c0_147] : memref<3x1x256xf32, #tpu.memory_space<vmem>>, vector<1x1x256xf32>
    %179 = vector.shape_cast %178 : vector<1x1x256xf32> to vector<1x256xf32>
    %180 = vector.broadcast %179 : vector<1x256xf32> to vector<4x256xf32>
    %181 = arith.addf %177, %180 : vector<4x256xf32>
    %cst_148 = arith.constant 0.000000e+00 : f32
    %182 = vector.broadcast %cst_148 : f32 to vector<4x256xf32>
    %183 = arith.maximumf %181, %182 : vector<4x256xf32>
    %c1_149 = arith.constant 1 : index
    %c0_150 = arith.constant 0 : index
    %c0_151 = arith.constant 0 : index
    %184 = vector.load %arg3[%c1_149, %c0_150, %c0_151] : memref<3x256x256xbf16, #tpu.memory_space<vmem>>, vector<1x256x256xbf16>
    %185 = vector.shape_cast %184 : vector<1x256x256xbf16> to vector<256x256xbf16>
    %186 = arith.truncf %183 : vector<4x256xf32> to vector<4x256xbf16>
    %cst_152 = arith.constant dense<0.000000e+00> : vector<4x256xf32>
    %187 = tpu.matmul %186, %185, %cst_152 {dimension_numbers = #tpu.dot_dimension_numbers<[1], [0], [0], [1], [0, 0, 1, 1], [], []>} : vector<4x256xbf16>, vector<256x256xbf16>, vector<4x256xf32> -> vector<4x256xf32>
    %c1_153 = arith.constant 1 : index
    %c0_154 = arith.constant 0 : index
    %c0_155 = arith.constant 0 : index
    %188 = vector.load %arg4[%c1_153, %c0_154, %c0_155] : memref<3x1x256xf32, #tpu.memory_space<vmem>>, vector<1x1x256xf32>
    %189 = vector.shape_cast %188 : vector<1x1x256xf32> to vector<1x256xf32>
    %190 = vector.broadcast %189 : vector<1x256xf32> to vector<4x256xf32>
    %191 = arith.addf %187, %190 : vector<4x256xf32>
    %cst_156 = arith.constant 0.000000e+00 : f32
    %192 = vector.broadcast %cst_156 : f32 to vector<4x256xf32>
    %193 = arith.maximumf %191, %192 : vector<4x256xf32>
    %c1_157 = arith.constant 1 : index
    %c0_158 = arith.constant 0 : index
    %c0_159 = arith.constant 0 : index
    %194 = vector.load %arg5[%c1_157, %c0_158, %c0_159] : memref<3x256x64xbf16, #tpu.memory_space<vmem>>, vector<1x256x64xbf16>
    %195 = vector.shape_cast %194 : vector<1x256x64xbf16> to vector<256x64xbf16>
    %196 = arith.truncf %193 : vector<4x256xf32> to vector<4x256xbf16>
    %cst_160 = arith.constant dense<0.000000e+00> : vector<4x64xf32>
    %197 = tpu.matmul %196, %195, %cst_160 {dimension_numbers = #tpu.dot_dimension_numbers<[1], [0], [0], [1], [0, 0, 1, 1], [], []>} : vector<4x256xbf16>, vector<256x64xbf16>, vector<4x64xf32> -> vector<4x64xf32>
    %c1_161 = arith.constant 1 : index
    %c0_162 = arith.constant 0 : index
    %c0_163 = arith.constant 0 : index
    %198 = vector.load %arg6[%c1_161, %c0_162, %c0_163] : memref<3x1x64xf32, #tpu.memory_space<vmem>>, vector<1x1x64xf32>
    %199 = vector.shape_cast %198 : vector<1x1x64xf32> to vector<1x64xf32>
    %200 = vector.broadcast %199 : vector<1x64xf32> to vector<4x64xf32>
    %201 = arith.addf %197, %200 : vector<4x64xf32>
    %202 = vector.extract_strided_slice %201 {offsets = [0, 0], sizes = [4, 32], strides = [1, 1]} : vector<4x64xf32> to vector<4x32xf32>
    %203 = vector.extract_strided_slice %201 {offsets = [0, 32], sizes = [4, 32], strides = [1, 1]} : vector<4x64xf32> to vector<4x32xf32>
    %204 = arith.maximumf %202, %203 : vector<4x32xf32>
    %205 = arith.subf %202, %204 : vector<4x32xf32>
    %206 = math.exp %205 : vector<4x32xf32>
    %207 = arith.subf %203, %204 : vector<4x32xf32>
    %208 = math.exp %207 : vector<4x32xf32>
    %209 = arith.addf %206, %208 : vector<4x32xf32>
    %210 = arith.divf %206, %209 : vector<4x32xf32>
    %211 = arith.mulf %173, %210 : vector<4x32xf32>
    %cst_164 = arith.constant 0.000000e+00 : f32
    %212 = vector.broadcast %cst_164 : f32 to vector<4x8xf32>
    %c1_165 = arith.constant 1 : index
    %c0_166 = arith.constant 0 : index
    %c0_167 = arith.constant 0 : index
    %c0_168 = arith.constant 0 : index
    %213 = vector.load %arg7[%c1_165, %c0_166, %c0_167, %c0_168] : memref<3x4x32x256xbf16, #tpu.memory_space<vmem>>, vector<1x1x32x256xbf16>
    %214 = vector.shape_cast %213 : vector<1x1x32x256xbf16> to vector<32x256xbf16>
    %215 = arith.truncf %211 : vector<4x32xf32> to vector<4x32xbf16>
    %cst_169 = arith.constant dense<0.000000e+00> : vector<4x256xf32>
    %216 = tpu.matmul %215, %214, %cst_169 {dimension_numbers = #tpu.dot_dimension_numbers<[1], [0], [0], [1], [0, 0, 1, 1], [], []>} : vector<4x32xbf16>, vector<32x256xbf16>, vector<4x256xf32> -> vector<4x256xf32>
    %c1_170 = arith.constant 1 : index
    %c0_171 = arith.constant 0 : index
    %c0_172 = arith.constant 0 : index
    %c0_173 = arith.constant 0 : index
    %217 = vector.load %arg8[%c1_170, %c0_171, %c0_172, %c0_173] : memref<3x4x1x256xf32, #tpu.memory_space<vmem>>, vector<1x1x1x256xf32>
    %218 = vector.shape_cast %217 : vector<1x1x1x256xf32> to vector<1x256xf32>
    %219 = vector.broadcast %218 : vector<1x256xf32> to vector<4x256xf32>
    %220 = arith.addf %216, %219 : vector<4x256xf32>
    %cst_174 = arith.constant 0.000000e+00 : f32
    %221 = vector.broadcast %cst_174 : f32 to vector<4x256xf32>
    %222 = arith.maximumf %220, %221 : vector<4x256xf32>
    %c1_175 = arith.constant 1 : index
    %c0_176 = arith.constant 0 : index
    %c0_177 = arith.constant 0 : index
    %c0_178 = arith.constant 0 : index
    %223 = vector.load %arg9[%c1_175, %c0_176, %c0_177, %c0_178] : memref<3x4x256x256xbf16, #tpu.memory_space<vmem>>, vector<1x1x256x256xbf16>
    %224 = vector.shape_cast %223 : vector<1x1x256x256xbf16> to vector<256x256xbf16>
    %225 = arith.truncf %222 : vector<4x256xf32> to vector<4x256xbf16>
    %cst_179 = arith.constant dense<0.000000e+00> : vector<4x256xf32>
    %226 = tpu.matmul %225, %224, %cst_179 {dimension_numbers = #tpu.dot_dimension_numbers<[1], [0], [0], [1], [0, 0, 1, 1], [], []>} : vector<4x256xbf16>, vector<256x256xbf16>, vector<4x256xf32> -> vector<4x256xf32>
    %c1_180 = arith.constant 1 : index
    %c0_181 = arith.constant 0 : index
    %c0_182 = arith.constant 0 : index
    %c0_183 = arith.constant 0 : index
    %227 = vector.load %arg10[%c1_180, %c0_181, %c0_182, %c0_183] : memref<3x4x1x256xf32, #tpu.memory_space<vmem>>, vector<1x1x1x256xf32>
    %228 = vector.shape_cast %227 : vector<1x1x1x256xf32> to vector<1x256xf32>
    %229 = vector.broadcast %228 : vector<1x256xf32> to vector<4x256xf32>
    %230 = arith.addf %226, %229 : vector<4x256xf32>
    %cst_184 = arith.constant 0.000000e+00 : f32
    %231 = vector.broadcast %cst_184 : f32 to vector<4x256xf32>
    %232 = arith.maximumf %230, %231 : vector<4x256xf32>
    %c1_185 = arith.constant 1 : index
    %c0_186 = arith.constant 0 : index
    %c0_187 = arith.constant 0 : index
    %c0_188 = arith.constant 0 : index
    %233 = vector.load %arg11[%c1_185, %c0_186, %c0_187, %c0_188] : memref<3x4x256x40xbf16, #tpu.memory_space<vmem>>, vector<1x1x256x40xbf16>
    %234 = vector.shape_cast %233 : vector<1x1x256x40xbf16> to vector<256x40xbf16>
    %235 = arith.truncf %232 : vector<4x256xf32> to vector<4x256xbf16>
    %cst_189 = arith.constant dense<0.000000e+00> : vector<4x40xf32>
    %236 = tpu.matmul %235, %234, %cst_189 {dimension_numbers = #tpu.dot_dimension_numbers<[1], [0], [0], [1], [0, 0, 1, 1], [], []>} : vector<4x256xbf16>, vector<256x40xbf16>, vector<4x40xf32> -> vector<4x40xf32>
    %c1_190 = arith.constant 1 : index
    %c0_191 = arith.constant 0 : index
    %c0_192 = arith.constant 0 : index
    %c0_193 = arith.constant 0 : index
    %237 = vector.load %arg12[%c1_190, %c0_191, %c0_192, %c0_193] : memref<3x4x1x40xf32, #tpu.memory_space<vmem>>, vector<1x1x1x40xf32>
    %238 = vector.shape_cast %237 : vector<1x1x1x40xf32> to vector<1x40xf32>
    %239 = vector.broadcast %238 : vector<1x40xf32> to vector<4x40xf32>
    %240 = arith.addf %236, %239 : vector<4x40xf32>
    %241 = vector.extract_strided_slice %240 {offsets = [0, 0], sizes = [4, 32], strides = [1, 1]} : vector<4x40xf32> to vector<4x32xf32>
    %242 = arith.subf %211, %241 : vector<4x32xf32>
    %243 = vector.extract_strided_slice %240 {offsets = [0, 32], sizes = [4, 8], strides = [1, 1]} : vector<4x40xf32> to vector<4x8xf32>
    %244 = arith.addf %212, %243 : vector<4x8xf32>
    %c1_194 = arith.constant 1 : index
    %c1_195 = arith.constant 1 : index
    %c0_196 = arith.constant 0 : index
    %c0_197 = arith.constant 0 : index
    %245 = vector.load %arg7[%c1_194, %c1_195, %c0_196, %c0_197] : memref<3x4x32x256xbf16, #tpu.memory_space<vmem>>, vector<1x1x32x256xbf16>
    %246 = vector.shape_cast %245 : vector<1x1x32x256xbf16> to vector<32x256xbf16>
    %247 = arith.truncf %242 : vector<4x32xf32> to vector<4x32xbf16>
    %cst_198 = arith.constant dense<0.000000e+00> : vector<4x256xf32>
    %248 = tpu.matmul %247, %246, %cst_198 {dimension_numbers = #tpu.dot_dimension_numbers<[1], [0], [0], [1], [0, 0, 1, 1], [], []>} : vector<4x32xbf16>, vector<32x256xbf16>, vector<4x256xf32> -> vector<4x256xf32>
    %c1_199 = arith.constant 1 : index
    %c1_200 = arith.constant 1 : index
    %c0_201 = arith.constant 0 : index
    %c0_202 = arith.constant 0 : index
    %249 = vector.load %arg8[%c1_199, %c1_200, %c0_201, %c0_202] : memref<3x4x1x256xf32, #tpu.memory_space<vmem>>, vector<1x1x1x256xf32>
    %250 = vector.shape_cast %249 : vector<1x1x1x256xf32> to vector<1x256xf32>
    %251 = vector.broadcast %250 : vector<1x256xf32> to vector<4x256xf32>
    %252 = arith.addf %248, %251 : vector<4x256xf32>
    %cst_203 = arith.constant 0.000000e+00 : f32
    %253 = vector.broadcast %cst_203 : f32 to vector<4x256xf32>
    %254 = arith.maximumf %252, %253 : vector<4x256xf32>
    %c1_204 = arith.constant 1 : index
    %c1_205 = arith.constant 1 : index
    %c0_206 = arith.constant 0 : index
    %c0_207 = arith.constant 0 : index
    %255 = vector.load %arg9[%c1_204, %c1_205, %c0_206, %c0_207] : memref<3x4x256x256xbf16, #tpu.memory_space<vmem>>, vector<1x1x256x256xbf16>
    %256 = vector.shape_cast %255 : vector<1x1x256x256xbf16> to vector<256x256xbf16>
    %257 = arith.truncf %254 : vector<4x256xf32> to vector<4x256xbf16>
    %cst_208 = arith.constant dense<0.000000e+00> : vector<4x256xf32>
    %258 = tpu.matmul %257, %256, %cst_208 {dimension_numbers = #tpu.dot_dimension_numbers<[1], [0], [0], [1], [0, 0, 1, 1], [], []>} : vector<4x256xbf16>, vector<256x256xbf16>, vector<4x256xf32> -> vector<4x256xf32>
    %c1_209 = arith.constant 1 : index
    %c1_210 = arith.constant 1 : index
    %c0_211 = arith.constant 0 : index
    %c0_212 = arith.constant 0 : index
    %259 = vector.load %arg10[%c1_209, %c1_210, %c0_211, %c0_212] : memref<3x4x1x256xf32, #tpu.memory_space<vmem>>, vector<1x1x1x256xf32>
    %260 = vector.shape_cast %259 : vector<1x1x1x256xf32> to vector<1x256xf32>
    %261 = vector.broadcast %260 : vector<1x256xf32> to vector<4x256xf32>
    %262 = arith.addf %258, %261 : vector<4x256xf32>
    %cst_213 = arith.constant 0.000000e+00 : f32
    %263 = vector.broadcast %cst_213 : f32 to vector<4x256xf32>
    %264 = arith.maximumf %262, %263 : vector<4x256xf32>
    %c1_214 = arith.constant 1 : index
    %c1_215 = arith.constant 1 : index
    %c0_216 = arith.constant 0 : index
    %c0_217 = arith.constant 0 : index
    %265 = vector.load %arg11[%c1_214, %c1_215, %c0_216, %c0_217] : memref<3x4x256x40xbf16, #tpu.memory_space<vmem>>, vector<1x1x256x40xbf16>
    %266 = vector.shape_cast %265 : vector<1x1x256x40xbf16> to vector<256x40xbf16>
    %267 = arith.truncf %264 : vector<4x256xf32> to vector<4x256xbf16>
    %cst_218 = arith.constant dense<0.000000e+00> : vector<4x40xf32>
    %268 = tpu.matmul %267, %266, %cst_218 {dimension_numbers = #tpu.dot_dimension_numbers<[1], [0], [0], [1], [0, 0, 1, 1], [], []>} : vector<4x256xbf16>, vector<256x40xbf16>, vector<4x40xf32> -> vector<4x40xf32>
    %c1_219 = arith.constant 1 : index
    %c1_220 = arith.constant 1 : index
    %c0_221 = arith.constant 0 : index
    %c0_222 = arith.constant 0 : index
    %269 = vector.load %arg12[%c1_219, %c1_220, %c0_221, %c0_222] : memref<3x4x1x40xf32, #tpu.memory_space<vmem>>, vector<1x1x1x40xf32>
    %270 = vector.shape_cast %269 : vector<1x1x1x40xf32> to vector<1x40xf32>
    %271 = vector.broadcast %270 : vector<1x40xf32> to vector<4x40xf32>
    %272 = arith.addf %268, %271 : vector<4x40xf32>
    %273 = vector.extract_strided_slice %272 {offsets = [0, 0], sizes = [4, 32], strides = [1, 1]} : vector<4x40xf32> to vector<4x32xf32>
    %274 = arith.subf %242, %273 : vector<4x32xf32>
    %275 = vector.extract_strided_slice %272 {offsets = [0, 32], sizes = [4, 8], strides = [1, 1]} : vector<4x40xf32> to vector<4x8xf32>
    %276 = arith.addf %244, %275 : vector<4x8xf32>
    %c1_223 = arith.constant 1 : index
    %c2_224 = arith.constant 2 : index
    %c0_225 = arith.constant 0 : index
    %c0_226 = arith.constant 0 : index
    %277 = vector.load %arg7[%c1_223, %c2_224, %c0_225, %c0_226] : memref<3x4x32x256xbf16, #tpu.memory_space<vmem>>, vector<1x1x32x256xbf16>
    %278 = vector.shape_cast %277 : vector<1x1x32x256xbf16> to vector<32x256xbf16>
    %279 = arith.truncf %274 : vector<4x32xf32> to vector<4x32xbf16>
    %cst_227 = arith.constant dense<0.000000e+00> : vector<4x256xf32>
    %280 = tpu.matmul %279, %278, %cst_227 {dimension_numbers = #tpu.dot_dimension_numbers<[1], [0], [0], [1], [0, 0, 1, 1], [], []>} : vector<4x32xbf16>, vector<32x256xbf16>, vector<4x256xf32> -> vector<4x256xf32>
    %c1_228 = arith.constant 1 : index
    %c2_229 = arith.constant 2 : index
    %c0_230 = arith.constant 0 : index
    %c0_231 = arith.constant 0 : index
    %281 = vector.load %arg8[%c1_228, %c2_229, %c0_230, %c0_231] : memref<3x4x1x256xf32, #tpu.memory_space<vmem>>, vector<1x1x1x256xf32>
    %282 = vector.shape_cast %281 : vector<1x1x1x256xf32> to vector<1x256xf32>
    %283 = vector.broadcast %282 : vector<1x256xf32> to vector<4x256xf32>
    %284 = arith.addf %280, %283 : vector<4x256xf32>
    %cst_232 = arith.constant 0.000000e+00 : f32
    %285 = vector.broadcast %cst_232 : f32 to vector<4x256xf32>
    %286 = arith.maximumf %284, %285 : vector<4x256xf32>
    %c1_233 = arith.constant 1 : index
    %c2_234 = arith.constant 2 : index
    %c0_235 = arith.constant 0 : index
    %c0_236 = arith.constant 0 : index
    %287 = vector.load %arg9[%c1_233, %c2_234, %c0_235, %c0_236] : memref<3x4x256x256xbf16, #tpu.memory_space<vmem>>, vector<1x1x256x256xbf16>
    %288 = vector.shape_cast %287 : vector<1x1x256x256xbf16> to vector<256x256xbf16>
    %289 = arith.truncf %286 : vector<4x256xf32> to vector<4x256xbf16>
    %cst_237 = arith.constant dense<0.000000e+00> : vector<4x256xf32>
    %290 = tpu.matmul %289, %288, %cst_237 {dimension_numbers = #tpu.dot_dimension_numbers<[1], [0], [0], [1], [0, 0, 1, 1], [], []>} : vector<4x256xbf16>, vector<256x256xbf16>, vector<4x256xf32> -> vector<4x256xf32>
    %c1_238 = arith.constant 1 : index
    %c2_239 = arith.constant 2 : index
    %c0_240 = arith.constant 0 : index
    %c0_241 = arith.constant 0 : index
    %291 = vector.load %arg10[%c1_238, %c2_239, %c0_240, %c0_241] : memref<3x4x1x256xf32, #tpu.memory_space<vmem>>, vector<1x1x1x256xf32>
    %292 = vector.shape_cast %291 : vector<1x1x1x256xf32> to vector<1x256xf32>
    %293 = vector.broadcast %292 : vector<1x256xf32> to vector<4x256xf32>
    %294 = arith.addf %290, %293 : vector<4x256xf32>
    %cst_242 = arith.constant 0.000000e+00 : f32
    %295 = vector.broadcast %cst_242 : f32 to vector<4x256xf32>
    %296 = arith.maximumf %294, %295 : vector<4x256xf32>
    %c1_243 = arith.constant 1 : index
    %c2_244 = arith.constant 2 : index
    %c0_245 = arith.constant 0 : index
    %c0_246 = arith.constant 0 : index
    %297 = vector.load %arg11[%c1_243, %c2_244, %c0_245, %c0_246] : memref<3x4x256x40xbf16, #tpu.memory_space<vmem>>, vector<1x1x256x40xbf16>
    %298 = vector.shape_cast %297 : vector<1x1x256x40xbf16> to vector<256x40xbf16>
    %299 = arith.truncf %296 : vector<4x256xf32> to vector<4x256xbf16>
    %cst_247 = arith.constant dense<0.000000e+00> : vector<4x40xf32>
    %300 = tpu.matmul %299, %298, %cst_247 {dimension_numbers = #tpu.dot_dimension_numbers<[1], [0], [0], [1], [0, 0, 1, 1], [], []>} : vector<4x256xbf16>, vector<256x40xbf16>, vector<4x40xf32> -> vector<4x40xf32>
    %c1_248 = arith.constant 1 : index
    %c2_249 = arith.constant 2 : index
    %c0_250 = arith.constant 0 : index
    %c0_251 = arith.constant 0 : index
    %301 = vector.load %arg12[%c1_248, %c2_249, %c0_250, %c0_251] : memref<3x4x1x40xf32, #tpu.memory_space<vmem>>, vector<1x1x1x40xf32>
    %302 = vector.shape_cast %301 : vector<1x1x1x40xf32> to vector<1x40xf32>
    %303 = vector.broadcast %302 : vector<1x40xf32> to vector<4x40xf32>
    %304 = arith.addf %300, %303 : vector<4x40xf32>
    %305 = vector.extract_strided_slice %304 {offsets = [0, 0], sizes = [4, 32], strides = [1, 1]} : vector<4x40xf32> to vector<4x32xf32>
    %306 = arith.subf %274, %305 : vector<4x32xf32>
    %307 = vector.extract_strided_slice %304 {offsets = [0, 32], sizes = [4, 8], strides = [1, 1]} : vector<4x40xf32> to vector<4x8xf32>
    %308 = arith.addf %276, %307 : vector<4x8xf32>
    %c1_252 = arith.constant 1 : index
    %c3_253 = arith.constant 3 : index
    %c0_254 = arith.constant 0 : index
    %c0_255 = arith.constant 0 : index
    %309 = vector.load %arg7[%c1_252, %c3_253, %c0_254, %c0_255] : memref<3x4x32x256xbf16, #tpu.memory_space<vmem>>, vector<1x1x32x256xbf16>
    %310 = vector.shape_cast %309 : vector<1x1x32x256xbf16> to vector<32x256xbf16>
    %311 = arith.truncf %306 : vector<4x32xf32> to vector<4x32xbf16>
    %cst_256 = arith.constant dense<0.000000e+00> : vector<4x256xf32>
    %312 = tpu.matmul %311, %310, %cst_256 {dimension_numbers = #tpu.dot_dimension_numbers<[1], [0], [0], [1], [0, 0, 1, 1], [], []>} : vector<4x32xbf16>, vector<32x256xbf16>, vector<4x256xf32> -> vector<4x256xf32>
    %c1_257 = arith.constant 1 : index
    %c3_258 = arith.constant 3 : index
    %c0_259 = arith.constant 0 : index
    %c0_260 = arith.constant 0 : index
    %313 = vector.load %arg8[%c1_257, %c3_258, %c0_259, %c0_260] : memref<3x4x1x256xf32, #tpu.memory_space<vmem>>, vector<1x1x1x256xf32>
    %314 = vector.shape_cast %313 : vector<1x1x1x256xf32> to vector<1x256xf32>
    %315 = vector.broadcast %314 : vector<1x256xf32> to vector<4x256xf32>
    %316 = arith.addf %312, %315 : vector<4x256xf32>
    %cst_261 = arith.constant 0.000000e+00 : f32
    %317 = vector.broadcast %cst_261 : f32 to vector<4x256xf32>
    %318 = arith.maximumf %316, %317 : vector<4x256xf32>
    %c1_262 = arith.constant 1 : index
    %c3_263 = arith.constant 3 : index
    %c0_264 = arith.constant 0 : index
    %c0_265 = arith.constant 0 : index
    %319 = vector.load %arg9[%c1_262, %c3_263, %c0_264, %c0_265] : memref<3x4x256x256xbf16, #tpu.memory_space<vmem>>, vector<1x1x256x256xbf16>
    %320 = vector.shape_cast %319 : vector<1x1x256x256xbf16> to vector<256x256xbf16>
    %321 = arith.truncf %318 : vector<4x256xf32> to vector<4x256xbf16>
    %cst_266 = arith.constant dense<0.000000e+00> : vector<4x256xf32>
    %322 = tpu.matmul %321, %320, %cst_266 {dimension_numbers = #tpu.dot_dimension_numbers<[1], [0], [0], [1], [0, 0, 1, 1], [], []>} : vector<4x256xbf16>, vector<256x256xbf16>, vector<4x256xf32> -> vector<4x256xf32>
    %c1_267 = arith.constant 1 : index
    %c3_268 = arith.constant 3 : index
    %c0_269 = arith.constant 0 : index
    %c0_270 = arith.constant 0 : index
    %323 = vector.load %arg10[%c1_267, %c3_268, %c0_269, %c0_270] : memref<3x4x1x256xf32, #tpu.memory_space<vmem>>, vector<1x1x1x256xf32>
    %324 = vector.shape_cast %323 : vector<1x1x1x256xf32> to vector<1x256xf32>
    %325 = vector.broadcast %324 : vector<1x256xf32> to vector<4x256xf32>
    %326 = arith.addf %322, %325 : vector<4x256xf32>
    %cst_271 = arith.constant 0.000000e+00 : f32
    %327 = vector.broadcast %cst_271 : f32 to vector<4x256xf32>
    %328 = arith.maximumf %326, %327 : vector<4x256xf32>
    %c1_272 = arith.constant 1 : index
    %c3_273 = arith.constant 3 : index
    %c0_274 = arith.constant 0 : index
    %c0_275 = arith.constant 0 : index
    %329 = vector.load %arg11[%c1_272, %c3_273, %c0_274, %c0_275] : memref<3x4x256x40xbf16, #tpu.memory_space<vmem>>, vector<1x1x256x40xbf16>
    %330 = vector.shape_cast %329 : vector<1x1x256x40xbf16> to vector<256x40xbf16>
    %331 = arith.truncf %328 : vector<4x256xf32> to vector<4x256xbf16>
    %cst_276 = arith.constant dense<0.000000e+00> : vector<4x40xf32>
    %332 = tpu.matmul %331, %330, %cst_276 {dimension_numbers = #tpu.dot_dimension_numbers<[1], [0], [0], [1], [0, 0, 1, 1], [], []>} : vector<4x256xbf16>, vector<256x40xbf16>, vector<4x40xf32> -> vector<4x40xf32>
    %c1_277 = arith.constant 1 : index
    %c3_278 = arith.constant 3 : index
    %c0_279 = arith.constant 0 : index
    %c0_280 = arith.constant 0 : index
    %333 = vector.load %arg12[%c1_277, %c3_278, %c0_279, %c0_280] : memref<3x4x1x40xf32, #tpu.memory_space<vmem>>, vector<1x1x1x40xf32>
    %334 = vector.shape_cast %333 : vector<1x1x1x40xf32> to vector<1x40xf32>
    %335 = vector.broadcast %334 : vector<1x40xf32> to vector<4x40xf32>
    %336 = arith.addf %332, %335 : vector<4x40xf32>
    %337 = vector.extract_strided_slice %336 {offsets = [0, 0], sizes = [4, 32], strides = [1, 1]} : vector<4x40xf32> to vector<4x32xf32>
    %338 = arith.subf %306, %337 : vector<4x32xf32>
    %339 = vector.extract_strided_slice %336 {offsets = [0, 32], sizes = [4, 8], strides = [1, 1]} : vector<4x40xf32> to vector<4x8xf32>
    %340 = arith.addf %308, %339 : vector<4x8xf32>
    %341 = tpu.concatenate %172, %172 in 1 : vector<4x16xf32>, vector<4x16xf32> -> vector<4x32xf32>
    %c2_281 = arith.constant 2 : index
    %c0_282 = arith.constant 0 : index
    %c0_283 = arith.constant 0 : index
    %342 = vector.load %arg1[%c2_281, %c0_282, %c0_283] : memref<3x16x256xbf16, #tpu.memory_space<vmem>>, vector<1x16x256xbf16>
    %343 = vector.shape_cast %342 : vector<1x16x256xbf16> to vector<16x256xbf16>
    %344 = arith.truncf %172 : vector<4x16xf32> to vector<4x16xbf16>
    %cst_284 = arith.constant dense<0.000000e+00> : vector<4x256xf32>
    %345 = tpu.matmul %344, %343, %cst_284 {dimension_numbers = #tpu.dot_dimension_numbers<[1], [0], [0], [1], [0, 0, 1, 1], [], []>} : vector<4x16xbf16>, vector<16x256xbf16>, vector<4x256xf32> -> vector<4x256xf32>
    %c2_285 = arith.constant 2 : index
    %c0_286 = arith.constant 0 : index
    %c0_287 = arith.constant 0 : index
    %346 = vector.load %arg2[%c2_285, %c0_286, %c0_287] : memref<3x1x256xf32, #tpu.memory_space<vmem>>, vector<1x1x256xf32>
    %347 = vector.shape_cast %346 : vector<1x1x256xf32> to vector<1x256xf32>
    %348 = vector.broadcast %347 : vector<1x256xf32> to vector<4x256xf32>
    %349 = arith.addf %345, %348 : vector<4x256xf32>
    %cst_288 = arith.constant 0.000000e+00 : f32
    %350 = vector.broadcast %cst_288 : f32 to vector<4x256xf32>
    %351 = arith.maximumf %349, %350 : vector<4x256xf32>
    %c2_289 = arith.constant 2 : index
    %c0_290 = arith.constant 0 : index
    %c0_291 = arith.constant 0 : index
    %352 = vector.load %arg3[%c2_289, %c0_290, %c0_291] : memref<3x256x256xbf16, #tpu.memory_space<vmem>>, vector<1x256x256xbf16>
    %353 = vector.shape_cast %352 : vector<1x256x256xbf16> to vector<256x256xbf16>
    %354 = arith.truncf %351 : vector<4x256xf32> to vector<4x256xbf16>
    %cst_292 = arith.constant dense<0.000000e+00> : vector<4x256xf32>
    %355 = tpu.matmul %354, %353, %cst_292 {dimension_numbers = #tpu.dot_dimension_numbers<[1], [0], [0], [1], [0, 0, 1, 1], [], []>} : vector<4x256xbf16>, vector<256x256xbf16>, vector<4x256xf32> -> vector<4x256xf32>
    %c2_293 = arith.constant 2 : index
    %c0_294 = arith.constant 0 : index
    %c0_295 = arith.constant 0 : index
    %356 = vector.load %arg4[%c2_293, %c0_294, %c0_295] : memref<3x1x256xf32, #tpu.memory_space<vmem>>, vector<1x1x256xf32>
    %357 = vector.shape_cast %356 : vector<1x1x256xf32> to vector<1x256xf32>
    %358 = vector.broadcast %357 : vector<1x256xf32> to vector<4x256xf32>
    %359 = arith.addf %355, %358 : vector<4x256xf32>
    %cst_296 = arith.constant 0.000000e+00 : f32
    %360 = vector.broadcast %cst_296 : f32 to vector<4x256xf32>
    %361 = arith.maximumf %359, %360 : vector<4x256xf32>
    %c2_297 = arith.constant 2 : index
    %c0_298 = arith.constant 0 : index
    %c0_299 = arith.constant 0 : index
    %362 = vector.load %arg5[%c2_297, %c0_298, %c0_299] : memref<3x256x64xbf16, #tpu.memory_space<vmem>>, vector<1x256x64xbf16>
    %363 = vector.shape_cast %362 : vector<1x256x64xbf16> to vector<256x64xbf16>
    %364 = arith.truncf %361 : vector<4x256xf32> to vector<4x256xbf16>
    %cst_300 = arith.constant dense<0.000000e+00> : vector<4x64xf32>
    %365 = tpu.matmul %364, %363, %cst_300 {dimension_numbers = #tpu.dot_dimension_numbers<[1], [0], [0], [1], [0, 0, 1, 1], [], []>} : vector<4x256xbf16>, vector<256x64xbf16>, vector<4x64xf32> -> vector<4x64xf32>
    %c2_301 = arith.constant 2 : index
    %c0_302 = arith.constant 0 : index
    %c0_303 = arith.constant 0 : index
    %366 = vector.load %arg6[%c2_301, %c0_302, %c0_303] : memref<3x1x64xf32, #tpu.memory_space<vmem>>, vector<1x1x64xf32>
    %367 = vector.shape_cast %366 : vector<1x1x64xf32> to vector<1x64xf32>
    %368 = vector.broadcast %367 : vector<1x64xf32> to vector<4x64xf32>
    %369 = arith.addf %365, %368 : vector<4x64xf32>
    %370 = vector.extract_strided_slice %369 {offsets = [0, 0], sizes = [4, 32], strides = [1, 1]} : vector<4x64xf32> to vector<4x32xf32>
    %371 = vector.extract_strided_slice %369 {offsets = [0, 32], sizes = [4, 32], strides = [1, 1]} : vector<4x64xf32> to vector<4x32xf32>
    %372 = arith.maximumf %370, %371 : vector<4x32xf32>
    %373 = arith.subf %370, %372 : vector<4x32xf32>
    %374 = math.exp %373 : vector<4x32xf32>
    %375 = arith.subf %371, %372 : vector<4x32xf32>
    %376 = math.exp %375 : vector<4x32xf32>
    %377 = arith.addf %374, %376 : vector<4x32xf32>
    %378 = arith.divf %374, %377 : vector<4x32xf32>
    %379 = arith.mulf %341, %378 : vector<4x32xf32>
    %cst_304 = arith.constant 0.000000e+00 : f32
    %380 = vector.broadcast %cst_304 : f32 to vector<4x8xf32>
    %c2_305 = arith.constant 2 : index
    %c0_306 = arith.constant 0 : index
    %c0_307 = arith.constant 0 : index
    %c0_308 = arith.constant 0 : index
    %381 = vector.load %arg7[%c2_305, %c0_306, %c0_307, %c0_308] : memref<3x4x32x256xbf16, #tpu.memory_space<vmem>>, vector<1x1x32x256xbf16>
    %382 = vector.shape_cast %381 : vector<1x1x32x256xbf16> to vector<32x256xbf16>
    %383 = arith.truncf %379 : vector<4x32xf32> to vector<4x32xbf16>
    %cst_309 = arith.constant dense<0.000000e+00> : vector<4x256xf32>
    %384 = tpu.matmul %383, %382, %cst_309 {dimension_numbers = #tpu.dot_dimension_numbers<[1], [0], [0], [1], [0, 0, 1, 1], [], []>} : vector<4x32xbf16>, vector<32x256xbf16>, vector<4x256xf32> -> vector<4x256xf32>
    %c2_310 = arith.constant 2 : index
    %c0_311 = arith.constant 0 : index
    %c0_312 = arith.constant 0 : index
    %c0_313 = arith.constant 0 : index
    %385 = vector.load %arg8[%c2_310, %c0_311, %c0_312, %c0_313] : memref<3x4x1x256xf32, #tpu.memory_space<vmem>>, vector<1x1x1x256xf32>
    %386 = vector.shape_cast %385 : vector<1x1x1x256xf32> to vector<1x256xf32>
    %387 = vector.broadcast %386 : vector<1x256xf32> to vector<4x256xf32>
    %388 = arith.addf %384, %387 : vector<4x256xf32>
    %cst_314 = arith.constant 0.000000e+00 : f32
    %389 = vector.broadcast %cst_314 : f32 to vector<4x256xf32>
    %390 = arith.maximumf %388, %389 : vector<4x256xf32>
    %c2_315 = arith.constant 2 : index
    %c0_316 = arith.constant 0 : index
    %c0_317 = arith.constant 0 : index
    %c0_318 = arith.constant 0 : index
    %391 = vector.load %arg9[%c2_315, %c0_316, %c0_317, %c0_318] : memref<3x4x256x256xbf16, #tpu.memory_space<vmem>>, vector<1x1x256x256xbf16>
    %392 = vector.shape_cast %391 : vector<1x1x256x256xbf16> to vector<256x256xbf16>
    %393 = arith.truncf %390 : vector<4x256xf32> to vector<4x256xbf16>
    %cst_319 = arith.constant dense<0.000000e+00> : vector<4x256xf32>
    %394 = tpu.matmul %393, %392, %cst_319 {dimension_numbers = #tpu.dot_dimension_numbers<[1], [0], [0], [1], [0, 0, 1, 1], [], []>} : vector<4x256xbf16>, vector<256x256xbf16>, vector<4x256xf32> -> vector<4x256xf32>
    %c2_320 = arith.constant 2 : index
    %c0_321 = arith.constant 0 : index
    %c0_322 = arith.constant 0 : index
    %c0_323 = arith.constant 0 : index
    %395 = vector.load %arg10[%c2_320, %c0_321, %c0_322, %c0_323] : memref<3x4x1x256xf32, #tpu.memory_space<vmem>>, vector<1x1x1x256xf32>
    %396 = vector.shape_cast %395 : vector<1x1x1x256xf32> to vector<1x256xf32>
    %397 = vector.broadcast %396 : vector<1x256xf32> to vector<4x256xf32>
    %398 = arith.addf %394, %397 : vector<4x256xf32>
    %cst_324 = arith.constant 0.000000e+00 : f32
    %399 = vector.broadcast %cst_324 : f32 to vector<4x256xf32>
    %400 = arith.maximumf %398, %399 : vector<4x256xf32>
    %c2_325 = arith.constant 2 : index
    %c0_326 = arith.constant 0 : index
    %c0_327 = arith.constant 0 : index
    %c0_328 = arith.constant 0 : index
    %401 = vector.load %arg11[%c2_325, %c0_326, %c0_327, %c0_328] : memref<3x4x256x40xbf16, #tpu.memory_space<vmem>>, vector<1x1x256x40xbf16>
    %402 = vector.shape_cast %401 : vector<1x1x256x40xbf16> to vector<256x40xbf16>
    %403 = arith.truncf %400 : vector<4x256xf32> to vector<4x256xbf16>
    %cst_329 = arith.constant dense<0.000000e+00> : vector<4x40xf32>
    %404 = tpu.matmul %403, %402, %cst_329 {dimension_numbers = #tpu.dot_dimension_numbers<[1], [0], [0], [1], [0, 0, 1, 1], [], []>} : vector<4x256xbf16>, vector<256x40xbf16>, vector<4x40xf32> -> vector<4x40xf32>
    %c2_330 = arith.constant 2 : index
    %c0_331 = arith.constant 0 : index
    %c0_332 = arith.constant 0 : index
    %c0_333 = arith.constant 0 : index
    %405 = vector.load %arg12[%c2_330, %c0_331, %c0_332, %c0_333] : memref<3x4x1x40xf32, #tpu.memory_space<vmem>>, vector<1x1x1x40xf32>
    %406 = vector.shape_cast %405 : vector<1x1x1x40xf32> to vector<1x40xf32>
    %407 = vector.broadcast %406 : vector<1x40xf32> to vector<4x40xf32>
    %408 = arith.addf %404, %407 : vector<4x40xf32>
    %409 = vector.extract_strided_slice %408 {offsets = [0, 0], sizes = [4, 32], strides = [1, 1]} : vector<4x40xf32> to vector<4x32xf32>
    %410 = arith.subf %379, %409 : vector<4x32xf32>
    %411 = vector.extract_strided_slice %408 {offsets = [0, 32], sizes = [4, 8], strides = [1, 1]} : vector<4x40xf32> to vector<4x8xf32>
    %412 = arith.addf %380, %411 : vector<4x8xf32>
    %c2_334 = arith.constant 2 : index
    %c1_335 = arith.constant 1 : index
    %c0_336 = arith.constant 0 : index
    %c0_337 = arith.constant 0 : index
    %413 = vector.load %arg7[%c2_334, %c1_335, %c0_336, %c0_337] : memref<3x4x32x256xbf16, #tpu.memory_space<vmem>>, vector<1x1x32x256xbf16>
    %414 = vector.shape_cast %413 : vector<1x1x32x256xbf16> to vector<32x256xbf16>
    %415 = arith.truncf %410 : vector<4x32xf32> to vector<4x32xbf16>
    %cst_338 = arith.constant dense<0.000000e+00> : vector<4x256xf32>
    %416 = tpu.matmul %415, %414, %cst_338 {dimension_numbers = #tpu.dot_dimension_numbers<[1], [0], [0], [1], [0, 0, 1, 1], [], []>} : vector<4x32xbf16>, vector<32x256xbf16>, vector<4x256xf32> -> vector<4x256xf32>
    %c2_339 = arith.constant 2 : index
    %c1_340 = arith.constant 1 : index
    %c0_341 = arith.constant 0 : index
    %c0_342 = arith.constant 0 : index
    %417 = vector.load %arg8[%c2_339, %c1_340, %c0_341, %c0_342] : memref<3x4x1x256xf32, #tpu.memory_space<vmem>>, vector<1x1x1x256xf32>
    %418 = vector.shape_cast %417 : vector<1x1x1x256xf32> to vector<1x256xf32>
    %419 = vector.broadcast %418 : vector<1x256xf32> to vector<4x256xf32>
    %420 = arith.addf %416, %419 : vector<4x256xf32>
    %cst_343 = arith.constant 0.000000e+00 : f32
    %421 = vector.broadcast %cst_343 : f32 to vector<4x256xf32>
    %422 = arith.maximumf %420, %421 : vector<4x256xf32>
    %c2_344 = arith.constant 2 : index
    %c1_345 = arith.constant 1 : index
    %c0_346 = arith.constant 0 : index
    %c0_347 = arith.constant 0 : index
    %423 = vector.load %arg9[%c2_344, %c1_345, %c0_346, %c0_347] : memref<3x4x256x256xbf16, #tpu.memory_space<vmem>>, vector<1x1x256x256xbf16>
    %424 = vector.shape_cast %423 : vector<1x1x256x256xbf16> to vector<256x256xbf16>
    %425 = arith.truncf %422 : vector<4x256xf32> to vector<4x256xbf16>
    %cst_348 = arith.constant dense<0.000000e+00> : vector<4x256xf32>
    %426 = tpu.matmul %425, %424, %cst_348 {dimension_numbers = #tpu.dot_dimension_numbers<[1], [0], [0], [1], [0, 0, 1, 1], [], []>} : vector<4x256xbf16>, vector<256x256xbf16>, vector<4x256xf32> -> vector<4x256xf32>
    %c2_349 = arith.constant 2 : index
    %c1_350 = arith.constant 1 : index
    %c0_351 = arith.constant 0 : index
    %c0_352 = arith.constant 0 : index
    %427 = vector.load %arg10[%c2_349, %c1_350, %c0_351, %c0_352] : memref<3x4x1x256xf32, #tpu.memory_space<vmem>>, vector<1x1x1x256xf32>
    %428 = vector.shape_cast %427 : vector<1x1x1x256xf32> to vector<1x256xf32>
    %429 = vector.broadcast %428 : vector<1x256xf32> to vector<4x256xf32>
    %430 = arith.addf %426, %429 : vector<4x256xf32>
    %cst_353 = arith.constant 0.000000e+00 : f32
    %431 = vector.broadcast %cst_353 : f32 to vector<4x256xf32>
    %432 = arith.maximumf %430, %431 : vector<4x256xf32>
    %c2_354 = arith.constant 2 : index
    %c1_355 = arith.constant 1 : index
    %c0_356 = arith.constant 0 : index
    %c0_357 = arith.constant 0 : index
    %433 = vector.load %arg11[%c2_354, %c1_355, %c0_356, %c0_357] : memref<3x4x256x40xbf16, #tpu.memory_space<vmem>>, vector<1x1x256x40xbf16>
    %434 = vector.shape_cast %433 : vector<1x1x256x40xbf16> to vector<256x40xbf16>
    %435 = arith.truncf %432 : vector<4x256xf32> to vector<4x256xbf16>
    %cst_358 = arith.constant dense<0.000000e+00> : vector<4x40xf32>
    %436 = tpu.matmul %435, %434, %cst_358 {dimension_numbers = #tpu.dot_dimension_numbers<[1], [0], [0], [1], [0, 0, 1, 1], [], []>} : vector<4x256xbf16>, vector<256x40xbf16>, vector<4x40xf32> -> vector<4x40xf32>
    %c2_359 = arith.constant 2 : index
    %c1_360 = arith.constant 1 : index
    %c0_361 = arith.constant 0 : index
    %c0_362 = arith.constant 0 : index
    %437 = vector.load %arg12[%c2_359, %c1_360, %c0_361, %c0_362] : memref<3x4x1x40xf32, #tpu.memory_space<vmem>>, vector<1x1x1x40xf32>
    %438 = vector.shape_cast %437 : vector<1x1x1x40xf32> to vector<1x40xf32>
    %439 = vector.broadcast %438 : vector<1x40xf32> to vector<4x40xf32>
    %440 = arith.addf %436, %439 : vector<4x40xf32>
    %441 = vector.extract_strided_slice %440 {offsets = [0, 0], sizes = [4, 32], strides = [1, 1]} : vector<4x40xf32> to vector<4x32xf32>
    %442 = arith.subf %410, %441 : vector<4x32xf32>
    %443 = vector.extract_strided_slice %440 {offsets = [0, 32], sizes = [4, 8], strides = [1, 1]} : vector<4x40xf32> to vector<4x8xf32>
    %444 = arith.addf %412, %443 : vector<4x8xf32>
    %c2_363 = arith.constant 2 : index
    %c2_364 = arith.constant 2 : index
    %c0_365 = arith.constant 0 : index
    %c0_366 = arith.constant 0 : index
    %445 = vector.load %arg7[%c2_363, %c2_364, %c0_365, %c0_366] : memref<3x4x32x256xbf16, #tpu.memory_space<vmem>>, vector<1x1x32x256xbf16>
    %446 = vector.shape_cast %445 : vector<1x1x32x256xbf16> to vector<32x256xbf16>
    %447 = arith.truncf %442 : vector<4x32xf32> to vector<4x32xbf16>
    %cst_367 = arith.constant dense<0.000000e+00> : vector<4x256xf32>
    %448 = tpu.matmul %447, %446, %cst_367 {dimension_numbers = #tpu.dot_dimension_numbers<[1], [0], [0], [1], [0, 0, 1, 1], [], []>} : vector<4x32xbf16>, vector<32x256xbf16>, vector<4x256xf32> -> vector<4x256xf32>
    %c2_368 = arith.constant 2 : index
    %c2_369 = arith.constant 2 : index
    %c0_370 = arith.constant 0 : index
    %c0_371 = arith.constant 0 : index
    %449 = vector.load %arg8[%c2_368, %c2_369, %c0_370, %c0_371] : memref<3x4x1x256xf32, #tpu.memory_space<vmem>>, vector<1x1x1x256xf32>
    %450 = vector.shape_cast %449 : vector<1x1x1x256xf32> to vector<1x256xf32>
    %451 = vector.broadcast %450 : vector<1x256xf32> to vector<4x256xf32>
    %452 = arith.addf %448, %451 : vector<4x256xf32>
    %cst_372 = arith.constant 0.000000e+00 : f32
    %453 = vector.broadcast %cst_372 : f32 to vector<4x256xf32>
    %454 = arith.maximumf %452, %453 : vector<4x256xf32>
    %c2_373 = arith.constant 2 : index
    %c2_374 = arith.constant 2 : index
    %c0_375 = arith.constant 0 : index
    %c0_376 = arith.constant 0 : index
    %455 = vector.load %arg9[%c2_373, %c2_374, %c0_375, %c0_376] : memref<3x4x256x256xbf16, #tpu.memory_space<vmem>>, vector<1x1x256x256xbf16>
    %456 = vector.shape_cast %455 : vector<1x1x256x256xbf16> to vector<256x256xbf16>
    %457 = arith.truncf %454 : vector<4x256xf32> to vector<4x256xbf16>
    %cst_377 = arith.constant dense<0.000000e+00> : vector<4x256xf32>
    %458 = tpu.matmul %457, %456, %cst_377 {dimension_numbers = #tpu.dot_dimension_numbers<[1], [0], [0], [1], [0, 0, 1, 1], [], []>} : vector<4x256xbf16>, vector<256x256xbf16>, vector<4x256xf32> -> vector<4x256xf32>
    %c2_378 = arith.constant 2 : index
    %c2_379 = arith.constant 2 : index
    %c0_380 = arith.constant 0 : index
    %c0_381 = arith.constant 0 : index
    %459 = vector.load %arg10[%c2_378, %c2_379, %c0_380, %c0_381] : memref<3x4x1x256xf32, #tpu.memory_space<vmem>>, vector<1x1x1x256xf32>
    %460 = vector.shape_cast %459 : vector<1x1x1x256xf32> to vector<1x256xf32>
    %461 = vector.broadcast %460 : vector<1x256xf32> to vector<4x256xf32>
    %462 = arith.addf %458, %461 : vector<4x256xf32>
    %cst_382 = arith.constant 0.000000e+00 : f32
    %463 = vector.broadcast %cst_382 : f32 to vector<4x256xf32>
    %464 = arith.maximumf %462, %463 : vector<4x256xf32>
    %c2_383 = arith.constant 2 : index
    %c2_384 = arith.constant 2 : index
    %c0_385 = arith.constant 0 : index
    %c0_386 = arith.constant 0 : index
    %465 = vector.load %arg11[%c2_383, %c2_384, %c0_385, %c0_386] : memref<3x4x256x40xbf16, #tpu.memory_space<vmem>>, vector<1x1x256x40xbf16>
    %466 = vector.shape_cast %465 : vector<1x1x256x40xbf16> to vector<256x40xbf16>
    %467 = arith.truncf %464 : vector<4x256xf32> to vector<4x256xbf16>
    %cst_387 = arith.constant dense<0.000000e+00> : vector<4x40xf32>
    %468 = tpu.matmul %467, %466, %cst_387 {dimension_numbers = #tpu.dot_dimension_numbers<[1], [0], [0], [1], [0, 0, 1, 1], [], []>} : vector<4x256xbf16>, vector<256x40xbf16>, vector<4x40xf32> -> vector<4x40xf32>
    %c2_388 = arith.constant 2 : index
    %c2_389 = arith.constant 2 : index
    %c0_390 = arith.constant 0 : index
    %c0_391 = arith.constant 0 : index
    %469 = vector.load %arg12[%c2_388, %c2_389, %c0_390, %c0_391] : memref<3x4x1x40xf32, #tpu.memory_space<vmem>>, vector<1x1x1x40xf32>
    %470 = vector.shape_cast %469 : vector<1x1x1x40xf32> to vector<1x40xf32>
    %471 = vector.broadcast %470 : vector<1x40xf32> to vector<4x40xf32>
    %472 = arith.addf %468, %471 : vector<4x40xf32>
    %473 = vector.extract_strided_slice %472 {offsets = [0, 0], sizes = [4, 32], strides = [1, 1]} : vector<4x40xf32> to vector<4x32xf32>
    %474 = arith.subf %442, %473 : vector<4x32xf32>
    %475 = vector.extract_strided_slice %472 {offsets = [0, 32], sizes = [4, 8], strides = [1, 1]} : vector<4x40xf32> to vector<4x8xf32>
    %476 = arith.addf %444, %475 : vector<4x8xf32>
    %c2_392 = arith.constant 2 : index
    %c3_393 = arith.constant 3 : index
    %c0_394 = arith.constant 0 : index
    %c0_395 = arith.constant 0 : index
    %477 = vector.load %arg7[%c2_392, %c3_393, %c0_394, %c0_395] : memref<3x4x32x256xbf16, #tpu.memory_space<vmem>>, vector<1x1x32x256xbf16>
    %478 = vector.shape_cast %477 : vector<1x1x32x256xbf16> to vector<32x256xbf16>
    %479 = arith.truncf %474 : vector<4x32xf32> to vector<4x32xbf16>
    %cst_396 = arith.constant dense<0.000000e+00> : vector<4x256xf32>
    %480 = tpu.matmul %479, %478, %cst_396 {dimension_numbers = #tpu.dot_dimension_numbers<[1], [0], [0], [1], [0, 0, 1, 1], [], []>} : vector<4x32xbf16>, vector<32x256xbf16>, vector<4x256xf32> -> vector<4x256xf32>
    %c2_397 = arith.constant 2 : index
    %c3_398 = arith.constant 3 : index
    %c0_399 = arith.constant 0 : index
    %c0_400 = arith.constant 0 : index
    %481 = vector.load %arg8[%c2_397, %c3_398, %c0_399, %c0_400] : memref<3x4x1x256xf32, #tpu.memory_space<vmem>>, vector<1x1x1x256xf32>
    %482 = vector.shape_cast %481 : vector<1x1x1x256xf32> to vector<1x256xf32>
    %483 = vector.broadcast %482 : vector<1x256xf32> to vector<4x256xf32>
    %484 = arith.addf %480, %483 : vector<4x256xf32>
    %cst_401 = arith.constant 0.000000e+00 : f32
    %485 = vector.broadcast %cst_401 : f32 to vector<4x256xf32>
    %486 = arith.maximumf %484, %485 : vector<4x256xf32>
    %c2_402 = arith.constant 2 : index
    %c3_403 = arith.constant 3 : index
    %c0_404 = arith.constant 0 : index
    %c0_405 = arith.constant 0 : index
    %487 = vector.load %arg9[%c2_402, %c3_403, %c0_404, %c0_405] : memref<3x4x256x256xbf16, #tpu.memory_space<vmem>>, vector<1x1x256x256xbf16>
    %488 = vector.shape_cast %487 : vector<1x1x256x256xbf16> to vector<256x256xbf16>
    %489 = arith.truncf %486 : vector<4x256xf32> to vector<4x256xbf16>
    %cst_406 = arith.constant dense<0.000000e+00> : vector<4x256xf32>
    %490 = tpu.matmul %489, %488, %cst_406 {dimension_numbers = #tpu.dot_dimension_numbers<[1], [0], [0], [1], [0, 0, 1, 1], [], []>} : vector<4x256xbf16>, vector<256x256xbf16>, vector<4x256xf32> -> vector<4x256xf32>
    %c2_407 = arith.constant 2 : index
    %c3_408 = arith.constant 3 : index
    %c0_409 = arith.constant 0 : index
    %c0_410 = arith.constant 0 : index
    %491 = vector.load %arg10[%c2_407, %c3_408, %c0_409, %c0_410] : memref<3x4x1x256xf32, #tpu.memory_space<vmem>>, vector<1x1x1x256xf32>
    %492 = vector.shape_cast %491 : vector<1x1x1x256xf32> to vector<1x256xf32>
    %493 = vector.broadcast %492 : vector<1x256xf32> to vector<4x256xf32>
    %494 = arith.addf %490, %493 : vector<4x256xf32>
    %cst_411 = arith.constant 0.000000e+00 : f32
    %495 = vector.broadcast %cst_411 : f32 to vector<4x256xf32>
    %496 = arith.maximumf %494, %495 : vector<4x256xf32>
    %c2_412 = arith.constant 2 : index
    %c3_413 = arith.constant 3 : index
    %c0_414 = arith.constant 0 : index
    %c0_415 = arith.constant 0 : index
    %497 = vector.load %arg11[%c2_412, %c3_413, %c0_414, %c0_415] : memref<3x4x256x40xbf16, #tpu.memory_space<vmem>>, vector<1x1x256x40xbf16>
    %498 = vector.shape_cast %497 : vector<1x1x256x40xbf16> to vector<256x40xbf16>
    %499 = arith.truncf %496 : vector<4x256xf32> to vector<4x256xbf16>
    %cst_416 = arith.constant dense<0.000000e+00> : vector<4x40xf32>
    %500 = tpu.matmul %499, %498, %cst_416 {dimension_numbers = #tpu.dot_dimension_numbers<[1], [0], [0], [1], [0, 0, 1, 1], [], []>} : vector<4x256xbf16>, vector<256x40xbf16>, vector<4x40xf32> -> vector<4x40xf32>
    %c2_417 = arith.constant 2 : index
    %c3_418 = arith.constant 3 : index
    %c0_419 = arith.constant 0 : index
    %c0_420 = arith.constant 0 : index
    %501 = vector.load %arg12[%c2_417, %c3_418, %c0_419, %c0_420] : memref<3x4x1x40xf32, #tpu.memory_space<vmem>>, vector<1x1x1x40xf32>
    %502 = vector.shape_cast %501 : vector<1x1x1x40xf32> to vector<1x40xf32>
    %503 = vector.broadcast %502 : vector<1x40xf32> to vector<4x40xf32>
    %504 = arith.addf %500, %503 : vector<4x40xf32>
    %505 = vector.extract_strided_slice %504 {offsets = [0, 0], sizes = [4, 32], strides = [1, 1]} : vector<4x40xf32> to vector<4x32xf32>
    %506 = arith.subf %474, %505 : vector<4x32xf32>
    %507 = vector.extract_strided_slice %504 {offsets = [0, 32], sizes = [4, 8], strides = [1, 1]} : vector<4x40xf32> to vector<4x8xf32>
    %508 = arith.addf %476, %507 : vector<4x8xf32>
    %509 = arith.subf %211, %338 : vector<4x32xf32>
    %cst_421 = arith.constant dense<0.000000e+00> : vector<4x16xf32>
    %510 = tpu.matmul %509, %1, %cst_421 {dimension_numbers = #tpu.dot_dimension_numbers<[1], [0], [0], [1], [0, 0, 1, 1], [], []>} : vector<4x32xf32>, vector<32x16xf32>, vector<4x16xf32> -> vector<4x16xf32>
    %511 = arith.subf %379, %506 : vector<4x32xf32>
    %cst_422 = arith.constant dense<0.000000e+00> : vector<4x16xf32>
    %512 = tpu.matmul %511, %1, %cst_422 {dimension_numbers = #tpu.dot_dimension_numbers<[1], [0], [0], [1], [0, 0, 1, 1], [], []>} : vector<4x32xf32>, vector<32x16xf32>, vector<4x16xf32> -> vector<4x16xf32>
    %513 = arith.addf %169, %340 : vector<4x8xf32>
    %514 = arith.addf %513, %508 : vector<4x8xf32>
    %cst_423 = arith.constant 0.0416666679 : f32
    %515 = vector.broadcast %cst_423 : f32 to vector<4x8xf32>
    %516 = arith.mulf %514, %515 : vector<4x8xf32>
    %517 = arith.addf %172, %510 : vector<4x16xf32>
    %518 = arith.addf %517, %512 : vector<4x16xf32>
    %cst_424 = arith.constant 2.000000e-01 : f32
    %519 = vector.broadcast %cst_424 : f32 to vector<4x16xf32>
    %520 = arith.mulf %518, %519 : vector<4x16xf32>
    %c0_425 = arith.constant 0 : index
    %c0_426 = arith.constant 0 : index
    %521 = vector.load %arg20[%c0_425, %c0_426] : memref<4x8xf32, #tpu.memory_space<vmem>>, vector<4x8xf32>
    tpu.vector_store %arg20[%c0_425, %c0_426], %516 {strides = array<i32>} : memref<4x8xf32, #tpu.memory_space<vmem>>, vector<4x8xf32>,
    %c0_427 = arith.constant 0 : index
    %c0_428 = arith.constant 0 : index
    %522 = vector.load %arg14[%c0_427, %c0_428] : memref<8x128xbf16, #tpu.memory_space<vmem>>, vector<8x128xbf16>
    %523 = arith.truncf %516 : vector<4x8xf32> to vector<4x8xbf16>
    %cst_429 = arith.constant dense<0.000000e+00> : vector<4x128xf32>
    %524 = tpu.matmul %523, %522, %cst_429 {dimension_numbers = #tpu.dot_dimension_numbers<[1], [0], [0], [1], [0, 0, 1, 1], [], []>} : vector<4x8xbf16>, vector<8x128xbf16>, vector<4x128xf32> -> vector<4x128xf32>
    %c0_430 = arith.constant 0 : index
    %c0_431 = arith.constant 0 : index
    %525 = vector.load %arg15[%c0_430, %c0_431] : memref<1x128xf32, #tpu.memory_space<vmem>>, vector<1x128xf32>
    %526 = vector.broadcast %525 : vector<1x128xf32> to vector<4x128xf32>
    %527 = arith.addf %524, %526 : vector<4x128xf32>
    %cst_432 = arith.constant 0.000000e+00 : f32
    %528 = vector.broadcast %cst_432 : f32 to vector<4x128xf32>
    %529 = arith.maximumf %527, %528 : vector<4x128xf32>
    %c0_433 = arith.constant 0 : index
    %c0_434 = arith.constant 0 : index
    %530 = vector.load %arg16[%c0_433, %c0_434] : memref<128x128xbf16, #tpu.memory_space<vmem>>, vector<128x128xbf16>
    %531 = arith.truncf %529 : vector<4x128xf32> to vector<4x128xbf16>
    %cst_435 = arith.constant dense<0.000000e+00> : vector<4x128xf32>
    %532 = tpu.matmul %531, %530, %cst_435 {dimension_numbers = #tpu.dot_dimension_numbers<[1], [0], [0], [1], [0, 0, 1, 1], [], []>} : vector<4x128xbf16>, vector<128x128xbf16>, vector<4x128xf32> -> vector<4x128xf32>
    %c0_436 = arith.constant 0 : index
    %c0_437 = arith.constant 0 : index
    %533 = vector.load %arg17[%c0_436, %c0_437] : memref<1x128xf32, #tpu.memory_space<vmem>>, vector<1x128xf32>
    %534 = vector.broadcast %533 : vector<1x128xf32> to vector<4x128xf32>
    %535 = arith.addf %532, %534 : vector<4x128xf32>
    %cst_438 = arith.constant 0.000000e+00 : f32
    %536 = vector.broadcast %cst_438 : f32 to vector<4x128xf32>
    %537 = arith.maximumf %535, %536 : vector<4x128xf32>
    %c0_439 = arith.constant 0 : index
    %c0_440 = arith.constant 0 : index
    %538 = vector.load %arg18[%c0_439, %c0_440] : memref<128x16xbf16, #tpu.memory_space<vmem>>, vector<128x16xbf16>
    %539 = arith.truncf %537 : vector<4x128xf32> to vector<4x128xbf16>
    %cst_441 = arith.constant dense<0.000000e+00> : vector<4x16xf32>
    %540 = tpu.matmul %539, %538, %cst_441 {dimension_numbers = #tpu.dot_dimension_numbers<[1], [0], [0], [1], [0, 0, 1, 1], [], []>} : vector<4x128xbf16>, vector<128x16xbf16>, vector<4x16xf32> -> vector<4x16xf32>
    %c0_442 = arith.constant 0 : index
    %c0_443 = arith.constant 0 : index
    %541 = vector.load %arg19[%c0_442, %c0_443] : memref<1x16xf32, #tpu.memory_space<vmem>>, vector<1x16xf32>
    %542 = vector.broadcast %541 : vector<1x16xf32> to vector<4x16xf32>
    %543 = arith.addf %540, %542 : vector<4x16xf32>
    %544 = arith.subf %0, %520 : vector<4x16xf32>
    %545 = arith.subf %544, %543 : vector<4x16xf32>
    %c0_444 = arith.constant 0 : index
    %c0_445 = arith.constant 0 : index
    %546 = vector.load %arg21[%c0_444, %c0_445] : memref<4x16xf32, #tpu.memory_space<vmem>>, vector<4x16xf32>
    tpu.vector_store %arg21[%c0_444, %c0_445], %545 {strides = array<i32>} : memref<4x16xf32, #tpu.memory_space<vmem>>, vector<4x16xf32>,
    return
  }
}

</mosaic_0001>

<llo_original>
// kernel: treedrnet_forward.1
$region0: #{treedrnet_forward.1}
  #allocation0 [shape = 'u32[]', space=smem, size = 0x4, offset = 0x4, fixed_abs, tag = 'smem constant byte address 0x4 - core index']
  #allocation1 [shape = 'u32[144,128]{1,0:T(1,128)}', space=vmem, size = 0x12000, scoped, tag = 'internal scratch']
  %s0 = inlined_call_operand.vmem [shape: f32[4,16], index: 0, kind: input, shape index: {}]
  %s1 = inlined_call_operand.vmem [shape: bf16[3,16,256], index: 1, kind: input, shape index: {}]
  %s2 = inlined_call_operand.vmem [shape: f32[3,1,256], index: 2, kind: input, shape index: {}]
  %s3 = inlined_call_operand.vmem [shape: bf16[3,256,256], index: 3, kind: input, shape index: {}]
  %s4 = inlined_call_operand.vmem [shape: f32[3,1,256], index: 4, kind: input, shape index: {}]
  %s5 = inlined_call_operand.vmem [shape: bf16[3,256,64], index: 5, kind: input, shape index: {}]
  %s6 = inlined_call_operand.vmem [shape: f32[3,1,64], index: 6, kind: input, shape index: {}]
  %s7 = inlined_call_operand.vmem [shape: bf16[3,4,32,256], index: 7, kind: input, shape index: {}]
  %s8 = inlined_call_operand.vmem [shape: f32[3,4,1,256], index: 8, kind: input, shape index: {}]
  %s9 = inlined_call_operand.vmem [shape: bf16[3,4,256,256], index: 9, kind: input, shape index: {}]
  %s10 = inlined_call_operand.vmem [shape: f32[3,4,1,256], index: 10, kind: input, shape index: {}]
  %s11 = inlined_call_operand.vmem [shape: bf16[3,4,256,40], index: 11, kind: input, shape index: {}]
  %s12 = inlined_call_operand.vmem [shape: f32[3,4,1,40], index: 12, kind: input, shape index: {}]
  %s13 = inlined_call_operand.vmem [shape: f32[32,16], index: 13, kind: input, shape index: {}]
  %s14 = inlined_call_operand.vmem [shape: bf16[8,128], index: 14, kind: input, shape index: {}]
  %s15 = inlined_call_operand.vmem [shape: f32[1,128], index: 15, kind: input, shape index: {}]
  %s16 = inlined_call_operand.vmem [shape: bf16[128,128], index: 16, kind: input, shape index: {}]
  %s17 = inlined_call_operand.vmem [shape: f32[1,128], index: 17, kind: input, shape index: {}]
  %s18 = inlined_call_operand.vmem [shape: bf16[128,16], index: 18, kind: input, shape index: {}]
  %s19 = inlined_call_operand.vmem [shape: f32[1,16], index: 19, kind: input, shape index: {}]
  %s20 = inlined_call_operand.hbm [shape: f32[4,8], index: 20, kind: output, shape index: {0}]
  %s21 = inlined_call_operand.hbm [shape: f32[4,16], index: 21, kind: output, shape index: {1}]
  %22 = xla_tuple %s20, %s21
  %s23 = sld [smem:[#allocation0]]
  $region98: #{treedrnet_forward.1} parent=0
    _
  %s25 = ssub.s32 1, %s23
  %s26 = scalar_select 0, %s25, %s23
  $region1: #{treedrnet_forward.1} parent=0
    #allocation2 [shape = 'u8[2048]{0}', space=vmem, size = 0x800, scoped, tag = 'output window, operand 0, single buffered']
    #allocation3 [shape = 's32[1]{0}', space=sflag, size = 0x4, scoped, tag = 'scoped memory for treedrnet_forward.1']
    #allocation4 [shape = 'u8[2048]{0}', space=vmem, size = 0x800, scoped, tag = 'output window, operand 1, single buffered']
    #allocation5 [shape = 's32[1]{0}', space=sflag, size = 0x4, scoped, tag = 'scoped memory for treedrnet_forward.1']
    %27 = vsyncpa [#allocation3], 0
    %28 = vsyncpa [#allocation5], 0
    // Predicated region
    $region2: #{treedrnet_forward.1} parent=1 // pred_check
      _
    $region3: #{treedrnet_forward.1} parent=1 // pred_check_branch
      %30 = sbr.rel (0) target = $region5
    $region4: #{treedrnet_forward.1} parent=1 // pred_region
      _
    $region5: #{treedrnet_forward.1} parent=1 // pred_fallthru
      _
    // Predicated region
    $region6: #{treedrnet_forward.1} parent=1 // pred_check
      _
    $region7: #{treedrnet_forward.1} parent=1 // pred_check_branch
      %32 = sbr.rel (0) target = $region9
    $region8: #{treedrnet_forward.1} parent=1 // pred_region
      _
    $region9: #{treedrnet_forward.1} parent=1 // pred_fallthru
      _
    // Predicated region
    $region10: #{treedrnet_forward.1} parent=1 // pred_check
      _
    $region11: #{treedrnet_forward.1} parent=1 // pred_check_branch
      %34 = sbr.rel (0) target = $region13
    $region12: #{treedrnet_forward.1} parent=1 // pred_region
      _
    $region13: #{treedrnet_forward.1} parent=1 // pred_fallthru
      _
    // Predicated region
    $region14: #{treedrnet_forward.1} parent=1 // pred_check
      _
    $region15: #{treedrnet_forward.1} parent=1 // pred_check_branch
      %36 = sbr.rel (0) target = $region17
    $region16: #{treedrnet_forward.1} parent=1 // pred_region
      _
    $region17: #{treedrnet_forward.1} parent=1 // pred_fallthru
      _
    // Predicated region
    $region18: #{treedrnet_forward.1} parent=1 // pred_check
      _
    $region19: #{treedrnet_forward.1} parent=1 // pred_check_branch
      %38 = sbr.rel (0) target = $region21
    $region20: #{treedrnet_forward.1} parent=1 // pred_region
      _
    $region21: #{treedrnet_forward.1} parent=1 // pred_fallthru
      _
    // Predicated region
    $region22: #{treedrnet_forward.1} parent=1 // pred_check
      _
    $region23: #{treedrnet_forward.1} parent=1 // pred_check_branch
      %40 = sbr.rel (0) target = $region25
    $region24: #{treedrnet_forward.1} parent=1 // pred_region
      _
    $region25: #{treedrnet_forward.1} parent=1 // pred_fallthru
      _
    // Predicated region
    $region26: #{treedrnet_forward.1} parent=1 // pred_check
      _
    $region27: #{treedrnet_forward.1} parent=1 // pred_check_branch
      %42 = sbr.rel (0) target = $region29
    $region28: #{treedrnet_forward.1} parent=1 // pred_region
      _
    $region29: #{treedrnet_forward.1} parent=1 // pred_fallthru
      _
    // Predicated region
    $region30: #{treedrnet_forward.1} parent=1 // pred_check
      _
    $region31: #{treedrnet_forward.1} parent=1 // pred_check_branch
      %44 = sbr.rel (0) target = $region33
    $region32: #{treedrnet_forward.1} parent=1 // pred_region
      _
    $region33: #{treedrnet_forward.1} parent=1 // pred_fallthru
      _
    // Predicated region
    $region34: #{treedrnet_forward.1} parent=1 // pred_check
      _
    $region35: #{treedrnet_forward.1} parent=1 // pred_check_branch
      %46 = sbr.rel (0) target = $region37
    $region36: #{treedrnet_forward.1} parent=1 // pred_region
      _
    $region37: #{treedrnet_forward.1} parent=1 // pred_fallthru
      _
    // Predicated region
    $region38: #{treedrnet_forward.1} parent=1 // pred_check
      _
    $region39: #{treedrnet_forward.1} parent=1 // pred_check_branch
      %48 = sbr.rel (0) target = $region41
    $region40: #{treedrnet_forward.1} parent=1 // pred_region
      _
    $region41: #{treedrnet_forward.1} parent=1 // pred_fallthru
      _
    // Predicated region
    $region42: #{treedrnet_forward.1} parent=1 // pred_check
      _
    $region43: #{treedrnet_forward.1} parent=1 // pred_check_branch
      %50 = sbr.rel (0) target = $region45
    $region44: #{treedrnet_forward.1} parent=1 // pred_region
      _
    $region45: #{treedrnet_forward.1} parent=1 // pred_fallthru
      _
    // Predicated region
    $region46: #{treedrnet_forward.1} parent=1 // pred_check
      _
    $region47: #{treedrnet_forward.1} parent=1 // pred_check_branch
      %52 = sbr.rel (0) target = $region49
    $region48: #{treedrnet_forward.1} parent=1 // pred_region
      _
    $region49: #{treedrnet_forward.1} parent=1 // pred_fallthru
      _
    // Predicated region
    $region50: #{treedrnet_forward.1} parent=1 // pred_check
      _
    $region51: #{treedrnet_forward.1} parent=1 // pred_check_branch
      %54 = sbr.rel (0) target = $region53
    $region52: #{treedrnet_forward.1} parent=1 // pred_region
      _
    $region53: #{treedrnet_forward.1} parent=1 // pred_fallthru
      _
    // Predicated region
    $region54: #{treedrnet_forward.1} parent=1 // pred_check
      _
    $region55: #{treedrnet_forward.1} parent=1 // pred_check_branch
      %56 = sbr.rel (0) target = $region57
    $region56: #{treedrnet_forward.1} parent=1 // pred_region
      _
    $region57: #{treedrnet_forward.1} parent=1 // pred_fallthru
      _
    // Predicated region
    $region58: #{treedrnet_forward.1} parent=1 // pred_check
      _
    $region59: #{treedrnet_forward.1} parent=1 // pred_check_branch
      %58 = sbr.rel (0) target = $region61
    $region60: #{treedrnet_forward.1} parent=1 // pred_region
      _
    $region61: #{treedrnet_forward.1} parent=1 // pred_fallthru
      _
    // Predicated region
    $region62: #{treedrnet_forward.1} parent=1 // pred_check
      _
    $region63: #{treedrnet_forward.1} parent=1 // pred_check_branch
      %60 = sbr.rel (0) target = $region65
    $region64: #{treedrnet_forward.1} parent=1 // pred_region
      _
    $region65: #{treedrnet_forward.1} parent=1 // pred_fallthru
      _
    // Predicated region
    $region66: #{treedrnet_forward.1} parent=1 // pred_check
      _
    $region67: #{treedrnet_forward.1} parent=1 // pred_check_branch
      %62 = sbr.rel (0) target = $region69
    $region68: #{treedrnet_forward.1} parent=1 // pred_region
      _
    $region69: #{treedrnet_forward.1} parent=1 // pred_fallthru
      _
    // Predicated region
    $region70: #{treedrnet_forward.1} parent=1 // pred_check
      _
    $region71: #{treedrnet_forward.1} parent=1 // pred_check_branch
      %64 = sbr.rel (0) target = $region73
    $region72: #{treedrnet_forward.1} parent=1 // pred_region
      _
    $region73: #{treedrnet_forward.1} parent=1 // pred_fallthru
      _
    // Predicated region
    $region74: #{treedrnet_forward.1} parent=1 // pred_check
      _
    $region75: #{treedrnet_forward.1} parent=1 // pred_check_branch
      %66 = sbr.rel (0) target = $region77
    $region76: #{treedrnet_forward.1} parent=1 // pred_region
      _
    $region77: #{treedrnet_forward.1} parent=1 // pred_fallthru
      _
    // Predicated region
    $region78: #{treedrnet_forward.1} parent=1 // pred_check
      _
    $region79: #{treedrnet_forward.1} parent=1 // pred_check_branch
      %68 = sbr.rel (0) target = $region81
    $region80: #{treedrnet_forward.1} parent=1 // pred_region
      _
    $region81: #{treedrnet_forward.1} parent=1 // pred_fallthru
      _
    %v70 = vld [vmem:[%s0] sm:$0xf]
    %v71 = vld [vmem:[%s13] sm:$0xff]
    %v72 = vld [vmem:[%s13 + $0x8] sm:$0xff]
    %v73 = vld [vmem:[%s13 + $0x10] sm:$0xff]
    %v74 = vld [vmem:[%s13 + $0x18] sm:$0xff]
    %76 = vrot.lane.b32.xlu0 %v70, 16
    %v77 = vpop.permute.xlu0 %76
    %vm79 = vcmask 130048
    %v80 = vsel %vm79, %v70, %v77
    %v81 = vld [vmem:[%s1] sm:$0xff]
    %v82 = vld [vmem:[%s1 + $0x8] sm:$0xff]
    %v83 = vpack.c.bf16 %v70, %v70
    %v84 = vld [vmem:[%s2] sm:$0x3]
    %v86 = vlaneseq
    %v87 = vshrl.u32 %v86, 7
    %v88 = vsub.s32 0, %v87
    %v89 = vrot.slane %v84, %v88
    %v90 = vlaneseq
    %v91 = vshrl.u32 %v90, 7
    %v92 = vsub.s32 1, %v91
    %v93 = vrot.slane %v84, %v92
    %v98 = vunpack.c.l.b16 %v81
    %v99 = vunpack.c.h.b16 %v81
    %v100 = vunpack.c.l.b16 %v82
    %v101 = vunpack.c.h.b16 %v82
    %v102 = vpack.c.b16 %v100, %v98
    %v103 = vpack.c.b16 %v101, %v99
    %v107 = vsel %vm79, %v83, 0
    %109 = vmatprep.subr.bf16.mxu0 %v103
    %110 = vmatpush1.bf16.msra.mxu0 %v102
    %111 = vmatprep.subr.bf16.mxu0 0
    %112 = vmatpush1.bf16.msra.mxu0 0
    %113 = vmatprep.subr.bf16.mxu0 0
    %114 = vmatpush1.bf16.msra.mxu0 0
    %115 = vmatprep.subr.bf16.mxu0 0
    %116 = vmatpush1.bf16.msra.mxu0 0
    %117 = vmatprep.subr.bf16.mxu0 0
    %118 = vmatpush1.bf16.msra.mxu0 0
    %119 = vmatprep.subr.bf16.mxu0 0
    %120 = vmatpush1.bf16.msra.mxu0 0
    %121 = vmatprep.subr.bf16.mxu0 0
    %122 = vmatpush1.bf16.msra.mxu0 0
    %123 = vmatprep.subr.bf16.mxu0 0
    %124 = vmatpush1.bf16.msra.mxu0 0
    %125 = vmatprep.subr.bf16.mxu0 0
    %126 = vmatpush1.bf16.msra.mxu0 0
    %127 = vmatprep.subr.bf16.mxu0 0
    %128 = vmatpush1.bf16.msra.mxu0 0
    %129 = vmatprep.subr.bf16.mxu0 0
    %130 = vmatpush1.bf16.msra.mxu0 0
    %131 = vmatprep.subr.bf16.mxu0 0
    %132 = vmatpush1.bf16.msra.mxu0 0
    %133 = vmatprep.subr.bf16.mxu0 0
    %134 = vmatpush1.bf16.msra.mxu0 0
    %135 = vmatprep.subr.bf16.mxu0 0
    %136 = vmatpush1.bf16.msra.mxu0 0
    %137 = vmatprep.subr.bf16.mxu0 0
    %138 = vmatpush1.bf16.msra.mxu0 0
    %139 = vmatprep.subr.bf16.mxu0 0
    %140 = vmatpush1.bf16.msra.mxu0 0
    %141 = vmatprep.mubr.bf16.mxu0 0
    %142 = vmatmul.mubr.bf16.gmra.mrb[0].mxu0 %v107
    %v143 = vpop.f32.mrb[0].mxu0
    %v144 = vadd.f32 %v89, %v143
    %v145 = vpop.f32.mrb[0].mxu0
    %v146 = vadd.f32 %v93, %v145
    %v147 = vpop.f32.mrb[0].mxu0
    %v148 = vpop.f32.mrb[0].mxu0
    %149 = vdwg.mxu0
    %v150 = vmax.f32 %v144, 0.0
    %v151 = vmax.f32 %v146, 0.0
    %v152 = vld [vmem:[%s3] sm:$0xff]
    %v153 = vld [vmem:[%s3 + $0x8] sm:$0xff]
    %v154 = vld [vmem:[%s3 + $0x10] sm:$0xff]
    %v155 = vld [vmem:[%s3 + $0x18] sm:$0xff]
    %v156 = vld [vmem:[%s3 + $0x20] sm:$0xff]
    %v157 = vld [vmem:[%s3 + $0x28] sm:$0xff]
    %v158 = vld [vmem:[%s3 + $0x30] sm:$0xff]
    %v159 = vld [vmem:[%s3 + $0x38] sm:$0xff]
    %v160 = vld [vmem:[%s3 + $0x40] sm:$0xff]
    %v161 = vld [vmem:[%s3 + $0x48] sm:$0xff]
    %v162 = vld [vmem:[%s3 + $0x50] sm:$0xff]
    %v163 = vld [vmem:[%s3 + $0x58] sm:$0xff]
    %v164 = vld [vmem:[%s3 + $0x60] sm:$0xff]
    %v165 = vld [vmem:[%s3 + $0x68] sm:$0xff]
    %v166 = vld [vmem:[%s3 + $0x70] sm:$0xff]
    %v167 = vld [vmem:[%s3 + $0x78] sm:$0xff]
    %v168 = vld [vmem:[%s3 + $0x80] sm:$0xff]
    %v169 = vld [vmem:[%s3 + $0x88] sm:$0xff]
    %v170 = vld [vmem:[%s3 + $0x90] sm:$0xff]
    %v171 = vld [vmem:[%s3 + $0x98] sm:$0xff]
    %v172 = vld [vmem:[%s3 + $0xa0] sm:$0xff]
    %v173 = vld [vmem:[%s3 + $0xa8] sm:$0xff]
    %v174 = vld [vmem:[%s3 + $0xb0] sm:$0xff]
    %v175 = vld [vmem:[%s3 + $0xb8] sm:$0xff]
    %v176 = vld [vmem:[%s3 + $0xc0] sm:$0xff]
    %v177 = vld [vmem:[%s3 + $0xc8] sm:$0xff]
    %v178 = vld [vmem:[%s3 + $0xd0] sm:$0xff]
    %v179 = vld [vmem:[%s3 + $0xd8] sm:$0xff]
    %v180 = vld [vmem:[%s3 + $0xe0] sm:$0xff]
    %v181 = vld [vmem:[%s3 + $0xe8] sm:$0xff]
    %v182 = vld [vmem:[%s3 + $0xf0] sm:$0xff]
    %v183 = vld [vmem:[%s3 + $0xf8] sm:$0xff]
    %v184 = vpack.c.bf16 %v150, %v150
    %v185 = vpack.c.bf16 %v151, %v151
    %v186 = vld [vmem:[%s4] sm:$0x3]
    %v188 = vlaneseq
    %v189 = vshrl.u32 %v188, 7
    %v190 = vsub.s32 0, %v189
    %v191 = vrot.slane %v186, %v190
    %v192 = vlaneseq
    %v193 = vshrl.u32 %v192, 7
    %v194 = vsub.s32 1, %v193
    %v195 = vrot.slane %v186, %v194
    %v230 = vunpack.c.l.b16 %v152
    %v231 = vunpack.c.h.b16 %v152
    %v232 = vunpack.c.l.b16 %v153
    %v233 = vunpack.c.h.b16 %v153
    %v234 = vunpack.c.l.b16 %v154
    %v235 = vunpack.c.h.b16 %v154
    %v236 = vunpack.c.l.b16 %v155
    %v237 = vunpack.c.h.b16 %v155
    %v238 = vunpack.c.l.b16 %v156
    %v239 = vunpack.c.h.b16 %v156
    %v240 = vunpack.c.l.b16 %v157
    %v241 = vunpack.c.h.b16 %v157
    %v242 = vunpack.c.l.b16 %v158
    %v243 = vunpack.c.h.b16 %v158
    %v244 = vunpack.c.l.b16 %v159
    %v245 = vunpack.c.h.b16 %v159
    %v246 = vunpack.c.l.b16 %v160
    %v247 = vunpack.c.h.b16 %v160
    %v248 = vunpack.c.l.b16 %v161
    %v249 = vunpack.c.h.b16 %v161
    %v250 = vunpack.c.l.b16 %v162
    %v251 = vunpack.c.h.b16 %v162
    %v252 = vunpack.c.l.b16 %v163
    %v253 = vunpack.c.h.b16 %v163
    %v254 = vunpack.c.l.b16 %v164
    %v255 = vunpack.c.h.b16 %v164
    %v256 = vunpack.c.l.b16 %v165
    %v257 = vunpack.c.h.b16 %v165
    %v258 = vunpack.c.l.b16 %v166
    %v259 = vunpack.c.h.b16 %v166
    %v260 = vunpack.c.l.b16 %v167
    %v261 = vunpack.c.h.b16 %v167
    %v262 = vunpack.c.l.b16 %v168
    %v263 = vunpack.c.h.b16 %v168
    %v264 = vunpack.c.l.b16 %v169
    %v265 = vunpack.c.h.b16 %v169
    %v266 = vunpack.c.l.b16 %v170
    %v267 = vunpack.c.h.b16 %v170
    %v268 = vunpack.c.l.b16 %v171
    %v269 = vunpack.c.h.b16 %v171
    %v270 = vunpack.c.l.b16 %v172
    %v271 = vunpack.c.h.b16 %v172
    %v272 = vunpack.c.l.b16 %v173
    %v273 = vunpack.c.h.b16 %v173
    %v274 = vunpack.c.l.b16 %v174
    %v275 = vunpack.c.h.b16 %v174
    %v276 = vunpack.c.l.b16 %v175
    %v277 = vunpack.c.h.b16 %v175
    %v278 = vunpack.c.l.b16 %v176
    %v279 = vunpack.c.h.b16 %v176
    %v280 = vunpack.c.l.b16 %v177
    %v281 = vunpack.c.h.b16 %v177
    %v282 = vunpack.c.l.b16 %v178
    %v283 = vunpack.c.h.b16 %v178
    %v284 = vunpack.c.l.b16 %v179
    %v285 = vunpack.c.h.b16 %v179
    %v286 = vunpack.c.l.b16 %v180
    %v287 = vunpack.c.h.b16 %v180
    %v288 = vunpack.c.l.b16 %v181
    %v289 = vunpack.c.h.b16 %v181
    %v290 = vunpack.c.l.b16 %v182
    %v291 = vunpack.c.h.b16 %v182
    %v292 = vunpack.c.l.b16 %v183
    %v293 = vunpack.c.h.b16 %v183
    %v294 = vpack.c.b16 %v232, %v230
    %v295 = vpack.c.b16 %v233, %v231
    %v296 = vpack.c.b16 %v236, %v234
    %v297 = vpack.c.b16 %v237, %v235
    %v298 = vpack.c.b16 %v240, %v238
    %v299 = vpack.c.b16 %v241, %v239
    %v300 = vpack.c.b16 %v244, %v242
    %v301 = vpack.c.b16 %v245, %v243
    %v302 = vpack.c.b16 %v248, %v246
    %v303 = vpack.c.b16 %v249, %v247
    %v304 = vpack.c.b16 %v252, %v250
    %v305 = vpack.c.b16 %v253, %v251
    %v306 = vpack.c.b16 %v256, %v254
    %v307 = vpack.c.b16 %v257, %v255
    %v308 = vpack.c.b16 %v260, %v258
    %v309 = vpack.c.b16 %v261, %v259
    %v310 = vpack.c.b16 %v264, %v262
    %v311 = vpack.c.b16 %v265, %v263
    %v312 = vpack.c.b16 %v268, %v266
    %v313 = vpack.c.b16 %v269, %v267
    %v314 = vpack.c.b16 %v272, %v270
    %v315 = vpack.c.b16 %v273, %v271
    %v316 = vpack.c.b16 %v276, %v274
    %v317 = vpack.c.b16 %v277, %v275
    %v318 = vpack.c.b16 %v280, %v278
    %v319 = vpack.c.b16 %v281, %v279
    %v320 = vpack.c.b16 %v284, %v282
    %v321 = vpack.c.b16 %v285, %v283
    %v322 = vpack.c.b16 %v288, %v286
    %v323 = vpack.c.b16 %v289, %v287
    %v324 = vpack.c.b16 %v292, %v290
    %v325 = vpack.c.b16 %v293, %v291
    %358 = vmatprep.subr.bf16.mxu0 %v295
    %359 = vmatpush1.bf16.msra.mxu0 %v294
    %360 = vmatprep.subr.bf16.mxu0 %v297
    %361 = vmatpush1.bf16.msra.mxu0 %v296
    %362 = vmatprep.subr.bf16.mxu0 %v299
    %363 = vmatpush1.bf16.msra.mxu0 %v298
    %364 = vmatprep.subr.bf16.mxu0 %v301
    %365 = vmatpush1.bf16.msra.mxu0 %v300
    %366 = vmatprep.subr.bf16.mxu0 %v303
    %367 = vmatpush1.bf16.msra.mxu0 %v302
    %368 = vmatprep.subr.bf16.mxu0 %v305
    %369 = vmatpush1.bf16.msra.mxu0 %v304
    %370 = vmatprep.subr.bf16.mxu0 %v307
    %371 = vmatpush1.bf16.msra.mxu0 %v306
    %372 = vmatprep.subr.bf16.mxu0 %v309
    %373 = vmatpush1.bf16.msra.mxu0 %v308
    %374 = vmatprep.subr.bf16.mxu0 %v311
    %375 = vmatpush1.bf16.msra.mxu0 %v310
    %376 = vmatprep.subr.bf16.mxu0 %v313
    %377 = vmatpush1.bf16.msra.mxu0 %v312
    %378 = vmatprep.subr.bf16.mxu0 %v315
    %379 = vmatpush1.bf16.msra.mxu0 %v314
    %380 = vmatprep.subr.bf16.mxu0 %v317
    %381 = vmatpush1.bf16.msra.mxu0 %v316
    %382 = vmatprep.subr.bf16.mxu0 %v319
    %383 = vmatpush1.bf16.msra.mxu0 %v318
    %384 = vmatprep.subr.bf16.mxu0 %v321
    %385 = vmatpush1.bf16.msra.mxu0 %v320
    %386 = vmatprep.subr.bf16.mxu0 %v323
    %387 = vmatpush1.bf16.msra.mxu0 %v322
    %388 = vmatprep.subr.bf16.mxu0 %v325
    %389 = vmatpush1.bf16.msra.mxu0 %v324
    %390 = vmatprep.mubr.bf16.mxu0 %v185
    %391 = vmatmul.mubr.bf16.gmra.mrb[0].mxu0 %v184
    %v392 = vpop.f32.mrb[0].mxu0
    %v393 = vadd.f32 %v191, %v392
    %v394 = vpop.f32.mrb[0].mxu0
    %v395 = vadd.f32 %v195, %v394
    %v396 = vpop.f32.mrb[0].mxu0
    %v397 = vpop.f32.mrb[0].mxu0
    %398 = vdwg.mxu0
    %v399 = vmax.f32 %v393, 0.0
    %v400 = vmax.f32 %v395, 0.0
    %v401 = vld [vmem:[%s5] sm:$0xf]
    %v402 = vld [vmem:[%s5 + $0x4] sm:$0xf]
    %v403 = vld [vmem:[%s5 + $0x8] sm:$0xf]
    %v404 = vld [vmem:[%s5 + $0xc] sm:$0xf]
    %v405 = vld [vmem:[%s5 + $0x10] sm:$0xf]
    %v406 = vld [vmem:[%s5 + $0x14] sm:$0xf]
    %v407 = vld [vmem:[%s5 + $0x18] sm:$0xf]
    %v408 = vld [vmem:[%s5 + $0x1c] sm:$0xf]
    %v409 = vld [vmem:[%s5 + $0x20] sm:$0xf]
    %v410 = vld [vmem:[%s5 + $0x24] sm:$0xf]
    %v411 = vld [vmem:[%s5 + $0x28] sm:$0xf]
    %v412 = vld [vmem:[%s5 + $0x2c] sm:$0xf]
    %v413 = vld [vmem:[%s5 + $0x30] sm:$0xf]
    %v414 = vld [vmem:[%s5 + $0x34] sm:$0xf]
    %v415 = vld [vmem:[%s5 + $0x38] sm:$0xf]
    %v416 = vld [vmem:[%s5 + $0x3c] sm:$0xf]
    %v417 = vld [vmem:[%s5 + $0x40] sm:$0xf]
    %v418 = vld [vmem:[%s5 + $0x44] sm:$0xf]
    %v419 = vld [vmem:[%s5 + $0x48] sm:$0xf]
    %v420 = vld [vmem:[%s5 + $0x4c] sm:$0xf]
    %v421 = vld [vmem:[%s5 + $0x50] sm:$0xf]
    %v422 = vld [vmem:[%s5 + $0x54] sm:$0xf]
    %v423 = vld [vmem:[%s5 + $0x58] sm:$0xf]
    %v424 = vld [vmem:[%s5 + $0x5c] sm:$0xf]
    %v425 = vld [vmem:[%s5 + $0x60] sm:$0xf]
    %v426 = vld [vmem:[%s5 + $0x64] sm:$0xf]
    %v427 = vld [vmem:[%s5 + $0x68] sm:$0xf]
    %v428 = vld [vmem:[%s5 + $0x6c] sm:$0xf]
    %v429 = vld [vmem:[%s5 + $0x70] sm:$0xf]
    %v430 = vld [vmem:[%s5 + $0x74] sm:$0xf]
    %v431 = vld [vmem:[%s5 + $0x78] sm:$0xf]
    %v432 = vld [vmem:[%s5 + $0x7c] sm:$0xf]
    %v433 = vpack.c.bf16 %v399, %v399
    %v434 = vpack.c.bf16 %v400, %v400
    %v435 = vld [vmem:[%s6] sm:$0x1]
    %v437 = vlaneseq
    %v438 = vshrl.u32 %v437, 7
    %v439 = vsub.s32 0, %v438
    %v440 = vrot.slane %v435, %v439
    %v474 = vunpack.c.l.b16 %v401
    %v475 = vunpack.c.l.b16 %v402
    %v476 = vunpack.c.l.b16 %v403
    %v477 = vunpack.c.l.b16 %v404
    %v478 = vunpack.c.l.b16 %v405
    %v479 = vunpack.c.l.b16 %v406
    %v480 = vunpack.c.l.b16 %v407
    %v481 = vunpack.c.l.b16 %v408
    %v482 = vunpack.c.l.b16 %v409
    %v483 = vunpack.c.l.b16 %v410
    %v484 = vunpack.c.l.b16 %v411
    %v485 = vunpack.c.l.b16 %v412
    %v486 = vunpack.c.l.b16 %v413
    %v487 = vunpack.c.l.b16 %v414
    %v488 = vunpack.c.l.b16 %v415
    %v489 = vunpack.c.l.b16 %v416
    %v490 = vunpack.c.l.b16 %v417
    %v491 = vunpack.c.l.b16 %v418
    %v492 = vunpack.c.l.b16 %v419
    %v493 = vunpack.c.l.b16 %v420
    %v494 = vunpack.c.l.b16 %v421
    %v495 = vunpack.c.l.b16 %v422
    %v496 = vunpack.c.l.b16 %v423
    %v497 = vunpack.c.l.b16 %v424
    %v498 = vunpack.c.l.b16 %v425
    %v499 = vunpack.c.l.b16 %v426
    %v500 = vunpack.c.l.b16 %v427
    %v501 = vunpack.c.l.b16 %v428
    %v502 = vunpack.c.l.b16 %v429
    %v503 = vunpack.c.l.b16 %v430
    %v504 = vunpack.c.l.b16 %v431
    %v505 = vunpack.c.l.b16 %v432
    %v506 = vpack.c.b16 %v475, %v474
    %v507 = vpack.c.b16 %v477, %v476
    %v508 = vpack.c.b16 %v479, %v478
    %v509 = vpack.c.b16 %v481, %v480
    %v510 = vpack.c.b16 %v483, %v482
    %v511 = vpack.c.b16 %v485, %v484
    %v512 = vpack.c.b16 %v487, %v486
    %v513 = vpack.c.b16 %v489, %v488
    %v514 = vpack.c.b16 %v491, %v490
    %v515 = vpack.c.b16 %v493, %v492
    %v516 = vpack.c.b16 %v495, %v494
    %v517 = vpack.c.b16 %v497, %v496
    %v518 = vpack.c.b16 %v499, %v498
    %v519 = vpack.c.b16 %v501, %v500
    %v520 = vpack.c.b16 %v503, %v502
    %v521 = vpack.c.b16 %v505, %v504
    %538 = vmatprep.subr.bf16.mxu0 0
    %539 = vmatpush1.bf16.msra.mxu0 %v506
    %540 = vmatprep.subr.bf16.mxu0 0
    %541 = vmatpush1.bf16.msra.mxu0 %v507
    %542 = vmatprep.subr.bf16.mxu0 0
    %543 = vmatpush1.bf16.msra.mxu0 %v508
    %544 = vmatprep.subr.bf16.mxu0 0
    %545 = vmatpush1.bf16.msra.mxu0 %v509
    %546 = vmatprep.subr.bf16.mxu0 0
    %547 = vmatpush1.bf16.msra.mxu0 %v510
    %548 = vmatprep.subr.bf16.mxu0 0
    %549 = vmatpush1.bf16.msra.mxu0 %v511
    %550 = vmatprep.subr.bf16.mxu0 0
    %551 = vmatpush1.bf16.msra.mxu0 %v512
    %552 = vmatprep.subr.bf16.mxu0 0
    %553 = vmatpush1.bf16.msra.mxu0 %v513
    %554 = vmatprep.subr.bf16.mxu0 0
    %555 = vmatpush1.bf16.msra.mxu0 %v514
    %556 = vmatprep.subr.bf16.mxu0 0
    %557 = vmatpush1.bf16.msra.mxu0 %v515
    %558 = vmatprep.subr.bf16.mxu0 0
    %559 = vmatpush1.bf16.msra.mxu0 %v516
    %560 = vmatprep.subr.bf16.mxu0 0
    %561 = vmatpush1.bf16.msra.mxu0 %v517
    %562 = vmatprep.subr.bf16.mxu0 0
    %563 = vmatpush1.bf16.msra.mxu0 %v518
    %564 = vmatprep.subr.bf16.mxu0 0
    %565 = vmatpush1.bf16.msra.mxu0 %v519
    %566 = vmatprep.subr.bf16.mxu0 0
    %567 = vmatpush1.bf16.msra.mxu0 %v520
    %568 = vmatprep.subr.bf16.mxu0 0
    %569 = vmatpush1.bf16.msra.mxu0 %v521
    %570 = vmatprep.mubr.bf16.mxu0 %v434
    %571 = vmatmul.mubr.bf16.gmra.mrb[0].mxu0 %v433
    %v572 = vpop.f32.mrb[0].mxu0
    %v573 = vadd.f32 %v440, %v572
    %v574 = vpop.f32.mrb[0].mxu0
    %v575 = vpop.f32.mrb[0].mxu0
    %v576 = vpop.f32.mrb[0].mxu0
    %577 = vdwg.mxu0
    %579 = vrot.lane.b32.xlu0 %v573, 96
    %v580 = vpop.permute.xlu0 %579
    %v582 = vmax.f32 %v573, %v580
    %v583 = vsub.f32 %v573, %v582
    %v584 = vmul.f32 %v583, 1.442695
    %v585 = vpow.pop %v584
    %587 = vrot.lane.b32.xlu0 %v582, 32
    %v588 = vpop.permute.xlu0 %587
    %v590 = vsub.f32 %v573, %v588
    %v591 = vmul.f32 %v590, 1.442695
    %v592 = vpow.pop %v591
    %594 = vrot.lane.b32.xlu0 %v592, 96
    %v595 = vpop.permute.xlu0 %594
    %v597 = vadd.f32 %v585, %v595
    %v598 = vrcp.pop %v597
    %v599 = vmul.f32 %v585, %v598
    %v600 = vmul.f32 %v80, %v599
    %v601 = vld [vmem:[%s7] sm:$0xff]
    %v602 = vld [vmem:[%s7 + $0x8] sm:$0xff]
    %v603 = vld [vmem:[%s7 + $0x10] sm:$0xff]
    %v604 = vld [vmem:[%s7 + $0x18] sm:$0xff]
    %v605 = vpack.c.bf16 %v600, %v600
    %v606 = vld [vmem:[%s8] sm:$0x3]
    %v608 = vlaneseq
    %v609 = vshrl.u32 %v608, 7
    %v610 = vsub.s32 0, %v609
    %v611 = vrot.slane %v606, %v610
    %v612 = vlaneseq
    %v613 = vshrl.u32 %v612, 7
    %v614 = vsub.s32 1, %v613
    %v615 = vrot.slane %v606, %v614
    %v622 = vunpack.c.l.b16 %v601
    %v623 = vunpack.c.h.b16 %v601
    %v624 = vunpack.c.l.b16 %v602
    %v625 = vunpack.c.h.b16 %v602
    %v626 = vunpack.c.l.b16 %v603
    %v627 = vunpack.c.h.b16 %v603
    %v628 = vunpack.c.l.b16 %v604
    %v629 = vunpack.c.h.b16 %v604
    %v630 = vpack.c.b16 %v624, %v622
    %v631 = vpack.c.b16 %v625, %v623
    %v632 = vpack.c.b16 %v628, %v626
    %v633 = vpack.c.b16 %v629, %v627
    %vm638 = vcmask 261120
    %v640 = vsel %vm638, %v605, 0
    %642 = vmatprep.subr.bf16.mxu0 %v631
    %643 = vmatpush1.bf16.msra.mxu0 %v630
    %644 = vmatprep.subr.bf16.mxu0 %v633
    %645 = vmatpush1.bf16.msra.mxu0 %v632
    %646 = vmatprep.subr.bf16.mxu0 0
    %647 = vmatpush1.bf16.msra.mxu0 0
    %648 = vmatprep.subr.bf16.mxu0 0
    %649 = vmatpush1.bf16.msra.mxu0 0
    %650 = vmatprep.subr.bf16.mxu0 0
    %651 = vmatpush1.bf16.msra.mxu0 0
    %652 = vmatprep.subr.bf16.mxu0 0
    %653 = vmatpush1.bf16.msra.mxu0 0
    %654 = vmatprep.subr.bf16.mxu0 0
    %655 = vmatpush1.bf16.msra.mxu0 0
    %656 = vmatprep.subr.bf16.mxu0 0
    %657 = vmatpush1.bf16.msra.mxu0 0
    %658 = vmatprep.subr.bf16.mxu0 0
    %659 = vmatpush1.bf16.msra.mxu0 0
    %660 = vmatprep.subr.bf16.mxu0 0
    %661 = vmatpush1.bf16.msra.mxu0 0
    %662 = vmatprep.subr.bf16.mxu0 0
    %663 = vmatpush1.bf16.msra.mxu0 0
    %664 = vmatprep.subr.bf16.mxu0 0
    %665 = vmatpush1.bf16.msra.mxu0 0
    %666 = vmatprep.subr.bf16.mxu0 0
    %667 = vmatpush1.bf16.msra.mxu0 0
    %668 = vmatprep.subr.bf16.mxu0 0
    %669 = vmatpush1.bf16.msra.mxu0 0
    %670 = vmatprep.subr.bf16.mxu0 0
    %671 = vmatpush1.bf16.msra.mxu0 0
    %672 = vmatprep.subr.bf16.mxu0 0
    %673 = vmatpush1.bf16.msra.mxu0 0
    %674 = vmatprep.mubr.bf16.mxu0 0
    %675 = vmatmul.mubr.bf16.gmra.mrb[0].mxu0 %v640
    %v676 = vpop.f32.mrb[0].mxu0
    %v677 = vadd.f32 %v611, %v676
    %v678 = vpop.f32.mrb[0].mxu0
    %v679 = vadd.f32 %v615, %v678
    %v680 = vpop.f32.mrb[0].mxu0
    %v681 = vpop.f32.mrb[0].mxu0
    %682 = vdwg.mxu0
    %v683 = vmax.f32 %v677, 0.0
    %v684 = vmax.f32 %v679, 0.0
    %v685 = vld [vmem:[%s9] sm:$0xff]
    %v686 = vld [vmem:[%s9 + $0x8] sm:$0xff]
    %v687 = vld [vmem:[%s9 + $0x10] sm:$0xff]
    %v688 = vld [vmem:[%s9 + $0x18] sm:$0xff]
    %v689 = vld [vmem:[%s9 + $0x20] sm:$0xff]
    %v690 = vld [vmem:[%s9 + $0x28] sm:$0xff]
    %v691 = vld [vmem:[%s9 + $0x30] sm:$0xff]
    %v692 = vld [vmem:[%s9 + $0x38] sm:$0xff]
    %v693 = vld [vmem:[%s9 + $0x40] sm:$0xff]
    %v694 = vld [vmem:[%s9 + $0x48] sm:$0xff]
    %v695 = vld [vmem:[%s9 + $0x50] sm:$0xff]
    %v696 = vld [vmem:[%s9 + $0x58] sm:$0xff]
    %v697 = vld [vmem:[%s9 + $0x60] sm:$0xff]
    %v698 = vld [vmem:[%s9 + $0x68] sm:$0xff]
    %v699 = vld [vmem:[%s9 + $0x70] sm:$0xff]
    %v700 = vld [vmem:[%s9 + $0x78] sm:$0xff]
    %v701 = vld [vmem:[%s9 + $0x80] sm:$0xff]
    %v702 = vld [vmem:[%s9 + $0x88] sm:$0xff]
    %v703 = vld [vmem:[%s9 + $0x90] sm:$0xff]
    %v704 = vld [vmem:[%s9 + $0x98] sm:$0xff]
    %v705 = vld [vmem:[%s9 + $0xa0] sm:$0xff]
    %v706 = vld [vmem:[%s9 + $0xa8] sm:$0xff]
    %v707 = vld [vmem:[%s9 + $0xb0] sm:$0xff]
    %v708 = vld [vmem:[%s9 + $0xb8] sm:$0xff]
    %v709 = vld [vmem:[%s9 + $0xc0] sm:$0xff]
    %v710 = vld [vmem:[%s9 + $0xc8] sm:$0xff]
    %v711 = vld [vmem:[%s9 + $0xd0] sm:$0xff]
    %v712 = vld [vmem:[%s9 + $0xd8] sm:$0xff]
    %v713 = vld [vmem:[%s9 + $0xe0] sm:$0xff]
    %v714 = vld [vmem:[%s9 + $0xe8] sm:$0xff]
    %v715 = vld [vmem:[%s9 + $0xf0] sm:$0xff]
    %v716 = vld [vmem:[%s9 + $0xf8] sm:$0xff]
    %v717 = vpack.c.bf16 %v683, %v683
    %v718 = vpack.c.bf16 %v684, %v684
    %v719 = vld [vmem:[%s10] sm:$0x3]
    %v721 = vlaneseq
    %v722 = vshrl.u32 %v721, 7
    %v723 = vsub.s32 0, %v722
    %v724 = vrot.slane %v719, %v723
    %v725 = vlaneseq
    %v726 = vshrl.u32 %v725, 7
    %v727 = vsub.s32 1, %v726
    %v728 = vrot.slane %v719, %v727
    %v763 = vunpack.c.l.b16 %v685
    %v764 = vunpack.c.h.b16 %v685
    %v765 = vunpack.c.l.b16 %v686
    %v766 = vunpack.c.h.b16 %v686
    %v767 = vunpack.c.l.b16 %v687
    %v768 = vunpack.c.h.b16 %v687
    %v769 = vunpack.c.l.b16 %v688
    %v770 = vunpack.c.h.b16 %v688
    %v771 = vunpack.c.l.b16 %v689
    %v772 = vunpack.c.h.b16 %v689
    %v773 = vunpack.c.l.b16 %v690
    %v774 = vunpack.c.h.b16 %v690
    %v775 = vunpack.c.l.b16 %v691
    %v776 = vunpack.c.h.b16 %v691
    %v777 = vunpack.c.l.b16 %v692
    %v778 = vunpack.c.h.b16 %v692
    %v779 = vunpack.c.l.b16 %v693
    %v780 = vunpack.c.h.b16 %v693
    %v781 = vunpack.c.l.b16 %v694
    %v782 = vunpack.c.h.b16 %v694
    %v783 = vunpack.c.l.b16 %v695
    %v784 = vunpack.c.h.b16 %v695
    %v785 = vunpack.c.l.b16 %v696
    %v786 = vunpack.c.h.b16 %v696
    %v787 = vunpack.c.l.b16 %v697
    %v788 = vunpack.c.h.b16 %v697
    %v789 = vunpack.c.l.b16 %v698
    %v790 = vunpack.c.h.b16 %v698
    %v791 = vunpack.c.l.b16 %v699
    %v792 = vunpack.c.h.b16 %v699
    %v793 = vunpack.c.l.b16 %v700
    %v794 = vunpack.c.h.b16 %v700
    %v795 = vunpack.c.l.b16 %v701
    %v796 = vunpack.c.h.b16 %v701
    %v797 = vunpack.c.l.b16 %v702
    %v798 = vunpack.c.h.b16 %v702
    %v799 = vunpack.c.l.b16 %v703
    %v800 = vunpack.c.h.b16 %v703
    %v801 = vunpack.c.l.b16 %v704
    %v802 = vunpack.c.h.b16 %v704
    %v803 = vunpack.c.l.b16 %v705
    %v804 = vunpack.c.h.b16 %v705
    %v805 = vunpack.c.l.b16 %v706
    %v806 = vunpack.c.h.b16 %v706
    %v807 = vunpack.c.l.b16 %v707
    %v808 = vunpack.c.h.b16 %v707
    %v809 = vunpack.c.l.b16 %v708
    %v810 = vunpack.c.h.b16 %v708
    %v811 = vunpack.c.l.b16 %v709
    %v812 = vunpack.c.h.b16 %v709
    %v813 = vunpack.c.l.b16 %v710
    %v814 = vunpack.c.h.b16 %v710
    %v815 = vunpack.c.l.b16 %v711
    %v816 = vunpack.c.h.b16 %v711
    %v817 = vunpack.c.l.b16 %v712
    %v818 = vunpack.c.h.b16 %v712
    %v819 = vunpack.c.l.b16 %v713
    %v820 = vunpack.c.h.b16 %v713
    %v821 = vunpack.c.l.b16 %v714
    %v822 = vunpack.c.h.b16 %v714
    %v823 = vunpack.c.l.b16 %v715
    %v824 = vunpack.c.h.b16 %v715
    %v825 = vunpack.c.l.b16 %v716
    %v826 = vunpack.c.h.b16 %v716
    %v827 = vpack.c.b16 %v765, %v763
    %v828 = vpack.c.b16 %v766, %v764
    %v829 = vpack.c.b16 %v769, %v767
    %v830 = vpack.c.b16 %v770, %v768
    %v831 = vpack.c.b16 %v773, %v771
    %v832 = vpack.c.b16 %v774, %v772
    %v833 = vpack.c.b16 %v777, %v775
    %v834 = vpack.c.b16 %v778, %v776
    %v835 = vpack.c.b16 %v781, %v779
    %v836 = vpack.c.b16 %v782, %v780
    %v837 = vpack.c.b16 %v785, %v783
    %v838 = vpack.c.b16 %v786, %v784
    %v839 = vpack.c.b16 %v789, %v787
    %v840 = vpack.c.b16 %v790, %v788
    %v841 = vpack.c.b16 %v793, %v791
    %v842 = vpack.c.b16 %v794, %v792
    %v843 = vpack.c.b16 %v797, %v795
    %v844 = vpack.c.b16 %v798, %v796
    %v845 = vpack.c.b16 %v801, %v799
    %v846 = vpack.c.b16 %v802, %v800
    %v847 = vpack.c.b16 %v805, %v803
    %v848 = vpack.c.b16 %v806, %v804
    %v849 = vpack.c.b16 %v809, %v807
    %v850 = vpack.c.b16 %v810, %v808
    %v851 = vpack.c.b16 %v813, %v811
    %v852 = vpack.c.b16 %v814, %v812
    %v853 = vpack.c.b16 %v817, %v815
    %v854 = vpack.c.b16 %v818, %v816
    %v855 = vpack.c.b16 %v821, %v819
    %v856 = vpack.c.b16 %v822, %v820
    %v857 = vpack.c.b16 %v825, %v823
    %v858 = vpack.c.b16 %v826, %v824
    %891 = vmatprep.subr.bf16.mxu0 %v828
    %892 = vmatpush1.bf16.msra.mxu0 %v827
    %893 = vmatprep.subr.bf16.mxu0 %v830
    %894 = vmatpush1.bf16.msra.mxu0 %v829
    %895 = vmatprep.subr.bf16.mxu0 %v832
    %896 = vmatpush1.bf16.msra.mxu0 %v831
    %897 = vmatprep.subr.bf16.mxu0 %v834
    %898 = vmatpush1.bf16.msra.mxu0 %v833
    %899 = vmatprep.subr.bf16.mxu0 %v836
    %900 = vmatpush1.bf16.msra.mxu0 %v835
    %901 = vmatprep.subr.bf16.mxu0 %v838
    %902 = vmatpush1.bf16.msra.mxu0 %v837
    %903 = vmatprep.subr.bf16.mxu0 %v840
    %904 = vmatpush1.bf16.msra.mxu0 %v839
    %905 = vmatprep.subr.bf16.mxu0 %v842
    %906 = vmatpush1.bf16.msra.mxu0 %v841
    %907 = vmatprep.subr.bf16.mxu0 %v844
    %908 = vmatpush1.bf16.msra.mxu0 %v843
    %909 = vmatprep.subr.bf16.mxu0 %v846
    %910 = vmatpush1.bf16.msra.mxu0 %v845
    %911 = vmatprep.subr.bf16.mxu0 %v848
    %912 = vmatpush1.bf16.msra.mxu0 %v847
    %913 = vmatprep.subr.bf16.mxu0 %v850
    %914 = vmatpush1.bf16.msra.mxu0 %v849
    %915 = vmatprep.subr.bf16.mxu0 %v852
    %916 = vmatpush1.bf16.msra.mxu0 %v851
    %917 = vmatprep.subr.bf16.mxu0 %v854
    %918 = vmatpush1.bf16.msra.mxu0 %v853
    %919 = vmatprep.subr.bf16.mxu0 %v856
    %920 = vmatpush1.bf16.msra.mxu0 %v855
    %921 = vmatprep.subr.bf16.mxu0 %v858
    %922 = vmatpush1.bf16.msra.mxu0 %v857
    %923 = vmatprep.mubr.bf16.mxu0 %v718
    %924 = vmatmul.mubr.bf16.gmra.mrb[0].mxu0 %v717
    %v925 = vpop.f32.mrb[0].mxu0
    %v926 = vadd.f32 %v724, %v925
    %v927 = vpop.f32.mrb[0].mxu0
    %v928 = vadd.f32 %v728, %v927
    %v929 = vpop.f32.mrb[0].mxu0
    %v930 = vpop.f32.mrb[0].mxu0
    %931 = vdwg.mxu0
    %v932 = vmax.f32 %v926, 0.0
    %v933 = vmax.f32 %v928, 0.0
    %v934 = vld [vmem:[%s11] sm:$0xf]
    %v935 = vld [vmem:[%s11 + $0x4] sm:$0xf]
    %v936 = vld [vmem:[%s11 + $0x8] sm:$0xf]
    %v937 = vld [vmem:[%s11 + $0xc] sm:$0xf]
    %v938 = vld [vmem:[%s11 + $0x10] sm:$0xf]
    %v939 = vld [vmem:[%s11 + $0x14] sm:$0xf]
    %v940 = vld [vmem:[%s11 + $0x18] sm:$0xf]
    %v941 = vld [vmem:[%s11 + $0x1c] sm:$0xf]
    %v942 = vld [vmem:[%s11 + $0x20] sm:$0xf]
    %v943 = vld [vmem:[%s11 + $0x24] sm:$0xf]
    %v944 = vld [vmem:[%s11 + $0x28] sm:$0xf]
    %v945 = vld [vmem:[%s11 + $0x2c] sm:$0xf]
    %v946 = vld [vmem:[%s11 + $0x30] sm:$0xf]
    %v947 = vld [vmem:[%s11 + $0x34] sm:$0xf]
    %v948 = vld [vmem:[%s11 + $0x38] sm:$0xf]
    %v949 = vld [vmem:[%s11 + $0x3c] sm:$0xf]
    %v950 = vld [vmem:[%s11 + $0x40] sm:$0xf]
    %v951 = vld [vmem:[%s11 + $0x44] sm:$0xf]
    %v952 = vld [vmem:[%s11 + $0x48] sm:$0xf]
    %v953 = vld [vmem:[%s11 + $0x4c] sm:$0xf]
    %v954 = vld [vmem:[%s11 + $0x50] sm:$0xf]
    %v955 = vld [vmem:[%s11 + $0x54] sm:$0xf]
    %v956 = vld [vmem:[%s11 + $0x58] sm:$0xf]
    %v957 = vld [vmem:[%s11 + $0x5c] sm:$0xf]
    %v958 = vld [vmem:[%s11 + $0x60] sm:$0xf]
    %v959 = vld [vmem:[%s11 + $0x64] sm:$0xf]
    %v960 = vld [vmem:[%s11 + $0x68] sm:$0xf]
    %v961 = vld [vmem:[%s11 + $0x6c] sm:$0xf]
    %v962 = vld [vmem:[%s11 + $0x70] sm:$0xf]
    %v963 = vld [vmem:[%s11 + $0x74] sm:$0xf]
    %v964 = vld [vmem:[%s11 + $0x78] sm:$0xf]
    %v965 = vld [vmem:[%s11 + $0x7c] sm:$0xf]
    %v966 = vpack.c.bf16 %v932, %v932
    %v967 = vpack.c.bf16 %v933, %v933
    %v968 = vld [vmem:[%s12] sm:$0x1]
    %v970 = vlaneseq
    %v971 = vshrl.u32 %v970, 7
    %v972 = vsub.s32 0, %v971
    %v973 = vrot.slane %v968, %v972
    %v1007 = vunpack.c.l.b16 %v934
    %v1008 = vunpack.c.l.b16 %v935
    %v1009 = vunpack.c.l.b16 %v936
    %v1010 = vunpack.c.l.b16 %v937
    %v1011 = vunpack.c.l.b16 %v938
    %v1012 = vunpack.c.l.b16 %v939
    %v1013 = vunpack.c.l.b16 %v940
    %v1014 = vunpack.c.l.b16 %v941
    %v1015 = vunpack.c.l.b16 %v942
    %v1016 = vunpack.c.l.b16 %v943
    %v1017 = vunpack.c.l.b16 %v944
    %v1018 = vunpack.c.l.b16 %v945
    %v1019 = vunpack.c.l.b16 %v946
    %v1020 = vunpack.c.l.b16 %v947
    %v1021 = vunpack.c.l.b16 %v948
    %v1022 = vunpack.c.l.b16 %v949
    %v1023 = vunpack.c.l.b16 %v950
    %v1024 = vunpack.c.l.b16 %v951
    %v1025 = vunpack.c.l.b16 %v952
    %v1026 = vunpack.c.l.b16 %v953
    %v1027 = vunpack.c.l.b16 %v954
    %v1028 = vunpack.c.l.b16 %v955
    %v1029 = vunpack.c.l.b16 %v956
    %v1030 = vunpack.c.l.b16 %v957
    %v1031 = vunpack.c.l.b16 %v958
    %v1032 = vunpack.c.l.b16 %v959
    %v1033 = vunpack.c.l.b16 %v960
    %v1034 = vunpack.c.l.b16 %v961
    %v1035 = vunpack.c.l.b16 %v962
    %v1036 = vunpack.c.l.b16 %v963
    %v1037 = vunpack.c.l.b16 %v964
    %v1038 = vunpack.c.l.b16 %v965
    %v1039 = vpack.c.b16 %v1008, %v1007
    %v1040 = vpack.c.b16 %v1010, %v1009
    %v1041 = vpack.c.b16 %v1012, %v1011
    %v1042 = vpack.c.b16 %v1014, %v1013
    %v1043 = vpack.c.b16 %v1016, %v1015
    %v1044 = vpack.c.b16 %v1018, %v1017
    %v1045 = vpack.c.b16 %v1020, %v1019
    %v1046 = vpack.c.b16 %v1022, %v1021
    %v1047 = vpack.c.b16 %v1024, %v1023
    %v1048 = vpack.c.b16 %v1026, %v1025
    %v1049 = vpack.c.b16 %v1028, %v1027
    %v1050 = vpack.c.b16 %v1030, %v1029
    %v1051 = vpack.c.b16 %v1032, %v1031
    %v1052 = vpack.c.b16 %v1034, %v1033
    %v1053 = vpack.c.b16 %v1036, %v1035
    %v1054 = vpack.c.b16 %v1038, %v1037
    %1071 = vmatprep.subr.bf16.mxu0 0
    %1072 = vmatpush1.bf16.msra.mxu0 %v1039
    %1073 = vmatprep.subr.bf16.mxu0 0
    %1074 = vmatpush1.bf16.msra.mxu0 %v1040
    %1075 = vmatprep.subr.bf16.mxu0 0
    %1076 = vmatpush1.bf16.msra.mxu0 %v1041
    %1077 = vmatprep.subr.bf16.mxu0 0
    %1078 = vmatpush1.bf16.msra.mxu0 %v1042
    %1079 = vmatprep.subr.bf16.mxu0 0
    %1080 = vmatpush1.bf16.msra.mxu0 %v1043
    %1081 = vmatprep.subr.bf16.mxu0 0
    %1082 = vmatpush1.bf16.msra.mxu0 %v1044
    %1083 = vmatprep.subr.bf16.mxu0 0
    %1084 = vmatpush1.bf16.msra.mxu0 %v1045
    %1085 = vmatprep.subr.bf16.mxu0 0
    %1086 = vmatpush1.bf16.msra.mxu0 %v1046
    %1087 = vmatprep.subr.bf16.mxu0 0
    %1088 = vmatpush1.bf16.msra.mxu0 %v1047
    %1089 = vmatprep.subr.bf16.mxu0 0
    %1090 = vmatpush1.bf16.msra.mxu0 %v1048
    %1091 = vmatprep.subr.bf16.mxu0 0
    %1092 = vmatpush1.bf16.msra.mxu0 %v1049
    %1093 = vmatprep.subr.bf16.mxu0 0
    %1094 = vmatpush1.bf16.msra.mxu0 %v1050
    %1095 = vmatprep.subr.bf16.mxu0 0
    %1096 = vmatpush1.bf16.msra.mxu0 %v1051
    %1097 = vmatprep.subr.bf16.mxu0 0
    %1098 = vmatpush1.bf16.msra.mxu0 %v1052
    %1099 = vmatprep.subr.bf16.mxu0 0
    %1100 = vmatpush1.bf16.msra.mxu0 %v1053
    %1101 = vmatprep.subr.bf16.mxu0 0
    %1102 = vmatpush1.bf16.msra.mxu0 %v1054
    %1103 = vmatprep.mubr.bf16.mxu0 %v967
    %1104 = vmatmul.mubr.bf16.gmra.mrb[0].mxu0 %v966
    %v1105 = vpop.f32.mrb[0].mxu0
    %v1106 = vadd.f32 %v973, %v1105
    %v1107 = vpop.f32.mrb[0].mxu0
    %v1108 = vpop.f32.mrb[0].mxu0
    %v1109 = vpop.f32.mrb[0].mxu0
    %1110 = vdwg.mxu0
    %v1111 = vsub.f32 %v600, %v1106
    %v1112 = vadd.f32 %v1106, 0.0
    %s1113 = scalar_lea.vmem %s7, 32
    %v1114 = vld [vmem:[%s1113] sm:$0xff]
    %v1115 = vld [vmem:[%s1113 + $0x8] sm:$0xff]
    %v1116 = vld [vmem:[%s1113 + $0x10] sm:$0xff]
    %v1117 = vld [vmem:[%s1113 + $0x18] sm:$0xff]
    %v1118 = vpack.c.bf16 %v1111, %v1111
    %s1119 = scalar_lea.vmem %s8, 2
    %v1120 = vld [vmem:[%s1119] sm:$0x3]
    %v1122 = vlaneseq
    %v1123 = vshrl.u32 %v1122, 7
    %v1124 = vsub.s32 0, %v1123
    %v1125 = vrot.slane %v1120, %v1124
    %v1126 = vlaneseq
    %v1127 = vshrl.u32 %v1126, 7
    %v1128 = vsub.s32 1, %v1127
    %v1129 = vrot.slane %v1120, %v1128
    %v1136 = vunpack.c.l.b16 %v1114
    %v1137 = vunpack.c.h.b16 %v1114
    %v1138 = vunpack.c.l.b16 %v1115
    %v1139 = vunpack.c.h.b16 %v1115
    %v1140 = vunpack.c.l.b16 %v1116
    %v1141 = vunpack.c.h.b16 %v1116
    %v1142 = vunpack.c.l.b16 %v1117
    %v1143 = vunpack.c.h.b16 %v1117
    %v1144 = vpack.c.b16 %v1138, %v1136
    %v1145 = vpack.c.b16 %v1139, %v1137
    %v1146 = vpack.c.b16 %v1142, %v1140
    %v1147 = vpack.c.b16 %v1143, %v1141
    %v1153 = vsel %vm638, %v1118, 0
    %1155 = vmatprep.subr.bf16.mxu0 %v1145
    %1156 = vmatpush1.bf16.msra.mxu0 %v1144
    %1157 = vmatprep.subr.bf16.mxu0 %v1147
    %1158 = vmatpush1.bf16.msra.mxu0 %v1146
    %1159 = vmatprep.subr.bf16.mxu0 0
    %1160 = vmatpush1.bf16.msra.mxu0 0
    %1161 = vmatprep.subr.bf16.mxu0 0
    %1162 = vmatpush1.bf16.msra.mxu0 0
    %1163 = vmatprep.subr.bf16.mxu0 0
    %1164 = vmatpush1.bf16.msra.mxu0 0
    %1165 = vmatprep.subr.bf16.mxu0 0
    %1166 = vmatpush1.bf16.msra.mxu0 0
    %1167 = vmatprep.subr.bf16.mxu0 0
    %1168 = vmatpush1.bf16.msra.mxu0 0
    %1169 = vmatprep.subr.bf16.mxu0 0
    %1170 = vmatpush1.bf16.msra.mxu0 0
    %1171 = vmatprep.subr.bf16.mxu0 0
    %1172 = vmatpush1.bf16.msra.mxu0 0
    %1173 = vmatprep.subr.bf16.mxu0 0
    %1174 = vmatpush1.bf16.msra.mxu0 0
    %1175 = vmatprep.subr.bf16.mxu0 0
    %1176 = vmatpush1.bf16.msra.mxu0 0
    %1177 = vmatprep.subr.bf16.mxu0 0
    %1178 = vmatpush1.bf16.msra.mxu0 0
    %1179 = vmatprep.subr.bf16.mxu0 0
    %1180 = vmatpush1.bf16.msra.mxu0 0
    %1181 = vmatprep.subr.bf16.mxu0 0
    %1182 = vmatpush1.bf16.msra.mxu0 0
    %1183 = vmatprep.subr.bf16.mxu0 0
    %1184 = vmatpush1.bf16.msra.mxu0 0
    %1185 = vmatprep.subr.bf16.mxu0 0
    %1186 = vmatpush1.bf16.msra.mxu0 0
    %1187 = vmatprep.mubr.bf16.mxu0 0
    %1188 = vmatmul.mubr.bf16.gmra.mrb[0].mxu0 %v1153
    %v1189 = vpop.f32.mrb[0].mxu0
    %v1190 = vadd.f32 %v1125, %v1189
    %v1191 = vpop.f32.mrb[0].mxu0
    %v1192 = vadd.f32 %v1129, %v1191
    %v1193 = vpop.f32.mrb[0].mxu0
    %v1194 = vpop.f32.mrb[0].mxu0
    %1195 = vdwg.mxu0
    %v1196 = vmax.f32 %v1190, 0.0
    %v1197 = vmax.f32 %v1192, 0.0
    %s1198 = scalar_lea.vmem %s9, 256
    %v1199 = vld [vmem:[%s1198] sm:$0xff]
    %v1200 = vld [vmem:[%s1198 + $0x8] sm:$0xff]
    %v1201 = vld [vmem:[%s1198 + $0x10] sm:$0xff]
    %v1202 = vld [vmem:[%s1198 + $0x18] sm:$0xff]
    %v1203 = vld [vmem:[%s1198 + $0x20] sm:$0xff]
    %v1204 = vld [vmem:[%s1198 + $0x28] sm:$0xff]
    %v1205 = vld [vmem:[%s1198 + $0x30] sm:$0xff]
    %v1206 = vld [vmem:[%s1198 + $0x38] sm:$0xff]
    %v1207 = vld [vmem:[%s1198 + $0x40] sm:$0xff]
    %v1208 = vld [vmem:[%s1198 + $0x48] sm:$0xff]
    %v1209 = vld [vmem:[%s1198 + $0x50] sm:$0xff]
    %v1210 = vld [vmem:[%s1198 + $0x58] sm:$0xff]
    %v1211 = vld [vmem:[%s1198 + $0x60] sm:$0xff]
    %v1212 = vld [vmem:[%s1198 + $0x68] sm:$0xff]
    %v1213 = vld [vmem:[%s1198 + $0x70] sm:$0xff]
    %v1214 = vld [vmem:[%s1198 + $0x78] sm:$0xff]
    %v1215 = vld [vmem:[%s1198 + $0x80] sm:$0xff]
    %v1216 = vld [vmem:[%s1198 + $0x88] sm:$0xff]
    %v1217 = vld [vmem:[%s1198 + $0x90] sm:$0xff]
    %v1218 = vld [vmem:[%s1198 + $0x98] sm:$0xff]
    %v1219 = vld [vmem:[%s1198 + $0xa0] sm:$0xff]
    %v1220 = vld [vmem:[%s1198 + $0xa8] sm:$0xff]
    %v1221 = vld [vmem:[%s1198 + $0xb0] sm:$0xff]
    %v1222 = vld [vmem:[%s1198 + $0xb8] sm:$0xff]
    %v1223 = vld [vmem:[%s1198 + $0xc0] sm:$0xff]
    %v1224 = vld [vmem:[%s1198 + $0xc8] sm:$0xff]
    %v1225 = vld [vmem:[%s1198 + $0xd0] sm:$0xff]
    %v1226 = vld [vmem:[%s1198 + $0xd8] sm:$0xff]
    %v1227 = vld [vmem:[%s1198 + $0xe0] sm:$0xff]
    %v1228 = vld [vmem:[%s1198 + $0xe8] sm:$0xff]
    %v1229 = vld [vmem:[%s1198 + $0xf0] sm:$0xff]
    %v1230 = vld [vmem:[%s1198 + $0xf8] sm:$0xff]
    %v1231 = vpack.c.bf16 %v1196, %v1196
    %v1232 = vpack.c.bf16 %v1197, %v1197
    %s1233 = scalar_lea.vmem %s10, 2
    %v1234 = vld [vmem:[%s1233] sm:$0x3]
    %v1236 = vlaneseq
    %v1237 = vshrl.u32 %v1236, 7
    %v1238 = vsub.s32 0, %v1237
    %v1239 = vrot.slane %v1234, %v1238
    %v1240 = vlaneseq
    %v1241 = vshrl.u32 %v1240, 7
    %v1242 = vsub.s32 1, %v1241
    %v1243 = vrot.slane %v1234, %v1242
    %v1278 = vunpack.c.l.b16 %v1199
    %v1279 = vunpack.c.h.b16 %v1199
    %v1280 = vunpack.c.l.b16 %v1200
    %v1281 = vunpack.c.h.b16 %v1200
    %v1282 = vunpack.c.l.b16 %v1201
    %v1283 = vunpack.c.h.b16 %v1201
    %v1284 = vunpack.c.l.b16 %v1202
    %v1285 = vunpack.c.h.b16 %v1202
    %v1286 = vunpack.c.l.b16 %v1203
    %v1287 = vunpack.c.h.b16 %v1203
    %v1288 = vunpack.c.l.b16 %v1204
    %v1289 = vunpack.c.h.b16 %v1204
    %v1290 = vunpack.c.l.b16 %v1205
    %v1291 = vunpack.c.h.b16 %v1205
    %v1292 = vunpack.c.l.b16 %v1206
    %v1293 = vunpack.c.h.b16 %v1206
    %v1294 = vunpack.c.l.b16 %v1207
    %v1295 = vunpack.c.h.b16 %v1207
    %v1296 = vunpack.c.l.b16 %v1208
    %v1297 = vunpack.c.h.b16 %v1208
    %v1298 = vunpack.c.l.b16 %v1209
    %v1299 = vunpack.c.h.b16 %v1209
    %v1300 = vunpack.c.l.b16 %v1210
    %v1301 = vunpack.c.h.b16 %v1210
    %v1302 = vunpack.c.l.b16 %v1211
    %v1303 = vunpack.c.h.b16 %v1211
    %v1304 = vunpack.c.l.b16 %v1212
    %v1305 = vunpack.c.h.b16 %v1212
    %v1306 = vunpack.c.l.b16 %v1213
    %v1307 = vunpack.c.h.b16 %v1213
    %v1308 = vunpack.c.l.b16 %v1214
    %v1309 = vunpack.c.h.b16 %v1214
    %v1310 = vunpack.c.l.b16 %v1215
    %v1311 = vunpack.c.h.b16 %v1215
    %v1312 = vunpack.c.l.b16 %v1216
    %v1313 = vunpack.c.h.b16 %v1216
    %v1314 = vunpack.c.l.b16 %v1217
    %v1315 = vunpack.c.h.b16 %v1217
    %v1316 = vunpack.c.l.b16 %v1218
    %v1317 = vunpack.c.h.b16 %v1218
    %v1318 = vunpack.c.l.b16 %v1219
    %v1319 = vunpack.c.h.b16 %v1219
    %v1320 = vunpack.c.l.b16 %v1220
    %v1321 = vunpack.c.h.b16 %v1220
    %v1322 = vunpack.c.l.b16 %v1221
    %v1323 = vunpack.c.h.b16 %v1221
    %v1324 = vunpack.c.l.b16 %v1222
    %v1325 = vunpack.c.h.b16 %v1222
    %v1326 = vunpack.c.l.b16 %v1223
    %v1327 = vunpack.c.h.b16 %v1223
    %v1328 = vunpack.c.l.b16 %v1224
    %v1329 = vunpack.c.h.b16 %v1224
    %v1330 = vunpack.c.l.b16 %v1225
    %v1331 = vunpack.c.h.b16 %v1225
    %v1332 = vunpack.c.l.b16 %v1226
    %v1333 = vunpack.c.h.b16 %v1226
    %v1334 = vunpack.c.l.b16 %v1227
    %v1335 = vunpack.c.h.b16 %v1227
    %v1336 = vunpack.c.l.b16 %v1228
    %v1337 = vunpack.c.h.b16 %v1228
    %v1338 = vunpack.c.l.b16 %v1229
    %v1339 = vunpack.c.h.b16 %v1229
    %v1340 = vunpack.c.l.b16 %v1230
    %v1341 = vunpack.c.h.b16 %v1230
    %v1342 = vpack.c.b16 %v1280, %v1278
    %v1343 = vpack.c.b16 %v1281, %v1279
    %v1344 = vpack.c.b16 %v1284, %v1282
    %v1345 = vpack.c.b16 %v1285, %v1283
    %v1346 = vpack.c.b16 %v1288, %v1286
    %v1347 = vpack.c.b16 %v1289, %v1287
    %v1348 = vpack.c.b16 %v1292, %v1290
    %v1349 = vpack.c.b16 %v1293, %v1291
    %v1350 = vpack.c.b16 %v1296, %v1294
    %v1351 = vpack.c.b16 %v1297, %v1295
    %v1352 = vpack.c.b16 %v1300, %v1298
    %v1353 = vpack.c.b16 %v1301, %v1299
    %v1354 = vpack.c.b16 %v1304, %v1302
    %v1355 = vpack.c.b16 %v1305, %v1303
    %v1356 = vpack.c.b16 %v1308, %v1306
    %v1357 = vpack.c.b16 %v1309, %v1307
    %v1358 = vpack.c.b16 %v1312, %v1310
    %v1359 = vpack.c.b16 %v1313, %v1311
    %v1360 = vpack.c.b16 %v1316, %v1314
    %v1361 = vpack.c.b16 %v1317, %v1315
    %v1362 = vpack.c.b16 %v1320, %v1318
    %v1363 = vpack.c.b16 %v1321, %v1319
    %v1364 = vpack.c.b16 %v1324, %v1322
    %v1365 = vpack.c.b16 %v1325, %v1323
    %v1366 = vpack.c.b16 %v1328, %v1326
    %v1367 = vpack.c.b16 %v1329, %v1327
    %v1368 = vpack.c.b16 %v1332, %v1330
    %v1369 = vpack.c.b16 %v1333, %v1331
    %v1370 = vpack.c.b16 %v1336, %v1334
    %v1371 = vpack.c.b16 %v1337, %v1335
    %v1372 = vpack.c.b16 %v1340, %v1338
    %v1373 = vpack.c.b16 %v1341, %v1339
    %1406 = vmatprep.subr.bf16.mxu0 %v1343
    %1407 = vmatpush1.bf16.msra.mxu0 %v1342
    %1408 = vmatprep.subr.bf16.mxu0 %v1345
    %1409 = vmatpush1.bf16.msra.mxu0 %v1344
    %1410 = vmatprep.subr.bf16.mxu0 %v1347
    %1411 = vmatpush1.bf16.msra.mxu0 %v1346
    %1412 = vmatprep.subr.bf16.mxu0 %v1349
    %1413 = vmatpush1.bf16.msra.mxu0 %v1348
    %1414 = vmatprep.subr.bf16.mxu0 %v1351
    %1415 = vmatpush1.bf16.msra.mxu0 %v1350
    %1416 = vmatprep.subr.bf16.mxu0 %v1353
    %1417 = vmatpush1.bf16.msra.mxu0 %v1352
    %1418 = vmatprep.subr.bf16.mxu0 %v1355
    %1419 = vmatpush1.bf16.msra.mxu0 %v1354
    %1420 = vmatprep.subr.bf16.mxu0 %v1357
    %1421 = vmatpush1.bf16.msra.mxu0 %v1356
    %1422 = vmatprep.subr.bf16.mxu0 %v1359
    %1423 = vmatpush1.bf16.msra.mxu0 %v1358
    %1424 = vmatprep.subr.bf16.mxu0 %v1361
    %1425 = vmatpush1.bf16.msra.mxu0 %v1360
    %1426 = vmatprep.subr.bf16.mxu0 %v1363
    %1427 = vmatpush1.bf16.msra.mxu0 %v1362
    %1428 = vmatprep.subr.bf16.mxu0 %v1365
    %1429 = vmatpush1.bf16.msra.mxu0 %v1364
    %1430 = vmatprep.subr.bf16.mxu0 %v1367
    %1431 = vmatpush1.bf16.msra.mxu0 %v1366
    %1432 = vmatprep.subr.bf16.mxu0 %v1369
    %1433 = vmatpush1.bf16.msra.mxu0 %v1368
    %1434 = vmatprep.subr.bf16.mxu0 %v1371
    %1435 = vmatpush1.bf16.msra.mxu0 %v1370
    %1436 = vmatprep.subr.bf16.mxu0 %v1373
    %1437 = vmatpush1.bf16.msra.mxu0 %v1372
    %1438 = vmatprep.mubr.bf16.mxu0 %v1232
    %1439 = vmatmul.mubr.bf16.gmra.mrb[0].mxu0 %v1231
    %v1440 = vpop.f32.mrb[0].mxu0
    %v1441 = vadd.f32 %v1239, %v1440
    %v1442 = vpop.f32.mrb[0].mxu0
    %v1443 = vadd.f32 %v1243, %v1442
    %v1444 = vpop.f32.mrb[0].mxu0
    %v1445 = vpop.f32.mrb[0].mxu0
    %1446 = vdwg.mxu0
    %v1447 = vmax.f32 %v1441, 0.0
    %v1448 = vmax.f32 %v1443, 0.0
    %s1449 = scalar_lea.vmem %s11, 128
    %v1450 = vld [vmem:[%s1449] sm:$0xf]
    %v1451 = vld [vmem:[%s1449 + $0x4] sm:$0xf]
    %v1452 = vld [vmem:[%s1449 + $0x8] sm:$0xf]
    %v1453 = vld [vmem:[%s1449 + $0xc] sm:$0xf]
    %v1454 = vld [vmem:[%s1449 + $0x10] sm:$0xf]
    %v1455 = vld [vmem:[%s1449 + $0x14] sm:$0xf]
    %v1456 = vld [vmem:[%s1449 + $0x18] sm:$0xf]
    %v1457 = vld [vmem:[%s1449 + $0x1c] sm:$0xf]
    %v1458 = vld [vmem:[%s1449 + $0x20] sm:$0xf]
    %v1459 = vld [vmem:[%s1449 + $0x24] sm:$0xf]
    %v1460 = vld [vmem:[%s1449 + $0x28] sm:$0xf]
    %v1461 = vld [vmem:[%s1449 + $0x2c] sm:$0xf]
    %v1462 = vld [vmem:[%s1449 + $0x30] sm:$0xf]
    %v1463 = vld [vmem:[%s1449 + $0x34] sm:$0xf]
    %v1464 = vld [vmem:[%s1449 + $0x38] sm:$0xf]
    %v1465 = vld [vmem:[%s1449 + $0x3c] sm:$0xf]
    %v1466 = vld [vmem:[%s1449 + $0x40] sm:$0xf]
    %v1467 = vld [vmem:[%s1449 + $0x44] sm:$0xf]
    %v1468 = vld [vmem:[%s1449 + $0x48] sm:$0xf]
    %v1469 = vld [vmem:[%s1449 + $0x4c] sm:$0xf]
    %v1470 = vld [vmem:[%s1449 + $0x50] sm:$0xf]
    %v1471 = vld [vmem:[%s1449 + $0x54] sm:$0xf]
    %v1472 = vld [vmem:[%s1449 + $0x58] sm:$0xf]
    %v1473 = vld [vmem:[%s1449 + $0x5c] sm:$0xf]
    %v1474 = vld [vmem:[%s1449 + $0x60] sm:$0xf]
    %v1475 = vld [vmem:[%s1449 + $0x64] sm:$0xf]
    %v1476 = vld [vmem:[%s1449 + $0x68] sm:$0xf]
    %v1477 = vld [vmem:[%s1449 + $0x6c] sm:$0xf]
    %v1478 = vld [vmem:[%s1449 + $0x70] sm:$0xf]
    %v1479 = vld [vmem:[%s1449 + $0x74] sm:$0xf]
    %v1480 = vld [vmem:[%s1449 + $0x78] sm:$0xf]
    %v1481 = vld [vmem:[%s1449 + $0x7c] sm:$0xf]
    %v1482 = vpack.c.bf16 %v1447, %v1447
    %v1483 = vpack.c.bf16 %v1448, %v1448
    %s1484 = scalar_lea.vmem %s12, 1
    %v1485 = vld [vmem:[%s1484] sm:$0x1]
    %v1487 = vlaneseq
    %v1488 = vshrl.u32 %v1487, 7
    %v1489 = vsub.s32 0, %v1488
    %v1490 = vrot.slane %v1485, %v1489
    %v1524 = vunpack.c.l.b16 %v1450
    %v1525 = vunpack.c.l.b16 %v1451
    %v1526 = vunpack.c.l.b16 %v1452
    %v1527 = vunpack.c.l.b16 %v1453
    %v1528 = vunpack.c.l.b16 %v1454
    %v1529 = vunpack.c.l.b16 %v1455
    %v1530 = vunpack.c.l.b16 %v1456
    %v1531 = vunpack.c.l.b16 %v1457
    %v1532 = vunpack.c.l.b16 %v1458
    %v1533 = vunpack.c.l.b16 %v1459
    %v1534 = vunpack.c.l.b16 %v1460
    %v1535 = vunpack.c.l.b16 %v1461
    %v1536 = vunpack.c.l.b16 %v1462
    %v1537 = vunpack.c.l.b16 %v1463
    %v1538 = vunpack.c.l.b16 %v1464
    %v1539 = vunpack.c.l.b16 %v1465
    %v1540 = vunpack.c.l.b16 %v1466
    %v1541 = vunpack.c.l.b16 %v1467
    %v1542 = vunpack.c.l.b16 %v1468
    %v1543 = vunpack.c.l.b16 %v1469
    %v1544 = vunpack.c.l.b16 %v1470
    %v1545 = vunpack.c.l.b16 %v1471
    %v1546 = vunpack.c.l.b16 %v1472
    %v1547 = vunpack.c.l.b16 %v1473
    %v1548 = vunpack.c.l.b16 %v1474
    %v1549 = vunpack.c.l.b16 %v1475
    %v1550 = vunpack.c.l.b16 %v1476
    %v1551 = vunpack.c.l.b16 %v1477
    %v1552 = vunpack.c.l.b16 %v1478
    %v1553 = vunpack.c.l.b16 %v1479
    %v1554 = vunpack.c.l.b16 %v1480
    %v1555 = vunpack.c.l.b16 %v1481
    %v1556 = vpack.c.b16 %v1525, %v1524
    %v1557 = vpack.c.b16 %v1527, %v1526
    %v1558 = vpack.c.b16 %v1529, %v1528
    %v1559 = vpack.c.b16 %v1531, %v1530
    %v1560 = vpack.c.b16 %v1533, %v1532
    %v1561 = vpack.c.b16 %v1535, %v1534
    %v1562 = vpack.c.b16 %v1537, %v1536
    %v1563 = vpack.c.b16 %v1539, %v1538
    %v1564 = vpack.c.b16 %v1541, %v1540
    %v1565 = vpack.c.b16 %v1543, %v1542
    %v1566 = vpack.c.b16 %v1545, %v1544
    %v1567 = vpack.c.b16 %v1547, %v1546
    %v1568 = vpack.c.b16 %v1549, %v1548
    %v1569 = vpack.c.b16 %v1551, %v1550
    %v1570 = vpack.c.b16 %v1553, %v1552
    %v1571 = vpack.c.b16 %v1555, %v1554
    %1588 = vmatprep.subr.bf16.mxu0 0
    %1589 = vmatpush1.bf16.msra.mxu0 %v1556
    %1590 = vmatprep.subr.bf16.mxu0 0
    %1591 = vmatpush1.bf16.msra.mxu0 %v1557
    %1592 = vmatprep.subr.bf16.mxu0 0
    %1593 = vmatpush1.bf16.msra.mxu0 %v1558
    %1594 = vmatprep.subr.bf16.mxu0 0
    %1595 = vmatpush1.bf16.msra.mxu0 %v1559
    %1596 = vmatprep.subr.bf16.mxu0 0
    %1597 = vmatpush1.bf16.msra.mxu0 %v1560
    %1598 = vmatprep.subr.bf16.mxu0 0
    %1599 = vmatpush1.bf16.msra.mxu0 %v1561
    %1600 = vmatprep.subr.bf16.mxu0 0
    %1601 = vmatpush1.bf16.msra.mxu0 %v1562
    %1602 = vmatprep.subr.bf16.mxu0 0
    %1603 = vmatpush1.bf16.msra.mxu0 %v1563
    %1604 = vmatprep.subr.bf16.mxu0 0
    %1605 = vmatpush1.bf16.msra.mxu0 %v1564
    %1606 = vmatprep.subr.bf16.mxu0 0
    %1607 = vmatpush1.bf16.msra.mxu0 %v1565
    %1608 = vmatprep.subr.bf16.mxu0 0
    %1609 = vmatpush1.bf16.msra.mxu0 %v1566
    %1610 = vmatprep.subr.bf16.mxu0 0
    %1611 = vmatpush1.bf16.msra.mxu0 %v1567
    %1612 = vmatprep.subr.bf16.mxu0 0
    %1613 = vmatpush1.bf16.msra.mxu0 %v1568
    %1614 = vmatprep.subr.bf16.mxu0 0
    %1615 = vmatpush1.bf16.msra.mxu0 %v1569
    %1616 = vmatprep.subr.bf16.mxu0 0
    %1617 = vmatpush1.bf16.msra.mxu0 %v1570
    %1618 = vmatprep.subr.bf16.mxu0 0
    %1619 = vmatpush1.bf16.msra.mxu0 %v1571
    %1620 = vmatprep.mubr.bf16.mxu0 %v1483
    %1621 = vmatmul.mubr.bf16.gmra.mrb[0].mxu0 %v1482
    %v1622 = vpop.f32.mrb[0].mxu0
    %v1623 = vadd.f32 %v1490, %v1622
    %v1624 = vpop.f32.mrb[0].mxu0
    %v1625 = vpop.f32.mrb[0].mxu0
    %v1626 = vpop.f32.mrb[0].mxu0
    %1627 = vdwg.mxu0
    %v1628 = vsub.f32 %v1111, %v1623
    %v1629 = vadd.f32 %v1112, %v1623
    %s1630 = scalar_lea.vmem %s7, 64
    %v1631 = vld [vmem:[%s1630] sm:$0xff]
    %v1632 = vld [vmem:[%s1630 + $0x8] sm:$0xff]
    %v1633 = vld [vmem:[%s1630 + $0x10] sm:$0xff]
    %v1634 = vld [vmem:[%s1630 + $0x18] sm:$0xff]
    %v1635 = vpack.c.bf16 %v1628, %v1628
    %s1636 = scalar_lea.vmem %s8, 4
    %v1637 = vld [vmem:[%s1636] sm:$0x3]
    %v1639 = vlaneseq
    %v1640 = vshrl.u32 %v1639, 7
    %v1641 = vsub.s32 0, %v1640
    %v1642 = vrot.slane %v1637, %v1641
    %v1643 = vlaneseq
    %v1644 = vshrl.u32 %v1643, 7
    %v1645 = vsub.s32 1, %v1644
    %v1646 = vrot.slane %v1637, %v1645
    %v1653 = vunpack.c.l.b16 %v1631
    %v1654 = vunpack.c.h.b16 %v1631
    %v1655 = vunpack.c.l.b16 %v1632
    %v1656 = vunpack.c.h.b16 %v1632
    %v1657 = vunpack.c.l.b16 %v1633
    %v1658 = vunpack.c.h.b16 %v1633
    %v1659 = vunpack.c.l.b16 %v1634
    %v1660 = vunpack.c.h.b16 %v1634
    %v1661 = vpack.c.b16 %v1655, %v1653
    %v1662 = vpack.c.b16 %v1656, %v1654
    %v1663 = vpack.c.b16 %v1659, %v1657
    %v1664 = vpack.c.b16 %v1660, %v1658
    %v1670 = vsel %vm638, %v1635, 0
    %1672 = vmatprep.subr.bf16.mxu0 %v1662
    %1673 = vmatpush1.bf16.msra.mxu0 %v1661
    %1674 = vmatprep.subr.bf16.mxu0 %v1664
    %1675 = vmatpush1.bf16.msra.mxu0 %v1663
    %1676 = vmatprep.subr.bf16.mxu0 0
    %1677 = vmatpush1.bf16.msra.mxu0 0
    %1678 = vmatprep.subr.bf16.mxu0 0
    %1679 = vmatpush1.bf16.msra.mxu0 0
    %1680 = vmatprep.subr.bf16.mxu0 0
    %1681 = vmatpush1.bf16.msra.mxu0 0
    %1682 = vmatprep.subr.bf16.mxu0 0
    %1683 = vmatpush1.bf16.msra.mxu0 0
    %1684 = vmatprep.subr.bf16.mxu0 0
    %1685 = vmatpush1.bf16.msra.mxu0 0
    %1686 = vmatprep.subr.bf16.mxu0 0
    %1687 = vmatpush1.bf16.msra.mxu0 0
    %1688 = vmatprep.subr.bf16.mxu0 0
    %1689 = vmatpush1.bf16.msra.mxu0 0
    %1690 = vmatprep.subr.bf16.mxu0 0
    %1691 = vmatpush1.bf16.msra.mxu0 0
    %1692 = vmatprep.subr.bf16.mxu0 0
    %1693 = vmatpush1.bf16.msra.mxu0 0
    %1694 = vmatprep.subr.bf16.mxu0 0
    %1695 = vmatpush1.bf16.msra.mxu0 0
    %1696 = vmatprep.subr.bf16.mxu0 0
    %1697 = vmatpush1.bf16.msra.mxu0 0
    %1698 = vmatprep.subr.bf16.mxu0 0
    %1699 = vmatpush1.bf16.msra.mxu0 0
    %1700 = vmatprep.subr.bf16.mxu0 0
    %1701 = vmatpush1.bf16.msra.mxu0 0
    %1702 = vmatprep.subr.bf16.mxu0 0
    %1703 = vmatpush1.bf16.msra.mxu0 0
    %1704 = vmatprep.mubr.bf16.mxu0 0
    %1705 = vmatmul.mubr.bf16.gmra.mrb[0].mxu0 %v1670
    %v1706 = vpop.f32.mrb[0].mxu0
    %v1707 = vadd.f32 %v1642, %v1706
    %v1708 = vpop.f32.mrb[0].mxu0
    %v1709 = vadd.f32 %v1646, %v1708
    %v1710 = vpop.f32.mrb[0].mxu0
    %v1711 = vpop.f32.mrb[0].mxu0
    %1712 = vdwg.mxu0
    %v1713 = vmax.f32 %v1707, 0.0
    %v1714 = vmax.f32 %v1709, 0.0
    %s1715 = scalar_lea.vmem %s9, 512
    %v1716 = vld [vmem:[%s1715] sm:$0xff]
    %v1717 = vld [vmem:[%s1715 + $0x8] sm:$0xff]
    %v1718 = vld [vmem:[%s1715 + $0x10] sm:$0xff]
    %v1719 = vld [vmem:[%s1715 + $0x18] sm:$0xff]
    %v1720 = vld [vmem:[%s1715 + $0x20] sm:$0xff]
    %v1721 = vld [vmem:[%s1715 + $0x28] sm:$0xff]
    %v1722 = vld [vmem:[%s1715 + $0x30] sm:$0xff]
    %v1723 = vld [vmem:[%s1715 + $0x38] sm:$0xff]
    %v1724 = vld [vmem:[%s1715 + $0x40] sm:$0xff]
    %v1725 = vld [vmem:[%s1715 + $0x48] sm:$0xff]
    %v1726 = vld [vmem:[%s1715 + $0x50] sm:$0xff]
    %v1727 = vld [vmem:[%s1715 + $0x58] sm:$0xff]
    %v1728 = vld [vmem:[%s1715 + $0x60] sm:$0xff]
    %v1729 = vld [vmem:[%s1715 + $0x68] sm:$0xff]
    %v1730 = vld [vmem:[%s1715 + $0x70] sm:$0xff]
    %v1731 = vld [vmem:[%s1715 + $0x78] sm:$0xff]
    %v1732 = vld [vmem:[%s1715 + $0x80] sm:$0xff]
    %v1733 = vld [vmem:[%s1715 + $0x88] sm:$0xff]
    %v1734 = vld [vmem:[%s1715 + $0x90] sm:$0xff]
    %v1735 = vld [vmem:[%s1715 + $0x98] sm:$0xff]
    %v1736 = vld [vmem:[%s1715 + $0xa0] sm:$0xff]
    %v1737 = vld [vmem:[%s1715 + $0xa8] sm:$0xff]
    %v1738 = vld [vmem:[%s1715 + $0xb0] sm:$0xff]
    %v1739 = vld [vmem:[%s1715 + $0xb8] sm:$0xff]
    %v1740 = vld [vmem:[%s1715 + $0xc0] sm:$0xff]
    %v1741 = vld [vmem:[%s1715 + $0xc8] sm:$0xff]
    %v1742 = vld [vmem:[%s1715 + $0xd0] sm:$0xff]
    %v1743 = vld [vmem:[%s1715 + $0xd8] sm:$0xff]
    %v1744 = vld [vmem:[%s1715 + $0xe0] sm:$0xff]
    %v1745 = vld [vmem:[%s1715 + $0xe8] sm:$0xff]
    %v1746 = vld [vmem:[%s1715 + $0xf0] sm:$0xff]
    %v1747 = vld [vmem:[%s1715 + $0xf8] sm:$0xff]
    %v1748 = vpack.c.bf16 %v1713, %v1713
    %v1749 = vpack.c.bf16 %v1714, %v1714
    %s1750 = scalar_lea.vmem %s10, 4
    %v1751 = vld [vmem:[%s1750] sm:$0x3]
    %v1753 = vlaneseq
    %v1754 = vshrl.u32 %v1753, 7
    %v1755 = vsub.s32 0, %v1754
    %v1756 = vrot.slane %v1751, %v1755
    %v1757 = vlaneseq
    %v1758 = vshrl.u32 %v1757, 7
    %v1759 = vsub.s32 1, %v1758
    %v1760 = vrot.slane %v1751, %v1759
    %v1795 = vunpack.c.l.b16 %v1716
    %v1796 = vunpack.c.h.b16 %v1716
    %v1797 = vunpack.c.l.b16 %v1717
    %v1798 = vunpack.c.h.b16 %v1717
    %v1799 = vunpack.c.l.b16 %v1718
    %v1800 = vunpack.c.h.b16 %v1718
    %v1801 = vunpack.c.l.b16 %v1719
    %v1802 = vunpack.c.h.b16 %v1719
    %v1803 = vunpack.c.l.b16 %v1720
    %v1804 = vunpack.c.h.b16 %v1720
    %v1805 = vunpack.c.l.b16 %v1721
    %v1806 = vunpack.c.h.b16 %v1721
    %v1807 = vunpack.c.l.b16 %v1722
    %v1808 = vunpack.c.h.b16 %v1722
    %v1809 = vunpack.c.l.b16 %v1723
    %v1810 = vunpack.c.h.b16 %v1723
    %v1811 = vunpack.c.l.b16 %v1724
    %v1812 = vunpack.c.h.b16 %v1724
    %v1813 = vunpack.c.l.b16 %v1725
    %v1814 = vunpack.c.h.b16 %v1725
    %v1815 = vunpack.c.l.b16 %v1726
    %v1816 = vunpack.c.h.b16 %v1726
    %v1817 = vunpack.c.l.b16 %v1727
    %v1818 = vunpack.c.h.b16 %v1727
    %v1819 = vunpack.c.l.b16 %v1728
    %v1820 = vunpack.c.h.b16 %v1728
    %v1821 = vunpack.c.l.b16 %v1729
    %v1822 = vunpack.c.h.b16 %v1729
    %v1823 = vunpack.c.l.b16 %v1730
    %v1824 = vunpack.c.h.b16 %v1730
    %v1825 = vunpack.c.l.b16 %v1731
    %v1826 = vunpack.c.h.b16 %v1731
    %v1827 = vunpack.c.l.b16 %v1732
    %v1828 = vunpack.c.h.b16 %v1732
    %v1829 = vunpack.c.l.b16 %v1733
    %v1830 = vunpack.c.h.b16 %v1733
    %v1831 = vunpack.c.l.b16 %v1734
    %v1832 = vunpack.c.h.b16 %v1734
    %v1833 = vunpack.c.l.b16 %v1735
    %v1834 = vunpack.c.h.b16 %v1735
    %v1835 = vunpack.c.l.b16 %v1736
    %v1836 = vunpack.c.h.b16 %v1736
    %v1837 = vunpack.c.l.b16 %v1737
    %v1838 = vunpack.c.h.b16 %v1737
    %v1839 = vunpack.c.l.b16 %v1738
    %v1840 = vunpack.c.h.b16 %v1738
    %v1841 = vunpack.c.l.b16 %v1739
    %v1842 = vunpack.c.h.b16 %v1739
    %v1843 = vunpack.c.l.b16 %v1740
    %v1844 = vunpack.c.h.b16 %v1740
    %v1845 = vunpack.c.l.b16 %v1741
    %v1846 = vunpack.c.h.b16 %v1741
    %v1847 = vunpack.c.l.b16 %v1742
    %v1848 = vunpack.c.h.b16 %v1742
    %v1849 = vunpack.c.l.b16 %v1743
    %v1850 = vunpack.c.h.b16 %v1743
    %v1851 = vunpack.c.l.b16 %v1744
    %v1852 = vunpack.c.h.b16 %v1744
    %v1853 = vunpack.c.l.b16 %v1745
    %v1854 = vunpack.c.h.b16 %v1745
    %v1855 = vunpack.c.l.b16 %v1746
    %v1856 = vunpack.c.h.b16 %v1746
    %v1857 = vunpack.c.l.b16 %v1747
    %v1858 = vunpack.c.h.b16 %v1747
    %v1859 = vpack.c.b16 %v1797, %v1795
    %v1860 = vpack.c.b16 %v1798, %v1796
    %v1861 = vpack.c.b16 %v1801, %v1799
    %v1862 = vpack.c.b16 %v1802, %v1800
    %v1863 = vpack.c.b16 %v1805, %v1803
    %v1864 = vpack.c.b16 %v1806, %v1804
    %v1865 = vpack.c.b16 %v1809, %v1807
    %v1866 = vpack.c.b16 %v1810, %v1808
    %v1867 = vpack.c.b16 %v1813, %v1811
    %v1868 = vpack.c.b16 %v1814, %v1812
    %v1869 = vpack.c.b16 %v1817, %v1815
    %v1870 = vpack.c.b16 %v1818, %v1816
    %v1871 = vpack.c.b16 %v1821, %v1819
    %v1872 = vpack.c.b16 %v1822, %v1820
    %v1873 = vpack.c.b16 %v1825, %v1823
    %v1874 = vpack.c.b16 %v1826, %v1824
    %v1875 = vpack.c.b16 %v1829, %v1827
    %v1876 = vpack.c.b16 %v1830, %v1828
    %v1877 = vpack.c.b16 %v1833, %v1831
    %v1878 = vpack.c.b16 %v1834, %v1832
    %v1879 = vpack.c.b16 %v1837, %v1835
    %v1880 = vpack.c.b16 %v1838, %v1836
    %v1881 = vpack.c.b16 %v1841, %v1839
    %v1882 = vpack.c.b16 %v1842, %v1840
    %v1883 = vpack.c.b16 %v1845, %v1843
    %v1884 = vpack.c.b16 %v1846, %v1844
    %v1885 = vpack.c.b16 %v1849, %v1847
    %v1886 = vpack.c.b16 %v1850, %v1848
    %v1887 = vpack.c.b16 %v1853, %v1851
    %v1888 = vpack.c.b16 %v1854, %v1852
    %v1889 = vpack.c.b16 %v1857, %v1855
    %v1890 = vpack.c.b16 %v1858, %v1856
    %1923 = vmatprep.subr.bf16.mxu0 %v1860
    %1924 = vmatpush1.bf16.msra.mxu0 %v1859
    %1925 = vmatprep.subr.bf16.mxu0 %v1862
    %1926 = vmatpush1.bf16.msra.mxu0 %v1861
    %1927 = vmatprep.subr.bf16.mxu0 %v1864
    %1928 = vmatpush1.bf16.msra.mxu0 %v1863
    %1929 = vmatprep.subr.bf16.mxu0 %v1866
    %1930 = vmatpush1.bf16.msra.mxu0 %v1865
    %1931 = vmatprep.subr.bf16.mxu0 %v1868
    %1932 = vmatpush1.bf16.msra.mxu0 %v1867
    %1933 = vmatprep.subr.bf16.mxu0 %v1870
    %1934 = vmatpush1.bf16.msra.mxu0 %v1869
    %1935 = vmatprep.subr.bf16.mxu0 %v1872
    %1936 = vmatpush1.bf16.msra.mxu0 %v1871
    %1937 = vmatprep.subr.bf16.mxu0 %v1874
    %1938 = vmatpush1.bf16.msra.mxu0 %v1873
    %1939 = vmatprep.subr.bf16.mxu0 %v1876
    %1940 = vmatpush1.bf16.msra.mxu0 %v1875
    %1941 = vmatprep.subr.bf16.mxu0 %v1878
    %1942 = vmatpush1.bf16.msra.mxu0 %v1877
    %1943 = vmatprep.subr.bf16.mxu0 %v1880
    %1944 = vmatpush1.bf16.msra.mxu0 %v1879
    %1945 = vmatprep.subr.bf16.mxu0 %v1882
    %1946 = vmatpush1.bf16.msra.mxu0 %v1881
    %1947 = vmatprep.subr.bf16.mxu0 %v1884
    %1948 = vmatpush1.bf16.msra.mxu0 %v1883
    %1949 = vmatprep.subr.bf16.mxu0 %v1886
    %1950 = vmatpush1.bf16.msra.mxu0 %v1885
    %1951 = vmatprep.subr.bf16.mxu0 %v1888
    %1952 = vmatpush1.bf16.msra.mxu0 %v1887
    %1953 = vmatprep.subr.bf16.mxu0 %v1890
    %1954 = vmatpush1.bf16.msra.mxu0 %v1889
    %1955 = vmatprep.mubr.bf16.mxu0 %v1749
    %1956 = vmatmul.mubr.bf16.gmra.mrb[0].mxu0 %v1748
    %v1957 = vpop.f32.mrb[0].mxu0
    %v1958 = vadd.f32 %v1756, %v1957
    %v1959 = vpop.f32.mrb[0].mxu0
    %v1960 = vadd.f32 %v1760, %v1959
    %v1961 = vpop.f32.mrb[0].mxu0
    %v1962 = vpop.f32.mrb[0].mxu0
    %1963 = vdwg.mxu0
    %v1964 = vmax.f32 %v1958, 0.0
    %v1965 = vmax.f32 %v1960, 0.0
    %s1966 = scalar_lea.vmem %s11, 256
    %v1967 = vld [vmem:[%s1966] sm:$0xf]
    %v1968 = vld [vmem:[%s1966 + $0x4] sm:$0xf]
    %v1969 = vld [vmem:[%s1966 + $0x8] sm:$0xf]
    %v1970 = vld [vmem:[%s1966 + $0xc] sm:$0xf]
    %v1971 = vld [vmem:[%s1966 + $0x10] sm:$0xf]
    %v1972 = vld [vmem:[%s1966 + $0x14] sm:$0xf]
    %v1973 = vld [vmem:[%s1966 + $0x18] sm:$0xf]
    %v1974 = vld [vmem:[%s1966 + $0x1c] sm:$0xf]
    %v1975 = vld [vmem:[%s1966 + $0x20] sm:$0xf]
    %v1976 = vld [vmem:[%s1966 + $0x24] sm:$0xf]
    %v1977 = vld [vmem:[%s1966 + $0x28] sm:$0xf]
    %v1978 = vld [vmem:[%s1966 + $0x2c] sm:$0xf]
    %v1979 = vld [vmem:[%s1966 + $0x30] sm:$0xf]
    %v1980 = vld [vmem:[%s1966 + $0x34] sm:$0xf]
    %v1981 = vld [vmem:[%s1966 + $0x38] sm:$0xf]
    %v1982 = vld [vmem:[%s1966 + $0x3c] sm:$0xf]
    %v1983 = vld [vmem:[%s1966 + $0x40] sm:$0xf]
    %v1984 = vld [vmem:[%s1966 + $0x44] sm:$0xf]
    %v1985 = vld [vmem:[%s1966 + $0x48] sm:$0xf]
    %v1986 = vld [vmem:[%s1966 + $0x4c] sm:$0xf]
    %v1987 = vld [vmem:[%s1966 + $0x50] sm:$0xf]
    %v1988 = vld [vmem:[%s1966 + $0x54] sm:$0xf]
    %v1989 = vld [vmem:[%s1966 + $0x58] sm:$0xf]
    %v1990 = vld [vmem:[%s1966 + $0x5c] sm:$0xf]
    %v1991 = vld [vmem:[%s1966 + $0x60] sm:$0xf]
    %v1992 = vld [vmem:[%s1966 + $0x64] sm:$0xf]
    %v1993 = vld [vmem:[%s1966 + $0x68] sm:$0xf]
    %v1994 = vld [vmem:[%s1966 + $0x6c] sm:$0xf]
    %v1995 = vld [vmem:[%s1966 + $0x70] sm:$0xf]
    %v1996 = vld [vmem:[%s1966 + $0x74] sm:$0xf]
    %v1997 = vld [vmem:[%s1966 + $0x78] sm:$0xf]
    %v1998 = vld [vmem:[%s1966 + $0x7c] sm:$0xf]
    %v1999 = vpack.c.bf16 %v1964, %v1964
    %v2000 = vpack.c.bf16 %v1965, %v1965
    %s2001 = scalar_lea.vmem %s12, 2
    %v2002 = vld [vmem:[%s2001] sm:$0x1]
    %v2004 = vlaneseq
    %v2005 = vshrl.u32 %v2004, 7
    %v2006 = vsub.s32 0, %v2005
    %v2007 = vrot.slane %v2002, %v2006
    %v2041 = vunpack.c.l.b16 %v1967
    %v2042 = vunpack.c.l.b16 %v1968
    %v2043 = vunpack.c.l.b16 %v1969
    %v2044 = vunpack.c.l.b16 %v1970
    %v2045 = vunpack.c.l.b16 %v1971
    %v2046 = vunpack.c.l.b16 %v1972
    %v2047 = vunpack.c.l.b16 %v1973
    %v2048 = vunpack.c.l.b16 %v1974
    %v2049 = vunpack.c.l.b16 %v1975
    %v2050 = vunpack.c.l.b16 %v1976
    %v2051 = vunpack.c.l.b16 %v1977
    %v2052 = vunpack.c.l.b16 %v1978
    %v2053 = vunpack.c.l.b16 %v1979
    %v2054 = vunpack.c.l.b16 %v1980
    %v2055 = vunpack.c.l.b16 %v1981
    %v2056 = vunpack.c.l.b16 %v1982
    %v2057 = vunpack.c.l.b16 %v1983
    %v2058 = vunpack.c.l.b16 %v1984
    %v2059 = vunpack.c.l.b16 %v1985
    %v2060 = vunpack.c.l.b16 %v1986
    %v2061 = vunpack.c.l.b16 %v1987
    %v2062 = vunpack.c.l.b16 %v1988
    %v2063 = vunpack.c.l.b16 %v1989
    %v2064 = vunpack.c.l.b16 %v1990
    %v2065 = vunpack.c.l.b16 %v1991
    %v2066 = vunpack.c.l.b16 %v1992
    %v2067 = vunpack.c.l.b16 %v1993
    %v2068 = vunpack.c.l.b16 %v1994
    %v2069 = vunpack.c.l.b16 %v1995
    %v2070 = vunpack.c.l.b16 %v1996
    %v2071 = vunpack.c.l.b16 %v1997
    %v2072 = vunpack.c.l.b16 %v1998
    %v2073 = vpack.c.b16 %v2042, %v2041
    %v2074 = vpack.c.b16 %v2044, %v2043
    %v2075 = vpack.c.b16 %v2046, %v2045
    %v2076 = vpack.c.b16 %v2048, %v2047
    %v2077 = vpack.c.b16 %v2050, %v2049
    %v2078 = vpack.c.b16 %v2052, %v2051
    %v2079 = vpack.c.b16 %v2054, %v2053
    %v2080 = vpack.c.b16 %v2056, %v2055
    %v2081 = vpack.c.b16 %v2058, %v2057
    %v2082 = vpack.c.b16 %v2060, %v2059
    %v2083 = vpack.c.b16 %v2062, %v2061
    %v2084 = vpack.c.b16 %v2064, %v2063
    %v2085 = vpack.c.b16 %v2066, %v2065
    %v2086 = vpack.c.b16 %v2068, %v2067
    %v2087 = vpack.c.b16 %v2070, %v2069
    %v2088 = vpack.c.b16 %v2072, %v2071
    %2105 = vmatprep.subr.bf16.mxu0 0
    %2106 = vmatpush1.bf16.msra.mxu0 %v2073
    %2107 = vmatprep.subr.bf16.mxu0 0
    %2108 = vmatpush1.bf16.msra.mxu0 %v2074
    %2109 = vmatprep.subr.bf16.mxu0 0
    %2110 = vmatpush1.bf16.msra.mxu0 %v2075
    %2111 = vmatprep.subr.bf16.mxu0 0
    %2112 = vmatpush1.bf16.msra.mxu0 %v2076
    %2113 = vmatprep.subr.bf16.mxu0 0
    %2114 = vmatpush1.bf16.msra.mxu0 %v2077
    %2115 = vmatprep.subr.bf16.mxu0 0
    %2116 = vmatpush1.bf16.msra.mxu0 %v2078
    %2117 = vmatprep.subr.bf16.mxu0 0
    %2118 = vmatpush1.bf16.msra.mxu0 %v2079
    %2119 = vmatprep.subr.bf16.mxu0 0
    %2120 = vmatpush1.bf16.msra.mxu0 %v2080
    %2121 = vmatprep.subr.bf16.mxu0 0
    %2122 = vmatpush1.bf16.msra.mxu0 %v2081
    %2123 = vmatprep.subr.bf16.mxu0 0
    %2124 = vmatpush1.bf16.msra.mxu0 %v2082
    %2125 = vmatprep.subr.bf16.mxu0 0
    %2126 = vmatpush1.bf16.msra.mxu0 %v2083
    %2127 = vmatprep.subr.bf16.mxu0 0
    %2128 = vmatpush1.bf16.msra.mxu0 %v2084
    %2129 = vmatprep.subr.bf16.mxu0 0
    %2130 = vmatpush1.bf16.msra.mxu0 %v2085
    %2131 = vmatprep.subr.bf16.mxu0 0
    %2132 = vmatpush1.bf16.msra.mxu0 %v2086
    %2133 = vmatprep.subr.bf16.mxu0 0
    %2134 = vmatpush1.bf16.msra.mxu0 %v2087
    %2135 = vmatprep.subr.bf16.mxu0 0
    %2136 = vmatpush1.bf16.msra.mxu0 %v2088
    %2137 = vmatprep.mubr.bf16.mxu0 %v2000
    %2138 = vmatmul.mubr.bf16.gmra.mrb[0].mxu0 %v1999
    %v2139 = vpop.f32.mrb[0].mxu0
    %v2140 = vadd.f32 %v2007, %v2139
    %v2141 = vpop.f32.mrb[0].mxu0
    %v2142 = vpop.f32.mrb[0].mxu0
    %v2143 = vpop.f32.mrb[0].mxu0
    %2144 = vdwg.mxu0
    %v2145 = vsub.f32 %v1628, %v2140
    %v2146 = vadd.f32 %v1629, %v2140
    %s2147 = scalar_lea.vmem %s7, 96
    %v2148 = vld [vmem:[%s2147] sm:$0xff]
    %v2149 = vld [vmem:[%s2147 + $0x8] sm:$0xff]
    %v2150 = vld [vmem:[%s2147 + $0x10] sm:$0xff]
    %v2151 = vld [vmem:[%s2147 + $0x18] sm:$0xff]
    %v2152 = vpack.c.bf16 %v2145, %v2145
    %s2153 = scalar_lea.vmem %s8, 6
    %v2154 = vld [vmem:[%s2153] sm:$0x3]
    %v2156 = vlaneseq
    %v2157 = vshrl.u32 %v2156, 7
    %v2158 = vsub.s32 0, %v2157
    %v2159 = vrot.slane %v2154, %v2158
    %v2160 = vlaneseq
    %v2161 = vshrl.u32 %v2160, 7
    %v2162 = vsub.s32 1, %v2161
    %v2163 = vrot.slane %v2154, %v2162
    %v2170 = vunpack.c.l.b16 %v2148
    %v2171 = vunpack.c.h.b16 %v2148
    %v2172 = vunpack.c.l.b16 %v2149
    %v2173 = vunpack.c.h.b16 %v2149
    %v2174 = vunpack.c.l.b16 %v2150
    %v2175 = vunpack.c.h.b16 %v2150
    %v2176 = vunpack.c.l.b16 %v2151
    %v2177 = vunpack.c.h.b16 %v2151
    %v2178 = vpack.c.b16 %v2172, %v2170
    %v2179 = vpack.c.b16 %v2173, %v2171
    %v2180 = vpack.c.b16 %v2176, %v2174
    %v2181 = vpack.c.b16 %v2177, %v2175
    %v2187 = vsel %vm638, %v2152, 0
    %2189 = vmatprep.subr.bf16.mxu0 %v2179
    %2190 = vmatpush1.bf16.msra.mxu0 %v2178
    %2191 = vmatprep.subr.bf16.mxu0 %v2181
    %2192 = vmatpush1.bf16.msra.mxu0 %v2180
    %2193 = vmatprep.subr.bf16.mxu0 0
    %2194 = vmatpush1.bf16.msra.mxu0 0
    %2195 = vmatprep.subr.bf16.mxu0 0
    %2196 = vmatpush1.bf16.msra.mxu0 0
    %2197 = vmatprep.subr.bf16.mxu0 0
    %2198 = vmatpush1.bf16.msra.mxu0 0
    %2199 = vmatprep.subr.bf16.mxu0 0
    %2200 = vmatpush1.bf16.msra.mxu0 0
    %2201 = vmatprep.subr.bf16.mxu0 0
    %2202 = vmatpush1.bf16.msra.mxu0 0
    %2203 = vmatprep.subr.bf16.mxu0 0
    %2204 = vmatpush1.bf16.msra.mxu0 0
    %2205 = vmatprep.subr.bf16.mxu0 0
    %2206 = vmatpush1.bf16.msra.mxu0 0
    %2207 = vmatprep.subr.bf16.mxu0 0
    %2208 = vmatpush1.bf16.msra.mxu0 0
    %2209 = vmatprep.subr.bf16.mxu0 0
    %2210 = vmatpush1.bf16.msra.mxu0 0
    %2211 = vmatprep.subr.bf16.mxu0 0
    %2212 = vmatpush1.bf16.msra.mxu0 0
    %2213 = vmatprep.subr.bf16.mxu0 0
    %2214 = vmatpush1.bf16.msra.mxu0 0
    %2215 = vmatprep.subr.bf16.mxu0 0
    %2216 = vmatpush1.bf16.msra.mxu0 0
    %2217 = vmatprep.subr.bf16.mxu0 0
    %2218 = vmatpush1.bf16.msra.mxu0 0
    %2219 = vmatprep.subr.bf16.mxu0 0
    %2220 = vmatpush1.bf16.msra.mxu0 0
    %2221 = vmatprep.mubr.bf16.mxu0 0
    %2222 = vmatmul.mubr.bf16.gmra.mrb[0].mxu0 %v2187
    %v2223 = vpop.f32.mrb[0].mxu0
    %v2224 = vadd.f32 %v2159, %v2223
    %v2225 = vpop.f32.mrb[0].mxu0
    %v2226 = vadd.f32 %v2163, %v2225
    %v2227 = vpop.f32.mrb[0].mxu0
    %v2228 = vpop.f32.mrb[0].mxu0
    %2229 = vdwg.mxu0
    %v2230 = vmax.f32 %v2224, 0.0
    %v2231 = vmax.f32 %v2226, 0.0
    %s2232 = scalar_lea.vmem %s9, 768
    %v2233 = vld [vmem:[%s2232] sm:$0xff]
    %v2234 = vld [vmem:[%s2232 + $0x8] sm:$0xff]
    %v2235 = vld [vmem:[%s2232 + $0x10] sm:$0xff]
    %v2236 = vld [vmem:[%s2232 + $0x18] sm:$0xff]
    %v2237 = vld [vmem:[%s2232 + $0x20] sm:$0xff]
    %v2238 = vld [vmem:[%s2232 + $0x28] sm:$0xff]
    %v2239 = vld [vmem:[%s2232 + $0x30] sm:$0xff]
    %v2240 = vld [vmem:[%s2232 + $0x38] sm:$0xff]
    %v2241 = vld [vmem:[%s2232 + $0x40] sm:$0xff]
    %v2242 = vld [vmem:[%s2232 + $0x48] sm:$0xff]
    %v2243 = vld [vmem:[%s2232 + $0x50] sm:$0xff]
    %v2244 = vld [vmem:[%s2232 + $0x58] sm:$0xff]
    %v2245 = vld [vmem:[%s2232 + $0x60] sm:$0xff]
    %v2246 = vld [vmem:[%s2232 + $0x68] sm:$0xff]
    %v2247 = vld [vmem:[%s2232 + $0x70] sm:$0xff]
    %v2248 = vld [vmem:[%s2232 + $0x78] sm:$0xff]
    %v2249 = vld [vmem:[%s2232 + $0x80] sm:$0xff]
    %v2250 = vld [vmem:[%s2232 + $0x88] sm:$0xff]
    %v2251 = vld [vmem:[%s2232 + $0x90] sm:$0xff]
    %v2252 = vld [vmem:[%s2232 + $0x98] sm:$0xff]
    %v2253 = vld [vmem:[%s2232 + $0xa0] sm:$0xff]
    %v2254 = vld [vmem:[%s2232 + $0xa8] sm:$0xff]
    %v2255 = vld [vmem:[%s2232 + $0xb0] sm:$0xff]
    %v2256 = vld [vmem:[%s2232 + $0xb8] sm:$0xff]
    %v2257 = vld [vmem:[%s2232 + $0xc0] sm:$0xff]
    %v2258 = vld [vmem:[%s2232 + $0xc8] sm:$0xff]
    %v2259 = vld [vmem:[%s2232 + $0xd0] sm:$0xff]
    %v2260 = vld [vmem:[%s2232 + $0xd8] sm:$0xff]
    %v2261 = vld [vmem:[%s2232 + $0xe0] sm:$0xff]
    %v2262 = vld [vmem:[%s2232 + $0xe8] sm:$0xff]
    %v2263 = vld [vmem:[%s2232 + $0xf0] sm:$0xff]
    %v2264 = vld [vmem:[%s2232 + $0xf8] sm:$0xff]
    %v2265 = vpack.c.bf16 %v2230, %v2230
    %v2266 = vpack.c.bf16 %v2231, %v2231
    %s2267 = scalar_lea.vmem %s10, 6
    %v2268 = vld [vmem:[%s2267] sm:$0x3]
    %v2270 = vlaneseq
    %v2271 = vshrl.u32 %v2270, 7
    %v2272 = vsub.s32 0, %v2271
    %v2273 = vrot.slane %v2268, %v2272
    %v2274 = vlaneseq
    %v2275 = vshrl.u32 %v2274, 7
    %v2276 = vsub.s32 1, %v2275
    %v2277 = vrot.slane %v2268, %v2276
    %v2312 = vunpack.c.l.b16 %v2233
    %v2313 = vunpack.c.h.b16 %v2233
    %v2314 = vunpack.c.l.b16 %v2234
    %v2315 = vunpack.c.h.b16 %v2234
    %v2316 = vunpack.c.l.b16 %v2235
    %v2317 = vunpack.c.h.b16 %v2235
    %v2318 = vunpack.c.l.b16 %v2236
    %v2319 = vunpack.c.h.b16 %v2236
    %v2320 = vunpack.c.l.b16 %v2237
    %v2321 = vunpack.c.h.b16 %v2237
    %v2322 = vunpack.c.l.b16 %v2238
    %v2323 = vunpack.c.h.b16 %v2238
    %v2324 = vunpack.c.l.b16 %v2239
    %v2325 = vunpack.c.h.b16 %v2239
    %v2326 = vunpack.c.l.b16 %v2240
    %v2327 = vunpack.c.h.b16 %v2240
    %v2328 = vunpack.c.l.b16 %v2241
    %v2329 = vunpack.c.h.b16 %v2241
    %v2330 = vunpack.c.l.b16 %v2242
    %v2331 = vunpack.c.h.b16 %v2242
    %v2332 = vunpack.c.l.b16 %v2243
    %v2333 = vunpack.c.h.b16 %v2243
    %v2334 = vunpack.c.l.b16 %v2244
    %v2335 = vunpack.c.h.b16 %v2244
    %v2336 = vunpack.c.l.b16 %v2245
    %v2337 = vunpack.c.h.b16 %v2245
    %v2338 = vunpack.c.l.b16 %v2246
    %v2339 = vunpack.c.h.b16 %v2246
    %v2340 = vunpack.c.l.b16 %v2247
    %v2341 = vunpack.c.h.b16 %v2247
    %v2342 = vunpack.c.l.b16 %v2248
    %v2343 = vunpack.c.h.b16 %v2248
    %v2344 = vunpack.c.l.b16 %v2249
    %v2345 = vunpack.c.h.b16 %v2249
    %v2346 = vunpack.c.l.b16 %v2250
    %v2347 = vunpack.c.h.b16 %v2250
    %v2348 = vunpack.c.l.b16 %v2251
    %v2349 = vunpack.c.h.b16 %v2251
    %v2350 = vunpack.c.l.b16 %v2252
    %v2351 = vunpack.c.h.b16 %v2252
    %v2352 = vunpack.c.l.b16 %v2253
    %v2353 = vunpack.c.h.b16 %v2253
    %v2354 = vunpack.c.l.b16 %v2254
    %v2355 = vunpack.c.h.b16 %v2254
    %v2356 = vunpack.c.l.b16 %v2255
    %v2357 = vunpack.c.h.b16 %v2255
    %v2358 = vunpack.c.l.b16 %v2256
    %v2359 = vunpack.c.h.b16 %v2256
    %v2360 = vunpack.c.l.b16 %v2257
    %v2361 = vunpack.c.h.b16 %v2257
    %v2362 = vunpack.c.l.b16 %v2258
    %v2363 = vunpack.c.h.b16 %v2258
    %v2364 = vunpack.c.l.b16 %v2259
    %v2365 = vunpack.c.h.b16 %v2259
    %v2366 = vunpack.c.l.b16 %v2260
    %v2367 = vunpack.c.h.b16 %v2260
    %v2368 = vunpack.c.l.b16 %v2261
    %v2369 = vunpack.c.h.b16 %v2261
    %v2370 = vunpack.c.l.b16 %v2262
    %v2371 = vunpack.c.h.b16 %v2262
    %v2372 = vunpack.c.l.b16 %v2263
    %v2373 = vunpack.c.h.b16 %v2263
    %v2374 = vunpack.c.l.b16 %v2264
    %v2375 = vunpack.c.h.b16 %v2264
    %v2376 = vpack.c.b16 %v2314, %v2312
    %v2377 = vpack.c.b16 %v2315, %v2313
    %v2378 = vpack.c.b16 %v2318, %v2316
    %v2379 = vpack.c.b16 %v2319, %v2317
    %v2380 = vpack.c.b16 %v2322, %v2320
    %v2381 = vpack.c.b16 %v2323, %v2321
    %v2382 = vpack.c.b16 %v2326, %v2324
    %v2383 = vpack.c.b16 %v2327, %v2325
    %v2384 = vpack.c.b16 %v2330, %v2328
    %v2385 = vpack.c.b16 %v2331, %v2329
    %v2386 = vpack.c.b16 %v2334, %v2332
    %v2387 = vpack.c.b16 %v2335, %v2333
    %v2388 = vpack.c.b16 %v2338, %v2336
    %v2389 = vpack.c.b16 %v2339, %v2337
    %v2390 = vpack.c.b16 %v2342, %v2340
    %v2391 = vpack.c.b16 %v2343, %v2341
    %v2392 = vpack.c.b16 %v2346, %v2344
    %v2393 = vpack.c.b16 %v2347, %v2345
    %v2394 = vpack.c.b16 %v2350, %v2348
    %v2395 = vpack.c.b16 %v2351, %v2349
    %v2396 = vpack.c.b16 %v2354, %v2352
    %v2397 = vpack.c.b16 %v2355, %v2353
    %v2398 = vpack.c.b16 %v2358, %v2356
    %v2399 = vpack.c.b16 %v2359, %v2357
    %v2400 = vpack.c.b16 %v2362, %v2360
    %v2401 = vpack.c.b16 %v2363, %v2361
    %v2402 = vpack.c.b16 %v2366, %v2364
    %v2403 = vpack.c.b16 %v2367, %v2365
    %v2404 = vpack.c.b16 %v2370, %v2368
    %v2405 = vpack.c.b16 %v2371, %v2369
    %v2406 = vpack.c.b16 %v2374, %v2372
    %v2407 = vpack.c.b16 %v2375, %v2373
    %2440 = vmatprep.subr.bf16.mxu0 %v2377
    %2441 = vmatpush1.bf16.msra.mxu0 %v2376
    %2442 = vmatprep.subr.bf16.mxu0 %v2379
    %2443 = vmatpush1.bf16.msra.mxu0 %v2378
    %2444 = vmatprep.subr.bf16.mxu0 %v2381
    %2445 = vmatpush1.bf16.msra.mxu0 %v2380
    %2446 = vmatprep.subr.bf16.mxu0 %v2383
    %2447 = vmatpush1.bf16.msra.mxu0 %v2382
    %2448 = vmatprep.subr.bf16.mxu0 %v2385
    %2449 = vmatpush1.bf16.msra.mxu0 %v2384
    %2450 = vmatprep.subr.bf16.mxu0 %v2387
    %2451 = vmatpush1.bf16.msra.mxu0 %v2386
    %2452 = vmatprep.subr.bf16.mxu0 %v2389
    %2453 = vmatpush1.bf16.msra.mxu0 %v2388
    %2454 = vmatprep.subr.bf16.mxu0 %v2391
    %2455 = vmatpush1.bf16.msra.mxu0 %v2390
    %2456 = vmatprep.subr.bf16.mxu0 %v2393
    %2457 = vmatpush1.bf16.msra.mxu0 %v2392
    %2458 = vmatprep.subr.bf16.mxu0 %v2395
    %2459 = vmatpush1.bf16.msra.mxu0 %v2394
    %2460 = vmatprep.subr.bf16.mxu0 %v2397
    %2461 = vmatpush1.bf16.msra.mxu0 %v2396
    %2462 = vmatprep.subr.bf16.mxu0 %v2399
    %2463 = vmatpush1.bf16.msra.mxu0 %v2398
    %2464 = vmatprep.subr.bf16.mxu0 %v2401
    %2465 = vmatpush1.bf16.msra.mxu0 %v2400
    %2466 = vmatprep.subr.bf16.mxu0 %v2403
    %2467 = vmatpush1.bf16.msra.mxu0 %v2402
    %2468 = vmatprep.subr.bf16.mxu0 %v2405
    %2469 = vmatpush1.bf16.msra.mxu0 %v2404
    %2470 = vmatprep.subr.bf16.mxu0 %v2407
    %2471 = vmatpush1.bf16.msra.mxu0 %v2406
    %2472 = vmatprep.mubr.bf16.mxu0 %v2266
    %2473 = vmatmul.mubr.bf16.gmra.mrb[0].mxu0 %v2265
    %v2474 = vpop.f32.mrb[0].mxu0
    %v2475 = vadd.f32 %v2273, %v2474
    %v2476 = vpop.f32.mrb[0].mxu0
    %v2477 = vadd.f32 %v2277, %v2476
    %v2478 = vpop.f32.mrb[0].mxu0
    %v2479 = vpop.f32.mrb[0].mxu0
    %2480 = vdwg.mxu0
    %v2481 = vmax.f32 %v2475, 0.0
    %v2482 = vmax.f32 %v2477, 0.0
    %s2483 = scalar_lea.vmem %s11, 384
    %v2484 = vld [vmem:[%s2483] sm:$0xf]
    %v2485 = vld [vmem:[%s2483 + $0x4] sm:$0xf]
    %v2486 = vld [vmem:[%s2483 + $0x8] sm:$0xf]
    %v2487 = vld [vmem:[%s2483 + $0xc] sm:$0xf]
    %v2488 = vld [vmem:[%s2483 + $0x10] sm:$0xf]
    %v2489 = vld [vmem:[%s2483 + $0x14] sm:$0xf]
    %v2490 = vld [vmem:[%s2483 + $0x18] sm:$0xf]
    %v2491 = vld [vmem:[%s2483 + $0x1c] sm:$0xf]
    %v2492 = vld [vmem:[%s2483 + $0x20] sm:$0xf]
    %v2493 = vld [vmem:[%s2483 + $0x24] sm:$0xf]
    %v2494 = vld [vmem:[%s2483 + $0x28] sm:$0xf]
    %v2495 = vld [vmem:[%s2483 + $0x2c] sm:$0xf]
    %v2496 = vld [vmem:[%s2483 + $0x30] sm:$0xf]
    %v2497 = vld [vmem:[%s2483 + $0x34] sm:$0xf]
    %v2498 = vld [vmem:[%s2483 + $0x38] sm:$0xf]
    %v2499 = vld [vmem:[%s2483 + $0x3c] sm:$0xf]
    %v2500 = vld [vmem:[%s2483 + $0x40] sm:$0xf]
    %v2501 = vld [vmem:[%s2483 + $0x44] sm:$0xf]
    %v2502 = vld [vmem:[%s2483 + $0x48] sm:$0xf]
    %v2503 = vld [vmem:[%s2483 + $0x4c] sm:$0xf]
    %v2504 = vld [vmem:[%s2483 + $0x50] sm:$0xf]
    %v2505 = vld [vmem:[%s2483 + $0x54] sm:$0xf]
    %v2506 = vld [vmem:[%s2483 + $0x58] sm:$0xf]
    %v2507 = vld [vmem:[%s2483 + $0x5c] sm:$0xf]
    %v2508 = vld [vmem:[%s2483 + $0x60] sm:$0xf]
    %v2509 = vld [vmem:[%s2483 + $0x64] sm:$0xf]
    %v2510 = vld [vmem:[%s2483 + $0x68] sm:$0xf]
    %v2511 = vld [vmem:[%s2483 + $0x6c] sm:$0xf]
    %v2512 = vld [vmem:[%s2483 + $0x70] sm:$0xf]
    %v2513 = vld [vmem:[%s2483 + $0x74] sm:$0xf]
    %v2514 = vld [vmem:[%s2483 + $0x78] sm:$0xf]
    %v2515 = vld [vmem:[%s2483 + $0x7c] sm:$0xf]
    %v2516 = vpack.c.bf16 %v2481, %v2481
    %v2517 = vpack.c.bf16 %v2482, %v2482
    %s2518 = scalar_lea.vmem %s12, 3
    %v2519 = vld [vmem:[%s2518] sm:$0x1]
    %v2521 = vlaneseq
    %v2522 = vshrl.u32 %v2521, 7
    %v2523 = vsub.s32 0, %v2522
    %v2524 = vrot.slane %v2519, %v2523
    %v2558 = vunpack.c.l.b16 %v2484
    %v2559 = vunpack.c.l.b16 %v2485
    %v2560 = vunpack.c.l.b16 %v2486
    %v2561 = vunpack.c.l.b16 %v2487
    %v2562 = vunpack.c.l.b16 %v2488
    %v2563 = vunpack.c.l.b16 %v2489
    %v2564 = vunpack.c.l.b16 %v2490
    %v2565 = vunpack.c.l.b16 %v2491
    %v2566 = vunpack.c.l.b16 %v2492
    %v2567 = vunpack.c.l.b16 %v2493
    %v2568 = vunpack.c.l.b16 %v2494
    %v2569 = vunpack.c.l.b16 %v2495
    %v2570 = vunpack.c.l.b16 %v2496
    %v2571 = vunpack.c.l.b16 %v2497
    %v2572 = vunpack.c.l.b16 %v2498
    %v2573 = vunpack.c.l.b16 %v2499
    %v2574 = vunpack.c.l.b16 %v2500
    %v2575 = vunpack.c.l.b16 %v2501
    %v2576 = vunpack.c.l.b16 %v2502
    %v2577 = vunpack.c.l.b16 %v2503
    %v2578 = vunpack.c.l.b16 %v2504
    %v2579 = vunpack.c.l.b16 %v2505
    %v2580 = vunpack.c.l.b16 %v2506
    %v2581 = vunpack.c.l.b16 %v2507
    %v2582 = vunpack.c.l.b16 %v2508
    %v2583 = vunpack.c.l.b16 %v2509
    %v2584 = vunpack.c.l.b16 %v2510
    %v2585 = vunpack.c.l.b16 %v2511
    %v2586 = vunpack.c.l.b16 %v2512
    %v2587 = vunpack.c.l.b16 %v2513
    %v2588 = vunpack.c.l.b16 %v2514
    %v2589 = vunpack.c.l.b16 %v2515
    %v2590 = vpack.c.b16 %v2559, %v2558
    %v2591 = vpack.c.b16 %v2561, %v2560
    %v2592 = vpack.c.b16 %v2563, %v2562
    %v2593 = vpack.c.b16 %v2565, %v2564
    %v2594 = vpack.c.b16 %v2567, %v2566
    %v2595 = vpack.c.b16 %v2569, %v2568
    %v2596 = vpack.c.b16 %v2571, %v2570
    %v2597 = vpack.c.b16 %v2573, %v2572
    %v2598 = vpack.c.b16 %v2575, %v2574
    %v2599 = vpack.c.b16 %v2577, %v2576
    %v2600 = vpack.c.b16 %v2579, %v2578
    %v2601 = vpack.c.b16 %v2581, %v2580
    %v2602 = vpack.c.b16 %v2583, %v2582
    %v2603 = vpack.c.b16 %v2585, %v2584
    %v2604 = vpack.c.b16 %v2587, %v2586
    %v2605 = vpack.c.b16 %v2589, %v2588
    %2622 = vmatprep.subr.bf16.mxu0 0
    %2623 = vmatpush1.bf16.msra.mxu0 %v2590
    %2624 = vmatprep.subr.bf16.mxu0 0
    %2625 = vmatpush1.bf16.msra.mxu0 %v2591
    %2626 = vmatprep.subr.bf16.mxu0 0
    %2627 = vmatpush1.bf16.msra.mxu0 %v2592
    %2628 = vmatprep.subr.bf16.mxu0 0
    %2629 = vmatpush1.bf16.msra.mxu0 %v2593
    %2630 = vmatprep.subr.bf16.mxu0 0
    %2631 = vmatpush1.bf16.msra.mxu0 %v2594
    %2632 = vmatprep.subr.bf16.mxu0 0
    %2633 = vmatpush1.bf16.msra.mxu0 %v2595
    %2634 = vmatprep.subr.bf16.mxu0 0
    %2635 = vmatpush1.bf16.msra.mxu0 %v2596
    %2636 = vmatprep.subr.bf16.mxu0 0
    %2637 = vmatpush1.bf16.msra.mxu0 %v2597
    %2638 = vmatprep.subr.bf16.mxu0 0
    %2639 = vmatpush1.bf16.msra.mxu0 %v2598
    %2640 = vmatprep.subr.bf16.mxu0 0
    %2641 = vmatpush1.bf16.msra.mxu0 %v2599
    %2642 = vmatprep.subr.bf16.mxu0 0
    %2643 = vmatpush1.bf16.msra.mxu0 %v2600
    %2644 = vmatprep.subr.bf16.mxu0 0
    %2645 = vmatpush1.bf16.msra.mxu0 %v2601
    %2646 = vmatprep.subr.bf16.mxu0 0
    %2647 = vmatpush1.bf16.msra.mxu0 %v2602
    %2648 = vmatprep.subr.bf16.mxu0 0
    %2649 = vmatpush1.bf16.msra.mxu0 %v2603
    %2650 = vmatprep.subr.bf16.mxu0 0
    %2651 = vmatpush1.bf16.msra.mxu0 %v2604
    %2652 = vmatprep.subr.bf16.mxu0 0
    %2653 = vmatpush1.bf16.msra.mxu0 %v2605
    %2654 = vmatprep.mubr.bf16.mxu0 %v2517
    %2655 = vmatmul.mubr.bf16.gmra.mrb[0].mxu0 %v2516
    %v2656 = vpop.f32.mrb[0].mxu0
    %v2657 = vadd.f32 %v2524, %v2656
    %v2658 = vpop.f32.mrb[0].mxu0
    %v2659 = vpop.f32.mrb[0].mxu0
    %v2660 = vpop.f32.mrb[0].mxu0
    %2661 = vdwg.mxu0
    %v2662 = vsub.f32 %v2145, %v2657
    %v2663 = vadd.f32 %v2146, %v2657
    %v2665 = vsel %vm638, %v2662, 0
    %2667 = vmatprep.subr.mxu0 0.0
    %2668 = vmatpush1.msra.mxu0 %v71
    %2669 = vmatprep.subr.mxu0 0.0
    %2670 = vmatpush1.msra.mxu0 %v72
    %2671 = vmatprep.subr.mxu0 0.0
    %2672 = vmatpush1.msra.mxu0 %v73
    %2673 = vmatprep.subr.mxu0 0.0
    %2674 = vmatpush1.msra.mxu0 %v74
    %2675 = vmatprep.subr.mxu0 0.0
    %2676 = vmatpush1.msra.mxu0 0.0
    %2677 = vmatprep.subr.mxu0 0.0
    %2678 = vmatpush1.msra.mxu0 0.0
    %2679 = vmatprep.subr.mxu0 0.0
    %2680 = vmatpush1.msra.mxu0 0.0
    %2681 = vmatprep.subr.mxu0 0.0
    %2682 = vmatpush1.msra.mxu0 0.0
    %2683 = vmatprep.subr.mxu0 0.0
    %2684 = vmatpush1.msra.mxu0 0.0
    %2685 = vmatprep.subr.mxu0 0.0
    %2686 = vmatpush1.msra.mxu0 0.0
    %2687 = vmatprep.subr.mxu0 0.0
    %2688 = vmatpush1.msra.mxu0 0.0
    %2689 = vmatprep.subr.mxu0 0.0
    %2690 = vmatpush1.msra.mxu0 0.0
    %2691 = vmatprep.subr.mxu0 0.0
    %2692 = vmatpush1.msra.mxu0 0.0
    %2693 = vmatprep.subr.mxu0 0.0
    %2694 = vmatpush1.msra.mxu0 0.0
    %2695 = vmatprep.subr.mxu0 0.0
    %2696 = vmatpush1.msra.mxu0 0.0
    %2697 = vmatprep.subr.mxu0 0.0
    %2698 = vmatpush1.msra.mxu0 0.0
    %2699 = vmatprep.subr.mxu0 0.0
    %2700 = vmatpush1.msra.mxu0 0.0
    %2701 = vmatprep.subr.mxu0 0.0
    %2702 = vmatpush1.msra.mxu0 0.0
    %2703 = vmatprep.subr.mxu0 0.0
    %2704 = vmatpush1.msra.mxu0 0.0
    %2705 = vmatprep.subr.mxu0 0.0
    %2706 = vmatpush1.msra.mxu0 0.0
    %2707 = vmatprep.subr.mxu0 0.0
    %2708 = vmatpush1.msra.mxu0 0.0
    %2709 = vmatprep.subr.mxu0 0.0
    %2710 = vmatpush1.msra.mxu0 0.0
    %2711 = vmatprep.subr.mxu0 0.0
    %2712 = vmatpush1.msra.mxu0 0.0
    %2713 = vmatprep.subr.mxu0 0.0
    %2714 = vmatpush1.msra.mxu0 0.0
    %2715 = vmatprep.subr.mxu0 0.0
    %2716 = vmatpush1.msra.mxu0 0.0
    %2717 = vmatprep.subr.mxu0 0.0
    %2718 = vmatpush1.msra.mxu0 0.0
    %2719 = vmatprep.subr.mxu0 0.0
    %2720 = vmatpush1.msra.mxu0 0.0
    %2721 = vmatprep.subr.mxu0 0.0
    %2722 = vmatpush1.msra.mxu0 0.0
    %2723 = vmatprep.subr.mxu0 0.0
    %2724 = vmatpush1.msra.mxu0 0.0
    %2725 = vmatprep.subr.mxu0 0.0
    %2726 = vmatpush1.msra.mxu0 0.0
    %2727 = vmatprep.subr.mxu0 0.0
    %2728 = vmatpush1.msra.mxu0 0.0
    %2729 = vmatprep.subr.mxu0 0.0
    %2730 = vmatpush1.msra.mxu0 0.0
    %2731 = vmatprep.mubr.f32.mxu0 0.0
    %2732 = vmatmul.mubr.f32.gmra.mrb[0].mxu0 %v2665
    %v2733 = vpop.f32.mrb[0].mxu0
    %v2734 = vadd.f32 0.0, %v2733
    %v2735 = vpop.f32.mrb[0].mxu0
    %2736 = vdwg.mxu0
    %v2737 = vmul.f32 %v2734, 0.125
    %2739 = vrot.lane.b32.xlu0 %v2737, 16
    %v2740 = vpop.permute.xlu0 %2739
    %v2742 = vsel %vm79, %v2737, %v2740
    %s2743 = scalar_lea.vmem %s1, 16
    %v2744 = vld [vmem:[%s2743] sm:$0xff]
    %v2745 = vld [vmem:[%s2743 + $0x8] sm:$0xff]
    %v2746 = vpack.c.bf16 %v2737, %v2737
    %s2747 = scalar_lea.vmem %s2, 2
    %v2748 = vld [vmem:[%s2747] sm:$0x3]
    %v2750 = vlaneseq
    %v2751 = vshrl.u32 %v2750, 7
    %v2752 = vsub.s32 0, %v2751
    %v2753 = vrot.slane %v2748, %v2752
    %v2754 = vlaneseq
    %v2755 = vshrl.u32 %v2754, 7
    %v2756 = vsub.s32 1, %v2755
    %v2757 = vrot.slane %v2748, %v2756
    %v2762 = vunpack.c.l.b16 %v2744
    %v2763 = vunpack.c.h.b16 %v2744
    %v2764 = vunpack.c.l.b16 %v2745
    %v2765 = vunpack.c.h.b16 %v2745
    %v2766 = vpack.c.b16 %v2764, %v2762
    %v2767 = vpack.c.b16 %v2765, %v2763
    %v2771 = vsel %vm79, %v2746, 0
    %2773 = vmatprep.subr.bf16.mxu0 %v2767
    %2774 = vmatpush1.bf16.msra.mxu0 %v2766
    %2775 = vmatprep.subr.bf16.mxu0 0
    %2776 = vmatpush1.bf16.msra.mxu0 0
    %2777 = vmatprep.subr.bf16.mxu0 0
    %2778 = vmatpush1.bf16.msra.mxu0 0
    %2779 = vmatprep.subr.bf16.mxu0 0
    %2780 = vmatpush1.bf16.msra.mxu0 0
    %2781 = vmatprep.subr.bf16.mxu0 0
    %2782 = vmatpush1.bf16.msra.mxu0 0
    %2783 = vmatprep.subr.bf16.mxu0 0
    %2784 = vmatpush1.bf16.msra.mxu0 0
    %2785 = vmatprep.subr.bf16.mxu0 0
    %2786 = vmatpush1.bf16.msra.mxu0 0
    %2787 = vmatprep.subr.bf16.mxu0 0
    %2788 = vmatpush1.bf16.msra.mxu0 0
    %2789 = vmatprep.subr.bf16.mxu0 0
    %2790 = vmatpush1.bf16.msra.mxu0 0
    %2791 = vmatprep.subr.bf16.mxu0 0
    %2792 = vmatpush1.bf16.msra.mxu0 0
    %2793 = vmatprep.subr.bf16.mxu0 0
    %2794 = vmatpush1.bf16.msra.mxu0 0
    %2795 = vmatprep.subr.bf16.mxu0 0
    %2796 = vmatpush1.bf16.msra.mxu0 0
    %2797 = vmatprep.subr.bf16.mxu0 0
    %2798 = vmatpush1.bf16.msra.mxu0 0
    %2799 = vmatprep.subr.bf16.mxu0 0
    %2800 = vmatpush1.bf16.msra.mxu0 0
    %2801 = vmatprep.subr.bf16.mxu0 0
    %2802 = vmatpush1.bf16.msra.mxu0 0
    %2803 = vmatprep.subr.bf16.mxu0 0
    %2804 = vmatpush1.bf16.msra.mxu0 0
    %2805 = vmatprep.mubr.bf16.mxu0 0
    %2806 = vmatmul.mubr.bf16.gmra.mrb[0].mxu0 %v2771
    %v2807 = vpop.f32.mrb[0].mxu0
    %v2808 = vadd.f32 %v2753, %v2807
    %v2809 = vpop.f32.mrb[0].mxu0
    %v2810 = vadd.f32 %v2757, %v2809
    %v2811 = vpop.f32.mrb[0].mxu0
    %v2812 = vpop.f32.mrb[0].mxu0
    %2813 = vdwg.mxu0
    %v2814 = vmax.f32 %v2808, 0.0
    %v2815 = vmax.f32 %v2810, 0.0
    %s2816 = scalar_lea.vmem %s3, 256
    %v2817 = vld [vmem:[%s2816] sm:$0xff]
    %v2818 = vld [vmem:[%s2816 + $0x8] sm:$0xff]
    %v2819 = vld [vmem:[%s2816 + $0x10] sm:$0xff]
    %v2820 = vld [vmem:[%s2816 + $0x18] sm:$0xff]
    %v2821 = vld [vmem:[%s2816 + $0x20] sm:$0xff]
    %v2822 = vld [vmem:[%s2816 + $0x28] sm:$0xff]
    %v2823 = vld [vmem:[%s2816 + $0x30] sm:$0xff]
    %v2824 = vld [vmem:[%s2816 + $0x38] sm:$0xff]
    %v2825 = vld [vmem:[%s2816 + $0x40] sm:$0xff]
    %v2826 = vld [vmem:[%s2816 + $0x48] sm:$0xff]
    %v2827 = vld [vmem:[%s2816 + $0x50] sm:$0xff]
    %v2828 = vld [vmem:[%s2816 + $0x58] sm:$0xff]
    %v2829 = vld [vmem:[%s2816 + $0x60] sm:$0xff]
    %v2830 = vld [vmem:[%s2816 + $0x68] sm:$0xff]
    %v2831 = vld [vmem:[%s2816 + $0x70] sm:$0xff]
    %v2832 = vld [vmem:[%s2816 + $0x78] sm:$0xff]
    %v2833 = vld [vmem:[%s2816 + $0x80] sm:$0xff]
    %v2834 = vld [vmem:[%s2816 + $0x88] sm:$0xff]
    %v2835 = vld [vmem:[%s2816 + $0x90] sm:$0xff]
    %v2836 = vld [vmem:[%s2816 + $0x98] sm:$0xff]
    %v2837 = vld [vmem:[%s2816 + $0xa0] sm:$0xff]
    %v2838 = vld [vmem:[%s2816 + $0xa8] sm:$0xff]
    %v2839 = vld [vmem:[%s2816 + $0xb0] sm:$0xff]
    %v2840 = vld [vmem:[%s2816 + $0xb8] sm:$0xff]
    %v2841 = vld [vmem:[%s2816 + $0xc0] sm:$0xff]
    %v2842 = vld [vmem:[%s2816 + $0xc8] sm:$0xff]
    %v2843 = vld [vmem:[%s2816 + $0xd0] sm:$0xff]
    %v2844 = vld [vmem:[%s2816 + $0xd8] sm:$0xff]
    %v2845 = vld [vmem:[%s2816 + $0xe0] sm:$0xff]
    %v2846 = vld [vmem:[%s2816 + $0xe8] sm:$0xff]
    %v2847 = vld [vmem:[%s2816 + $0xf0] sm:$0xff]
    %v2848 = vld [vmem:[%s2816 + $0xf8] sm:$0xff]
    %v2849 = vpack.c.bf16 %v2814, %v2814
    %v2850 = vpack.c.bf16 %v2815, %v2815
    %s2851 = scalar_lea.vmem %s4, 2
    %v2852 = vld [vmem:[%s2851] sm:$0x3]
    %v2854 = vlaneseq
    %v2855 = vshrl.u32 %v2854, 7
    %v2856 = vsub.s32 0, %v2855
    %v2857 = vrot.slane %v2852, %v2856
    %v2858 = vlaneseq
    %v2859 = vshrl.u32 %v2858, 7
    %v2860 = vsub.s32 1, %v2859
    %v2861 = vrot.slane %v2852, %v2860
    %v2896 = vunpack.c.l.b16 %v2817
    %v2897 = vunpack.c.h.b16 %v2817
    %v2898 = vunpack.c.l.b16 %v2818
    %v2899 = vunpack.c.h.b16 %v2818
    %v2900 = vunpack.c.l.b16 %v2819
    %v2901 = vunpack.c.h.b16 %v2819
    %v2902 = vunpack.c.l.b16 %v2820
    %v2903 = vunpack.c.h.b16 %v2820
    %v2904 = vunpack.c.l.b16 %v2821
    %v2905 = vunpack.c.h.b16 %v2821
    %v2906 = vunpack.c.l.b16 %v2822
    %v2907 = vunpack.c.h.b16 %v2822
    %v2908 = vunpack.c.l.b16 %v2823
    %v2909 = vunpack.c.h.b16 %v2823
    %v2910 = vunpack.c.l.b16 %v2824
    %v2911 = vunpack.c.h.b16 %v2824
    %v2912 = vunpack.c.l.b16 %v2825
    %v2913 = vunpack.c.h.b16 %v2825
    %v2914 = vunpack.c.l.b16 %v2826
    %v2915 = vunpack.c.h.b16 %v2826
    %v2916 = vunpack.c.l.b16 %v2827
    %v2917 = vunpack.c.h.b16 %v2827
    %v2918 = vunpack.c.l.b16 %v2828
    %v2919 = vunpack.c.h.b16 %v2828
    %v2920 = vunpack.c.l.b16 %v2829
    %v2921 = vunpack.c.h.b16 %v2829
    %v2922 = vunpack.c.l.b16 %v2830
    %v2923 = vunpack.c.h.b16 %v2830
    %v2924 = vunpack.c.l.b16 %v2831
    %v2925 = vunpack.c.h.b16 %v2831
    %v2926 = vunpack.c.l.b16 %v2832
    %v2927 = vunpack.c.h.b16 %v2832
    %v2928 = vunpack.c.l.b16 %v2833
    %v2929 = vunpack.c.h.b16 %v2833
    %v2930 = vunpack.c.l.b16 %v2834
    %v2931 = vunpack.c.h.b16 %v2834
    %v2932 = vunpack.c.l.b16 %v2835
    %v2933 = vunpack.c.h.b16 %v2835
    %v2934 = vunpack.c.l.b16 %v2836
    %v2935 = vunpack.c.h.b16 %v2836
    %v2936 = vunpack.c.l.b16 %v2837
    %v2937 = vunpack.c.h.b16 %v2837
    %v2938 = vunpack.c.l.b16 %v2838
    %v2939 = vunpack.c.h.b16 %v2838
    %v2940 = vunpack.c.l.b16 %v2839
    %v2941 = vunpack.c.h.b16 %v2839
    %v2942 = vunpack.c.l.b16 %v2840
    %v2943 = vunpack.c.h.b16 %v2840
    %v2944 = vunpack.c.l.b16 %v2841
    %v2945 = vunpack.c.h.b16 %v2841
    %v2946 = vunpack.c.l.b16 %v2842
    %v2947 = vunpack.c.h.b16 %v2842
    %v2948 = vunpack.c.l.b16 %v2843
    %v2949 = vunpack.c.h.b16 %v2843
    %v2950 = vunpack.c.l.b16 %v2844
    %v2951 = vunpack.c.h.b16 %v2844
    %v2952 = vunpack.c.l.b16 %v2845
    %v2953 = vunpack.c.h.b16 %v2845
    %v2954 = vunpack.c.l.b16 %v2846
    %v2955 = vunpack.c.h.b16 %v2846
    %v2956 = vunpack.c.l.b16 %v2847
    %v2957 = vunpack.c.h.b16 %v2847
    %v2958 = vunpack.c.l.b16 %v2848
    %v2959 = vunpack.c.h.b16 %v2848
    %v2960 = vpack.c.b16 %v2898, %v2896
    %v2961 = vpack.c.b16 %v2899, %v2897
    %v2962 = vpack.c.b16 %v2902, %v2900
    %v2963 = vpack.c.b16 %v2903, %v2901
    %v2964 = vpack.c.b16 %v2906, %v2904
    %v2965 = vpack.c.b16 %v2907, %v2905
    %v2966 = vpack.c.b16 %v2910, %v2908
    %v2967 = vpack.c.b16 %v2911, %v2909
    %v2968 = vpack.c.b16 %v2914, %v2912
    %v2969 = vpack.c.b16 %v2915, %v2913
    %v2970 = vpack.c.b16 %v2918, %v2916
    %v2971 = vpack.c.b16 %v2919, %v2917
    %v2972 = vpack.c.b16 %v2922, %v2920
    %v2973 = vpack.c.b16 %v2923, %v2921
    %v2974 = vpack.c.b16 %v2926, %v2924
    %v2975 = vpack.c.b16 %v2927, %v2925
    %v2976 = vpack.c.b16 %v2930, %v2928
    %v2977 = vpack.c.b16 %v2931, %v2929
    %v2978 = vpack.c.b16 %v2934, %v2932
    %v2979 = vpack.c.b16 %v2935, %v2933
    %v2980 = vpack.c.b16 %v2938, %v2936
    %v2981 = vpack.c.b16 %v2939, %v2937
    %v2982 = vpack.c.b16 %v2942, %v2940
    %v2983 = vpack.c.b16 %v2943, %v2941
    %v2984 = vpack.c.b16 %v2946, %v2944
    %v2985 = vpack.c.b16 %v2947, %v2945
    %v2986 = vpack.c.b16 %v2950, %v2948
    %v2987 = vpack.c.b16 %v2951, %v2949
    %v2988 = vpack.c.b16 %v2954, %v2952
    %v2989 = vpack.c.b16 %v2955, %v2953
    %v2990 = vpack.c.b16 %v2958, %v2956
    %v2991 = vpack.c.b16 %v2959, %v2957
    %3024 = vmatprep.subr.bf16.mxu0 %v2961
    %3025 = vmatpush1.bf16.msra.mxu0 %v2960
    %3026 = vmatprep.subr.bf16.mxu0 %v2963
    %3027 = vmatpush1.bf16.msra.mxu0 %v2962
    %3028 = vmatprep.subr.bf16.mxu0 %v2965
    %3029 = vmatpush1.bf16.msra.mxu0 %v2964
    %3030 = vmatprep.subr.bf16.mxu0 %v2967
    %3031 = vmatpush1.bf16.msra.mxu0 %v2966
    %3032 = vmatprep.subr.bf16.mxu0 %v2969
    %3033 = vmatpush1.bf16.msra.mxu0 %v2968
    %3034 = vmatprep.subr.bf16.mxu0 %v2971
    %3035 = vmatpush1.bf16.msra.mxu0 %v2970
    %3036 = vmatprep.subr.bf16.mxu0 %v2973
    %3037 = vmatpush1.bf16.msra.mxu0 %v2972
    %3038 = vmatprep.subr.bf16.mxu0 %v2975
    %3039 = vmatpush1.bf16.msra.mxu0 %v2974
    %3040 = vmatprep.subr.bf16.mxu0 %v2977
    %3041 = vmatpush1.bf16.msra.mxu0 %v2976
    %3042 = vmatprep.subr.bf16.mxu0 %v2979
    %3043 = vmatpush1.bf16.msra.mxu0 %v2978
    %3044 = vmatprep.subr.bf16.mxu0 %v2981
    %3045 = vmatpush1.bf16.msra.mxu0 %v2980
    %3046 = vmatprep.subr.bf16.mxu0 %v2983
    %3047 = vmatpush1.bf16.msra.mxu0 %v2982
    %3048 = vmatprep.subr.bf16.mxu0 %v2985
    %3049 = vmatpush1.bf16.msra.mxu0 %v2984
    %3050 = vmatprep.subr.bf16.mxu0 %v2987
    %3051 = vmatpush1.bf16.msra.mxu0 %v2986
    %3052 = vmatprep.subr.bf16.mxu0 %v2989
    %3053 = vmatpush1.bf16.msra.mxu0 %v2988
    %3054 = vmatprep.subr.bf16.mxu0 %v2991
    %3055 = vmatpush1.bf16.msra.mxu0 %v2990
    %3056 = vmatprep.mubr.bf16.mxu0 %v2850
    %3057 = vmatmul.mubr.bf16.gmra.mrb[0].mxu0 %v2849
    %v3058 = vpop.f32.mrb[0].mxu0
    %v3059 = vadd.f32 %v2857, %v3058
    %v3060 = vpop.f32.mrb[0].mxu0
    %v3061 = vadd.f32 %v2861, %v3060
    %v3062 = vpop.f32.mrb[0].mxu0
    %v3063 = vpop.f32.mrb[0].mxu0
    %3064 = vdwg.mxu0
    %v3065 = vmax.f32 %v3059, 0.0
    %v3066 = vmax.f32 %v3061, 0.0
    %s3067 = scalar_lea.vmem %s5, 128
    %v3068 = vld [vmem:[%s3067] sm:$0xf]
    %v3069 = vld [vmem:[%s3067 + $0x4] sm:$0xf]
    %v3070 = vld [vmem:[%s3067 + $0x8] sm:$0xf]
    %v3071 = vld [vmem:[%s3067 + $0xc] sm:$0xf]
    %v3072 = vld [vmem:[%s3067 + $0x10] sm:$0xf]
    %v3073 = vld [vmem:[%s3067 + $0x14] sm:$0xf]
    %v3074 = vld [vmem:[%s3067 + $0x18] sm:$0xf]
    %v3075 = vld [vmem:[%s3067 + $0x1c] sm:$0xf]
    %v3076 = vld [vmem:[%s3067 + $0x20] sm:$0xf]
    %v3077 = vld [vmem:[%s3067 + $0x24] sm:$0xf]
    %v3078 = vld [vmem:[%s3067 + $0x28] sm:$0xf]
    %v3079 = vld [vmem:[%s3067 + $0x2c] sm:$0xf]
    %v3080 = vld [vmem:[%s3067 + $0x30] sm:$0xf]
    %v3081 = vld [vmem:[%s3067 + $0x34] sm:$0xf]
    %v3082 = vld [vmem:[%s3067 + $0x38] sm:$0xf]
    %v3083 = vld [vmem:[%s3067 + $0x3c] sm:$0xf]
    %v3084 = vld [vmem:[%s3067 + $0x40] sm:$0xf]
    %v3085 = vld [vmem:[%s3067 + $0x44] sm:$0xf]
    %v3086 = vld [vmem:[%s3067 + $0x48] sm:$0xf]
    %v3087 = vld [vmem:[%s3067 + $0x4c] sm:$0xf]
    %v3088 = vld [vmem:[%s3067 + $0x50] sm:$0xf]
    %v3089 = vld [vmem:[%s3067 + $0x54] sm:$0xf]
    %v3090 = vld [vmem:[%s3067 + $0x58] sm:$0xf]
    %v3091 = vld [vmem:[%s3067 + $0x5c] sm:$0xf]
    %v3092 = vld [vmem:[%s3067 + $0x60] sm:$0xf]
    %v3093 = vld [vmem:[%s3067 + $0x64] sm:$0xf]
    %v3094 = vld [vmem:[%s3067 + $0x68] sm:$0xf]
    %v3095 = vld [vmem:[%s3067 + $0x6c] sm:$0xf]
    %v3096 = vld [vmem:[%s3067 + $0x70] sm:$0xf]
    %v3097 = vld [vmem:[%s3067 + $0x74] sm:$0xf]
    %v3098 = vld [vmem:[%s3067 + $0x78] sm:$0xf]
    %v3099 = vld [vmem:[%s3067 + $0x7c] sm:$0xf]
    %v3100 = vpack.c.bf16 %v3065, %v3065
    %v3101 = vpack.c.bf16 %v3066, %v3066
    %s3102 = scalar_lea.vmem %s6, 1
    %v3103 = vld [vmem:[%s3102] sm:$0x1]
    %v3105 = vlaneseq
    %v3106 = vshrl.u32 %v3105, 7
    %v3107 = vsub.s32 0, %v3106
    %v3108 = vrot.slane %v3103, %v3107
    %v3142 = vunpack.c.l.b16 %v3068
    %v3143 = vunpack.c.l.b16 %v3069
    %v3144 = vunpack.c.l.b16 %v3070
    %v3145 = vunpack.c.l.b16 %v3071
    %v3146 = vunpack.c.l.b16 %v3072
    %v3147 = vunpack.c.l.b16 %v3073
    %v3148 = vunpack.c.l.b16 %v3074
    %v3149 = vunpack.c.l.b16 %v3075
    %v3150 = vunpack.c.l.b16 %v3076
    %v3151 = vunpack.c.l.b16 %v3077
    %v3152 = vunpack.c.l.b16 %v3078
    %v3153 = vunpack.c.l.b16 %v3079
    %v3154 = vunpack.c.l.b16 %v3080
    %v3155 = vunpack.c.l.b16 %v3081
    %v3156 = vunpack.c.l.b16 %v3082
    %v3157 = vunpack.c.l.b16 %v3083
    %v3158 = vunpack.c.l.b16 %v3084
    %v3159 = vunpack.c.l.b16 %v3085
    %v3160 = vunpack.c.l.b16 %v3086
    %v3161 = vunpack.c.l.b16 %v3087
    %v3162 = vunpack.c.l.b16 %v3088
    %v3163 = vunpack.c.l.b16 %v3089
    %v3164 = vunpack.c.l.b16 %v3090
    %v3165 = vunpack.c.l.b16 %v3091
    %v3166 = vunpack.c.l.b16 %v3092
    %v3167 = vunpack.c.l.b16 %v3093
    %v3168 = vunpack.c.l.b16 %v3094
    %v3169 = vunpack.c.l.b16 %v3095
    %v3170 = vunpack.c.l.b16 %v3096
    %v3171 = vunpack.c.l.b16 %v3097
    %v3172 = vunpack.c.l.b16 %v3098
    %v3173 = vunpack.c.l.b16 %v3099
    %v3174 = vpack.c.b16 %v3143, %v3142
    %v3175 = vpack.c.b16 %v3145, %v3144
    %v3176 = vpack.c.b16 %v3147, %v3146
    %v3177 = vpack.c.b16 %v3149, %v3148
    %v3178 = vpack.c.b16 %v3151, %v3150
    %v3179 = vpack.c.b16 %v3153, %v3152
    %v3180 = vpack.c.b16 %v3155, %v3154
    %v3181 = vpack.c.b16 %v3157, %v3156
    %v3182 = vpack.c.b16 %v3159, %v3158
    %v3183 = vpack.c.b16 %v3161, %v3160
    %v3184 = vpack.c.b16 %v3163, %v3162
    %v3185 = vpack.c.b16 %v3165, %v3164
    %v3186 = vpack.c.b16 %v3167, %v3166
    %v3187 = vpack.c.b16 %v3169, %v3168
    %v3188 = vpack.c.b16 %v3171, %v3170
    %v3189 = vpack.c.b16 %v3173, %v3172
    %3206 = vmatprep.subr.bf16.mxu0 0
    %3207 = vmatpush1.bf16.msra.mxu0 %v3174
    %3208 = vmatprep.subr.bf16.mxu0 0
    %3209 = vmatpush1.bf16.msra.mxu0 %v3175
    %3210 = vmatprep.subr.bf16.mxu0 0
    %3211 = vmatpush1.bf16.msra.mxu0 %v3176
    %3212 = vmatprep.subr.bf16.mxu0 0
    %3213 = vmatpush1.bf16.msra.mxu0 %v3177
    %3214 = vmatprep.subr.bf16.mxu0 0
    %3215 = vmatpush1.bf16.msra.mxu0 %v3178
    %3216 = vmatprep.subr.bf16.mxu0 0
    %3217 = vmatpush1.bf16.msra.mxu0 %v3179
    %3218 = vmatprep.subr.bf16.mxu0 0
    %3219 = vmatpush1.bf16.msra.mxu0 %v3180
    %3220 = vmatprep.subr.bf16.mxu0 0
    %3221 = vmatpush1.bf16.msra.mxu0 %v3181
    %3222 = vmatprep.subr.bf16.mxu0 0
    %3223 = vmatpush1.bf16.msra.mxu0 %v3182
    %3224 = vmatprep.subr.bf16.mxu0 0
    %3225 = vmatpush1.bf16.msra.mxu0 %v3183
    %3226 = vmatprep.subr.bf16.mxu0 0
    %3227 = vmatpush1.bf16.msra.mxu0 %v3184
    %3228 = vmatprep.subr.bf16.mxu0 0
    %3229 = vmatpush1.bf16.msra.mxu0 %v3185
    %3230 = vmatprep.subr.bf16.mxu0 0
    %3231 = vmatpush1.bf16.msra.mxu0 %v3186
    %3232 = vmatprep.subr.bf16.mxu0 0
    %3233 = vmatpush1.bf16.msra.mxu0 %v3187
    %3234 = vmatprep.subr.bf16.mxu0 0
    %3235 = vmatpush1.bf16.msra.mxu0 %v3188
    %3236 = vmatprep.subr.bf16.mxu0 0
    %3237 = vmatpush1.bf16.msra.mxu0 %v3189
    %3238 = vmatprep.mubr.bf16.mxu0 %v3101
    %3239 = vmatmul.mubr.bf16.gmra.mrb[0].mxu0 %v3100
    %v3240 = vpop.f32.mrb[0].mxu0
    %v3241 = vadd.f32 %v3108, %v3240
    %v3242 = vpop.f32.mrb[0].mxu0
    %v3243 = vpop.f32.mrb[0].mxu0
    %v3244 = vpop.f32.mrb[0].mxu0
    %3245 = vdwg.mxu0
    %3247 = vrot.lane.b32.xlu0 %v3241, 96
    %v3248 = vpop.permute.xlu0 %3247
    %v3250 = vmax.f32 %v3241, %v3248
    %v3251 = vsub.f32 %v3241, %v3250
    %v3252 = vmul.f32 %v3251, 1.442695
    %v3253 = vpow.pop %v3252
    %3255 = vrot.lane.b32.xlu0 %v3250, 32
    %v3256 = vpop.permute.xlu0 %3255
    %v3258 = vsub.f32 %v3241, %v3256
    %v3259 = vmul.f32 %v3258, 1.442695
    %v3260 = vpow.pop %v3259
    %3262 = vrot.lane.b32.xlu0 %v3260, 96
    %v3263 = vpop.permute.xlu0 %3262
    %v3265 = vadd.f32 %v3253, %v3263
    %v3266 = vrcp.pop %v3265
    %v3267 = vmul.f32 %v3253, %v3266
    %v3268 = vmul.f32 %v2742, %v3267
    %s3269 = scalar_lea.vmem %s7, 128
    %v3270 = vld [vmem:[%s3269] sm:$0xff]
    %v3271 = vld [vmem:[%s3269 + $0x8] sm:$0xff]
    %v3272 = vld [vmem:[%s3269 + $0x10] sm:$0xff]
    %v3273 = vld [vmem:[%s3269 + $0x18] sm:$0xff]
    %v3274 = vpack.c.bf16 %v3268, %v3268
    %s3275 = scalar_lea.vmem %s8, 8
    %v3276 = vld [vmem:[%s3275] sm:$0x3]
    %v3278 = vlaneseq
    %v3279 = vshrl.u32 %v3278, 7
    %v3280 = vsub.s32 0, %v3279
    %v3281 = vrot.slane %v3276, %v3280
    %v3282 = vlaneseq
    %v3283 = vshrl.u32 %v3282, 7
    %v3284 = vsub.s32 1, %v3283
    %v3285 = vrot.slane %v3276, %v3284
    %v3292 = vunpack.c.l.b16 %v3270
    %v3293 = vunpack.c.h.b16 %v3270
    %v3294 = vunpack.c.l.b16 %v3271
    %v3295 = vunpack.c.h.b16 %v3271
    %v3296 = vunpack.c.l.b16 %v3272
    %v3297 = vunpack.c.h.b16 %v3272
    %v3298 = vunpack.c.l.b16 %v3273
    %v3299 = vunpack.c.h.b16 %v3273
    %v3300 = vpack.c.b16 %v3294, %v3292
    %v3301 = vpack.c.b16 %v3295, %v3293
    %v3302 = vpack.c.b16 %v3298, %v3296
    %v3303 = vpack.c.b16 %v3299, %v3297
    %v3309 = vsel %vm638, %v3274, 0
    %3311 = vmatprep.subr.bf16.mxu0 %v3301
    %3312 = vmatpush1.bf16.msra.mxu0 %v3300
    %3313 = vmatprep.subr.bf16.mxu0 %v3303
    %3314 = vmatpush1.bf16.msra.mxu0 %v3302
    %3315 = vmatprep.subr.bf16.mxu0 0
    %3316 = vmatpush1.bf16.msra.mxu0 0
    %3317 = vmatprep.subr.bf16.mxu0 0
    %3318 = vmatpush1.bf16.msra.mxu0 0
    %3319 = vmatprep.subr.bf16.mxu0 0
    %3320 = vmatpush1.bf16.msra.mxu0 0
    %3321 = vmatprep.subr.bf16.mxu0 0
    %3322 = vmatpush1.bf16.msra.mxu0 0
    %3323 = vmatprep.subr.bf16.mxu0 0
    %3324 = vmatpush1.bf16.msra.mxu0 0
    %3325 = vmatprep.subr.bf16.mxu0 0
    %3326 = vmatpush1.bf16.msra.mxu0 0
    %3327 = vmatprep.subr.bf16.mxu0 0
    %3328 = vmatpush1.bf16.msra.mxu0 0
    %3329 = vmatprep.subr.bf16.mxu0 0
    %3330 = vmatpush1.bf16.msra.mxu0 0
    %3331 = vmatprep.subr.bf16.mxu0 0
    %3332 = vmatpush1.bf16.msra.mxu0 0
    %3333 = vmatprep.subr.bf16.mxu0 0
    %3334 = vmatpush1.bf16.msra.mxu0 0
    %3335 = vmatprep.subr.bf16.mxu0 0
    %3336 = vmatpush1.bf16.msra.mxu0 0
    %3337 = vmatprep.subr.bf16.mxu0 0
    %3338 = vmatpush1.bf16.msra.mxu0 0
    %3339 = vmatprep.subr.bf16.mxu0 0
    %3340 = vmatpush1.bf16.msra.mxu0 0
    %3341 = vmatprep.subr.bf16.mxu0 0
    %3342 = vmatpush1.bf16.msra.mxu0 0
    %3343 = vmatprep.mubr.bf16.mxu0 0
    %3344 = vmatmul.mubr.bf16.gmra.mrb[0].mxu0 %v3309
    %v3345 = vpop.f32.mrb[0].mxu0
    %v3346 = vadd.f32 %v3281, %v3345
    %v3347 = vpop.f32.mrb[0].mxu0
    %v3348 = vadd.f32 %v3285, %v3347
    %v3349 = vpop.f32.mrb[0].mxu0
    %v3350 = vpop.f32.mrb[0].mxu0
    %3351 = vdwg.mxu0
    %v3352 = vmax.f32 %v3346, 0.0
    %v3353 = vmax.f32 %v3348, 0.0
    %s3354 = scalar_lea.vmem %s9, 1024
    %v3355 = vld [vmem:[%s3354] sm:$0xff]
    %v3356 = vld [vmem:[%s3354 + $0x8] sm:$0xff]
    %v3357 = vld [vmem:[%s3354 + $0x10] sm:$0xff]
    %v3358 = vld [vmem:[%s3354 + $0x18] sm:$0xff]
    %v3359 = vld [vmem:[%s3354 + $0x20] sm:$0xff]
    %v3360 = vld [vmem:[%s3354 + $0x28] sm:$0xff]
    %v3361 = vld [vmem:[%s3354 + $0x30] sm:$0xff]
    %v3362 = vld [vmem:[%s3354 + $0x38] sm:$0xff]
    %v3363 = vld [vmem:[%s3354 + $0x40] sm:$0xff]
    %v3364 = vld [vmem:[%s3354 + $0x48] sm:$0xff]
    %v3365 = vld [vmem:[%s3354 + $0x50] sm:$0xff]
    %v3366 = vld [vmem:[%s3354 + $0x58] sm:$0xff]
    %v3367 = vld [vmem:[%s3354 + $0x60] sm:$0xff]
    %v3368 = vld [vmem:[%s3354 + $0x68] sm:$0xff]
    %v3369 = vld [vmem:[%s3354 + $0x70] sm:$0xff]
    %v3370 = vld [vmem:[%s3354 + $0x78] sm:$0xff]
    %v3371 = vld [vmem:[%s3354 + $0x80] sm:$0xff]
    %v3372 = vld [vmem:[%s3354 + $0x88] sm:$0xff]
    %v3373 = vld [vmem:[%s3354 + $0x90] sm:$0xff]
    %v3374 = vld [vmem:[%s3354 + $0x98] sm:$0xff]
    %v3375 = vld [vmem:[%s3354 + $0xa0] sm:$0xff]
    %v3376 = vld [vmem:[%s3354 + $0xa8] sm:$0xff]
    %v3377 = vld [vmem:[%s3354 + $0xb0] sm:$0xff]
    %v3378 = vld [vmem:[%s3354 + $0xb8] sm:$0xff]
    %v3379 = vld [vmem:[%s3354 + $0xc0] sm:$0xff]
    %v3380 = vld [vmem:[%s3354 + $0xc8] sm:$0xff]
    %v3381 = vld [vmem:[%s3354 + $0xd0] sm:$0xff]
    %v3382 = vld [vmem:[%s3354 + $0xd8] sm:$0xff]
    %v3383 = vld [vmem:[%s3354 + $0xe0] sm:$0xff]
    %v3384 = vld [vmem:[%s3354 + $0xe8] sm:$0xff]
    %v3385 = vld [vmem:[%s3354 + $0xf0] sm:$0xff]
    %v3386 = vld [vmem:[%s3354 + $0xf8] sm:$0xff]
    %v3387 = vpack.c.bf16 %v3352, %v3352
    %v3388 = vpack.c.bf16 %v3353, %v3353
    %s3389 = scalar_lea.vmem %s10, 8
    %v3390 = vld [vmem:[%s3389] sm:$0x3]
    %v3392 = vlaneseq
    %v3393 = vshrl.u32 %v3392, 7
    %v3394 = vsub.s32 0, %v3393
    %v3395 = vrot.slane %v3390, %v3394
    %v3396 = vlaneseq
    %v3397 = vshrl.u32 %v3396, 7
    %v3398 = vsub.s32 1, %v3397
    %v3399 = vrot.slane %v3390, %v3398
    %v3434 = vunpack.c.l.b16 %v3355
    %v3435 = vunpack.c.h.b16 %v3355
    %v3436 = vunpack.c.l.b16 %v3356
    %v3437 = vunpack.c.h.b16 %v3356
    %v3438 = vunpack.c.l.b16 %v3357
    %v3439 = vunpack.c.h.b16 %v3357
    %v3440 = vunpack.c.l.b16 %v3358
    %v3441 = vunpack.c.h.b16 %v3358
    %v3442 = vunpack.c.l.b16 %v3359
    %v3443 = vunpack.c.h.b16 %v3359
    %v3444 = vunpack.c.l.b16 %v3360
    %v3445 = vunpack.c.h.b16 %v3360
    %v3446 = vunpack.c.l.b16 %v3361
    %v3447 = vunpack.c.h.b16 %v3361
    %v3448 = vunpack.c.l.b16 %v3362
    %v3449 = vunpack.c.h.b16 %v3362
    %v3450 = vunpack.c.l.b16 %v3363
    %v3451 = vunpack.c.h.b16 %v3363
    %v3452 = vunpack.c.l.b16 %v3364
    %v3453 = vunpack.c.h.b16 %v3364
    %v3454 = vunpack.c.l.b16 %v3365
    %v3455 = vunpack.c.h.b16 %v3365
    %v3456 = vunpack.c.l.b16 %v3366
    %v3457 = vunpack.c.h.b16 %v3366
    %v3458 = vunpack.c.l.b16 %v3367
    %v3459 = vunpack.c.h.b16 %v3367
    %v3460 = vunpack.c.l.b16 %v3368
    %v3461 = vunpack.c.h.b16 %v3368
    %v3462 = vunpack.c.l.b16 %v3369
    %v3463 = vunpack.c.h.b16 %v3369
    %v3464 = vunpack.c.l.b16 %v3370
    %v3465 = vunpack.c.h.b16 %v3370
    %v3466 = vunpack.c.l.b16 %v3371
    %v3467 = vunpack.c.h.b16 %v3371
    %v3468 = vunpack.c.l.b16 %v3372
    %v3469 = vunpack.c.h.b16 %v3372
    %v3470 = vunpack.c.l.b16 %v3373
    %v3471 = vunpack.c.h.b16 %v3373
    %v3472 = vunpack.c.l.b16 %v3374
    %v3473 = vunpack.c.h.b16 %v3374
    %v3474 = vunpack.c.l.b16 %v3375
    %v3475 = vunpack.c.h.b16 %v3375
    %v3476 = vunpack.c.l.b16 %v3376
    %v3477 = vunpack.c.h.b16 %v3376
    %v3478 = vunpack.c.l.b16 %v3377
    %v3479 = vunpack.c.h.b16 %v3377
    %v3480 = vunpack.c.l.b16 %v3378
    %v3481 = vunpack.c.h.b16 %v3378
    %v3482 = vunpack.c.l.b16 %v3379
    %v3483 = vunpack.c.h.b16 %v3379
    %v3484 = vunpack.c.l.b16 %v3380
    %v3485 = vunpack.c.h.b16 %v3380
    %v3486 = vunpack.c.l.b16 %v3381
    %v3487 = vunpack.c.h.b16 %v3381
    %v3488 = vunpack.c.l.b16 %v3382
    %v3489 = vunpack.c.h.b16 %v3382
    %v3490 = vunpack.c.l.b16 %v3383
    %v3491 = vunpack.c.h.b16 %v3383
    %v3492 = vunpack.c.l.b16 %v3384
    %v3493 = vunpack.c.h.b16 %v3384
    %v3494 = vunpack.c.l.b16 %v3385
    %v3495 = vunpack.c.h.b16 %v3385
    %v3496 = vunpack.c.l.b16 %v3386
    %v3497 = vunpack.c.h.b16 %v3386
    %v3498 = vpack.c.b16 %v3436, %v3434
    %v3499 = vpack.c.b16 %v3437, %v3435
    %v3500 = vpack.c.b16 %v3440, %v3438
    %v3501 = vpack.c.b16 %v3441, %v3439
    %v3502 = vpack.c.b16 %v3444, %v3442
    %v3503 = vpack.c.b16 %v3445, %v3443
    %v3504 = vpack.c.b16 %v3448, %v3446
    %v3505 = vpack.c.b16 %v3449, %v3447
    %v3506 = vpack.c.b16 %v3452, %v3450
    %v3507 = vpack.c.b16 %v3453, %v3451
    %v3508 = vpack.c.b16 %v3456, %v3454
    %v3509 = vpack.c.b16 %v3457, %v3455
    %v3510 = vpack.c.b16 %v3460, %v3458
    %v3511 = vpack.c.b16 %v3461, %v3459
    %v3512 = vpack.c.b16 %v3464, %v3462
    %v3513 = vpack.c.b16 %v3465, %v3463
    %v3514 = vpack.c.b16 %v3468, %v3466
    %v3515 = vpack.c.b16 %v3469, %v3467
    %v3516 = vpack.c.b16 %v3472, %v3470
    %v3517 = vpack.c.b16 %v3473, %v3471
    %v3518 = vpack.c.b16 %v3476, %v3474
    %v3519 = vpack.c.b16 %v3477, %v3475
    %v3520 = vpack.c.b16 %v3480, %v3478
    %v3521 = vpack.c.b16 %v3481, %v3479
    %v3522 = vpack.c.b16 %v3484, %v3482
    %v3523 = vpack.c.b16 %v3485, %v3483
    %v3524 = vpack.c.b16 %v3488, %v3486
    %v3525 = vpack.c.b16 %v3489, %v3487
    %v3526 = vpack.c.b16 %v3492, %v3490
    %v3527 = vpack.c.b16 %v3493, %v3491
    %v3528 = vpack.c.b16 %v3496, %v3494
    %v3529 = vpack.c.b16 %v3497, %v3495
    %3562 = vmatprep.subr.bf16.mxu0 %v3499
    %3563 = vmatpush1.bf16.msra.mxu0 %v3498
    %3564 = vmatprep.subr.bf16.mxu0 %v3501
    %3565 = vmatpush1.bf16.msra.mxu0 %v3500
    %3566 = vmatprep.subr.bf16.mxu0 %v3503
    %3567 = vmatpush1.bf16.msra.mxu0 %v3502
    %3568 = vmatprep.subr.bf16.mxu0 %v3505
    %3569 = vmatpush1.bf16.msra.mxu0 %v3504
    %3570 = vmatprep.subr.bf16.mxu0 %v3507
    %3571 = vmatpush1.bf16.msra.mxu0 %v3506
    %3572 = vmatprep.subr.bf16.mxu0 %v3509
    %3573 = vmatpush1.bf16.msra.mxu0 %v3508
    %3574 = vmatprep.subr.bf16.mxu0 %v3511
    %3575 = vmatpush1.bf16.msra.mxu0 %v3510
    %3576 = vmatprep.subr.bf16.mxu0 %v3513
    %3577 = vmatpush1.bf16.msra.mxu0 %v3512
    %3578 = vmatprep.subr.bf16.mxu0 %v3515
    %3579 = vmatpush1.bf16.msra.mxu0 %v3514
    %3580 = vmatprep.subr.bf16.mxu0 %v3517
    %3581 = vmatpush1.bf16.msra.mxu0 %v3516
    %3582 = vmatprep.subr.bf16.mxu0 %v3519
    %3583 = vmatpush1.bf16.msra.mxu0 %v3518
    %3584 = vmatprep.subr.bf16.mxu0 %v3521
    %3585 = vmatpush1.bf16.msra.mxu0 %v3520
    %3586 = vmatprep.subr.bf16.mxu0 %v3523
    %3587 = vmatpush1.bf16.msra.mxu0 %v3522
    %3588 = vmatprep.subr.bf16.mxu0 %v3525
    %3589 = vmatpush1.bf16.msra.mxu0 %v3524
    %3590 = vmatprep.subr.bf16.mxu0 %v3527
    %3591 = vmatpush1.bf16.msra.mxu0 %v3526
    %3592 = vmatprep.subr.bf16.mxu0 %v3529
    %3593 = vmatpush1.bf16.msra.mxu0 %v3528
    %3594 = vmatprep.mubr.bf16.mxu0 %v3388
    %3595 = vmatmul.mubr.bf16.gmra.mrb[0].mxu0 %v3387
    %v3596 = vpop.f32.mrb[0].mxu0
    %v3597 = vadd.f32 %v3395, %v3596
    %v3598 = vpop.f32.mrb[0].mxu0
    %v3599 = vadd.f32 %v3399, %v3598
    %v3600 = vpop.f32.mrb[0].mxu0
    %v3601 = vpop.f32.mrb[0].mxu0
    %3602 = vdwg.mxu0
    %v3603 = vmax.f32 %v3597, 0.0
    %v3604 = vmax.f32 %v3599, 0.0
    %s3605 = scalar_lea.vmem %s11, 512
    %v3606 = vld [vmem:[%s3605] sm:$0xf]
    %v3607 = vld [vmem:[%s3605 + $0x4] sm:$0xf]
    %v3608 = vld [vmem:[%s3605 + $0x8] sm:$0xf]
    %v3609 = vld [vmem:[%s3605 + $0xc] sm:$0xf]
    %v3610 = vld [vmem:[%s3605 + $0x10] sm:$0xf]
    %v3611 = vld [vmem:[%s3605 + $0x14] sm:$0xf]
    %v3612 = vld [vmem:[%s3605 + $0x18] sm:$0xf]
    %v3613 = vld [vmem:[%s3605 + $0x1c] sm:$0xf]
    %v3614 = vld [vmem:[%s3605 + $0x20] sm:$0xf]
    %v3615 = vld [vmem:[%s3605 + $0x24] sm:$0xf]
    %v3616 = vld [vmem:[%s3605 + $0x28] sm:$0xf]
    %v3617 = vld [vmem:[%s3605 + $0x2c] sm:$0xf]
    %v3618 = vld [vmem:[%s3605 + $0x30] sm:$0xf]
    %v3619 = vld [vmem:[%s3605 + $0x34] sm:$0xf]
    %v3620 = vld [vmem:[%s3605 + $0x38] sm:$0xf]
    %v3621 = vld [vmem:[%s3605 + $0x3c] sm:$0xf]
    %v3622 = vld [vmem:[%s3605 + $0x40] sm:$0xf]
    %v3623 = vld [vmem:[%s3605 + $0x44] sm:$0xf]
    %v3624 = vld [vmem:[%s3605 + $0x48] sm:$0xf]
    %v3625 = vld [vmem:[%s3605 + $0x4c] sm:$0xf]
    %v3626 = vld [vmem:[%s3605 + $0x50] sm:$0xf]
    %v3627 = vld [vmem:[%s3605 + $0x54] sm:$0xf]
    %v3628 = vld [vmem:[%s3605 + $0x58] sm:$0xf]
    %v3629 = vld [vmem:[%s3605 + $0x5c] sm:$0xf]
    %v3630 = vld [vmem:[%s3605 + $0x60] sm:$0xf]
    %v3631 = vld [vmem:[%s3605 + $0x64] sm:$0xf]
    %v3632 = vld [vmem:[%s3605 + $0x68] sm:$0xf]
    %v3633 = vld [vmem:[%s3605 + $0x6c] sm:$0xf]
    %v3634 = vld [vmem:[%s3605 + $0x70] sm:$0xf]
    %v3635 = vld [vmem:[%s3605 + $0x74] sm:$0xf]
    %v3636 = vld [vmem:[%s3605 + $0x78] sm:$0xf]
    %v3637 = vld [vmem:[%s3605 + $0x7c] sm:$0xf]
    %v3638 = vpack.c.bf16 %v3603, %v3603
    %v3639 = vpack.c.bf16 %v3604, %v3604
    %s3640 = scalar_lea.vmem %s12, 4
    %v3641 = vld [vmem:[%s3640] sm:$0x1]
    %v3643 = vlaneseq
    %v3644 = vshrl.u32 %v3643, 7
    %v3645 = vsub.s32 0, %v3644
    %v3646 = vrot.slane %v3641, %v3645
    %v3680 = vunpack.c.l.b16 %v3606
    %v3681 = vunpack.c.l.b16 %v3607
    %v3682 = vunpack.c.l.b16 %v3608
    %v3683 = vunpack.c.l.b16 %v3609
    %v3684 = vunpack.c.l.b16 %v3610
    %v3685 = vunpack.c.l.b16 %v3611
    %v3686 = vunpack.c.l.b16 %v3612
    %v3687 = vunpack.c.l.b16 %v3613
    %v3688 = vunpack.c.l.b16 %v3614
    %v3689 = vunpack.c.l.b16 %v3615
    %v3690 = vunpack.c.l.b16 %v3616
    %v3691 = vunpack.c.l.b16 %v3617
    %v3692 = vunpack.c.l.b16 %v3618
    %v3693 = vunpack.c.l.b16 %v3619
    %v3694 = vunpack.c.l.b16 %v3620
    %v3695 = vunpack.c.l.b16 %v3621
    %v3696 = vunpack.c.l.b16 %v3622
    %v3697 = vunpack.c.l.b16 %v3623
    %v3698 = vunpack.c.l.b16 %v3624
    %v3699 = vunpack.c.l.b16 %v3625
    %v3700 = vunpack.c.l.b16 %v3626
    %v3701 = vunpack.c.l.b16 %v3627
    %v3702 = vunpack.c.l.b16 %v3628
    %v3703 = vunpack.c.l.b16 %v3629
    %v3704 = vunpack.c.l.b16 %v3630
    %v3705 = vunpack.c.l.b16 %v3631
    %v3706 = vunpack.c.l.b16 %v3632
    %v3707 = vunpack.c.l.b16 %v3633
    %v3708 = vunpack.c.l.b16 %v3634
    %v3709 = vunpack.c.l.b16 %v3635
    %v3710 = vunpack.c.l.b16 %v3636
    %v3711 = vunpack.c.l.b16 %v3637
    %v3712 = vpack.c.b16 %v3681, %v3680
    %v3713 = vpack.c.b16 %v3683, %v3682
    %v3714 = vpack.c.b16 %v3685, %v3684
    %v3715 = vpack.c.b16 %v3687, %v3686
    %v3716 = vpack.c.b16 %v3689, %v3688
    %v3717 = vpack.c.b16 %v3691, %v3690
    %v3718 = vpack.c.b16 %v3693, %v3692
    %v3719 = vpack.c.b16 %v3695, %v3694
    %v3720 = vpack.c.b16 %v3697, %v3696
    %v3721 = vpack.c.b16 %v3699, %v3698
    %v3722 = vpack.c.b16 %v3701, %v3700
    %v3723 = vpack.c.b16 %v3703, %v3702
    %v3724 = vpack.c.b16 %v3705, %v3704
    %v3725 = vpack.c.b16 %v3707, %v3706
    %v3726 = vpack.c.b16 %v3709, %v3708
    %v3727 = vpack.c.b16 %v3711, %v3710
    %3744 = vmatprep.subr.bf16.mxu0 0
    %3745 = vmatpush1.bf16.msra.mxu0 %v3712
    %3746 = vmatprep.subr.bf16.mxu0 0
    %3747 = vmatpush1.bf16.msra.mxu0 %v3713
    %3748 = vmatprep.subr.bf16.mxu0 0
    %3749 = vmatpush1.bf16.msra.mxu0 %v3714
    %3750 = vmatprep.subr.bf16.mxu0 0
    %3751 = vmatpush1.bf16.msra.mxu0 %v3715
    %3752 = vmatprep.subr.bf16.mxu0 0
    %3753 = vmatpush1.bf16.msra.mxu0 %v3716
    %3754 = vmatprep.subr.bf16.mxu0 0
    %3755 = vmatpush1.bf16.msra.mxu0 %v3717
    %3756 = vmatprep.subr.bf16.mxu0 0
    %3757 = vmatpush1.bf16.msra.mxu0 %v3718
    %3758 = vmatprep.subr.bf16.mxu0 0
    %3759 = vmatpush1.bf16.msra.mxu0 %v3719
    %3760 = vmatprep.subr.bf16.mxu0 0
    %3761 = vmatpush1.bf16.msra.mxu0 %v3720
    %3762 = vmatprep.subr.bf16.mxu0 0
    %3763 = vmatpush1.bf16.msra.mxu0 %v3721
    %3764 = vmatprep.subr.bf16.mxu0 0
    %3765 = vmatpush1.bf16.msra.mxu0 %v3722
    %3766 = vmatprep.subr.bf16.mxu0 0
    %3767 = vmatpush1.bf16.msra.mxu0 %v3723
    %3768 = vmatprep.subr.bf16.mxu0 0
    %3769 = vmatpush1.bf16.msra.mxu0 %v3724
    %3770 = vmatprep.subr.bf16.mxu0 0
    %3771 = vmatpush1.bf16.msra.mxu0 %v3725
    %3772 = vmatprep.subr.bf16.mxu0 0
    %3773 = vmatpush1.bf16.msra.mxu0 %v3726
    %3774 = vmatprep.subr.bf16.mxu0 0
    %3775 = vmatpush1.bf16.msra.mxu0 %v3727
    %3776 = vmatprep.mubr.bf16.mxu0 %v3639
    %3777 = vmatmul.mubr.bf16.gmra.mrb[0].mxu0 %v3638
    %v3778 = vpop.f32.mrb[0].mxu0
    %v3779 = vadd.f32 %v3646, %v3778
    %v3780 = vpop.f32.mrb[0].mxu0
    %v3781 = vpop.f32.mrb[0].mxu0
    %v3782 = vpop.f32.mrb[0].mxu0
    %3783 = vdwg.mxu0
    %v3784 = vsub.f32 %v3268, %v3779
    %v3785 = vadd.f32 %v3779, 0.0
    %s3786 = scalar_lea.vmem %s7, 160
    %v3787 = vld [vmem:[%s3786] sm:$0xff]
    %v3788 = vld [vmem:[%s3786 + $0x8] sm:$0xff]
    %v3789 = vld [vmem:[%s3786 + $0x10] sm:$0xff]
    %v3790 = vld [vmem:[%s3786 + $0x18] sm:$0xff]
    %v3791 = vpack.c.bf16 %v3784, %v3784
    %s3792 = scalar_lea.vmem %s8, 10
    %v3793 = vld [vmem:[%s3792] sm:$0x3]
    %v3795 = vlaneseq
    %v3796 = vshrl.u32 %v3795, 7
    %v3797 = vsub.s32 0, %v3796
    %v3798 = vrot.slane %v3793, %v3797
    %v3799 = vlaneseq
    %v3800 = vshrl.u32 %v3799, 7
    %v3801 = vsub.s32 1, %v3800
    %v3802 = vrot.slane %v3793, %v3801
    %v3809 = vunpack.c.l.b16 %v3787
    %v3810 = vunpack.c.h.b16 %v3787
    %v3811 = vunpack.c.l.b16 %v3788
    %v3812 = vunpack.c.h.b16 %v3788
    %v3813 = vunpack.c.l.b16 %v3789
    %v3814 = vunpack.c.h.b16 %v3789
    %v3815 = vunpack.c.l.b16 %v3790
    %v3816 = vunpack.c.h.b16 %v3790
    %v3817 = vpack.c.b16 %v3811, %v3809
    %v3818 = vpack.c.b16 %v3812, %v3810
    %v3819 = vpack.c.b16 %v3815, %v3813
    %v3820 = vpack.c.b16 %v3816, %v3814
    %v3826 = vsel %vm638, %v3791, 0
    %3828 = vmatprep.subr.bf16.mxu0 %v3818
    %3829 = vmatpush1.bf16.msra.mxu0 %v3817
    %3830 = vmatprep.subr.bf16.mxu0 %v3820
    %3831 = vmatpush1.bf16.msra.mxu0 %v3819
    %3832 = vmatprep.subr.bf16.mxu0 0
    %3833 = vmatpush1.bf16.msra.mxu0 0
    %3834 = vmatprep.subr.bf16.mxu0 0
    %3835 = vmatpush1.bf16.msra.mxu0 0
    %3836 = vmatprep.subr.bf16.mxu0 0
    %3837 = vmatpush1.bf16.msra.mxu0 0
    %3838 = vmatprep.subr.bf16.mxu0 0
    %3839 = vmatpush1.bf16.msra.mxu0 0
    %3840 = vmatprep.subr.bf16.mxu0 0
    %3841 = vmatpush1.bf16.msra.mxu0 0
    %3842 = vmatprep.subr.bf16.mxu0 0
    %3843 = vmatpush1.bf16.msra.mxu0 0
    %3844 = vmatprep.subr.bf16.mxu0 0
    %3845 = vmatpush1.bf16.msra.mxu0 0
    %3846 = vmatprep.subr.bf16.mxu0 0
    %3847 = vmatpush1.bf16.msra.mxu0 0
    %3848 = vmatprep.subr.bf16.mxu0 0
    %3849 = vmatpush1.bf16.msra.mxu0 0
    %3850 = vmatprep.subr.bf16.mxu0 0
    %3851 = vmatpush1.bf16.msra.mxu0 0
    %3852 = vmatprep.subr.bf16.mxu0 0
    %3853 = vmatpush1.bf16.msra.mxu0 0
    %3854 = vmatprep.subr.bf16.mxu0 0
    %3855 = vmatpush1.bf16.msra.mxu0 0
    %3856 = vmatprep.subr.bf16.mxu0 0
    %3857 = vmatpush1.bf16.msra.mxu0 0
    %3858 = vmatprep.subr.bf16.mxu0 0
    %3859 = vmatpush1.bf16.msra.mxu0 0
    %3860 = vmatprep.mubr.bf16.mxu0 0
    %3861 = vmatmul.mubr.bf16.gmra.mrb[0].mxu0 %v3826
    %v3862 = vpop.f32.mrb[0].mxu0
    %v3863 = vadd.f32 %v3798, %v3862
    %v3864 = vpop.f32.mrb[0].mxu0
    %v3865 = vadd.f32 %v3802, %v3864
    %v3866 = vpop.f32.mrb[0].mxu0
    %v3867 = vpop.f32.mrb[0].mxu0
    %3868 = vdwg.mxu0
    %v3869 = vmax.f32 %v3863, 0.0
    %v3870 = vmax.f32 %v3865, 0.0
    %s3871 = scalar_lea.vmem %s9, 1280
    %v3872 = vld [vmem:[%s3871] sm:$0xff]
    %v3873 = vld [vmem:[%s3871 + $0x8] sm:$0xff]
    %v3874 = vld [vmem:[%s3871 + $0x10] sm:$0xff]
    %v3875 = vld [vmem:[%s3871 + $0x18] sm:$0xff]
    %v3876 = vld [vmem:[%s3871 + $0x20] sm:$0xff]
    %v3877 = vld [vmem:[%s3871 + $0x28] sm:$0xff]
    %v3878 = vld [vmem:[%s3871 + $0x30] sm:$0xff]
    %v3879 = vld [vmem:[%s3871 + $0x38] sm:$0xff]
    %v3880 = vld [vmem:[%s3871 + $0x40] sm:$0xff]
    %v3881 = vld [vmem:[%s3871 + $0x48] sm:$0xff]
    %v3882 = vld [vmem:[%s3871 + $0x50] sm:$0xff]
    %v3883 = vld [vmem:[%s3871 + $0x58] sm:$0xff]
    %v3884 = vld [vmem:[%s3871 + $0x60] sm:$0xff]
    %v3885 = vld [vmem:[%s3871 + $0x68] sm:$0xff]
    %v3886 = vld [vmem:[%s3871 + $0x70] sm:$0xff]
    %v3887 = vld [vmem:[%s3871 + $0x78] sm:$0xff]
    %v3888 = vld [vmem:[%s3871 + $0x80] sm:$0xff]
    %v3889 = vld [vmem:[%s3871 + $0x88] sm:$0xff]
    %v3890 = vld [vmem:[%s3871 + $0x90] sm:$0xff]
    %v3891 = vld [vmem:[%s3871 + $0x98] sm:$0xff]
    %v3892 = vld [vmem:[%s3871 + $0xa0] sm:$0xff]
    %v3893 = vld [vmem:[%s3871 + $0xa8] sm:$0xff]
    %v3894 = vld [vmem:[%s3871 + $0xb0] sm:$0xff]
    %v3895 = vld [vmem:[%s3871 + $0xb8] sm:$0xff]
    %v3896 = vld [vmem:[%s3871 + $0xc0] sm:$0xff]
    %v3897 = vld [vmem:[%s3871 + $0xc8] sm:$0xff]
    %v3898 = vld [vmem:[%s3871 + $0xd0] sm:$0xff]
    %v3899 = vld [vmem:[%s3871 + $0xd8] sm:$0xff]
    %v3900 = vld [vmem:[%s3871 + $0xe0] sm:$0xff]
    %v3901 = vld [vmem:[%s3871 + $0xe8] sm:$0xff]
    %v3902 = vld [vmem:[%s3871 + $0xf0] sm:$0xff]
    %v3903 = vld [vmem:[%s3871 + $0xf8] sm:$0xff]
    %v3904 = vpack.c.bf16 %v3869, %v3869
    %v3905 = vpack.c.bf16 %v3870, %v3870
    %s3906 = scalar_lea.vmem %s10, 10
    %v3907 = vld [vmem:[%s3906] sm:$0x3]
    %v3909 = vlaneseq
    %v3910 = vshrl.u32 %v3909, 7
    %v3911 = vsub.s32 0, %v3910
    %v3912 = vrot.slane %v3907, %v3911
    %v3913 = vlaneseq
    %v3914 = vshrl.u32 %v3913, 7
    %v3915 = vsub.s32 1, %v3914
    %v3916 = vrot.slane %v3907, %v3915
    %v3951 = vunpack.c.l.b16 %v3872
    %v3952 = vunpack.c.h.b16 %v3872
    %v3953 = vunpack.c.l.b16 %v3873
    %v3954 = vunpack.c.h.b16 %v3873
    %v3955 = vunpack.c.l.b16 %v3874
    %v3956 = vunpack.c.h.b16 %v3874
    %v3957 = vunpack.c.l.b16 %v3875
    %v3958 = vunpack.c.h.b16 %v3875
    %v3959 = vunpack.c.l.b16 %v3876
    %v3960 = vunpack.c.h.b16 %v3876
    %v3961 = vunpack.c.l.b16 %v3877
    %v3962 = vunpack.c.h.b16 %v3877
    %v3963 = vunpack.c.l.b16 %v3878
    %v3964 = vunpack.c.h.b16 %v3878
    %v3965 = vunpack.c.l.b16 %v3879
    %v3966 = vunpack.c.h.b16 %v3879
    %v3967 = vunpack.c.l.b16 %v3880
    %v3968 = vunpack.c.h.b16 %v3880
    %v3969 = vunpack.c.l.b16 %v3881
    %v3970 = vunpack.c.h.b16 %v3881
    %v3971 = vunpack.c.l.b16 %v3882
    %v3972 = vunpack.c.h.b16 %v3882
    %v3973 = vunpack.c.l.b16 %v3883
    %v3974 = vunpack.c.h.b16 %v3883
    %v3975 = vunpack.c.l.b16 %v3884
    %v3976 = vunpack.c.h.b16 %v3884
    %v3977 = vunpack.c.l.b16 %v3885
    %v3978 = vunpack.c.h.b16 %v3885
    %v3979 = vunpack.c.l.b16 %v3886
    %v3980 = vunpack.c.h.b16 %v3886
    %v3981 = vunpack.c.l.b16 %v3887
    %v3982 = vunpack.c.h.b16 %v3887
    %v3983 = vunpack.c.l.b16 %v3888
    %v3984 = vunpack.c.h.b16 %v3888
    %v3985 = vunpack.c.l.b16 %v3889
    %v3986 = vunpack.c.h.b16 %v3889
    %v3987 = vunpack.c.l.b16 %v3890
    %v3988 = vunpack.c.h.b16 %v3890
    %v3989 = vunpack.c.l.b16 %v3891
    %v3990 = vunpack.c.h.b16 %v3891
    %v3991 = vunpack.c.l.b16 %v3892
    %v3992 = vunpack.c.h.b16 %v3892
    %v3993 = vunpack.c.l.b16 %v3893
    %v3994 = vunpack.c.h.b16 %v3893
    %v3995 = vunpack.c.l.b16 %v3894
    %v3996 = vunpack.c.h.b16 %v3894
    %v3997 = vunpack.c.l.b16 %v3895
    %v3998 = vunpack.c.h.b16 %v3895
    %v3999 = vunpack.c.l.b16 %v3896
    %v4000 = vunpack.c.h.b16 %v3896
    %v4001 = vunpack.c.l.b16 %v3897
    %v4002 = vunpack.c.h.b16 %v3897
    %v4003 = vunpack.c.l.b16 %v3898
    %v4004 = vunpack.c.h.b16 %v3898
    %v4005 = vunpack.c.l.b16 %v3899
    %v4006 = vunpack.c.h.b16 %v3899
    %v4007 = vunpack.c.l.b16 %v3900
    %v4008 = vunpack.c.h.b16 %v3900
    %v4009 = vunpack.c.l.b16 %v3901
    %v4010 = vunpack.c.h.b16 %v3901
    %v4011 = vunpack.c.l.b16 %v3902
    %v4012 = vunpack.c.h.b16 %v3902
    %v4013 = vunpack.c.l.b16 %v3903
    %v4014 = vunpack.c.h.b16 %v3903
    %v4015 = vpack.c.b16 %v3953, %v3951
    %v4016 = vpack.c.b16 %v3954, %v3952
    %v4017 = vpack.c.b16 %v3957, %v3955
    %v4018 = vpack.c.b16 %v3958, %v3956
    %v4019 = vpack.c.b16 %v3961, %v3959
    %v4020 = vpack.c.b16 %v3962, %v3960
    %v4021 = vpack.c.b16 %v3965, %v3963
    %v4022 = vpack.c.b16 %v3966, %v3964
    %v4023 = vpack.c.b16 %v3969, %v3967
    %v4024 = vpack.c.b16 %v3970, %v3968
    %v4025 = vpack.c.b16 %v3973, %v3971
    %v4026 = vpack.c.b16 %v3974, %v3972
    %v4027 = vpack.c.b16 %v3977, %v3975
    %v4028 = vpack.c.b16 %v3978, %v3976
    %v4029 = vpack.c.b16 %v3981, %v3979
    %v4030 = vpack.c.b16 %v3982, %v3980
    %v4031 = vpack.c.b16 %v3985, %v3983
    %v4032 = vpack.c.b16 %v3986, %v3984
    %v4033 = vpack.c.b16 %v3989, %v3987
    %v4034 = vpack.c.b16 %v3990, %v3988
    %v4035 = vpack.c.b16 %v3993, %v3991
    %v4036 = vpack.c.b16 %v3994, %v3992
    %v4037 = vpack.c.b16 %v3997, %v3995
    %v4038 = vpack.c.b16 %v3998, %v3996
    %v4039 = vpack.c.b16 %v4001, %v3999
    %v4040 = vpack.c.b16 %v4002, %v4000
    %v4041 = vpack.c.b16 %v4005, %v4003
    %v4042 = vpack.c.b16 %v4006, %v4004
    %v4043 = vpack.c.b16 %v4009, %v4007
    %v4044 = vpack.c.b16 %v4010, %v4008
    %v4045 = vpack.c.b16 %v4013, %v4011
    %v4046 = vpack.c.b16 %v4014, %v4012
    %4079 = vmatprep.subr.bf16.mxu0 %v4016
    %4080 = vmatpush1.bf16.msra.mxu0 %v4015
    %4081 = vmatprep.subr.bf16.mxu0 %v4018
    %4082 = vmatpush1.bf16.msra.mxu0 %v4017
    %4083 = vmatprep.subr.bf16.mxu0 %v4020
    %4084 = vmatpush1.bf16.msra.mxu0 %v4019
    %4085 = vmatprep.subr.bf16.mxu0 %v4022
    %4086 = vmatpush1.bf16.msra.mxu0 %v4021
    %4087 = vmatprep.subr.bf16.mxu0 %v4024
    %4088 = vmatpush1.bf16.msra.mxu0 %v4023
    %4089 = vmatprep.subr.bf16.mxu0 %v4026
    %4090 = vmatpush1.bf16.msra.mxu0 %v4025
    %4091 = vmatprep.subr.bf16.mxu0 %v4028
    %4092 = vmatpush1.bf16.msra.mxu0 %v4027
    %4093 = vmatprep.subr.bf16.mxu0 %v4030
    %4094 = vmatpush1.bf16.msra.mxu0 %v4029
    %4095 = vmatprep.subr.bf16.mxu0 %v4032
    %4096 = vmatpush1.bf16.msra.mxu0 %v4031
    %4097 = vmatprep.subr.bf16.mxu0 %v4034
    %4098 = vmatpush1.bf16.msra.mxu0 %v4033
    %4099 = vmatprep.subr.bf16.mxu0 %v4036
    %4100 = vmatpush1.bf16.msra.mxu0 %v4035
    %4101 = vmatprep.subr.bf16.mxu0 %v4038
    %4102 = vmatpush1.bf16.msra.mxu0 %v4037
    %4103 = vmatprep.subr.bf16.mxu0 %v4040
    %4104 = vmatpush1.bf16.msra.mxu0 %v4039
    %4105 = vmatprep.subr.bf16.mxu0 %v4042
    %4106 = vmatpush1.bf16.msra.mxu0 %v4041
    %4107 = vmatprep.subr.bf16.mxu0 %v4044
    %4108 = vmatpush1.bf16.msra.mxu0 %v4043
    %4109 = vmatprep.subr.bf16.mxu0 %v4046
    %4110 = vmatpush1.bf16.msra.mxu0 %v4045
    %4111 = vmatprep.mubr.bf16.mxu0 %v3905
    %4112 = vmatmul.mubr.bf16.gmra.mrb[0].mxu0 %v3904
    %v4113 = vpop.f32.mrb[0].mxu0
    %v4114 = vadd.f32 %v3912, %v4113
    %v4115 = vpop.f32.mrb[0].mxu0
    %v4116 = vadd.f32 %v3916, %v4115
    %v4117 = vpop.f32.mrb[0].mxu0
    %v4118 = vpop.f32.mrb[0].mxu0
    %4119 = vdwg.mxu0
    %v4120 = vmax.f32 %v4114, 0.0
    %v4121 = vmax.f32 %v4116, 0.0
    %s4122 = scalar_lea.vmem %s11, 640
    %v4123 = vld [vmem:[%s4122] sm:$0xf]
    %v4124 = vld [vmem:[%s4122 + $0x4] sm:$0xf]
    %v4125 = vld [vmem:[%s4122 + $0x8] sm:$0xf]
    %v4126 = vld [vmem:[%s4122 + $0xc] sm:$0xf]
    %v4127 = vld [vmem:[%s4122 + $0x10] sm:$0xf]
    %v4128 = vld [vmem:[%s4122 + $0x14] sm:$0xf]
    %v4129 = vld [vmem:[%s4122 + $0x18] sm:$0xf]
    %v4130 = vld [vmem:[%s4122 + $0x1c] sm:$0xf]
    %v4131 = vld [vmem:[%s4122 + $0x20] sm:$0xf]
    %v4132 = vld [vmem:[%s4122 + $0x24] sm:$0xf]
    %v4133 = vld [vmem:[%s4122 + $0x28] sm:$0xf]
    %v4134 = vld [vmem:[%s4122 + $0x2c] sm:$0xf]
    %v4135 = vld [vmem:[%s4122 + $0x30] sm:$0xf]
    %v4136 = vld [vmem:[%s4122 + $0x34] sm:$0xf]
    %v4137 = vld [vmem:[%s4122 + $0x38] sm:$0xf]
    %v4138 = vld [vmem:[%s4122 + $0x3c] sm:$0xf]
    %v4139 = vld [vmem:[%s4122 + $0x40] sm:$0xf]
    %v4140 = vld [vmem:[%s4122 + $0x44] sm:$0xf]
    %v4141 = vld [vmem:[%s4122 + $0x48] sm:$0xf]
    %v4142 = vld [vmem:[%s4122 + $0x4c] sm:$0xf]
    %v4143 = vld [vmem:[%s4122 + $0x50] sm:$0xf]
    %v4144 = vld [vmem:[%s4122 + $0x54] sm:$0xf]
    %v4145 = vld [vmem:[%s4122 + $0x58] sm:$0xf]
    %v4146 = vld [vmem:[%s4122 + $0x5c] sm:$0xf]
    %v4147 = vld [vmem:[%s4122 + $0x60] sm:$0xf]
    %v4148 = vld [vmem:[%s4122 + $0x64] sm:$0xf]
    %v4149 = vld [vmem:[%s4122 + $0x68] sm:$0xf]
    %v4150 = vld [vmem:[%s4122 + $0x6c] sm:$0xf]
    %v4151 = vld [vmem:[%s4122 + $0x70] sm:$0xf]
    %v4152 = vld [vmem:[%s4122 + $0x74] sm:$0xf]
    %v4153 = vld [vmem:[%s4122 + $0x78] sm:$0xf]
    %v4154 = vld [vmem:[%s4122 + $0x7c] sm:$0xf]
    %v4155 = vpack.c.bf16 %v4120, %v4120
    %v4156 = vpack.c.bf16 %v4121, %v4121
    %s4157 = scalar_lea.vmem %s12, 5
    %v4158 = vld [vmem:[%s4157] sm:$0x1]
    %v4160 = vlaneseq
    %v4161 = vshrl.u32 %v4160, 7
    %v4162 = vsub.s32 0, %v4161
    %v4163 = vrot.slane %v4158, %v4162
    %v4197 = vunpack.c.l.b16 %v4123
    %v4198 = vunpack.c.l.b16 %v4124
    %v4199 = vunpack.c.l.b16 %v4125
    %v4200 = vunpack.c.l.b16 %v4126
    %v4201 = vunpack.c.l.b16 %v4127
    %v4202 = vunpack.c.l.b16 %v4128
    %v4203 = vunpack.c.l.b16 %v4129
    %v4204 = vunpack.c.l.b16 %v4130
    %v4205 = vunpack.c.l.b16 %v4131
    %v4206 = vunpack.c.l.b16 %v4132
    %v4207 = vunpack.c.l.b16 %v4133
    %v4208 = vunpack.c.l.b16 %v4134
    %v4209 = vunpack.c.l.b16 %v4135
    %v4210 = vunpack.c.l.b16 %v4136
    %v4211 = vunpack.c.l.b16 %v4137
    %v4212 = vunpack.c.l.b16 %v4138
    %v4213 = vunpack.c.l.b16 %v4139
    %v4214 = vunpack.c.l.b16 %v4140
    %v4215 = vunpack.c.l.b16 %v4141
    %v4216 = vunpack.c.l.b16 %v4142
    %v4217 = vunpack.c.l.b16 %v4143
    %v4218 = vunpack.c.l.b16 %v4144
    %v4219 = vunpack.c.l.b16 %v4145
    %v4220 = vunpack.c.l.b16 %v4146
    %v4221 = vunpack.c.l.b16 %v4147
    %v4222 = vunpack.c.l.b16 %v4148
    %v4223 = vunpack.c.l.b16 %v4149
    %v4224 = vunpack.c.l.b16 %v4150
    %v4225 = vunpack.c.l.b16 %v4151
    %v4226 = vunpack.c.l.b16 %v4152
    %v4227 = vunpack.c.l.b16 %v4153
    %v4228 = vunpack.c.l.b16 %v4154
    %v4229 = vpack.c.b16 %v4198, %v4197
    %v4230 = vpack.c.b16 %v4200, %v4199
    %v4231 = vpack.c.b16 %v4202, %v4201
    %v4232 = vpack.c.b16 %v4204, %v4203
    %v4233 = vpack.c.b16 %v4206, %v4205
    %v4234 = vpack.c.b16 %v4208, %v4207
    %v4235 = vpack.c.b16 %v4210, %v4209
    %v4236 = vpack.c.b16 %v4212, %v4211
    %v4237 = vpack.c.b16 %v4214, %v4213
    %v4238 = vpack.c.b16 %v4216, %v4215
    %v4239 = vpack.c.b16 %v4218, %v4217
    %v4240 = vpack.c.b16 %v4220, %v4219
    %v4241 = vpack.c.b16 %v4222, %v4221
    %v4242 = vpack.c.b16 %v4224, %v4223
    %v4243 = vpack.c.b16 %v4226, %v4225
    %v4244 = vpack.c.b16 %v4228, %v4227
    %4261 = vmatprep.subr.bf16.mxu0 0
    %4262 = vmatpush1.bf16.msra.mxu0 %v4229
    %4263 = vmatprep.subr.bf16.mxu0 0
    %4264 = vmatpush1.bf16.msra.mxu0 %v4230
    %4265 = vmatprep.subr.bf16.mxu0 0
    %4266 = vmatpush1.bf16.msra.mxu0 %v4231
    %4267 = vmatprep.subr.bf16.mxu0 0
    %4268 = vmatpush1.bf16.msra.mxu0 %v4232
    %4269 = vmatprep.subr.bf16.mxu0 0
    %4270 = vmatpush1.bf16.msra.mxu0 %v4233
    %4271 = vmatprep.subr.bf16.mxu0 0
    %4272 = vmatpush1.bf16.msra.mxu0 %v4234
    %4273 = vmatprep.subr.bf16.mxu0 0
    %4274 = vmatpush1.bf16.msra.mxu0 %v4235
    %4275 = vmatprep.subr.bf16.mxu0 0
    %4276 = vmatpush1.bf16.msra.mxu0 %v4236
    %4277 = vmatprep.subr.bf16.mxu0 0
    %4278 = vmatpush1.bf16.msra.mxu0 %v4237
    %4279 = vmatprep.subr.bf16.mxu0 0
    %4280 = vmatpush1.bf16.msra.mxu0 %v4238
    %4281 = vmatprep.subr.bf16.mxu0 0
    %4282 = vmatpush1.bf16.msra.mxu0 %v4239
    %4283 = vmatprep.subr.bf16.mxu0 0
    %4284 = vmatpush1.bf16.msra.mxu0 %v4240
    %4285 = vmatprep.subr.bf16.mxu0 0
    %4286 = vmatpush1.bf16.msra.mxu0 %v4241
    %4287 = vmatprep.subr.bf16.mxu0 0
    %4288 = vmatpush1.bf16.msra.mxu0 %v4242
    %4289 = vmatprep.subr.bf16.mxu0 0
    %4290 = vmatpush1.bf16.msra.mxu0 %v4243
    %4291 = vmatprep.subr.bf16.mxu0 0
    %4292 = vmatpush1.bf16.msra.mxu0 %v4244
    %4293 = vmatprep.mubr.bf16.mxu0 %v4156
    %4294 = vmatmul.mubr.bf16.gmra.mrb[0].mxu0 %v4155
    %v4295 = vpop.f32.mrb[0].mxu0
    %v4296 = vadd.f32 %v4163, %v4295
    %v4297 = vpop.f32.mrb[0].mxu0
    %v4298 = vpop.f32.mrb[0].mxu0
    %v4299 = vpop.f32.mrb[0].mxu0
    %4300 = vdwg.mxu0
    %v4301 = vsub.f32 %v3784, %v4296
    %v4302 = vadd.f32 %v3785, %v4296
    %s4303 = scalar_lea.vmem %s7, 192
    %v4304 = vld [vmem:[%s4303] sm:$0xff]
    %v4305 = vld [vmem:[%s4303 + $0x8] sm:$0xff]
    %v4306 = vld [vmem:[%s4303 + $0x10] sm:$0xff]
    %v4307 = vld [vmem:[%s4303 + $0x18] sm:$0xff]
    %v4308 = vpack.c.bf16 %v4301, %v4301
    %s4309 = scalar_lea.vmem %s8, 12
    %v4310 = vld [vmem:[%s4309] sm:$0x3]
    %v4312 = vlaneseq
    %v4313 = vshrl.u32 %v4312, 7
    %v4314 = vsub.s32 0, %v4313
    %v4315 = vrot.slane %v4310, %v4314
    %v4316 = vlaneseq
    %v4317 = vshrl.u32 %v4316, 7
    %v4318 = vsub.s32 1, %v4317
    %v4319 = vrot.slane %v4310, %v4318
    %v4326 = vunpack.c.l.b16 %v4304
    %v4327 = vunpack.c.h.b16 %v4304
    %v4328 = vunpack.c.l.b16 %v4305
    %v4329 = vunpack.c.h.b16 %v4305
    %v4330 = vunpack.c.l.b16 %v4306
    %v4331 = vunpack.c.h.b16 %v4306
    %v4332 = vunpack.c.l.b16 %v4307
    %v4333 = vunpack.c.h.b16 %v4307
    %v4334 = vpack.c.b16 %v4328, %v4326
    %v4335 = vpack.c.b16 %v4329, %v4327
    %v4336 = vpack.c.b16 %v4332, %v4330
    %v4337 = vpack.c.b16 %v4333, %v4331
    %v4343 = vsel %vm638, %v4308, 0
    %4345 = vmatprep.subr.bf16.mxu0 %v4335
    %4346 = vmatpush1.bf16.msra.mxu0 %v4334
    %4347 = vmatprep.subr.bf16.mxu0 %v4337
    %4348 = vmatpush1.bf16.msra.mxu0 %v4336
    %4349 = vmatprep.subr.bf16.mxu0 0
    %4350 = vmatpush1.bf16.msra.mxu0 0
    %4351 = vmatprep.subr.bf16.mxu0 0
    %4352 = vmatpush1.bf16.msra.mxu0 0
    %4353 = vmatprep.subr.bf16.mxu0 0
    %4354 = vmatpush1.bf16.msra.mxu0 0
    %4355 = vmatprep.subr.bf16.mxu0 0
    %4356 = vmatpush1.bf16.msra.mxu0 0
    %4357 = vmatprep.subr.bf16.mxu0 0
    %4358 = vmatpush1.bf16.msra.mxu0 0
    %4359 = vmatprep.subr.bf16.mxu0 0
    %4360 = vmatpush1.bf16.msra.mxu0 0
    %4361 = vmatprep.subr.bf16.mxu0 0
    %4362 = vmatpush1.bf16.msra.mxu0 0
    %4363 = vmatprep.subr.bf16.mxu0 0
    %4364 = vmatpush1.bf16.msra.mxu0 0
    %4365 = vmatprep.subr.bf16.mxu0 0
    %4366 = vmatpush1.bf16.msra.mxu0 0
    %4367 = vmatprep.subr.bf16.mxu0 0
    %4368 = vmatpush1.bf16.msra.mxu0 0
    %4369 = vmatprep.subr.bf16.mxu0 0
    %4370 = vmatpush1.bf16.msra.mxu0 0
    %4371 = vmatprep.subr.bf16.mxu0 0
    %4372 = vmatpush1.bf16.msra.mxu0 0
    %4373 = vmatprep.subr.bf16.mxu0 0
    %4374 = vmatpush1.bf16.msra.mxu0 0
    %4375 = vmatprep.subr.bf16.mxu0 0
    %4376 = vmatpush1.bf16.msra.mxu0 0
    %4377 = vmatprep.mubr.bf16.mxu0 0
    %4378 = vmatmul.mubr.bf16.gmra.mrb[0].mxu0 %v4343
    %v4379 = vpop.f32.mrb[0].mxu0
    %v4380 = vadd.f32 %v4315, %v4379
    %v4381 = vpop.f32.mrb[0].mxu0
    %v4382 = vadd.f32 %v4319, %v4381
    %v4383 = vpop.f32.mrb[0].mxu0
    %v4384 = vpop.f32.mrb[0].mxu0
    %4385 = vdwg.mxu0
    %v4386 = vmax.f32 %v4380, 0.0
    %v4387 = vmax.f32 %v4382, 0.0
    %s4388 = scalar_lea.vmem %s9, 1536
    %v4389 = vld [vmem:[%s4388] sm:$0xff]
    %v4390 = vld [vmem:[%s4388 + $0x8] sm:$0xff]
    %v4391 = vld [vmem:[%s4388 + $0x10] sm:$0xff]
    %v4392 = vld [vmem:[%s4388 + $0x18] sm:$0xff]
    %v4393 = vld [vmem:[%s4388 + $0x20] sm:$0xff]
    %v4394 = vld [vmem:[%s4388 + $0x28] sm:$0xff]
    %v4395 = vld [vmem:[%s4388 + $0x30] sm:$0xff]
    %v4396 = vld [vmem:[%s4388 + $0x38] sm:$0xff]
    %v4397 = vld [vmem:[%s4388 + $0x40] sm:$0xff]
    %v4398 = vld [vmem:[%s4388 + $0x48] sm:$0xff]
    %v4399 = vld [vmem:[%s4388 + $0x50] sm:$0xff]
    %v4400 = vld [vmem:[%s4388 + $0x58] sm:$0xff]
    %v4401 = vld [vmem:[%s4388 + $0x60] sm:$0xff]
    %v4402 = vld [vmem:[%s4388 + $0x68] sm:$0xff]
    %v4403 = vld [vmem:[%s4388 + $0x70] sm:$0xff]
    %v4404 = vld [vmem:[%s4388 + $0x78] sm:$0xff]
    %v4405 = vld [vmem:[%s4388 + $0x80] sm:$0xff]
    %v4406 = vld [vmem:[%s4388 + $0x88] sm:$0xff]
    %v4407 = vld [vmem:[%s4388 + $0x90] sm:$0xff]
    %v4408 = vld [vmem:[%s4388 + $0x98] sm:$0xff]
    %v4409 = vld [vmem:[%s4388 + $0xa0] sm:$0xff]
    %v4410 = vld [vmem:[%s4388 + $0xa8] sm:$0xff]
    %v4411 = vld [vmem:[%s4388 + $0xb0] sm:$0xff]
    %v4412 = vld [vmem:[%s4388 + $0xb8] sm:$0xff]
    %v4413 = vld [vmem:[%s4388 + $0xc0] sm:$0xff]
    %v4414 = vld [vmem:[%s4388 + $0xc8] sm:$0xff]
    %v4415 = vld [vmem:[%s4388 + $0xd0] sm:$0xff]
    %v4416 = vld [vmem:[%s4388 + $0xd8] sm:$0xff]
    %v4417 = vld [vmem:[%s4388 + $0xe0] sm:$0xff]
    %v4418 = vld [vmem:[%s4388 + $0xe8] sm:$0xff]
    %v4419 = vld [vmem:[%s4388 + $0xf0] sm:$0xff]
    %v4420 = vld [vmem:[%s4388 + $0xf8] sm:$0xff]
    %v4421 = vpack.c.bf16 %v4386, %v4386
    %v4422 = vpack.c.bf16 %v4387, %v4387
    %s4423 = scalar_lea.vmem %s10, 12
    %v4424 = vld [vmem:[%s4423] sm:$0x3]
    %v4426 = vlaneseq
    %v4427 = vshrl.u32 %v4426, 7
    %v4428 = vsub.s32 0, %v4427
    %v4429 = vrot.slane %v4424, %v4428
    %v4430 = vlaneseq
    %v4431 = vshrl.u32 %v4430, 7
    %v4432 = vsub.s32 1, %v4431
    %v4433 = vrot.slane %v4424, %v4432
    %v4468 = vunpack.c.l.b16 %v4389
    %v4469 = vunpack.c.h.b16 %v4389
    %v4470 = vunpack.c.l.b16 %v4390
    %v4471 = vunpack.c.h.b16 %v4390
    %v4472 = vunpack.c.l.b16 %v4391
    %v4473 = vunpack.c.h.b16 %v4391
    %v4474 = vunpack.c.l.b16 %v4392
    %v4475 = vunpack.c.h.b16 %v4392
    %v4476 = vunpack.c.l.b16 %v4393
    %v4477 = vunpack.c.h.b16 %v4393
    %v4478 = vunpack.c.l.b16 %v4394
    %v4479 = vunpack.c.h.b16 %v4394
    %v4480 = vunpack.c.l.b16 %v4395
    %v4481 = vunpack.c.h.b16 %v4395
    %v4482 = vunpack.c.l.b16 %v4396
    %v4483 = vunpack.c.h.b16 %v4396
    %v4484 = vunpack.c.l.b16 %v4397
    %v4485 = vunpack.c.h.b16 %v4397
    %v4486 = vunpack.c.l.b16 %v4398
    %v4487 = vunpack.c.h.b16 %v4398
    %v4488 = vunpack.c.l.b16 %v4399
    %v4489 = vunpack.c.h.b16 %v4399
    %v4490 = vunpack.c.l.b16 %v4400
    %v4491 = vunpack.c.h.b16 %v4400
    %v4492 = vunpack.c.l.b16 %v4401
    %v4493 = vunpack.c.h.b16 %v4401
    %v4494 = vunpack.c.l.b16 %v4402
    %v4495 = vunpack.c.h.b16 %v4402
    %v4496 = vunpack.c.l.b16 %v4403
    %v4497 = vunpack.c.h.b16 %v4403
    %v4498 = vunpack.c.l.b16 %v4404
    %v4499 = vunpack.c.h.b16 %v4404
    %v4500 = vunpack.c.l.b16 %v4405
    %v4501 = vunpack.c.h.b16 %v4405
    %v4502 = vunpack.c.l.b16 %v4406
    %v4503 = vunpack.c.h.b16 %v4406
    %v4504 = vunpack.c.l.b16 %v4407
    %v4505 = vunpack.c.h.b16 %v4407
    %v4506 = vunpack.c.l.b16 %v4408
    %v4507 = vunpack.c.h.b16 %v4408
    %v4508 = vunpack.c.l.b16 %v4409
    %v4509 = vunpack.c.h.b16 %v4409
    %v4510 = vunpack.c.l.b16 %v4410
    %v4511 = vunpack.c.h.b16 %v4410
    %v4512 = vunpack.c.l.b16 %v4411
    %v4513 = vunpack.c.h.b16 %v4411
    %v4514 = vunpack.c.l.b16 %v4412
    %v4515 = vunpack.c.h.b16 %v4412
    %v4516 = vunpack.c.l.b16 %v4413
    %v4517 = vunpack.c.h.b16 %v4413
    %v4518 = vunpack.c.l.b16 %v4414
    %v4519 = vunpack.c.h.b16 %v4414
    %v4520 = vunpack.c.l.b16 %v4415
    %v4521 = vunpack.c.h.b16 %v4415
    %v4522 = vunpack.c.l.b16 %v4416
    %v4523 = vunpack.c.h.b16 %v4416
    %v4524 = vunpack.c.l.b16 %v4417
    %v4525 = vunpack.c.h.b16 %v4417
    %v4526 = vunpack.c.l.b16 %v4418
    %v4527 = vunpack.c.h.b16 %v4418
    %v4528 = vunpack.c.l.b16 %v4419
    %v4529 = vunpack.c.h.b16 %v4419
    %v4530 = vunpack.c.l.b16 %v4420
    %v4531 = vunpack.c.h.b16 %v4420
    %v4532 = vpack.c.b16 %v4470, %v4468
    %v4533 = vpack.c.b16 %v4471, %v4469
    %v4534 = vpack.c.b16 %v4474, %v4472
    %v4535 = vpack.c.b16 %v4475, %v4473
    %v4536 = vpack.c.b16 %v4478, %v4476
    %v4537 = vpack.c.b16 %v4479, %v4477
    %v4538 = vpack.c.b16 %v4482, %v4480
    %v4539 = vpack.c.b16 %v4483, %v4481
    %v4540 = vpack.c.b16 %v4486, %v4484
    %v4541 = vpack.c.b16 %v4487, %v4485
    %v4542 = vpack.c.b16 %v4490, %v4488
    %v4543 = vpack.c.b16 %v4491, %v4489
    %v4544 = vpack.c.b16 %v4494, %v4492
    %v4545 = vpack.c.b16 %v4495, %v4493
    %v4546 = vpack.c.b16 %v4498, %v4496
    %v4547 = vpack.c.b16 %v4499, %v4497
    %v4548 = vpack.c.b16 %v4502, %v4500
    %v4549 = vpack.c.b16 %v4503, %v4501
    %v4550 = vpack.c.b16 %v4506, %v4504
    %v4551 = vpack.c.b16 %v4507, %v4505
    %v4552 = vpack.c.b16 %v4510, %v4508
    %v4553 = vpack.c.b16 %v4511, %v4509
    %v4554 = vpack.c.b16 %v4514, %v4512
    %v4555 = vpack.c.b16 %v4515, %v4513
    %v4556 = vpack.c.b16 %v4518, %v4516
    %v4557 = vpack.c.b16 %v4519, %v4517
    %v4558 = vpack.c.b16 %v4522, %v4520
    %v4559 = vpack.c.b16 %v4523, %v4521
    %v4560 = vpack.c.b16 %v4526, %v4524
    %v4561 = vpack.c.b16 %v4527, %v4525
    %v4562 = vpack.c.b16 %v4530, %v4528
    %v4563 = vpack.c.b16 %v4531, %v4529
    %4596 = vmatprep.subr.bf16.mxu0 %v4533
    %4597 = vmatpush1.bf16.msra.mxu0 %v4532
    %4598 = vmatprep.subr.bf16.mxu0 %v4535
    %4599 = vmatpush1.bf16.msra.mxu0 %v4534
    %4600 = vmatprep.subr.bf16.mxu0 %v4537
    %4601 = vmatpush1.bf16.msra.mxu0 %v4536
    %4602 = vmatprep.subr.bf16.mxu0 %v4539
    %4603 = vmatpush1.bf16.msra.mxu0 %v4538
    %4604 = vmatprep.subr.bf16.mxu0 %v4541
    %4605 = vmatpush1.bf16.msra.mxu0 %v4540
    %4606 = vmatprep.subr.bf16.mxu0 %v4543
    %4607 = vmatpush1.bf16.msra.mxu0 %v4542
    %4608 = vmatprep.subr.bf16.mxu0 %v4545
    %4609 = vmatpush1.bf16.msra.mxu0 %v4544
    %4610 = vmatprep.subr.bf16.mxu0 %v4547
    %4611 = vmatpush1.bf16.msra.mxu0 %v4546
    %4612 = vmatprep.subr.bf16.mxu0 %v4549
    %4613 = vmatpush1.bf16.msra.mxu0 %v4548
    %4614 = vmatprep.subr.bf16.mxu0 %v4551
    %4615 = vmatpush1.bf16.msra.mxu0 %v4550
    %4616 = vmatprep.subr.bf16.mxu0 %v4553
    %4617 = vmatpush1.bf16.msra.mxu0 %v4552
    %4618 = vmatprep.subr.bf16.mxu0 %v4555
    %4619 = vmatpush1.bf16.msra.mxu0 %v4554
    %4620 = vmatprep.subr.bf16.mxu0 %v4557
    %4621 = vmatpush1.bf16.msra.mxu0 %v4556
    %4622 = vmatprep.subr.bf16.mxu0 %v4559
    %4623 = vmatpush1.bf16.msra.mxu0 %v4558
    %4624 = vmatprep.subr.bf16.mxu0 %v4561
    %4625 = vmatpush1.bf16.msra.mxu0 %v4560
    %4626 = vmatprep.subr.bf16.mxu0 %v4563
    %4627 = vmatpush1.bf16.msra.mxu0 %v4562
    %4628 = vmatprep.mubr.bf16.mxu0 %v4422
    %4629 = vmatmul.mubr.bf16.gmra.mrb[0].mxu0 %v4421
    %v4630 = vpop.f32.mrb[0].mxu0
    %v4631 = vadd.f32 %v4429, %v4630
    %v4632 = vpop.f32.mrb[0].mxu0
    %v4633 = vadd.f32 %v4433, %v4632
    %v4634 = vpop.f32.mrb[0].mxu0
    %v4635 = vpop.f32.mrb[0].mxu0
    %4636 = vdwg.mxu0
    %v4637 = vmax.f32 %v4631, 0.0
    %v4638 = vmax.f32 %v4633, 0.0
    %s4639 = scalar_lea.vmem %s11, 768
    %v4640 = vld [vmem:[%s4639] sm:$0xf]
    %v4641 = vld [vmem:[%s4639 + $0x4] sm:$0xf]
    %v4642 = vld [vmem:[%s4639 + $0x8] sm:$0xf]
    %v4643 = vld [vmem:[%s4639 + $0xc] sm:$0xf]
    %v4644 = vld [vmem:[%s4639 + $0x10] sm:$0xf]
    %v4645 = vld [vmem:[%s4639 + $0x14] sm:$0xf]
    %v4646 = vld [vmem:[%s4639 + $0x18] sm:$0xf]
    %v4647 = vld [vmem:[%s4639 + $0x1c] sm:$0xf]
    %v4648 = vld [vmem:[%s4639 + $0x20] sm:$0xf]
    %v4649 = vld [vmem:[%s4639 + $0x24] sm:$0xf]
    %v4650 = vld [vmem:[%s4639 + $0x28] sm:$0xf]
    %v4651 = vld [vmem:[%s4639 + $0x2c] sm:$0xf]
    %v4652 = vld [vmem:[%s4639 + $0x30] sm:$0xf]
    %v4653 = vld [vmem:[%s4639 + $0x34] sm:$0xf]
    %v4654 = vld [vmem:[%s4639 + $0x38] sm:$0xf]
    %v4655 = vld [vmem:[%s4639 + $0x3c] sm:$0xf]
    %v4656 = vld [vmem:[%s4639 + $0x40] sm:$0xf]
    %v4657 = vld [vmem:[%s4639 + $0x44] sm:$0xf]
    %v4658 = vld [vmem:[%s4639 + $0x48] sm:$0xf]
    %v4659 = vld [vmem:[%s4639 + $0x4c] sm:$0xf]
    %v4660 = vld [vmem:[%s4639 + $0x50] sm:$0xf]
    %v4661 = vld [vmem:[%s4639 + $0x54] sm:$0xf]
    %v4662 = vld [vmem:[%s4639 + $0x58] sm:$0xf]
    %v4663 = vld [vmem:[%s4639 + $0x5c] sm:$0xf]
    %v4664 = vld [vmem:[%s4639 + $0x60] sm:$0xf]
    %v4665 = vld [vmem:[%s4639 + $0x64] sm:$0xf]
    %v4666 = vld [vmem:[%s4639 + $0x68] sm:$0xf]
    %v4667 = vld [vmem:[%s4639 + $0x6c] sm:$0xf]
    %v4668 = vld [vmem:[%s4639 + $0x70] sm:$0xf]
    %v4669 = vld [vmem:[%s4639 + $0x74] sm:$0xf]
    %v4670 = vld [vmem:[%s4639 + $0x78] sm:$0xf]
    %v4671 = vld [vmem:[%s4639 + $0x7c] sm:$0xf]
    %v4672 = vpack.c.bf16 %v4637, %v4637
    %v4673 = vpack.c.bf16 %v4638, %v4638
    %s4674 = scalar_lea.vmem %s12, 6
    %v4675 = vld [vmem:[%s4674] sm:$0x1]
    %v4677 = vlaneseq
    %v4678 = vshrl.u32 %v4677, 7
    %v4679 = vsub.s32 0, %v4678
    %v4680 = vrot.slane %v4675, %v4679
    %v4714 = vunpack.c.l.b16 %v4640
    %v4715 = vunpack.c.l.b16 %v4641
    %v4716 = vunpack.c.l.b16 %v4642
    %v4717 = vunpack.c.l.b16 %v4643
    %v4718 = vunpack.c.l.b16 %v4644
    %v4719 = vunpack.c.l.b16 %v4645
    %v4720 = vunpack.c.l.b16 %v4646
    %v4721 = vunpack.c.l.b16 %v4647
    %v4722 = vunpack.c.l.b16 %v4648
    %v4723 = vunpack.c.l.b16 %v4649
    %v4724 = vunpack.c.l.b16 %v4650
    %v4725 = vunpack.c.l.b16 %v4651
    %v4726 = vunpack.c.l.b16 %v4652
    %v4727 = vunpack.c.l.b16 %v4653
    %v4728 = vunpack.c.l.b16 %v4654
    %v4729 = vunpack.c.l.b16 %v4655
    %v4730 = vunpack.c.l.b16 %v4656
    %v4731 = vunpack.c.l.b16 %v4657
    %v4732 = vunpack.c.l.b16 %v4658
    %v4733 = vunpack.c.l.b16 %v4659
    %v4734 = vunpack.c.l.b16 %v4660
    %v4735 = vunpack.c.l.b16 %v4661
    %v4736 = vunpack.c.l.b16 %v4662
    %v4737 = vunpack.c.l.b16 %v4663
    %v4738 = vunpack.c.l.b16 %v4664
    %v4739 = vunpack.c.l.b16 %v4665
    %v4740 = vunpack.c.l.b16 %v4666
    %v4741 = vunpack.c.l.b16 %v4667
    %v4742 = vunpack.c.l.b16 %v4668
    %v4743 = vunpack.c.l.b16 %v4669
    %v4744 = vunpack.c.l.b16 %v4670
    %v4745 = vunpack.c.l.b16 %v4671
    %v4746 = vpack.c.b16 %v4715, %v4714
    %v4747 = vpack.c.b16 %v4717, %v4716
    %v4748 = vpack.c.b16 %v4719, %v4718
    %v4749 = vpack.c.b16 %v4721, %v4720
    %v4750 = vpack.c.b16 %v4723, %v4722
    %v4751 = vpack.c.b16 %v4725, %v4724
    %v4752 = vpack.c.b16 %v4727, %v4726
    %v4753 = vpack.c.b16 %v4729, %v4728
    %v4754 = vpack.c.b16 %v4731, %v4730
    %v4755 = vpack.c.b16 %v4733, %v4732
    %v4756 = vpack.c.b16 %v4735, %v4734
    %v4757 = vpack.c.b16 %v4737, %v4736
    %v4758 = vpack.c.b16 %v4739, %v4738
    %v4759 = vpack.c.b16 %v4741, %v4740
    %v4760 = vpack.c.b16 %v4743, %v4742
    %v4761 = vpack.c.b16 %v4745, %v4744
    %4778 = vmatprep.subr.bf16.mxu0 0
    %4779 = vmatpush1.bf16.msra.mxu0 %v4746
    %4780 = vmatprep.subr.bf16.mxu0 0
    %4781 = vmatpush1.bf16.msra.mxu0 %v4747
    %4782 = vmatprep.subr.bf16.mxu0 0
    %4783 = vmatpush1.bf16.msra.mxu0 %v4748
    %4784 = vmatprep.subr.bf16.mxu0 0
    %4785 = vmatpush1.bf16.msra.mxu0 %v4749
    %4786 = vmatprep.subr.bf16.mxu0 0
    %4787 = vmatpush1.bf16.msra.mxu0 %v4750
    %4788 = vmatprep.subr.bf16.mxu0 0
    %4789 = vmatpush1.bf16.msra.mxu0 %v4751
    %4790 = vmatprep.subr.bf16.mxu0 0
    %4791 = vmatpush1.bf16.msra.mxu0 %v4752
    %4792 = vmatprep.subr.bf16.mxu0 0
    %4793 = vmatpush1.bf16.msra.mxu0 %v4753
    %4794 = vmatprep.subr.bf16.mxu0 0
    %4795 = vmatpush1.bf16.msra.mxu0 %v4754
    %4796 = vmatprep.subr.bf16.mxu0 0
    %4797 = vmatpush1.bf16.msra.mxu0 %v4755
    %4798 = vmatprep.subr.bf16.mxu0 0
    %4799 = vmatpush1.bf16.msra.mxu0 %v4756
    %4800 = vmatprep.subr.bf16.mxu0 0
    %4801 = vmatpush1.bf16.msra.mxu0 %v4757
    %4802 = vmatprep.subr.bf16.mxu0 0
    %4803 = vmatpush1.bf16.msra.mxu0 %v4758
    %4804 = vmatprep.subr.bf16.mxu0 0
    %4805 = vmatpush1.bf16.msra.mxu0 %v4759
    %4806 = vmatprep.subr.bf16.mxu0 0
    %4807 = vmatpush1.bf16.msra.mxu0 %v4760
    %4808 = vmatprep.subr.bf16.mxu0 0
    %4809 = vmatpush1.bf16.msra.mxu0 %v4761
    %4810 = vmatprep.mubr.bf16.mxu0 %v4673
    %4811 = vmatmul.mubr.bf16.gmra.mrb[0].mxu0 %v4672
    %v4812 = vpop.f32.mrb[0].mxu0
    %v4813 = vadd.f32 %v4680, %v4812
    %v4814 = vpop.f32.mrb[0].mxu0
    %v4815 = vpop.f32.mrb[0].mxu0
    %v4816 = vpop.f32.mrb[0].mxu0
    %4817 = vdwg.mxu0
    %v4818 = vsub.f32 %v4301, %v4813
    %v4819 = vadd.f32 %v4302, %v4813
    %s4820 = scalar_lea.vmem %s7, 224
    %v4821 = vld [vmem:[%s4820] sm:$0xff]
    %v4822 = vld [vmem:[%s4820 + $0x8] sm:$0xff]
    %v4823 = vld [vmem:[%s4820 + $0x10] sm:$0xff]
    %v4824 = vld [vmem:[%s4820 + $0x18] sm:$0xff]
    %v4825 = vpack.c.bf16 %v4818, %v4818
    %s4826 = scalar_lea.vmem %s8, 14
    %v4827 = vld [vmem:[%s4826] sm:$0x3]
    %v4829 = vlaneseq
    %v4830 = vshrl.u32 %v4829, 7
    %v4831 = vsub.s32 0, %v4830
    %v4832 = vrot.slane %v4827, %v4831
    %v4833 = vlaneseq
    %v4834 = vshrl.u32 %v4833, 7
    %v4835 = vsub.s32 1, %v4834
    %v4836 = vrot.slane %v4827, %v4835
    %v4843 = vunpack.c.l.b16 %v4821
    %v4844 = vunpack.c.h.b16 %v4821
    %v4845 = vunpack.c.l.b16 %v4822
    %v4846 = vunpack.c.h.b16 %v4822
    %v4847 = vunpack.c.l.b16 %v4823
    %v4848 = vunpack.c.h.b16 %v4823
    %v4849 = vunpack.c.l.b16 %v4824
    %v4850 = vunpack.c.h.b16 %v4824
    %v4851 = vpack.c.b16 %v4845, %v4843
    %v4852 = vpack.c.b16 %v4846, %v4844
    %v4853 = vpack.c.b16 %v4849, %v4847
    %v4854 = vpack.c.b16 %v4850, %v4848
    %v4860 = vsel %vm638, %v4825, 0
    %4862 = vmatprep.subr.bf16.mxu0 %v4852
    %4863 = vmatpush1.bf16.msra.mxu0 %v4851
    %4864 = vmatprep.subr.bf16.mxu0 %v4854
    %4865 = vmatpush1.bf16.msra.mxu0 %v4853
    %4866 = vmatprep.subr.bf16.mxu0 0
    %4867 = vmatpush1.bf16.msra.mxu0 0
    %4868 = vmatprep.subr.bf16.mxu0 0
    %4869 = vmatpush1.bf16.msra.mxu0 0
    %4870 = vmatprep.subr.bf16.mxu0 0
    %4871 = vmatpush1.bf16.msra.mxu0 0
    %4872 = vmatprep.subr.bf16.mxu0 0
    %4873 = vmatpush1.bf16.msra.mxu0 0
    %4874 = vmatprep.subr.bf16.mxu0 0
    %4875 = vmatpush1.bf16.msra.mxu0 0
    %4876 = vmatprep.subr.bf16.mxu0 0
    %4877 = vmatpush1.bf16.msra.mxu0 0
    %4878 = vmatprep.subr.bf16.mxu0 0
    %4879 = vmatpush1.bf16.msra.mxu0 0
    %4880 = vmatprep.subr.bf16.mxu0 0
    %4881 = vmatpush1.bf16.msra.mxu0 0
    %4882 = vmatprep.subr.bf16.mxu0 0
    %4883 = vmatpush1.bf16.msra.mxu0 0
    %4884 = vmatprep.subr.bf16.mxu0 0
    %4885 = vmatpush1.bf16.msra.mxu0 0
    %4886 = vmatprep.subr.bf16.mxu0 0
    %4887 = vmatpush1.bf16.msra.mxu0 0
    %4888 = vmatprep.subr.bf16.mxu0 0
    %4889 = vmatpush1.bf16.msra.mxu0 0
    %4890 = vmatprep.subr.bf16.mxu0 0
    %4891 = vmatpush1.bf16.msra.mxu0 0
    %4892 = vmatprep.subr.bf16.mxu0 0
    %4893 = vmatpush1.bf16.msra.mxu0 0
    %4894 = vmatprep.mubr.bf16.mxu0 0
    %4895 = vmatmul.mubr.bf16.gmra.mrb[0].mxu0 %v4860
    %v4896 = vpop.f32.mrb[0].mxu0
    %v4897 = vadd.f32 %v4832, %v4896
    %v4898 = vpop.f32.mrb[0].mxu0
    %v4899 = vadd.f32 %v4836, %v4898
    %v4900 = vpop.f32.mrb[0].mxu0
    %v4901 = vpop.f32.mrb[0].mxu0
    %4902 = vdwg.mxu0
    %v4903 = vmax.f32 %v4897, 0.0
    %v4904 = vmax.f32 %v4899, 0.0
    %s4905 = scalar_lea.vmem %s9, 1792
    %v4906 = vld [vmem:[%s4905] sm:$0xff]
    %v4907 = vld [vmem:[%s4905 + $0x8] sm:$0xff]
    %v4908 = vld [vmem:[%s4905 + $0x10] sm:$0xff]
    %v4909 = vld [vmem:[%s4905 + $0x18] sm:$0xff]
    %v4910 = vld [vmem:[%s4905 + $0x20] sm:$0xff]
    %v4911 = vld [vmem:[%s4905 + $0x28] sm:$0xff]
    %v4912 = vld [vmem:[%s4905 + $0x30] sm:$0xff]
    %v4913 = vld [vmem:[%s4905 + $0x38] sm:$0xff]
    %v4914 = vld [vmem:[%s4905 + $0x40] sm:$0xff]
    %v4915 = vld [vmem:[%s4905 + $0x48] sm:$0xff]
    %v4916 = vld [vmem:[%s4905 + $0x50] sm:$0xff]
    %v4917 = vld [vmem:[%s4905 + $0x58] sm:$0xff]
    %v4918 = vld [vmem:[%s4905 + $0x60] sm:$0xff]
    %v4919 = vld [vmem:[%s4905 + $0x68] sm:$0xff]
    %v4920 = vld [vmem:[%s4905 + $0x70] sm:$0xff]
    %v4921 = vld [vmem:[%s4905 + $0x78] sm:$0xff]
    %v4922 = vld [vmem:[%s4905 + $0x80] sm:$0xff]
    %v4923 = vld [vmem:[%s4905 + $0x88] sm:$0xff]
    %v4924 = vld [vmem:[%s4905 + $0x90] sm:$0xff]
    %v4925 = vld [vmem:[%s4905 + $0x98] sm:$0xff]
    %v4926 = vld [vmem:[%s4905 + $0xa0] sm:$0xff]
    %v4927 = vld [vmem:[%s4905 + $0xa8] sm:$0xff]
    %v4928 = vld [vmem:[%s4905 + $0xb0] sm:$0xff]
    %v4929 = vld [vmem:[%s4905 + $0xb8] sm:$0xff]
    %v4930 = vld [vmem:[%s4905 + $0xc0] sm:$0xff]
    %v4931 = vld [vmem:[%s4905 + $0xc8] sm:$0xff]
    %v4932 = vld [vmem:[%s4905 + $0xd0] sm:$0xff]
    %v4933 = vld [vmem:[%s4905 + $0xd8] sm:$0xff]
    %v4934 = vld [vmem:[%s4905 + $0xe0] sm:$0xff]
    %v4935 = vld [vmem:[%s4905 + $0xe8] sm:$0xff]
    %v4936 = vld [vmem:[%s4905 + $0xf0] sm:$0xff]
    %v4937 = vld [vmem:[%s4905 + $0xf8] sm:$0xff]
    %v4938 = vpack.c.bf16 %v4903, %v4903
    %v4939 = vpack.c.bf16 %v4904, %v4904
    %s4940 = scalar_lea.vmem %s10, 14
    %v4941 = vld [vmem:[%s4940] sm:$0x3]
    %v4943 = vlaneseq
    %v4944 = vshrl.u32 %v4943, 7
    %v4945 = vsub.s32 0, %v4944
    %v4946 = vrot.slane %v4941, %v4945
    %v4947 = vlaneseq
    %v4948 = vshrl.u32 %v4947, 7
    %v4949 = vsub.s32 1, %v4948
    %v4950 = vrot.slane %v4941, %v4949
    %v4985 = vunpack.c.l.b16 %v4906
    %v4986 = vunpack.c.h.b16 %v4906
    %v4987 = vunpack.c.l.b16 %v4907
    %v4988 = vunpack.c.h.b16 %v4907
    %v4989 = vunpack.c.l.b16 %v4908
    %v4990 = vunpack.c.h.b16 %v4908
    %v4991 = vunpack.c.l.b16 %v4909
    %v4992 = vunpack.c.h.b16 %v4909
    %v4993 = vunpack.c.l.b16 %v4910
    %v4994 = vunpack.c.h.b16 %v4910
    %v4995 = vunpack.c.l.b16 %v4911
    %v4996 = vunpack.c.h.b16 %v4911
    %v4997 = vunpack.c.l.b16 %v4912
    %v4998 = vunpack.c.h.b16 %v4912
    %v4999 = vunpack.c.l.b16 %v4913
    %v5000 = vunpack.c.h.b16 %v4913
    %v5001 = vunpack.c.l.b16 %v4914
    %v5002 = vunpack.c.h.b16 %v4914
    %v5003 = vunpack.c.l.b16 %v4915
    %v5004 = vunpack.c.h.b16 %v4915
    %v5005 = vunpack.c.l.b16 %v4916
    %v5006 = vunpack.c.h.b16 %v4916
    %v5007 = vunpack.c.l.b16 %v4917
    %v5008 = vunpack.c.h.b16 %v4917
    %v5009 = vunpack.c.l.b16 %v4918
    %v5010 = vunpack.c.h.b16 %v4918
    %v5011 = vunpack.c.l.b16 %v4919
    %v5012 = vunpack.c.h.b16 %v4919
    %v5013 = vunpack.c.l.b16 %v4920
    %v5014 = vunpack.c.h.b16 %v4920
    %v5015 = vunpack.c.l.b16 %v4921
    %v5016 = vunpack.c.h.b16 %v4921
    %v5017 = vunpack.c.l.b16 %v4922
    %v5018 = vunpack.c.h.b16 %v4922
    %v5019 = vunpack.c.l.b16 %v4923
    %v5020 = vunpack.c.h.b16 %v4923
    %v5021 = vunpack.c.l.b16 %v4924
    %v5022 = vunpack.c.h.b16 %v4924
    %v5023 = vunpack.c.l.b16 %v4925
    %v5024 = vunpack.c.h.b16 %v4925
    %v5025 = vunpack.c.l.b16 %v4926
    %v5026 = vunpack.c.h.b16 %v4926
    %v5027 = vunpack.c.l.b16 %v4927
    %v5028 = vunpack.c.h.b16 %v4927
    %v5029 = vunpack.c.l.b16 %v4928
    %v5030 = vunpack.c.h.b16 %v4928
    %v5031 = vunpack.c.l.b16 %v4929
    %v5032 = vunpack.c.h.b16 %v4929
    %v5033 = vunpack.c.l.b16 %v4930
    %v5034 = vunpack.c.h.b16 %v4930
    %v5035 = vunpack.c.l.b16 %v4931
    %v5036 = vunpack.c.h.b16 %v4931
    %v5037 = vunpack.c.l.b16 %v4932
    %v5038 = vunpack.c.h.b16 %v4932
    %v5039 = vunpack.c.l.b16 %v4933
    %v5040 = vunpack.c.h.b16 %v4933
    %v5041 = vunpack.c.l.b16 %v4934
    %v5042 = vunpack.c.h.b16 %v4934
    %v5043 = vunpack.c.l.b16 %v4935
    %v5044 = vunpack.c.h.b16 %v4935
    %v5045 = vunpack.c.l.b16 %v4936
    %v5046 = vunpack.c.h.b16 %v4936
    %v5047 = vunpack.c.l.b16 %v4937
    %v5048 = vunpack.c.h.b16 %v4937
    %v5049 = vpack.c.b16 %v4987, %v4985
    %v5050 = vpack.c.b16 %v4988, %v4986
    %v5051 = vpack.c.b16 %v4991, %v4989
    %v5052 = vpack.c.b16 %v4992, %v4990
    %v5053 = vpack.c.b16 %v4995, %v4993
    %v5054 = vpack.c.b16 %v4996, %v4994
    %v5055 = vpack.c.b16 %v4999, %v4997
    %v5056 = vpack.c.b16 %v5000, %v4998
    %v5057 = vpack.c.b16 %v5003, %v5001
    %v5058 = vpack.c.b16 %v5004, %v5002
    %v5059 = vpack.c.b16 %v5007, %v5005
    %v5060 = vpack.c.b16 %v5008, %v5006
    %v5061 = vpack.c.b16 %v5011, %v5009
    %v5062 = vpack.c.b16 %v5012, %v5010
    %v5063 = vpack.c.b16 %v5015, %v5013
    %v5064 = vpack.c.b16 %v5016, %v5014
    %v5065 = vpack.c.b16 %v5019, %v5017
    %v5066 = vpack.c.b16 %v5020, %v5018
    %v5067 = vpack.c.b16 %v5023, %v5021
    %v5068 = vpack.c.b16 %v5024, %v5022
    %v5069 = vpack.c.b16 %v5027, %v5025
    %v5070 = vpack.c.b16 %v5028, %v5026
    %v5071 = vpack.c.b16 %v5031, %v5029
    %v5072 = vpack.c.b16 %v5032, %v5030
    %v5073 = vpack.c.b16 %v5035, %v5033
    %v5074 = vpack.c.b16 %v5036, %v5034
    %v5075 = vpack.c.b16 %v5039, %v5037
    %v5076 = vpack.c.b16 %v5040, %v5038
    %v5077 = vpack.c.b16 %v5043, %v5041
    %v5078 = vpack.c.b16 %v5044, %v5042
    %v5079 = vpack.c.b16 %v5047, %v5045
    %v5080 = vpack.c.b16 %v5048, %v5046
    %5113 = vmatprep.subr.bf16.mxu0 %v5050
    %5114 = vmatpush1.bf16.msra.mxu0 %v5049
    %5115 = vmatprep.subr.bf16.mxu0 %v5052
    %5116 = vmatpush1.bf16.msra.mxu0 %v5051
    %5117 = vmatprep.subr.bf16.mxu0 %v5054
    %5118 = vmatpush1.bf16.msra.mxu0 %v5053
    %5119 = vmatprep.subr.bf16.mxu0 %v5056
    %5120 = vmatpush1.bf16.msra.mxu0 %v5055
    %5121 = vmatprep.subr.bf16.mxu0 %v5058
    %5122 = vmatpush1.bf16.msra.mxu0 %v5057
    %5123 = vmatprep.subr.bf16.mxu0 %v5060
    %5124 = vmatpush1.bf16.msra.mxu0 %v5059
    %5125 = vmatprep.subr.bf16.mxu0 %v5062
    %5126 = vmatpush1.bf16.msra.mxu0 %v5061
    %5127 = vmatprep.subr.bf16.mxu0 %v5064
    %5128 = vmatpush1.bf16.msra.mxu0 %v5063
    %5129 = vmatprep.subr.bf16.mxu0 %v5066
    %5130 = vmatpush1.bf16.msra.mxu0 %v5065
    %5131 = vmatprep.subr.bf16.mxu0 %v5068
    %5132 = vmatpush1.bf16.msra.mxu0 %v5067
    %5133 = vmatprep.subr.bf16.mxu0 %v5070
    %5134 = vmatpush1.bf16.msra.mxu0 %v5069
    %5135 = vmatprep.subr.bf16.mxu0 %v5072
    %5136 = vmatpush1.bf16.msra.mxu0 %v5071
    %5137 = vmatprep.subr.bf16.mxu0 %v5074
    %5138 = vmatpush1.bf16.msra.mxu0 %v5073
    %5139 = vmatprep.subr.bf16.mxu0 %v5076
    %5140 = vmatpush1.bf16.msra.mxu0 %v5075
    %5141 = vmatprep.subr.bf16.mxu0 %v5078
    %5142 = vmatpush1.bf16.msra.mxu0 %v5077
    %5143 = vmatprep.subr.bf16.mxu0 %v5080
    %5144 = vmatpush1.bf16.msra.mxu0 %v5079
    %5145 = vmatprep.mubr.bf16.mxu0 %v4939
    %5146 = vmatmul.mubr.bf16.gmra.mrb[0].mxu0 %v4938
    %v5147 = vpop.f32.mrb[0].mxu0
    %v5148 = vadd.f32 %v4946, %v5147
    %v5149 = vpop.f32.mrb[0].mxu0
    %v5150 = vadd.f32 %v4950, %v5149
    %v5151 = vpop.f32.mrb[0].mxu0
    %v5152 = vpop.f32.mrb[0].mxu0
    %5153 = vdwg.mxu0
    %v5154 = vmax.f32 %v5148, 0.0
    %v5155 = vmax.f32 %v5150, 0.0
    %s5156 = scalar_lea.vmem %s11, 896
    %v5157 = vld [vmem:[%s5156] sm:$0xf]
    %v5158 = vld [vmem:[%s5156 + $0x4] sm:$0xf]
    %v5159 = vld [vmem:[%s5156 + $0x8] sm:$0xf]
    %v5160 = vld [vmem:[%s5156 + $0xc] sm:$0xf]
    %v5161 = vld [vmem:[%s5156 + $0x10] sm:$0xf]
    %v5162 = vld [vmem:[%s5156 + $0x14] sm:$0xf]
    %v5163 = vld [vmem:[%s5156 + $0x18] sm:$0xf]
    %v5164 = vld [vmem:[%s5156 + $0x1c] sm:$0xf]
    %v5165 = vld [vmem:[%s5156 + $0x20] sm:$0xf]
    %v5166 = vld [vmem:[%s5156 + $0x24] sm:$0xf]
    %v5167 = vld [vmem:[%s5156 + $0x28] sm:$0xf]
    %v5168 = vld [vmem:[%s5156 + $0x2c] sm:$0xf]
    %v5169 = vld [vmem:[%s5156 + $0x30] sm:$0xf]
    %v5170 = vld [vmem:[%s5156 + $0x34] sm:$0xf]
    %v5171 = vld [vmem:[%s5156 + $0x38] sm:$0xf]
    %v5172 = vld [vmem:[%s5156 + $0x3c] sm:$0xf]
    %v5173 = vld [vmem:[%s5156 + $0x40] sm:$0xf]
    %v5174 = vld [vmem:[%s5156 + $0x44] sm:$0xf]
    %v5175 = vld [vmem:[%s5156 + $0x48] sm:$0xf]
    %v5176 = vld [vmem:[%s5156 + $0x4c] sm:$0xf]
    %v5177 = vld [vmem:[%s5156 + $0x50] sm:$0xf]
    %v5178 = vld [vmem:[%s5156 + $0x54] sm:$0xf]
    %v5179 = vld [vmem:[%s5156 + $0x58] sm:$0xf]
    %v5180 = vld [vmem:[%s5156 + $0x5c] sm:$0xf]
    %v5181 = vld [vmem:[%s5156 + $0x60] sm:$0xf]
    %v5182 = vld [vmem:[%s5156 + $0x64] sm:$0xf]
    %v5183 = vld [vmem:[%s5156 + $0x68] sm:$0xf]
    %v5184 = vld [vmem:[%s5156 + $0x6c] sm:$0xf]
    %v5185 = vld [vmem:[%s5156 + $0x70] sm:$0xf]
    %v5186 = vld [vmem:[%s5156 + $0x74] sm:$0xf]
    %v5187 = vld [vmem:[%s5156 + $0x78] sm:$0xf]
    %v5188 = vld [vmem:[%s5156 + $0x7c] sm:$0xf]
    %v5189 = vpack.c.bf16 %v5154, %v5154
    %v5190 = vpack.c.bf16 %v5155, %v5155
    %s5191 = scalar_lea.vmem %s12, 7
    %v5192 = vld [vmem:[%s5191] sm:$0x1]
    %v5194 = vlaneseq
    %v5195 = vshrl.u32 %v5194, 7
    %v5196 = vsub.s32 0, %v5195
    %v5197 = vrot.slane %v5192, %v5196
    %v5231 = vunpack.c.l.b16 %v5157
    %v5232 = vunpack.c.l.b16 %v5158
    %v5233 = vunpack.c.l.b16 %v5159
    %v5234 = vunpack.c.l.b16 %v5160
    %v5235 = vunpack.c.l.b16 %v5161
    %v5236 = vunpack.c.l.b16 %v5162
    %v5237 = vunpack.c.l.b16 %v5163
    %v5238 = vunpack.c.l.b16 %v5164
    %v5239 = vunpack.c.l.b16 %v5165
    %v5240 = vunpack.c.l.b16 %v5166
    %v5241 = vunpack.c.l.b16 %v5167
    %v5242 = vunpack.c.l.b16 %v5168
    %v5243 = vunpack.c.l.b16 %v5169
    %v5244 = vunpack.c.l.b16 %v5170
    %v5245 = vunpack.c.l.b16 %v5171
    %v5246 = vunpack.c.l.b16 %v5172
    %v5247 = vunpack.c.l.b16 %v5173
    %v5248 = vunpack.c.l.b16 %v5174
    %v5249 = vunpack.c.l.b16 %v5175
    %v5250 = vunpack.c.l.b16 %v5176
    %v5251 = vunpack.c.l.b16 %v5177
    %v5252 = vunpack.c.l.b16 %v5178
    %v5253 = vunpack.c.l.b16 %v5179
    %v5254 = vunpack.c.l.b16 %v5180
    %v5255 = vunpack.c.l.b16 %v5181
    %v5256 = vunpack.c.l.b16 %v5182
    %v5257 = vunpack.c.l.b16 %v5183
    %v5258 = vunpack.c.l.b16 %v5184
    %v5259 = vunpack.c.l.b16 %v5185
    %v5260 = vunpack.c.l.b16 %v5186
    %v5261 = vunpack.c.l.b16 %v5187
    %v5262 = vunpack.c.l.b16 %v5188
    %v5263 = vpack.c.b16 %v5232, %v5231
    %v5264 = vpack.c.b16 %v5234, %v5233
    %v5265 = vpack.c.b16 %v5236, %v5235
    %v5266 = vpack.c.b16 %v5238, %v5237
    %v5267 = vpack.c.b16 %v5240, %v5239
    %v5268 = vpack.c.b16 %v5242, %v5241
    %v5269 = vpack.c.b16 %v5244, %v5243
    %v5270 = vpack.c.b16 %v5246, %v5245
    %v5271 = vpack.c.b16 %v5248, %v5247
    %v5272 = vpack.c.b16 %v5250, %v5249
    %v5273 = vpack.c.b16 %v5252, %v5251
    %v5274 = vpack.c.b16 %v5254, %v5253
    %v5275 = vpack.c.b16 %v5256, %v5255
    %v5276 = vpack.c.b16 %v5258, %v5257
    %v5277 = vpack.c.b16 %v5260, %v5259
    %v5278 = vpack.c.b16 %v5262, %v5261
    %5295 = vmatprep.subr.bf16.mxu0 0
    %5296 = vmatpush1.bf16.msra.mxu0 %v5263
    %5297 = vmatprep.subr.bf16.mxu0 0
    %5298 = vmatpush1.bf16.msra.mxu0 %v5264
    %5299 = vmatprep.subr.bf16.mxu0 0
    %5300 = vmatpush1.bf16.msra.mxu0 %v5265
    %5301 = vmatprep.subr.bf16.mxu0 0
    %5302 = vmatpush1.bf16.msra.mxu0 %v5266
    %5303 = vmatprep.subr.bf16.mxu0 0
    %5304 = vmatpush1.bf16.msra.mxu0 %v5267
    %5305 = vmatprep.subr.bf16.mxu0 0
    %5306 = vmatpush1.bf16.msra.mxu0 %v5268
    %5307 = vmatprep.subr.bf16.mxu0 0
    %5308 = vmatpush1.bf16.msra.mxu0 %v5269
    %5309 = vmatprep.subr.bf16.mxu0 0
    %5310 = vmatpush1.bf16.msra.mxu0 %v5270
    %5311 = vmatprep.subr.bf16.mxu0 0
    %5312 = vmatpush1.bf16.msra.mxu0 %v5271
    %5313 = vmatprep.subr.bf16.mxu0 0
    %5314 = vmatpush1.bf16.msra.mxu0 %v5272
    %5315 = vmatprep.subr.bf16.mxu0 0
    %5316 = vmatpush1.bf16.msra.mxu0 %v5273
    %5317 = vmatprep.subr.bf16.mxu0 0
    %5318 = vmatpush1.bf16.msra.mxu0 %v5274
    %5319 = vmatprep.subr.bf16.mxu0 0
    %5320 = vmatpush1.bf16.msra.mxu0 %v5275
    %5321 = vmatprep.subr.bf16.mxu0 0
    %5322 = vmatpush1.bf16.msra.mxu0 %v5276
    %5323 = vmatprep.subr.bf16.mxu0 0
    %5324 = vmatpush1.bf16.msra.mxu0 %v5277
    %5325 = vmatprep.subr.bf16.mxu0 0
    %5326 = vmatpush1.bf16.msra.mxu0 %v5278
    %5327 = vmatprep.mubr.bf16.mxu0 %v5190
    %5328 = vmatmul.mubr.bf16.gmra.mrb[0].mxu0 %v5189
    %v5329 = vpop.f32.mrb[0].mxu0
    %v5330 = vadd.f32 %v5197, %v5329
    %v5331 = vpop.f32.mrb[0].mxu0
    %v5332 = vpop.f32.mrb[0].mxu0
    %v5333 = vpop.f32.mrb[0].mxu0
    %5334 = vdwg.mxu0
    %v5335 = vsub.f32 %v4818, %v5330
    %v5336 = vadd.f32 %v4819, %v5330
    %s5337 = scalar_lea.vmem %s1, 32
    %v5338 = vld [vmem:[%s5337] sm:$0xff]
    %v5339 = vld [vmem:[%s5337 + $0x8] sm:$0xff]
    %s5340 = scalar_lea.vmem %s2, 4
    %v5341 = vld [vmem:[%s5340] sm:$0x3]
    %v5343 = vlaneseq
    %v5344 = vshrl.u32 %v5343, 7
    %v5345 = vsub.s32 0, %v5344
    %v5346 = vrot.slane %v5341, %v5345
    %v5347 = vlaneseq
    %v5348 = vshrl.u32 %v5347, 7
    %v5349 = vsub.s32 1, %v5348
    %v5350 = vrot.slane %v5341, %v5349
    %v5355 = vunpack.c.l.b16 %v5338
    %v5356 = vunpack.c.h.b16 %v5338
    %v5357 = vunpack.c.l.b16 %v5339
    %v5358 = vunpack.c.h.b16 %v5339
    %v5359 = vpack.c.b16 %v5357, %v5355
    %v5360 = vpack.c.b16 %v5358, %v5356
    %5363 = vmatprep.subr.bf16.mxu0 %v5360
    %5364 = vmatpush1.bf16.msra.mxu0 %v5359
    %5365 = vmatprep.subr.bf16.mxu0 0
    %5366 = vmatpush1.bf16.msra.mxu0 0
    %5367 = vmatprep.subr.bf16.mxu0 0
    %5368 = vmatpush1.bf16.msra.mxu0 0
    %5369 = vmatprep.subr.bf16.mxu0 0
    %5370 = vmatpush1.bf16.msra.mxu0 0
    %5371 = vmatprep.subr.bf16.mxu0 0
    %5372 = vmatpush1.bf16.msra.mxu0 0
    %5373 = vmatprep.subr.bf16.mxu0 0
    %5374 = vmatpush1.bf16.msra.mxu0 0
    %5375 = vmatprep.subr.bf16.mxu0 0
    %5376 = vmatpush1.bf16.msra.mxu0 0
    %5377 = vmatprep.subr.bf16.mxu0 0
    %5378 = vmatpush1.bf16.msra.mxu0 0
    %5379 = vmatprep.subr.bf16.mxu0 0
    %5380 = vmatpush1.bf16.msra.mxu0 0
    %5381 = vmatprep.subr.bf16.mxu0 0
    %5382 = vmatpush1.bf16.msra.mxu0 0
    %5383 = vmatprep.subr.bf16.mxu0 0
    %5384 = vmatpush1.bf16.msra.mxu0 0
    %5385 = vmatprep.subr.bf16.mxu0 0
    %5386 = vmatpush1.bf16.msra.mxu0 0
    %5387 = vmatprep.subr.bf16.mxu0 0
    %5388 = vmatpush1.bf16.msra.mxu0 0
    %5389 = vmatprep.subr.bf16.mxu0 0
    %5390 = vmatpush1.bf16.msra.mxu0 0
    %5391 = vmatprep.subr.bf16.mxu0 0
    %5392 = vmatpush1.bf16.msra.mxu0 0
    %5393 = vmatprep.subr.bf16.mxu0 0
    %5394 = vmatpush1.bf16.msra.mxu0 0
    %5395 = vmatprep.mubr.bf16.mxu0 0
    %5396 = vmatmul.mubr.bf16.gmra.mrb[0].mxu0 %v2771
    %v5397 = vpop.f32.mrb[0].mxu0
    %v5398 = vadd.f32 %v5346, %v5397
    %v5399 = vpop.f32.mrb[0].mxu0
    %v5400 = vadd.f32 %v5350, %v5399
    %v5401 = vpop.f32.mrb[0].mxu0
    %v5402 = vpop.f32.mrb[0].mxu0
    %5403 = vdwg.mxu0
    %v5404 = vmax.f32 %v5398, 0.0
    %v5405 = vmax.f32 %v5400, 0.0
    %s5406 = scalar_lea.vmem %s3, 512
    %v5407 = vld [vmem:[%s5406] sm:$0xff]
    %v5408 = vld [vmem:[%s5406 + $0x8] sm:$0xff]
    %v5409 = vld [vmem:[%s5406 + $0x10] sm:$0xff]
    %v5410 = vld [vmem:[%s5406 + $0x18] sm:$0xff]
    %v5411 = vld [vmem:[%s5406 + $0x20] sm:$0xff]
    %v5412 = vld [vmem:[%s5406 + $0x28] sm:$0xff]
    %v5413 = vld [vmem:[%s5406 + $0x30] sm:$0xff]
    %v5414 = vld [vmem:[%s5406 + $0x38] sm:$0xff]
    %v5415 = vld [vmem:[%s5406 + $0x40] sm:$0xff]
    %v5416 = vld [vmem:[%s5406 + $0x48] sm:$0xff]
    %v5417 = vld [vmem:[%s5406 + $0x50] sm:$0xff]
    %v5418 = vld [vmem:[%s5406 + $0x58] sm:$0xff]
    %v5419 = vld [vmem:[%s5406 + $0x60] sm:$0xff]
    %v5420 = vld [vmem:[%s5406 + $0x68] sm:$0xff]
    %v5421 = vld [vmem:[%s5406 + $0x70] sm:$0xff]
    %v5422 = vld [vmem:[%s5406 + $0x78] sm:$0xff]
    %v5423 = vld [vmem:[%s5406 + $0x80] sm:$0xff]
    %v5424 = vld [vmem:[%s5406 + $0x88] sm:$0xff]
    %v5425 = vld [vmem:[%s5406 + $0x90] sm:$0xff]
    %v5426 = vld [vmem:[%s5406 + $0x98] sm:$0xff]
    %v5427 = vld [vmem:[%s5406 + $0xa0] sm:$0xff]
    %v5428 = vld [vmem:[%s5406 + $0xa8] sm:$0xff]
    %v5429 = vld [vmem:[%s5406 + $0xb0] sm:$0xff]
    %v5430 = vld [vmem:[%s5406 + $0xb8] sm:$0xff]
    %v5431 = vld [vmem:[%s5406 + $0xc0] sm:$0xff]
    %v5432 = vld [vmem:[%s5406 + $0xc8] sm:$0xff]
    %v5433 = vld [vmem:[%s5406 + $0xd0] sm:$0xff]
    %v5434 = vld [vmem:[%s5406 + $0xd8] sm:$0xff]
    %v5435 = vld [vmem:[%s5406 + $0xe0] sm:$0xff]
    %v5436 = vld [vmem:[%s5406 + $0xe8] sm:$0xff]
    %v5437 = vld [vmem:[%s5406 + $0xf0] sm:$0xff]
    %v5438 = vld [vmem:[%s5406 + $0xf8] sm:$0xff]
    %v5439 = vpack.c.bf16 %v5404, %v5404
    %v5440 = vpack.c.bf16 %v5405, %v5405
    %s5441 = scalar_lea.vmem %s4, 4
    %v5442 = vld [vmem:[%s5441] sm:$0x3]
    %v5444 = vlaneseq
    %v5445 = vshrl.u32 %v5444, 7
    %v5446 = vsub.s32 0, %v5445
    %v5447 = vrot.slane %v5442, %v5446
    %v5448 = vlaneseq
    %v5449 = vshrl.u32 %v5448, 7
    %v5450 = vsub.s32 1, %v5449
    %v5451 = vrot.slane %v5442, %v5450
    %v5486 = vunpack.c.l.b16 %v5407
    %v5487 = vunpack.c.h.b16 %v5407
    %v5488 = vunpack.c.l.b16 %v5408
    %v5489 = vunpack.c.h.b16 %v5408
    %v5490 = vunpack.c.l.b16 %v5409
    %v5491 = vunpack.c.h.b16 %v5409
    %v5492 = vunpack.c.l.b16 %v5410
    %v5493 = vunpack.c.h.b16 %v5410
    %v5494 = vunpack.c.l.b16 %v5411
    %v5495 = vunpack.c.h.b16 %v5411
    %v5496 = vunpack.c.l.b16 %v5412
    %v5497 = vunpack.c.h.b16 %v5412
    %v5498 = vunpack.c.l.b16 %v5413
    %v5499 = vunpack.c.h.b16 %v5413
    %v5500 = vunpack.c.l.b16 %v5414
    %v5501 = vunpack.c.h.b16 %v5414
    %v5502 = vunpack.c.l.b16 %v5415
    %v5503 = vunpack.c.h.b16 %v5415
    %v5504 = vunpack.c.l.b16 %v5416
    %v5505 = vunpack.c.h.b16 %v5416
    %v5506 = vunpack.c.l.b16 %v5417
    %v5507 = vunpack.c.h.b16 %v5417
    %v5508 = vunpack.c.l.b16 %v5418
    %v5509 = vunpack.c.h.b16 %v5418
    %v5510 = vunpack.c.l.b16 %v5419
    %v5511 = vunpack.c.h.b16 %v5419
    %v5512 = vunpack.c.l.b16 %v5420
    %v5513 = vunpack.c.h.b16 %v5420
    %v5514 = vunpack.c.l.b16 %v5421
    %v5515 = vunpack.c.h.b16 %v5421
    %v5516 = vunpack.c.l.b16 %v5422
    %v5517 = vunpack.c.h.b16 %v5422
    %v5518 = vunpack.c.l.b16 %v5423
    %v5519 = vunpack.c.h.b16 %v5423
    %v5520 = vunpack.c.l.b16 %v5424
    %v5521 = vunpack.c.h.b16 %v5424
    %v5522 = vunpack.c.l.b16 %v5425
    %v5523 = vunpack.c.h.b16 %v5425
    %v5524 = vunpack.c.l.b16 %v5426
    %v5525 = vunpack.c.h.b16 %v5426
    %v5526 = vunpack.c.l.b16 %v5427
    %v5527 = vunpack.c.h.b16 %v5427
    %v5528 = vunpack.c.l.b16 %v5428
    %v5529 = vunpack.c.h.b16 %v5428
    %v5530 = vunpack.c.l.b16 %v5429
    %v5531 = vunpack.c.h.b16 %v5429
    %v5532 = vunpack.c.l.b16 %v5430
    %v5533 = vunpack.c.h.b16 %v5430
    %v5534 = vunpack.c.l.b16 %v5431
    %v5535 = vunpack.c.h.b16 %v5431
    %v5536 = vunpack.c.l.b16 %v5432
    %v5537 = vunpack.c.h.b16 %v5432
    %v5538 = vunpack.c.l.b16 %v5433
    %v5539 = vunpack.c.h.b16 %v5433
    %v5540 = vunpack.c.l.b16 %v5434
    %v5541 = vunpack.c.h.b16 %v5434
    %v5542 = vunpack.c.l.b16 %v5435
    %v5543 = vunpack.c.h.b16 %v5435
    %v5544 = vunpack.c.l.b16 %v5436
    %v5545 = vunpack.c.h.b16 %v5436
    %v5546 = vunpack.c.l.b16 %v5437
    %v5547 = vunpack.c.h.b16 %v5437
    %v5548 = vunpack.c.l.b16 %v5438
    %v5549 = vunpack.c.h.b16 %v5438
    %v5550 = vpack.c.b16 %v5488, %v5486
    %v5551 = vpack.c.b16 %v5489, %v5487
    %v5552 = vpack.c.b16 %v5492, %v5490
    %v5553 = vpack.c.b16 %v5493, %v5491
    %v5554 = vpack.c.b16 %v5496, %v5494
    %v5555 = vpack.c.b16 %v5497, %v5495
    %v5556 = vpack.c.b16 %v5500, %v5498
    %v5557 = vpack.c.b16 %v5501, %v5499
    %v5558 = vpack.c.b16 %v5504, %v5502
    %v5559 = vpack.c.b16 %v5505, %v5503
    %v5560 = vpack.c.b16 %v5508, %v5506
    %v5561 = vpack.c.b16 %v5509, %v5507
    %v5562 = vpack.c.b16 %v5512, %v5510
    %v5563 = vpack.c.b16 %v5513, %v5511
    %v5564 = vpack.c.b16 %v5516, %v5514
    %v5565 = vpack.c.b16 %v5517, %v5515
    %v5566 = vpack.c.b16 %v5520, %v5518
    %v5567 = vpack.c.b16 %v5521, %v5519
    %v5568 = vpack.c.b16 %v5524, %v5522
    %v5569 = vpack.c.b16 %v5525, %v5523
    %v5570 = vpack.c.b16 %v5528, %v5526
    %v5571 = vpack.c.b16 %v5529, %v5527
    %v5572 = vpack.c.b16 %v5532, %v5530
    %v5573 = vpack.c.b16 %v5533, %v5531
    %v5574 = vpack.c.b16 %v5536, %v5534
    %v5575 = vpack.c.b16 %v5537, %v5535
    %v5576 = vpack.c.b16 %v5540, %v5538
    %v5577 = vpack.c.b16 %v5541, %v5539
    %v5578 = vpack.c.b16 %v5544, %v5542
    %v5579 = vpack.c.b16 %v5545, %v5543
    %v5580 = vpack.c.b16 %v5548, %v5546
    %v5581 = vpack.c.b16 %v5549, %v5547
    %5614 = vmatprep.subr.bf16.mxu0 %v5551
    %5615 = vmatpush1.bf16.msra.mxu0 %v5550
    %5616 = vmatprep.subr.bf16.mxu0 %v5553
    %5617 = vmatpush1.bf16.msra.mxu0 %v5552
    %5618 = vmatprep.subr.bf16.mxu0 %v5555
    %5619 = vmatpush1.bf16.msra.mxu0 %v5554
    %5620 = vmatprep.subr.bf16.mxu0 %v5557
    %5621 = vmatpush1.bf16.msra.mxu0 %v5556
    %5622 = vmatprep.subr.bf16.mxu0 %v5559
    %5623 = vmatpush1.bf16.msra.mxu0 %v5558
    %5624 = vmatprep.subr.bf16.mxu0 %v5561
    %5625 = vmatpush1.bf16.msra.mxu0 %v5560
    %5626 = vmatprep.subr.bf16.mxu0 %v5563
    %5627 = vmatpush1.bf16.msra.mxu0 %v5562
    %5628 = vmatprep.subr.bf16.mxu0 %v5565
    %5629 = vmatpush1.bf16.msra.mxu0 %v5564
    %5630 = vmatprep.subr.bf16.mxu0 %v5567
    %5631 = vmatpush1.bf16.msra.mxu0 %v5566
    %5632 = vmatprep.subr.bf16.mxu0 %v5569
    %5633 = vmatpush1.bf16.msra.mxu0 %v5568
    %5634 = vmatprep.subr.bf16.mxu0 %v5571
    %5635 = vmatpush1.bf16.msra.mxu0 %v5570
    %5636 = vmatprep.subr.bf16.mxu0 %v5573
    %5637 = vmatpush1.bf16.msra.mxu0 %v5572
    %5638 = vmatprep.subr.bf16.mxu0 %v5575
    %5639 = vmatpush1.bf16.msra.mxu0 %v5574
    %5640 = vmatprep.subr.bf16.mxu0 %v5577
    %5641 = vmatpush1.bf16.msra.mxu0 %v5576
    %5642 = vmatprep.subr.bf16.mxu0 %v5579
    %5643 = vmatpush1.bf16.msra.mxu0 %v5578
    %5644 = vmatprep.subr.bf16.mxu0 %v5581
    %5645 = vmatpush1.bf16.msra.mxu0 %v5580
    %5646 = vmatprep.mubr.bf16.mxu0 %v5440
    %5647 = vmatmul.mubr.bf16.gmra.mrb[0].mxu0 %v5439
    %v5648 = vpop.f32.mrb[0].mxu0
    %v5649 = vadd.f32 %v5447, %v5648
    %v5650 = vpop.f32.mrb[0].mxu0
    %v5651 = vadd.f32 %v5451, %v5650
    %v5652 = vpop.f32.mrb[0].mxu0
    %v5653 = vpop.f32.mrb[0].mxu0
    %5654 = vdwg.mxu0
    %v5655 = vmax.f32 %v5649, 0.0
    %v5656 = vmax.f32 %v5651, 0.0
    %s5657 = scalar_lea.vmem %s5, 256
    %v5658 = vld [vmem:[%s5657] sm:$0xf]
    %v5659 = vld [vmem:[%s5657 + $0x4] sm:$0xf]
    %v5660 = vld [vmem:[%s5657 + $0x8] sm:$0xf]
    %v5661 = vld [vmem:[%s5657 + $0xc] sm:$0xf]
    %v5662 = vld [vmem:[%s5657 + $0x10] sm:$0xf]
    %v5663 = vld [vmem:[%s5657 + $0x14] sm:$0xf]
    %v5664 = vld [vmem:[%s5657 + $0x18] sm:$0xf]
    %v5665 = vld [vmem:[%s5657 + $0x1c] sm:$0xf]
    %v5666 = vld [vmem:[%s5657 + $0x20] sm:$0xf]
    %v5667 = vld [vmem:[%s5657 + $0x24] sm:$0xf]
    %v5668 = vld [vmem:[%s5657 + $0x28] sm:$0xf]
    %v5669 = vld [vmem:[%s5657 + $0x2c] sm:$0xf]
    %v5670 = vld [vmem:[%s5657 + $0x30] sm:$0xf]
    %v5671 = vld [vmem:[%s5657 + $0x34] sm:$0xf]
    %v5672 = vld [vmem:[%s5657 + $0x38] sm:$0xf]
    %v5673 = vld [vmem:[%s5657 + $0x3c] sm:$0xf]
    %v5674 = vld [vmem:[%s5657 + $0x40] sm:$0xf]
    %v5675 = vld [vmem:[%s5657 + $0x44] sm:$0xf]
    %v5676 = vld [vmem:[%s5657 + $0x48] sm:$0xf]
    %v5677 = vld [vmem:[%s5657 + $0x4c] sm:$0xf]
    %v5678 = vld [vmem:[%s5657 + $0x50] sm:$0xf]
    %v5679 = vld [vmem:[%s5657 + $0x54] sm:$0xf]
    %v5680 = vld [vmem:[%s5657 + $0x58] sm:$0xf]
    %v5681 = vld [vmem:[%s5657 + $0x5c] sm:$0xf]
    %v5682 = vld [vmem:[%s5657 + $0x60] sm:$0xf]
    %v5683 = vld [vmem:[%s5657 + $0x64] sm:$0xf]
    %v5684 = vld [vmem:[%s5657 + $0x68] sm:$0xf]
    %v5685 = vld [vmem:[%s5657 + $0x6c] sm:$0xf]
    %v5686 = vld [vmem:[%s5657 + $0x70] sm:$0xf]
    %v5687 = vld [vmem:[%s5657 + $0x74] sm:$0xf]
    %v5688 = vld [vmem:[%s5657 + $0x78] sm:$0xf]
    %v5689 = vld [vmem:[%s5657 + $0x7c] sm:$0xf]
    %v5690 = vpack.c.bf16 %v5655, %v5655
    %v5691 = vpack.c.bf16 %v5656, %v5656
    %s5692 = scalar_lea.vmem %s6, 2
    %v5693 = vld [vmem:[%s5692] sm:$0x1]
    %v5695 = vlaneseq
    %v5696 = vshrl.u32 %v5695, 7
    %v5697 = vsub.s32 0, %v5696
    %v5698 = vrot.slane %v5693, %v5697
    %v5732 = vunpack.c.l.b16 %v5658
    %v5733 = vunpack.c.l.b16 %v5659
    %v5734 = vunpack.c.l.b16 %v5660
    %v5735 = vunpack.c.l.b16 %v5661
    %v5736 = vunpack.c.l.b16 %v5662
    %v5737 = vunpack.c.l.b16 %v5663
    %v5738 = vunpack.c.l.b16 %v5664
    %v5739 = vunpack.c.l.b16 %v5665
    %v5740 = vunpack.c.l.b16 %v5666
    %v5741 = vunpack.c.l.b16 %v5667
    %v5742 = vunpack.c.l.b16 %v5668
    %v5743 = vunpack.c.l.b16 %v5669
    %v5744 = vunpack.c.l.b16 %v5670
    %v5745 = vunpack.c.l.b16 %v5671
    %v5746 = vunpack.c.l.b16 %v5672
    %v5747 = vunpack.c.l.b16 %v5673
    %v5748 = vunpack.c.l.b16 %v5674
    %v5749 = vunpack.c.l.b16 %v5675
    %v5750 = vunpack.c.l.b16 %v5676
    %v5751 = vunpack.c.l.b16 %v5677
    %v5752 = vunpack.c.l.b16 %v5678
    %v5753 = vunpack.c.l.b16 %v5679
    %v5754 = vunpack.c.l.b16 %v5680
    %v5755 = vunpack.c.l.b16 %v5681
    %v5756 = vunpack.c.l.b16 %v5682
    %v5757 = vunpack.c.l.b16 %v5683
    %v5758 = vunpack.c.l.b16 %v5684
    %v5759 = vunpack.c.l.b16 %v5685
    %v5760 = vunpack.c.l.b16 %v5686
    %v5761 = vunpack.c.l.b16 %v5687
    %v5762 = vunpack.c.l.b16 %v5688
    %v5763 = vunpack.c.l.b16 %v5689
    %v5764 = vpack.c.b16 %v5733, %v5732
    %v5765 = vpack.c.b16 %v5735, %v5734
    %v5766 = vpack.c.b16 %v5737, %v5736
    %v5767 = vpack.c.b16 %v5739, %v5738
    %v5768 = vpack.c.b16 %v5741, %v5740
    %v5769 = vpack.c.b16 %v5743, %v5742
    %v5770 = vpack.c.b16 %v5745, %v5744
    %v5771 = vpack.c.b16 %v5747, %v5746
    %v5772 = vpack.c.b16 %v5749, %v5748
    %v5773 = vpack.c.b16 %v5751, %v5750
    %v5774 = vpack.c.b16 %v5753, %v5752
    %v5775 = vpack.c.b16 %v5755, %v5754
    %v5776 = vpack.c.b16 %v5757, %v5756
    %v5777 = vpack.c.b16 %v5759, %v5758
    %v5778 = vpack.c.b16 %v5761, %v5760
    %v5779 = vpack.c.b16 %v5763, %v5762
    %5796 = vmatprep.subr.bf16.mxu0 0
    %5797 = vmatpush1.bf16.msra.mxu0 %v5764
    %5798 = vmatprep.subr.bf16.mxu0 0
    %5799 = vmatpush1.bf16.msra.mxu0 %v5765
    %5800 = vmatprep.subr.bf16.mxu0 0
    %5801 = vmatpush1.bf16.msra.mxu0 %v5766
    %5802 = vmatprep.subr.bf16.mxu0 0
    %5803 = vmatpush1.bf16.msra.mxu0 %v5767
    %5804 = vmatprep.subr.bf16.mxu0 0
    %5805 = vmatpush1.bf16.msra.mxu0 %v5768
    %5806 = vmatprep.subr.bf16.mxu0 0
    %5807 = vmatpush1.bf16.msra.mxu0 %v5769
    %5808 = vmatprep.subr.bf16.mxu0 0
    %5809 = vmatpush1.bf16.msra.mxu0 %v5770
    %5810 = vmatprep.subr.bf16.mxu0 0
    %5811 = vmatpush1.bf16.msra.mxu0 %v5771
    %5812 = vmatprep.subr.bf16.mxu0 0
    %5813 = vmatpush1.bf16.msra.mxu0 %v5772
    %5814 = vmatprep.subr.bf16.mxu0 0
    %5815 = vmatpush1.bf16.msra.mxu0 %v5773
    %5816 = vmatprep.subr.bf16.mxu0 0
    %5817 = vmatpush1.bf16.msra.mxu0 %v5774
    %5818 = vmatprep.subr.bf16.mxu0 0
    %5819 = vmatpush1.bf16.msra.mxu0 %v5775
    %5820 = vmatprep.subr.bf16.mxu0 0
    %5821 = vmatpush1.bf16.msra.mxu0 %v5776
    %5822 = vmatprep.subr.bf16.mxu0 0
    %5823 = vmatpush1.bf16.msra.mxu0 %v5777
    %5824 = vmatprep.subr.bf16.mxu0 0
    %5825 = vmatpush1.bf16.msra.mxu0 %v5778
    %5826 = vmatprep.subr.bf16.mxu0 0
    %5827 = vmatpush1.bf16.msra.mxu0 %v5779
    %5828 = vmatprep.mubr.bf16.mxu0 %v5691
    %5829 = vmatmul.mubr.bf16.gmra.mrb[0].mxu0 %v5690
    %v5830 = vpop.f32.mrb[0].mxu0
    %v5831 = vadd.f32 %v5698, %v5830
    %v5832 = vpop.f32.mrb[0].mxu0
    %v5833 = vpop.f32.mrb[0].mxu0
    %v5834 = vpop.f32.mrb[0].mxu0
    %5835 = vdwg.mxu0
    %5837 = vrot.lane.b32.xlu0 %v5831, 96
    %v5838 = vpop.permute.xlu0 %5837
    %v5840 = vmax.f32 %v5831, %v5838
    %v5841 = vsub.f32 %v5831, %v5840
    %v5842 = vmul.f32 %v5841, 1.442695
    %v5843 = vpow.pop %v5842
    %5845 = vrot.lane.b32.xlu0 %v5840, 32
    %v5846 = vpop.permute.xlu0 %5845
    %v5848 = vsub.f32 %v5831, %v5846
    %v5849 = vmul.f32 %v5848, 1.442695
    %v5850 = vpow.pop %v5849
    %5852 = vrot.lane.b32.xlu0 %v5850, 96
    %v5853 = vpop.permute.xlu0 %5852
    %v5855 = vadd.f32 %v5843, %v5853
    %v5856 = vrcp.pop %v5855
    %v5857 = vmul.f32 %v5843, %v5856
    %v5858 = vmul.f32 %v2742, %v5857
    %s5859 = scalar_lea.vmem %s7, 256
    %v5860 = vld [vmem:[%s5859] sm:$0xff]
    %v5861 = vld [vmem:[%s5859 + $0x8] sm:$0xff]
    %v5862 = vld [vmem:[%s5859 + $0x10] sm:$0xff]
    %v5863 = vld [vmem:[%s5859 + $0x18] sm:$0xff]
    %v5864 = vpack.c.bf16 %v5858, %v5858
    %s5865 = scalar_lea.vmem %s8, 16
    %v5866 = vld [vmem:[%s5865] sm:$0x3]
    %v5868 = vlaneseq
    %v5869 = vshrl.u32 %v5868, 7
    %v5870 = vsub.s32 0, %v5869
    %v5871 = vrot.slane %v5866, %v5870
    %v5872 = vlaneseq
    %v5873 = vshrl.u32 %v5872, 7
    %v5874 = vsub.s32 1, %v5873
    %v5875 = vrot.slane %v5866, %v5874
    %v5882 = vunpack.c.l.b16 %v5860
    %v5883 = vunpack.c.h.b16 %v5860
    %v5884 = vunpack.c.l.b16 %v5861
    %v5885 = vunpack.c.h.b16 %v5861
    %v5886 = vunpack.c.l.b16 %v5862
    %v5887 = vunpack.c.h.b16 %v5862
    %v5888 = vunpack.c.l.b16 %v5863
    %v5889 = vunpack.c.h.b16 %v5863
    %v5890 = vpack.c.b16 %v5884, %v5882
    %v5891 = vpack.c.b16 %v5885, %v5883
    %v5892 = vpack.c.b16 %v5888, %v5886
    %v5893 = vpack.c.b16 %v5889, %v5887
    %v5899 = vsel %vm638, %v5864, 0
    %5901 = vmatprep.subr.bf16.mxu0 %v5891
    %5902 = vmatpush1.bf16.msra.mxu0 %v5890
    %5903 = vmatprep.subr.bf16.mxu0 %v5893
    %5904 = vmatpush1.bf16.msra.mxu0 %v5892
    %5905 = vmatprep.subr.bf16.mxu0 0
    %5906 = vmatpush1.bf16.msra.mxu0 0
    %5907 = vmatprep.subr.bf16.mxu0 0
    %5908 = vmatpush1.bf16.msra.mxu0 0
    %5909 = vmatprep.subr.bf16.mxu0 0
    %5910 = vmatpush1.bf16.msra.mxu0 0
    %5911 = vmatprep.subr.bf16.mxu0 0
    %5912 = vmatpush1.bf16.msra.mxu0 0
    %5913 = vmatprep.subr.bf16.mxu0 0
    %5914 = vmatpush1.bf16.msra.mxu0 0
    %5915 = vmatprep.subr.bf16.mxu0 0
    %5916 = vmatpush1.bf16.msra.mxu0 0
    %5917 = vmatprep.subr.bf16.mxu0 0
    %5918 = vmatpush1.bf16.msra.mxu0 0
    %5919 = vmatprep.subr.bf16.mxu0 0
    %5920 = vmatpush1.bf16.msra.mxu0 0
    %5921 = vmatprep.subr.bf16.mxu0 0
    %5922 = vmatpush1.bf16.msra.mxu0 0
    %5923 = vmatprep.subr.bf16.mxu0 0
    %5924 = vmatpush1.bf16.msra.mxu0 0
    %5925 = vmatprep.subr.bf16.mxu0 0
    %5926 = vmatpush1.bf16.msra.mxu0 0
    %5927 = vmatprep.subr.bf16.mxu0 0
    %5928 = vmatpush1.bf16.msra.mxu0 0
    %5929 = vmatprep.subr.bf16.mxu0 0
    %5930 = vmatpush1.bf16.msra.mxu0 0
    %5931 = vmatprep.subr.bf16.mxu0 0
    %5932 = vmatpush1.bf16.msra.mxu0 0
    %5933 = vmatprep.mubr.bf16.mxu0 0
    %5934 = vmatmul.mubr.bf16.gmra.mrb[0].mxu0 %v5899
    %v5935 = vpop.f32.mrb[0].mxu0
    %v5936 = vadd.f32 %v5871, %v5935
    %v5937 = vpop.f32.mrb[0].mxu0
    %v5938 = vadd.f32 %v5875, %v5937
    %v5939 = vpop.f32.mrb[0].mxu0
    %v5940 = vpop.f32.mrb[0].mxu0
    %5941 = vdwg.mxu0
    %v5942 = vmax.f32 %v5936, 0.0
    %v5943 = vmax.f32 %v5938, 0.0
    %s5944 = scalar_lea.vmem %s9, 2048
    %v5945 = vld [vmem:[%s5944] sm:$0xff]
    %v5946 = vld [vmem:[%s5944 + $0x8] sm:$0xff]
    %v5947 = vld [vmem:[%s5944 + $0x10] sm:$0xff]
    %v5948 = vld [vmem:[%s5944 + $0x18] sm:$0xff]
    %v5949 = vld [vmem:[%s5944 + $0x20] sm:$0xff]
    %v5950 = vld [vmem:[%s5944 + $0x28] sm:$0xff]
    %v5951 = vld [vmem:[%s5944 + $0x30] sm:$0xff]
    %v5952 = vld [vmem:[%s5944 + $0x38] sm:$0xff]
    %v5953 = vld [vmem:[%s5944 + $0x40] sm:$0xff]
    %v5954 = vld [vmem:[%s5944 + $0x48] sm:$0xff]
    %v5955 = vld [vmem:[%s5944 + $0x50] sm:$0xff]
    %v5956 = vld [vmem:[%s5944 + $0x58] sm:$0xff]
    %v5957 = vld [vmem:[%s5944 + $0x60] sm:$0xff]
    %v5958 = vld [vmem:[%s5944 + $0x68] sm:$0xff]
    %v5959 = vld [vmem:[%s5944 + $0x70] sm:$0xff]
    %v5960 = vld [vmem:[%s5944 + $0x78] sm:$0xff]
    %v5961 = vld [vmem:[%s5944 + $0x80] sm:$0xff]
    %v5962 = vld [vmem:[%s5944 + $0x88] sm:$0xff]
    %v5963 = vld [vmem:[%s5944 + $0x90] sm:$0xff]
    %v5964 = vld [vmem:[%s5944 + $0x98] sm:$0xff]
    %v5965 = vld [vmem:[%s5944 + $0xa0] sm:$0xff]
    %v5966 = vld [vmem:[%s5944 + $0xa8] sm:$0xff]
    %v5967 = vld [vmem:[%s5944 + $0xb0] sm:$0xff]
    %v5968 = vld [vmem:[%s5944 + $0xb8] sm:$0xff]
    %v5969 = vld [vmem:[%s5944 + $0xc0] sm:$0xff]
    %v5970 = vld [vmem:[%s5944 + $0xc8] sm:$0xff]
    %v5971 = vld [vmem:[%s5944 + $0xd0] sm:$0xff]
    %v5972 = vld [vmem:[%s5944 + $0xd8] sm:$0xff]
    %v5973 = vld [vmem:[%s5944 + $0xe0] sm:$0xff]
    %v5974 = vld [vmem:[%s5944 + $0xe8] sm:$0xff]
    %v5975 = vld [vmem:[%s5944 + $0xf0] sm:$0xff]
    %v5976 = vld [vmem:[%s5944 + $0xf8] sm:$0xff]
    %v5977 = vpack.c.bf16 %v5942, %v5942
    %v5978 = vpack.c.bf16 %v5943, %v5943
    %s5979 = scalar_lea.vmem %s10, 16
    %v5980 = vld [vmem:[%s5979] sm:$0x3]
    %v5982 = vlaneseq
    %v5983 = vshrl.u32 %v5982, 7
    %v5984 = vsub.s32 0, %v5983
    %v5985 = vrot.slane %v5980, %v5984
    %v5986 = vlaneseq
    %v5987 = vshrl.u32 %v5986, 7
    %v5988 = vsub.s32 1, %v5987
    %v5989 = vrot.slane %v5980, %v5988
    %v6024 = vunpack.c.l.b16 %v5945
    %v6025 = vunpack.c.h.b16 %v5945
    %v6026 = vunpack.c.l.b16 %v5946
    %v6027 = vunpack.c.h.b16 %v5946
    %v6028 = vunpack.c.l.b16 %v5947
    %v6029 = vunpack.c.h.b16 %v5947
    %v6030 = vunpack.c.l.b16 %v5948
    %v6031 = vunpack.c.h.b16 %v5948
    %v6032 = vunpack.c.l.b16 %v5949
    %v6033 = vunpack.c.h.b16 %v5949
    %v6034 = vunpack.c.l.b16 %v5950
    %v6035 = vunpack.c.h.b16 %v5950
    %v6036 = vunpack.c.l.b16 %v5951
    %v6037 = vunpack.c.h.b16 %v5951
    %v6038 = vunpack.c.l.b16 %v5952
    %v6039 = vunpack.c.h.b16 %v5952
    %v6040 = vunpack.c.l.b16 %v5953
    %v6041 = vunpack.c.h.b16 %v5953
    %v6042 = vunpack.c.l.b16 %v5954
    %v6043 = vunpack.c.h.b16 %v5954
    %v6044 = vunpack.c.l.b16 %v5955
    %v6045 = vunpack.c.h.b16 %v5955
    %v6046 = vunpack.c.l.b16 %v5956
    %v6047 = vunpack.c.h.b16 %v5956
    %v6048 = vunpack.c.l.b16 %v5957
    %v6049 = vunpack.c.h.b16 %v5957
    %v6050 = vunpack.c.l.b16 %v5958
    %v6051 = vunpack.c.h.b16 %v5958
    %v6052 = vunpack.c.l.b16 %v5959
    %v6053 = vunpack.c.h.b16 %v5959
    %v6054 = vunpack.c.l.b16 %v5960
    %v6055 = vunpack.c.h.b16 %v5960
    %v6056 = vunpack.c.l.b16 %v5961
    %v6057 = vunpack.c.h.b16 %v5961
    %v6058 = vunpack.c.l.b16 %v5962
    %v6059 = vunpack.c.h.b16 %v5962
    %v6060 = vunpack.c.l.b16 %v5963
    %v6061 = vunpack.c.h.b16 %v5963
    %v6062 = vunpack.c.l.b16 %v5964
    %v6063 = vunpack.c.h.b16 %v5964
    %v6064 = vunpack.c.l.b16 %v5965
    %v6065 = vunpack.c.h.b16 %v5965
    %v6066 = vunpack.c.l.b16 %v5966
    %v6067 = vunpack.c.h.b16 %v5966
    %v6068 = vunpack.c.l.b16 %v5967
    %v6069 = vunpack.c.h.b16 %v5967
    %v6070 = vunpack.c.l.b16 %v5968
    %v6071 = vunpack.c.h.b16 %v5968
    %v6072 = vunpack.c.l.b16 %v5969
    %v6073 = vunpack.c.h.b16 %v5969
    %v6074 = vunpack.c.l.b16 %v5970
    %v6075 = vunpack.c.h.b16 %v5970
    %v6076 = vunpack.c.l.b16 %v5971
    %v6077 = vunpack.c.h.b16 %v5971
    %v6078 = vunpack.c.l.b16 %v5972
    %v6079 = vunpack.c.h.b16 %v5972
    %v6080 = vunpack.c.l.b16 %v5973
    %v6081 = vunpack.c.h.b16 %v5973
    %v6082 = vunpack.c.l.b16 %v5974
    %v6083 = vunpack.c.h.b16 %v5974
    %v6084 = vunpack.c.l.b16 %v5975
    %v6085 = vunpack.c.h.b16 %v5975
    %v6086 = vunpack.c.l.b16 %v5976
    %v6087 = vunpack.c.h.b16 %v5976
    %v6088 = vpack.c.b16 %v6026, %v6024
    %v6089 = vpack.c.b16 %v6027, %v6025
    %v6090 = vpack.c.b16 %v6030, %v6028
    %v6091 = vpack.c.b16 %v6031, %v6029
    %v6092 = vpack.c.b16 %v6034, %v6032
    %v6093 = vpack.c.b16 %v6035, %v6033
    %v6094 = vpack.c.b16 %v6038, %v6036
    %v6095 = vpack.c.b16 %v6039, %v6037
    %v6096 = vpack.c.b16 %v6042, %v6040
    %v6097 = vpack.c.b16 %v6043, %v6041
    %v6098 = vpack.c.b16 %v6046, %v6044
    %v6099 = vpack.c.b16 %v6047, %v6045
    %v6100 = vpack.c.b16 %v6050, %v6048
    %v6101 = vpack.c.b16 %v6051, %v6049
    %v6102 = vpack.c.b16 %v6054, %v6052
    %v6103 = vpack.c.b16 %v6055, %v6053
    %v6104 = vpack.c.b16 %v6058, %v6056
    %v6105 = vpack.c.b16 %v6059, %v6057
    %v6106 = vpack.c.b16 %v6062, %v6060
    %v6107 = vpack.c.b16 %v6063, %v6061
    %v6108 = vpack.c.b16 %v6066, %v6064
    %v6109 = vpack.c.b16 %v6067, %v6065
    %v6110 = vpack.c.b16 %v6070, %v6068
    %v6111 = vpack.c.b16 %v6071, %v6069
    %v6112 = vpack.c.b16 %v6074, %v6072
    %v6113 = vpack.c.b16 %v6075, %v6073
    %v6114 = vpack.c.b16 %v6078, %v6076
    %v6115 = vpack.c.b16 %v6079, %v6077
    %v6116 = vpack.c.b16 %v6082, %v6080
    %v6117 = vpack.c.b16 %v6083, %v6081
    %v6118 = vpack.c.b16 %v6086, %v6084
    %v6119 = vpack.c.b16 %v6087, %v6085
    %6152 = vmatprep.subr.bf16.mxu0 %v6089
    %6153 = vmatpush1.bf16.msra.mxu0 %v6088
    %6154 = vmatprep.subr.bf16.mxu0 %v6091
    %6155 = vmatpush1.bf16.msra.mxu0 %v6090
    %6156 = vmatprep.subr.bf16.mxu0 %v6093
    %6157 = vmatpush1.bf16.msra.mxu0 %v6092
    %6158 = vmatprep.subr.bf16.mxu0 %v6095
    %6159 = vmatpush1.bf16.msra.mxu0 %v6094
    %6160 = vmatprep.subr.bf16.mxu0 %v6097
    %6161 = vmatpush1.bf16.msra.mxu0 %v6096
    %6162 = vmatprep.subr.bf16.mxu0 %v6099
    %6163 = vmatpush1.bf16.msra.mxu0 %v6098
    %6164 = vmatprep.subr.bf16.mxu0 %v6101
    %6165 = vmatpush1.bf16.msra.mxu0 %v6100
    %6166 = vmatprep.subr.bf16.mxu0 %v6103
    %6167 = vmatpush1.bf16.msra.mxu0 %v6102
    %6168 = vmatprep.subr.bf16.mxu0 %v6105
    %6169 = vmatpush1.bf16.msra.mxu0 %v6104
    %6170 = vmatprep.subr.bf16.mxu0 %v6107
    %6171 = vmatpush1.bf16.msra.mxu0 %v6106
    %6172 = vmatprep.subr.bf16.mxu0 %v6109
    %6173 = vmatpush1.bf16.msra.mxu0 %v6108
    %6174 = vmatprep.subr.bf16.mxu0 %v6111
    %6175 = vmatpush1.bf16.msra.mxu0 %v6110
    %6176 = vmatprep.subr.bf16.mxu0 %v6113
    %6177 = vmatpush1.bf16.msra.mxu0 %v6112
    %6178 = vmatprep.subr.bf16.mxu0 %v6115
    %6179 = vmatpush1.bf16.msra.mxu0 %v6114
    %6180 = vmatprep.subr.bf16.mxu0 %v6117
    %6181 = vmatpush1.bf16.msra.mxu0 %v6116
    %6182 = vmatprep.subr.bf16.mxu0 %v6119
    %6183 = vmatpush1.bf16.msra.mxu0 %v6118
    %6184 = vmatprep.mubr.bf16.mxu0 %v5978
    %6185 = vmatmul.mubr.bf16.gmra.mrb[0].mxu0 %v5977
    %v6186 = vpop.f32.mrb[0].mxu0
    %v6187 = vadd.f32 %v5985, %v6186
    %v6188 = vpop.f32.mrb[0].mxu0
    %v6189 = vadd.f32 %v5989, %v6188
    %v6190 = vpop.f32.mrb[0].mxu0
    %v6191 = vpop.f32.mrb[0].mxu0
    %6192 = vdwg.mxu0
    %v6193 = vmax.f32 %v6187, 0.0
    %v6194 = vmax.f32 %v6189, 0.0
    %s6195 = scalar_lea.vmem %s11, 1024
    %v6196 = vld [vmem:[%s6195] sm:$0xf]
    %v6197 = vld [vmem:[%s6195 + $0x4] sm:$0xf]
    %v6198 = vld [vmem:[%s6195 + $0x8] sm:$0xf]
    %v6199 = vld [vmem:[%s6195 + $0xc] sm:$0xf]
    %v6200 = vld [vmem:[%s6195 + $0x10] sm:$0xf]
    %v6201 = vld [vmem:[%s6195 + $0x14] sm:$0xf]
    %v6202 = vld [vmem:[%s6195 + $0x18] sm:$0xf]
    %v6203 = vld [vmem:[%s6195 + $0x1c] sm:$0xf]
    %v6204 = vld [vmem:[%s6195 + $0x20] sm:$0xf]
    %v6205 = vld [vmem:[%s6195 + $0x24] sm:$0xf]
    %v6206 = vld [vmem:[%s6195 + $0x28] sm:$0xf]
    %v6207 = vld [vmem:[%s6195 + $0x2c] sm:$0xf]
    %v6208 = vld [vmem:[%s6195 + $0x30] sm:$0xf]
    %v6209 = vld [vmem:[%s6195 + $0x34] sm:$0xf]
    %v6210 = vld [vmem:[%s6195 + $0x38] sm:$0xf]
    %v6211 = vld [vmem:[%s6195 + $0x3c] sm:$0xf]
    %v6212 = vld [vmem:[%s6195 + $0x40] sm:$0xf]
    %v6213 = vld [vmem:[%s6195 + $0x44] sm:$0xf]
    %v6214 = vld [vmem:[%s6195 + $0x48] sm:$0xf]
    %v6215 = vld [vmem:[%s6195 + $0x4c] sm:$0xf]
    %v6216 = vld [vmem:[%s6195 + $0x50] sm:$0xf]
    %v6217 = vld [vmem:[%s6195 + $0x54] sm:$0xf]
    %v6218 = vld [vmem:[%s6195 + $0x58] sm:$0xf]
    %v6219 = vld [vmem:[%s6195 + $0x5c] sm:$0xf]
    %v6220 = vld [vmem:[%s6195 + $0x60] sm:$0xf]
    %v6221 = vld [vmem:[%s6195 + $0x64] sm:$0xf]
    %v6222 = vld [vmem:[%s6195 + $0x68] sm:$0xf]
    %v6223 = vld [vmem:[%s6195 + $0x6c] sm:$0xf]
    %v6224 = vld [vmem:[%s6195 + $0x70] sm:$0xf]
    %v6225 = vld [vmem:[%s6195 + $0x74] sm:$0xf]
    %v6226 = vld [vmem:[%s6195 + $0x78] sm:$0xf]
    %v6227 = vld [vmem:[%s6195 + $0x7c] sm:$0xf]
    %v6228 = vpack.c.bf16 %v6193, %v6193
    %v6229 = vpack.c.bf16 %v6194, %v6194
    %s6230 = scalar_lea.vmem %s12, 8
    %v6231 = vld [vmem:[%s6230] sm:$0x1]
    %v6233 = vlaneseq
    %v6234 = vshrl.u32 %v6233, 7
    %v6235 = vsub.s32 0, %v6234
    %v6236 = vrot.slane %v6231, %v6235
    %v6270 = vunpack.c.l.b16 %v6196
    %v6271 = vunpack.c.l.b16 %v6197
    %v6272 = vunpack.c.l.b16 %v6198
    %v6273 = vunpack.c.l.b16 %v6199
    %v6274 = vunpack.c.l.b16 %v6200
    %v6275 = vunpack.c.l.b16 %v6201
    %v6276 = vunpack.c.l.b16 %v6202
    %v6277 = vunpack.c.l.b16 %v6203
    %v6278 = vunpack.c.l.b16 %v6204
    %v6279 = vunpack.c.l.b16 %v6205
    %v6280 = vunpack.c.l.b16 %v6206
    %v6281 = vunpack.c.l.b16 %v6207
    %v6282 = vunpack.c.l.b16 %v6208
    %v6283 = vunpack.c.l.b16 %v6209
    %v6284 = vunpack.c.l.b16 %v6210
    %v6285 = vunpack.c.l.b16 %v6211
    %v6286 = vunpack.c.l.b16 %v6212
    %v6287 = vunpack.c.l.b16 %v6213
    %v6288 = vunpack.c.l.b16 %v6214
    %v6289 = vunpack.c.l.b16 %v6215
    %v6290 = vunpack.c.l.b16 %v6216
    %v6291 = vunpack.c.l.b16 %v6217
    %v6292 = vunpack.c.l.b16 %v6218
    %v6293 = vunpack.c.l.b16 %v6219
    %v6294 = vunpack.c.l.b16 %v6220
    %v6295 = vunpack.c.l.b16 %v6221
    %v6296 = vunpack.c.l.b16 %v6222
    %v6297 = vunpack.c.l.b16 %v6223
    %v6298 = vunpack.c.l.b16 %v6224
    %v6299 = vunpack.c.l.b16 %v6225
    %v6300 = vunpack.c.l.b16 %v6226
    %v6301 = vunpack.c.l.b16 %v6227
    %v6302 = vpack.c.b16 %v6271, %v6270
    %v6303 = vpack.c.b16 %v6273, %v6272
    %v6304 = vpack.c.b16 %v6275, %v6274
    %v6305 = vpack.c.b16 %v6277, %v6276
    %v6306 = vpack.c.b16 %v6279, %v6278
    %v6307 = vpack.c.b16 %v6281, %v6280
    %v6308 = vpack.c.b16 %v6283, %v6282
    %v6309 = vpack.c.b16 %v6285, %v6284
    %v6310 = vpack.c.b16 %v6287, %v6286
    %v6311 = vpack.c.b16 %v6289, %v6288
    %v6312 = vpack.c.b16 %v6291, %v6290
    %v6313 = vpack.c.b16 %v6293, %v6292
    %v6314 = vpack.c.b16 %v6295, %v6294
    %v6315 = vpack.c.b16 %v6297, %v6296
    %v6316 = vpack.c.b16 %v6299, %v6298
    %v6317 = vpack.c.b16 %v6301, %v6300
    %6334 = vmatprep.subr.bf16.mxu0 0
    %6335 = vmatpush1.bf16.msra.mxu0 %v6302
    %6336 = vmatprep.subr.bf16.mxu0 0
    %6337 = vmatpush1.bf16.msra.mxu0 %v6303
    %6338 = vmatprep.subr.bf16.mxu0 0
    %6339 = vmatpush1.bf16.msra.mxu0 %v6304
    %6340 = vmatprep.subr.bf16.mxu0 0
    %6341 = vmatpush1.bf16.msra.mxu0 %v6305
    %6342 = vmatprep.subr.bf16.mxu0 0
    %6343 = vmatpush1.bf16.msra.mxu0 %v6306
    %6344 = vmatprep.subr.bf16.mxu0 0
    %6345 = vmatpush1.bf16.msra.mxu0 %v6307
    %6346 = vmatprep.subr.bf16.mxu0 0
    %6347 = vmatpush1.bf16.msra.mxu0 %v6308
    %6348 = vmatprep.subr.bf16.mxu0 0
    %6349 = vmatpush1.bf16.msra.mxu0 %v6309
    %6350 = vmatprep.subr.bf16.mxu0 0
    %6351 = vmatpush1.bf16.msra.mxu0 %v6310
    %6352 = vmatprep.subr.bf16.mxu0 0
    %6353 = vmatpush1.bf16.msra.mxu0 %v6311
    %6354 = vmatprep.subr.bf16.mxu0 0
    %6355 = vmatpush1.bf16.msra.mxu0 %v6312
    %6356 = vmatprep.subr.bf16.mxu0 0
    %6357 = vmatpush1.bf16.msra.mxu0 %v6313
    %6358 = vmatprep.subr.bf16.mxu0 0
    %6359 = vmatpush1.bf16.msra.mxu0 %v6314
    %6360 = vmatprep.subr.bf16.mxu0 0
    %6361 = vmatpush1.bf16.msra.mxu0 %v6315
    %6362 = vmatprep.subr.bf16.mxu0 0
    %6363 = vmatpush1.bf16.msra.mxu0 %v6316
    %6364 = vmatprep.subr.bf16.mxu0 0
    %6365 = vmatpush1.bf16.msra.mxu0 %v6317
    %6366 = vmatprep.mubr.bf16.mxu0 %v6229
    %6367 = vmatmul.mubr.bf16.gmra.mrb[0].mxu0 %v6228
    %v6368 = vpop.f32.mrb[0].mxu0
    %v6369 = vadd.f32 %v6236, %v6368
    %v6370 = vpop.f32.mrb[0].mxu0
    %v6371 = vpop.f32.mrb[0].mxu0
    %v6372 = vpop.f32.mrb[0].mxu0
    %6373 = vdwg.mxu0
    %v6374 = vsub.f32 %v5858, %v6369
    %v6375 = vadd.f32 %v6369, 0.0
    %s6376 = scalar_lea.vmem %s7, 288
    %v6377 = vld [vmem:[%s6376] sm:$0xff]
    %v6378 = vld [vmem:[%s6376 + $0x8] sm:$0xff]
    %v6379 = vld [vmem:[%s6376 + $0x10] sm:$0xff]
    %v6380 = vld [vmem:[%s6376 + $0x18] sm:$0xff]
    %v6381 = vpack.c.bf16 %v6374, %v6374
    %s6382 = scalar_lea.vmem %s8, 18
    %v6383 = vld [vmem:[%s6382] sm:$0x3]
    %v6385 = vlaneseq
    %v6386 = vshrl.u32 %v6385, 7
    %v6387 = vsub.s32 0, %v6386
    %v6388 = vrot.slane %v6383, %v6387
    %v6389 = vlaneseq
    %v6390 = vshrl.u32 %v6389, 7
    %v6391 = vsub.s32 1, %v6390
    %v6392 = vrot.slane %v6383, %v6391
    %v6399 = vunpack.c.l.b16 %v6377
    %v6400 = vunpack.c.h.b16 %v6377
    %v6401 = vunpack.c.l.b16 %v6378
    %v6402 = vunpack.c.h.b16 %v6378
    %v6403 = vunpack.c.l.b16 %v6379
    %v6404 = vunpack.c.h.b16 %v6379
    %v6405 = vunpack.c.l.b16 %v6380
    %v6406 = vunpack.c.h.b16 %v6380
    %v6407 = vpack.c.b16 %v6401, %v6399
    %v6408 = vpack.c.b16 %v6402, %v6400
    %v6409 = vpack.c.b16 %v6405, %v6403
    %v6410 = vpack.c.b16 %v6406, %v6404
    %v6416 = vsel %vm638, %v6381, 0
    %6418 = vmatprep.subr.bf16.mxu0 %v6408
    %6419 = vmatpush1.bf16.msra.mxu0 %v6407
    %6420 = vmatprep.subr.bf16.mxu0 %v6410
    %6421 = vmatpush1.bf16.msra.mxu0 %v6409
    %6422 = vmatprep.subr.bf16.mxu0 0
    %6423 = vmatpush1.bf16.msra.mxu0 0
    %6424 = vmatprep.subr.bf16.mxu0 0
    %6425 = vmatpush1.bf16.msra.mxu0 0
    %6426 = vmatprep.subr.bf16.mxu0 0
    %6427 = vmatpush1.bf16.msra.mxu0 0
    %6428 = vmatprep.subr.bf16.mxu0 0
    %6429 = vmatpush1.bf16.msra.mxu0 0
    %6430 = vmatprep.subr.bf16.mxu0 0
    %6431 = vmatpush1.bf16.msra.mxu0 0
    %6432 = vmatprep.subr.bf16.mxu0 0
    %6433 = vmatpush1.bf16.msra.mxu0 0
    %6434 = vmatprep.subr.bf16.mxu0 0
    %6435 = vmatpush1.bf16.msra.mxu0 0
    %6436 = vmatprep.subr.bf16.mxu0 0
    %6437 = vmatpush1.bf16.msra.mxu0 0
    %6438 = vmatprep.subr.bf16.mxu0 0
    %6439 = vmatpush1.bf16.msra.mxu0 0
    %6440 = vmatprep.subr.bf16.mxu0 0
    %6441 = vmatpush1.bf16.msra.mxu0 0
    %6442 = vmatprep.subr.bf16.mxu0 0
    %6443 = vmatpush1.bf16.msra.mxu0 0
    %6444 = vmatprep.subr.bf16.mxu0 0
    %6445 = vmatpush1.bf16.msra.mxu0 0
    %6446 = vmatprep.subr.bf16.mxu0 0
    %6447 = vmatpush1.bf16.msra.mxu0 0
    %6448 = vmatprep.subr.bf16.mxu0 0
    %6449 = vmatpush1.bf16.msra.mxu0 0
    %6450 = vmatprep.mubr.bf16.mxu0 0
    %6451 = vmatmul.mubr.bf16.gmra.mrb[0].mxu0 %v6416
    %v6452 = vpop.f32.mrb[0].mxu0
    %v6453 = vadd.f32 %v6388, %v6452
    %v6454 = vpop.f32.mrb[0].mxu0
    %v6455 = vadd.f32 %v6392, %v6454
    %v6456 = vpop.f32.mrb[0].mxu0
    %v6457 = vpop.f32.mrb[0].mxu0
    %6458 = vdwg.mxu0
    %v6459 = vmax.f32 %v6453, 0.0
    %v6460 = vmax.f32 %v6455, 0.0
    %s6461 = scalar_lea.vmem %s9, 2304
    %v6462 = vld [vmem:[%s6461] sm:$0xff]
    %v6463 = vld [vmem:[%s6461 + $0x8] sm:$0xff]
    %v6464 = vld [vmem:[%s6461 + $0x10] sm:$0xff]
    %v6465 = vld [vmem:[%s6461 + $0x18] sm:$0xff]
    %v6466 = vld [vmem:[%s6461 + $0x20] sm:$0xff]
    %v6467 = vld [vmem:[%s6461 + $0x28] sm:$0xff]
    %v6468 = vld [vmem:[%s6461 + $0x30] sm:$0xff]
    %v6469 = vld [vmem:[%s6461 + $0x38] sm:$0xff]
    %v6470 = vld [vmem:[%s6461 + $0x40] sm:$0xff]
    %v6471 = vld [vmem:[%s6461 + $0x48] sm:$0xff]
    %v6472 = vld [vmem:[%s6461 + $0x50] sm:$0xff]
    %v6473 = vld [vmem:[%s6461 + $0x58] sm:$0xff]
    %v6474 = vld [vmem:[%s6461 + $0x60] sm:$0xff]
    %v6475 = vld [vmem:[%s6461 + $0x68] sm:$0xff]
    %v6476 = vld [vmem:[%s6461 + $0x70] sm:$0xff]
    %v6477 = vld [vmem:[%s6461 + $0x78] sm:$0xff]
    %v6478 = vld [vmem:[%s6461 + $0x80] sm:$0xff]
    %v6479 = vld [vmem:[%s6461 + $0x88] sm:$0xff]
    %v6480 = vld [vmem:[%s6461 + $0x90] sm:$0xff]
    %v6481 = vld [vmem:[%s6461 + $0x98] sm:$0xff]
    %v6482 = vld [vmem:[%s6461 + $0xa0] sm:$0xff]
    %v6483 = vld [vmem:[%s6461 + $0xa8] sm:$0xff]
    %v6484 = vld [vmem:[%s6461 + $0xb0] sm:$0xff]
    %v6485 = vld [vmem:[%s6461 + $0xb8] sm:$0xff]
    %v6486 = vld [vmem:[%s6461 + $0xc0] sm:$0xff]
    %v6487 = vld [vmem:[%s6461 + $0xc8] sm:$0xff]
    %v6488 = vld [vmem:[%s6461 + $0xd0] sm:$0xff]
    %v6489 = vld [vmem:[%s6461 + $0xd8] sm:$0xff]
    %v6490 = vld [vmem:[%s6461 + $0xe0] sm:$0xff]
    %v6491 = vld [vmem:[%s6461 + $0xe8] sm:$0xff]
    %v6492 = vld [vmem:[%s6461 + $0xf0] sm:$0xff]
    %v6493 = vld [vmem:[%s6461 + $0xf8] sm:$0xff]
    %v6494 = vpack.c.bf16 %v6459, %v6459
    %v6495 = vpack.c.bf16 %v6460, %v6460
    %s6496 = scalar_lea.vmem %s10, 18
    %v6497 = vld [vmem:[%s6496] sm:$0x3]
    %v6499 = vlaneseq
    %v6500 = vshrl.u32 %v6499, 7
    %v6501 = vsub.s32 0, %v6500
    %v6502 = vrot.slane %v6497, %v6501
    %v6503 = vlaneseq
    %v6504 = vshrl.u32 %v6503, 7
    %v6505 = vsub.s32 1, %v6504
    %v6506 = vrot.slane %v6497, %v6505
    %v6541 = vunpack.c.l.b16 %v6462
    %v6542 = vunpack.c.h.b16 %v6462
    %v6543 = vunpack.c.l.b16 %v6463
    %v6544 = vunpack.c.h.b16 %v6463
    %v6545 = vunpack.c.l.b16 %v6464
    %v6546 = vunpack.c.h.b16 %v6464
    %v6547 = vunpack.c.l.b16 %v6465
    %v6548 = vunpack.c.h.b16 %v6465
    %v6549 = vunpack.c.l.b16 %v6466
    %v6550 = vunpack.c.h.b16 %v6466
    %v6551 = vunpack.c.l.b16 %v6467
    %v6552 = vunpack.c.h.b16 %v6467
    %v6553 = vunpack.c.l.b16 %v6468
    %v6554 = vunpack.c.h.b16 %v6468
    %v6555 = vunpack.c.l.b16 %v6469
    %v6556 = vunpack.c.h.b16 %v6469
    %v6557 = vunpack.c.l.b16 %v6470
    %v6558 = vunpack.c.h.b16 %v6470
    %v6559 = vunpack.c.l.b16 %v6471
    %v6560 = vunpack.c.h.b16 %v6471
    %v6561 = vunpack.c.l.b16 %v6472
    %v6562 = vunpack.c.h.b16 %v6472
    %v6563 = vunpack.c.l.b16 %v6473
    %v6564 = vunpack.c.h.b16 %v6473
    %v6565 = vunpack.c.l.b16 %v6474
    %v6566 = vunpack.c.h.b16 %v6474
    %v6567 = vunpack.c.l.b16 %v6475
    %v6568 = vunpack.c.h.b16 %v6475
    %v6569 = vunpack.c.l.b16 %v6476
    %v6570 = vunpack.c.h.b16 %v6476
    %v6571 = vunpack.c.l.b16 %v6477
    %v6572 = vunpack.c.h.b16 %v6477
    %v6573 = vunpack.c.l.b16 %v6478
    %v6574 = vunpack.c.h.b16 %v6478
    %v6575 = vunpack.c.l.b16 %v6479
    %v6576 = vunpack.c.h.b16 %v6479
    %v6577 = vunpack.c.l.b16 %v6480
    %v6578 = vunpack.c.h.b16 %v6480
    %v6579 = vunpack.c.l.b16 %v6481
    %v6580 = vunpack.c.h.b16 %v6481
    %v6581 = vunpack.c.l.b16 %v6482
    %v6582 = vunpack.c.h.b16 %v6482
    %v6583 = vunpack.c.l.b16 %v6483
    %v6584 = vunpack.c.h.b16 %v6483
    %v6585 = vunpack.c.l.b16 %v6484
    %v6586 = vunpack.c.h.b16 %v6484
    %v6587 = vunpack.c.l.b16 %v6485
    %v6588 = vunpack.c.h.b16 %v6485
    %v6589 = vunpack.c.l.b16 %v6486
    %v6590 = vunpack.c.h.b16 %v6486
    %v6591 = vunpack.c.l.b16 %v6487
    %v6592 = vunpack.c.h.b16 %v6487
    %v6593 = vunpack.c.l.b16 %v6488
    %v6594 = vunpack.c.h.b16 %v6488
    %v6595 = vunpack.c.l.b16 %v6489
    %v6596 = vunpack.c.h.b16 %v6489
    %v6597 = vunpack.c.l.b16 %v6490
    %v6598 = vunpack.c.h.b16 %v6490
    %v6599 = vunpack.c.l.b16 %v6491
    %v6600 = vunpack.c.h.b16 %v6491
    %v6601 = vunpack.c.l.b16 %v6492
    %v6602 = vunpack.c.h.b16 %v6492
    %v6603 = vunpack.c.l.b16 %v6493
    %v6604 = vunpack.c.h.b16 %v6493
    %v6605 = vpack.c.b16 %v6543, %v6541
    %v6606 = vpack.c.b16 %v6544, %v6542
    %v6607 = vpack.c.b16 %v6547, %v6545
    %v6608 = vpack.c.b16 %v6548, %v6546
    %v6609 = vpack.c.b16 %v6551, %v6549
    %v6610 = vpack.c.b16 %v6552, %v6550
    %v6611 = vpack.c.b16 %v6555, %v6553
    %v6612 = vpack.c.b16 %v6556, %v6554
    %v6613 = vpack.c.b16 %v6559, %v6557
    %v6614 = vpack.c.b16 %v6560, %v6558
    %v6615 = vpack.c.b16 %v6563, %v6561
    %v6616 = vpack.c.b16 %v6564, %v6562
    %v6617 = vpack.c.b16 %v6567, %v6565
    %v6618 = vpack.c.b16 %v6568, %v6566
    %v6619 = vpack.c.b16 %v6571, %v6569
    %v6620 = vpack.c.b16 %v6572, %v6570
    %v6621 = vpack.c.b16 %v6575, %v6573
    %v6622 = vpack.c.b16 %v6576, %v6574
    %v6623 = vpack.c.b16 %v6579, %v6577
    %v6624 = vpack.c.b16 %v6580, %v6578
    %v6625 = vpack.c.b16 %v6583, %v6581
    %v6626 = vpack.c.b16 %v6584, %v6582
    %v6627 = vpack.c.b16 %v6587, %v6585
    %v6628 = vpack.c.b16 %v6588, %v6586
    %v6629 = vpack.c.b16 %v6591, %v6589
    %v6630 = vpack.c.b16 %v6592, %v6590
    %v6631 = vpack.c.b16 %v6595, %v6593
    %v6632 = vpack.c.b16 %v6596, %v6594
    %v6633 = vpack.c.b16 %v6599, %v6597
    %v6634 = vpack.c.b16 %v6600, %v6598
    %v6635 = vpack.c.b16 %v6603, %v6601
    %v6636 = vpack.c.b16 %v6604, %v6602
    %6669 = vmatprep.subr.bf16.mxu0 %v6606
    %6670 = vmatpush1.bf16.msra.mxu0 %v6605
    %6671 = vmatprep.subr.bf16.mxu0 %v6608
    %6672 = vmatpush1.bf16.msra.mxu0 %v6607
    %6673 = vmatprep.subr.bf16.mxu0 %v6610
    %6674 = vmatpush1.bf16.msra.mxu0 %v6609
    %6675 = vmatprep.subr.bf16.mxu0 %v6612
    %6676 = vmatpush1.bf16.msra.mxu0 %v6611
    %6677 = vmatprep.subr.bf16.mxu0 %v6614
    %6678 = vmatpush1.bf16.msra.mxu0 %v6613
    %6679 = vmatprep.subr.bf16.mxu0 %v6616
    %6680 = vmatpush1.bf16.msra.mxu0 %v6615
    %6681 = vmatprep.subr.bf16.mxu0 %v6618
    %6682 = vmatpush1.bf16.msra.mxu0 %v6617
    %6683 = vmatprep.subr.bf16.mxu0 %v6620
    %6684 = vmatpush1.bf16.msra.mxu0 %v6619
    %6685 = vmatprep.subr.bf16.mxu0 %v6622
    %6686 = vmatpush1.bf16.msra.mxu0 %v6621
    %6687 = vmatprep.subr.bf16.mxu0 %v6624
    %6688 = vmatpush1.bf16.msra.mxu0 %v6623
    %6689 = vmatprep.subr.bf16.mxu0 %v6626
    %6690 = vmatpush1.bf16.msra.mxu0 %v6625
    %6691 = vmatprep.subr.bf16.mxu0 %v6628
    %6692 = vmatpush1.bf16.msra.mxu0 %v6627
    %6693 = vmatprep.subr.bf16.mxu0 %v6630
    %6694 = vmatpush1.bf16.msra.mxu0 %v6629
    %6695 = vmatprep.subr.bf16.mxu0 %v6632
    %6696 = vmatpush1.bf16.msra.mxu0 %v6631
    %6697 = vmatprep.subr.bf16.mxu0 %v6634
    %6698 = vmatpush1.bf16.msra.mxu0 %v6633
    %6699 = vmatprep.subr.bf16.mxu0 %v6636
    %6700 = vmatpush1.bf16.msra.mxu0 %v6635
    %6701 = vmatprep.mubr.bf16.mxu0 %v6495
    %6702 = vmatmul.mubr.bf16.gmra.mrb[0].mxu0 %v6494
    %v6703 = vpop.f32.mrb[0].mxu0
    %v6704 = vadd.f32 %v6502, %v6703
    %v6705 = vpop.f32.mrb[0].mxu0
    %v6706 = vadd.f32 %v6506, %v6705
    %v6707 = vpop.f32.mrb[0].mxu0
    %v6708 = vpop.f32.mrb[0].mxu0
    %6709 = vdwg.mxu0
    %v6710 = vmax.f32 %v6704, 0.0
    %v6711 = vmax.f32 %v6706, 0.0
    %s6712 = scalar_lea.vmem %s11, 1152
    %v6713 = vld [vmem:[%s6712] sm:$0xf]
    %v6714 = vld [vmem:[%s6712 + $0x4] sm:$0xf]
    %v6715 = vld [vmem:[%s6712 + $0x8] sm:$0xf]
    %v6716 = vld [vmem:[%s6712 + $0xc] sm:$0xf]
    %v6717 = vld [vmem:[%s6712 + $0x10] sm:$0xf]
    %v6718 = vld [vmem:[%s6712 + $0x14] sm:$0xf]
    %v6719 = vld [vmem:[%s6712 + $0x18] sm:$0xf]
    %v6720 = vld [vmem:[%s6712 + $0x1c] sm:$0xf]
    %v6721 = vld [vmem:[%s6712 + $0x20] sm:$0xf]
    %v6722 = vld [vmem:[%s6712 + $0x24] sm:$0xf]
    %v6723 = vld [vmem:[%s6712 + $0x28] sm:$0xf]
    %v6724 = vld [vmem:[%s6712 + $0x2c] sm:$0xf]
    %v6725 = vld [vmem:[%s6712 + $0x30] sm:$0xf]
    %v6726 = vld [vmem:[%s6712 + $0x34] sm:$0xf]
    %v6727 = vld [vmem:[%s6712 + $0x38] sm:$0xf]
    %v6728 = vld [vmem:[%s6712 + $0x3c] sm:$0xf]
    %v6729 = vld [vmem:[%s6712 + $0x40] sm:$0xf]
    %v6730 = vld [vmem:[%s6712 + $0x44] sm:$0xf]
    %v6731 = vld [vmem:[%s6712 + $0x48] sm:$0xf]
    %v6732 = vld [vmem:[%s6712 + $0x4c] sm:$0xf]
    %v6733 = vld [vmem:[%s6712 + $0x50] sm:$0xf]
    %v6734 = vld [vmem:[%s6712 + $0x54] sm:$0xf]
    %v6735 = vld [vmem:[%s6712 + $0x58] sm:$0xf]
    %v6736 = vld [vmem:[%s6712 + $0x5c] sm:$0xf]
    %v6737 = vld [vmem:[%s6712 + $0x60] sm:$0xf]
    %v6738 = vld [vmem:[%s6712 + $0x64] sm:$0xf]
    %v6739 = vld [vmem:[%s6712 + $0x68] sm:$0xf]
    %v6740 = vld [vmem:[%s6712 + $0x6c] sm:$0xf]
    %v6741 = vld [vmem:[%s6712 + $0x70] sm:$0xf]
    %v6742 = vld [vmem:[%s6712 + $0x74] sm:$0xf]
    %v6743 = vld [vmem:[%s6712 + $0x78] sm:$0xf]
    %v6744 = vld [vmem:[%s6712 + $0x7c] sm:$0xf]
    %v6745 = vpack.c.bf16 %v6710, %v6710
    %v6746 = vpack.c.bf16 %v6711, %v6711
    %s6747 = scalar_lea.vmem %s12, 9
    %v6748 = vld [vmem:[%s6747] sm:$0x1]
    %v6750 = vlaneseq
    %v6751 = vshrl.u32 %v6750, 7
    %v6752 = vsub.s32 0, %v6751
    %v6753 = vrot.slane %v6748, %v6752
    %v6787 = vunpack.c.l.b16 %v6713
    %v6788 = vunpack.c.l.b16 %v6714
    %v6789 = vunpack.c.l.b16 %v6715
    %v6790 = vunpack.c.l.b16 %v6716
    %v6791 = vunpack.c.l.b16 %v6717
    %v6792 = vunpack.c.l.b16 %v6718
    %v6793 = vunpack.c.l.b16 %v6719
    %v6794 = vunpack.c.l.b16 %v6720
    %v6795 = vunpack.c.l.b16 %v6721
    %v6796 = vunpack.c.l.b16 %v6722
    %v6797 = vunpack.c.l.b16 %v6723
    %v6798 = vunpack.c.l.b16 %v6724
    %v6799 = vunpack.c.l.b16 %v6725
    %v6800 = vunpack.c.l.b16 %v6726
    %v6801 = vunpack.c.l.b16 %v6727
    %v6802 = vunpack.c.l.b16 %v6728
    %v6803 = vunpack.c.l.b16 %v6729
    %v6804 = vunpack.c.l.b16 %v6730
    %v6805 = vunpack.c.l.b16 %v6731
    %v6806 = vunpack.c.l.b16 %v6732
    %v6807 = vunpack.c.l.b16 %v6733
    %v6808 = vunpack.c.l.b16 %v6734
    %v6809 = vunpack.c.l.b16 %v6735
    %v6810 = vunpack.c.l.b16 %v6736
    %v6811 = vunpack.c.l.b16 %v6737
    %v6812 = vunpack.c.l.b16 %v6738
    %v6813 = vunpack.c.l.b16 %v6739
    %v6814 = vunpack.c.l.b16 %v6740
    %v6815 = vunpack.c.l.b16 %v6741
    %v6816 = vunpack.c.l.b16 %v6742
    %v6817 = vunpack.c.l.b16 %v6743
    %v6818 = vunpack.c.l.b16 %v6744
    %v6819 = vpack.c.b16 %v6788, %v6787
    %v6820 = vpack.c.b16 %v6790, %v6789
    %v6821 = vpack.c.b16 %v6792, %v6791
    %v6822 = vpack.c.b16 %v6794, %v6793
    %v6823 = vpack.c.b16 %v6796, %v6795
    %v6824 = vpack.c.b16 %v6798, %v6797
    %v6825 = vpack.c.b16 %v6800, %v6799
    %v6826 = vpack.c.b16 %v6802, %v6801
    %v6827 = vpack.c.b16 %v6804, %v6803
    %v6828 = vpack.c.b16 %v6806, %v6805
    %v6829 = vpack.c.b16 %v6808, %v6807
    %v6830 = vpack.c.b16 %v6810, %v6809
    %v6831 = vpack.c.b16 %v6812, %v6811
    %v6832 = vpack.c.b16 %v6814, %v6813
    %v6833 = vpack.c.b16 %v6816, %v6815
    %v6834 = vpack.c.b16 %v6818, %v6817
    %6851 = vmatprep.subr.bf16.mxu0 0
    %6852 = vmatpush1.bf16.msra.mxu0 %v6819
    %6853 = vmatprep.subr.bf16.mxu0 0
    %6854 = vmatpush1.bf16.msra.mxu0 %v6820
    %6855 = vmatprep.subr.bf16.mxu0 0
    %6856 = vmatpush1.bf16.msra.mxu0 %v6821
    %6857 = vmatprep.subr.bf16.mxu0 0
    %6858 = vmatpush1.bf16.msra.mxu0 %v6822
    %6859 = vmatprep.subr.bf16.mxu0 0
    %6860 = vmatpush1.bf16.msra.mxu0 %v6823
    %6861 = vmatprep.subr.bf16.mxu0 0
    %6862 = vmatpush1.bf16.msra.mxu0 %v6824
    %6863 = vmatprep.subr.bf16.mxu0 0
    %6864 = vmatpush1.bf16.msra.mxu0 %v6825
    %6865 = vmatprep.subr.bf16.mxu0 0
    %6866 = vmatpush1.bf16.msra.mxu0 %v6826
    %6867 = vmatprep.subr.bf16.mxu0 0
    %6868 = vmatpush1.bf16.msra.mxu0 %v6827
    %6869 = vmatprep.subr.bf16.mxu0 0
    %6870 = vmatpush1.bf16.msra.mxu0 %v6828
    %6871 = vmatprep.subr.bf16.mxu0 0
    %6872 = vmatpush1.bf16.msra.mxu0 %v6829
    %6873 = vmatprep.subr.bf16.mxu0 0
    %6874 = vmatpush1.bf16.msra.mxu0 %v6830
    %6875 = vmatprep.subr.bf16.mxu0 0
    %6876 = vmatpush1.bf16.msra.mxu0 %v6831
    %6877 = vmatprep.subr.bf16.mxu0 0
    %6878 = vmatpush1.bf16.msra.mxu0 %v6832
    %6879 = vmatprep.subr.bf16.mxu0 0
    %6880 = vmatpush1.bf16.msra.mxu0 %v6833
    %6881 = vmatprep.subr.bf16.mxu0 0
    %6882 = vmatpush1.bf16.msra.mxu0 %v6834
    %6883 = vmatprep.mubr.bf16.mxu0 %v6746
    %6884 = vmatmul.mubr.bf16.gmra.mrb[0].mxu0 %v6745
    %v6885 = vpop.f32.mrb[0].mxu0
    %v6886 = vadd.f32 %v6753, %v6885
    %v6887 = vpop.f32.mrb[0].mxu0
    %v6888 = vpop.f32.mrb[0].mxu0
    %v6889 = vpop.f32.mrb[0].mxu0
    %6890 = vdwg.mxu0
    %v6891 = vsub.f32 %v6374, %v6886
    %v6892 = vadd.f32 %v6375, %v6886
    %s6893 = scalar_lea.vmem %s7, 320
    %v6894 = vld [vmem:[%s6893] sm:$0xff]
    %v6895 = vld [vmem:[%s6893 + $0x8] sm:$0xff]
    %v6896 = vld [vmem:[%s6893 + $0x10] sm:$0xff]
    %v6897 = vld [vmem:[%s6893 + $0x18] sm:$0xff]
    %v6898 = vpack.c.bf16 %v6891, %v6891
    %s6899 = scalar_lea.vmem %s8, 20
    %v6900 = vld [vmem:[%s6899] sm:$0x3]
    %v6902 = vlaneseq
    %v6903 = vshrl.u32 %v6902, 7
    %v6904 = vsub.s32 0, %v6903
    %v6905 = vrot.slane %v6900, %v6904
    %v6906 = vlaneseq
    %v6907 = vshrl.u32 %v6906, 7
    %v6908 = vsub.s32 1, %v6907
    %v6909 = vrot.slane %v6900, %v6908
    %v6916 = vunpack.c.l.b16 %v6894
    %v6917 = vunpack.c.h.b16 %v6894
    %v6918 = vunpack.c.l.b16 %v6895
    %v6919 = vunpack.c.h.b16 %v6895
    %v6920 = vunpack.c.l.b16 %v6896
    %v6921 = vunpack.c.h.b16 %v6896
    %v6922 = vunpack.c.l.b16 %v6897
    %v6923 = vunpack.c.h.b16 %v6897
    %v6924 = vpack.c.b16 %v6918, %v6916
    %v6925 = vpack.c.b16 %v6919, %v6917
    %v6926 = vpack.c.b16 %v6922, %v6920
    %v6927 = vpack.c.b16 %v6923, %v6921
    %v6933 = vsel %vm638, %v6898, 0
    %6935 = vmatprep.subr.bf16.mxu0 %v6925
    %6936 = vmatpush1.bf16.msra.mxu0 %v6924
    %6937 = vmatprep.subr.bf16.mxu0 %v6927
    %6938 = vmatpush1.bf16.msra.mxu0 %v6926
    %6939 = vmatprep.subr.bf16.mxu0 0
    %6940 = vmatpush1.bf16.msra.mxu0 0
    %6941 = vmatprep.subr.bf16.mxu0 0
    %6942 = vmatpush1.bf16.msra.mxu0 0
    %6943 = vmatprep.subr.bf16.mxu0 0
    %6944 = vmatpush1.bf16.msra.mxu0 0
    %6945 = vmatprep.subr.bf16.mxu0 0
    %6946 = vmatpush1.bf16.msra.mxu0 0
    %6947 = vmatprep.subr.bf16.mxu0 0
    %6948 = vmatpush1.bf16.msra.mxu0 0
    %6949 = vmatprep.subr.bf16.mxu0 0
    %6950 = vmatpush1.bf16.msra.mxu0 0
    %6951 = vmatprep.subr.bf16.mxu0 0
    %6952 = vmatpush1.bf16.msra.mxu0 0
    %6953 = vmatprep.subr.bf16.mxu0 0
    %6954 = vmatpush1.bf16.msra.mxu0 0
    %6955 = vmatprep.subr.bf16.mxu0 0
    %6956 = vmatpush1.bf16.msra.mxu0 0
    %6957 = vmatprep.subr.bf16.mxu0 0
    %6958 = vmatpush1.bf16.msra.mxu0 0
    %6959 = vmatprep.subr.bf16.mxu0 0
    %6960 = vmatpush1.bf16.msra.mxu0 0
    %6961 = vmatprep.subr.bf16.mxu0 0
    %6962 = vmatpush1.bf16.msra.mxu0 0
    %6963 = vmatprep.subr.bf16.mxu0 0
    %6964 = vmatpush1.bf16.msra.mxu0 0
    %6965 = vmatprep.subr.bf16.mxu0 0
    %6966 = vmatpush1.bf16.msra.mxu0 0
    %6967 = vmatprep.mubr.bf16.mxu0 0
    %6968 = vmatmul.mubr.bf16.gmra.mrb[0].mxu0 %v6933
    %v6969 = vpop.f32.mrb[0].mxu0
    %v6970 = vadd.f32 %v6905, %v6969
    %v6971 = vpop.f32.mrb[0].mxu0
    %v6972 = vadd.f32 %v6909, %v6971
    %v6973 = vpop.f32.mrb[0].mxu0
    %v6974 = vpop.f32.mrb[0].mxu0
    %6975 = vdwg.mxu0
    %v6976 = vmax.f32 %v6970, 0.0
    %v6977 = vmax.f32 %v6972, 0.0
    %s6978 = scalar_lea.vmem %s9, 2560
    %v6979 = vld [vmem:[%s6978] sm:$0xff]
    %v6980 = vld [vmem:[%s6978 + $0x8] sm:$0xff]
    %v6981 = vld [vmem:[%s6978 + $0x10] sm:$0xff]
    %v6982 = vld [vmem:[%s6978 + $0x18] sm:$0xff]
    %v6983 = vld [vmem:[%s6978 + $0x20] sm:$0xff]
    %v6984 = vld [vmem:[%s6978 + $0x28] sm:$0xff]
    %v6985 = vld [vmem:[%s6978 + $0x30] sm:$0xff]
    %v6986 = vld [vmem:[%s6978 + $0x38] sm:$0xff]
    %v6987 = vld [vmem:[%s6978 + $0x40] sm:$0xff]
    %v6988 = vld [vmem:[%s6978 + $0x48] sm:$0xff]
    %v6989 = vld [vmem:[%s6978 + $0x50] sm:$0xff]
    %v6990 = vld [vmem:[%s6978 + $0x58] sm:$0xff]
    %v6991 = vld [vmem:[%s6978 + $0x60] sm:$0xff]
    %v6992 = vld [vmem:[%s6978 + $0x68] sm:$0xff]
    %v6993 = vld [vmem:[%s6978 + $0x70] sm:$0xff]
    %v6994 = vld [vmem:[%s6978 + $0x78] sm:$0xff]
    %v6995 = vld [vmem:[%s6978 + $0x80] sm:$0xff]
    %v6996 = vld [vmem:[%s6978 + $0x88] sm:$0xff]
    %v6997 = vld [vmem:[%s6978 + $0x90] sm:$0xff]
    %v6998 = vld [vmem:[%s6978 + $0x98] sm:$0xff]
    %v6999 = vld [vmem:[%s6978 + $0xa0] sm:$0xff]
    %v7000 = vld [vmem:[%s6978 + $0xa8] sm:$0xff]
    %v7001 = vld [vmem:[%s6978 + $0xb0] sm:$0xff]
    %v7002 = vld [vmem:[%s6978 + $0xb8] sm:$0xff]
    %v7003 = vld [vmem:[%s6978 + $0xc0] sm:$0xff]
    %v7004 = vld [vmem:[%s6978 + $0xc8] sm:$0xff]
    %v7005 = vld [vmem:[%s6978 + $0xd0] sm:$0xff]
    %v7006 = vld [vmem:[%s6978 + $0xd8] sm:$0xff]
    %v7007 = vld [vmem:[%s6978 + $0xe0] sm:$0xff]
    %v7008 = vld [vmem:[%s6978 + $0xe8] sm:$0xff]
    %v7009 = vld [vmem:[%s6978 + $0xf0] sm:$0xff]
    %v7010 = vld [vmem:[%s6978 + $0xf8] sm:$0xff]
    %v7011 = vpack.c.bf16 %v6976, %v6976
    %v7012 = vpack.c.bf16 %v6977, %v6977
    %s7013 = scalar_lea.vmem %s10, 20
    %v7014 = vld [vmem:[%s7013] sm:$0x3]
    %v7016 = vlaneseq
    %v7017 = vshrl.u32 %v7016, 7
    %v7018 = vsub.s32 0, %v7017
    %v7019 = vrot.slane %v7014, %v7018
    %v7020 = vlaneseq
    %v7021 = vshrl.u32 %v7020, 7
    %v7022 = vsub.s32 1, %v7021
    %v7023 = vrot.slane %v7014, %v7022
    %v7058 = vunpack.c.l.b16 %v6979
    %v7059 = vunpack.c.h.b16 %v6979
    %v7060 = vunpack.c.l.b16 %v6980
    %v7061 = vunpack.c.h.b16 %v6980
    %v7062 = vunpack.c.l.b16 %v6981
    %v7063 = vunpack.c.h.b16 %v6981
    %v7064 = vunpack.c.l.b16 %v6982
    %v7065 = vunpack.c.h.b16 %v6982
    %v7066 = vunpack.c.l.b16 %v6983
    %v7067 = vunpack.c.h.b16 %v6983
    %v7068 = vunpack.c.l.b16 %v6984
    %v7069 = vunpack.c.h.b16 %v6984
    %v7070 = vunpack.c.l.b16 %v6985
    %v7071 = vunpack.c.h.b16 %v6985
    %v7072 = vunpack.c.l.b16 %v6986
    %v7073 = vunpack.c.h.b16 %v6986
    %v7074 = vunpack.c.l.b16 %v6987
    %v7075 = vunpack.c.h.b16 %v6987
    %v7076 = vunpack.c.l.b16 %v6988
    %v7077 = vunpack.c.h.b16 %v6988
    %v7078 = vunpack.c.l.b16 %v6989
    %v7079 = vunpack.c.h.b16 %v6989
    %v7080 = vunpack.c.l.b16 %v6990
    %v7081 = vunpack.c.h.b16 %v6990
    %v7082 = vunpack.c.l.b16 %v6991
    %v7083 = vunpack.c.h.b16 %v6991
    %v7084 = vunpack.c.l.b16 %v6992
    %v7085 = vunpack.c.h.b16 %v6992
    %v7086 = vunpack.c.l.b16 %v6993
    %v7087 = vunpack.c.h.b16 %v6993
    %v7088 = vunpack.c.l.b16 %v6994
    %v7089 = vunpack.c.h.b16 %v6994
    %v7090 = vunpack.c.l.b16 %v6995
    %v7091 = vunpack.c.h.b16 %v6995
    %v7092 = vunpack.c.l.b16 %v6996
    %v7093 = vunpack.c.h.b16 %v6996
    %v7094 = vunpack.c.l.b16 %v6997
    %v7095 = vunpack.c.h.b16 %v6997
    %v7096 = vunpack.c.l.b16 %v6998
    %v7097 = vunpack.c.h.b16 %v6998
    %v7098 = vunpack.c.l.b16 %v6999
    %v7099 = vunpack.c.h.b16 %v6999
    %v7100 = vunpack.c.l.b16 %v7000
    %v7101 = vunpack.c.h.b16 %v7000
    %v7102 = vunpack.c.l.b16 %v7001
    %v7103 = vunpack.c.h.b16 %v7001
    %v7104 = vunpack.c.l.b16 %v7002
    %v7105 = vunpack.c.h.b16 %v7002
    %v7106 = vunpack.c.l.b16 %v7003
    %v7107 = vunpack.c.h.b16 %v7003
    %v7108 = vunpack.c.l.b16 %v7004
    %v7109 = vunpack.c.h.b16 %v7004
    %v7110 = vunpack.c.l.b16 %v7005
    %v7111 = vunpack.c.h.b16 %v7005
    %v7112 = vunpack.c.l.b16 %v7006
    %v7113 = vunpack.c.h.b16 %v7006
    %v7114 = vunpack.c.l.b16 %v7007
    %v7115 = vunpack.c.h.b16 %v7007
    %v7116 = vunpack.c.l.b16 %v7008
    %v7117 = vunpack.c.h.b16 %v7008
    %v7118 = vunpack.c.l.b16 %v7009
    %v7119 = vunpack.c.h.b16 %v7009
    %v7120 = vunpack.c.l.b16 %v7010
    %v7121 = vunpack.c.h.b16 %v7010
    %v7122 = vpack.c.b16 %v7060, %v7058
    %v7123 = vpack.c.b16 %v7061, %v7059
    %v7124 = vpack.c.b16 %v7064, %v7062
    %v7125 = vpack.c.b16 %v7065, %v7063
    %v7126 = vpack.c.b16 %v7068, %v7066
    %v7127 = vpack.c.b16 %v7069, %v7067
    %v7128 = vpack.c.b16 %v7072, %v7070
    %v7129 = vpack.c.b16 %v7073, %v7071
    %v7130 = vpack.c.b16 %v7076, %v7074
    %v7131 = vpack.c.b16 %v7077, %v7075
    %v7132 = vpack.c.b16 %v7080, %v7078
    %v7133 = vpack.c.b16 %v7081, %v7079
    %v7134 = vpack.c.b16 %v7084, %v7082
    %v7135 = vpack.c.b16 %v7085, %v7083
    %v7136 = vpack.c.b16 %v7088, %v7086
    %v7137 = vpack.c.b16 %v7089, %v7087
    %v7138 = vpack.c.b16 %v7092, %v7090
    %v7139 = vpack.c.b16 %v7093, %v7091
    %v7140 = vpack.c.b16 %v7096, %v7094
    %v7141 = vpack.c.b16 %v7097, %v7095
    %v7142 = vpack.c.b16 %v7100, %v7098
    %v7143 = vpack.c.b16 %v7101, %v7099
    %v7144 = vpack.c.b16 %v7104, %v7102
    %v7145 = vpack.c.b16 %v7105, %v7103
    %v7146 = vpack.c.b16 %v7108, %v7106
    %v7147 = vpack.c.b16 %v7109, %v7107
    %v7148 = vpack.c.b16 %v7112, %v7110
    %v7149 = vpack.c.b16 %v7113, %v7111
    %v7150 = vpack.c.b16 %v7116, %v7114
    %v7151 = vpack.c.b16 %v7117, %v7115
    %v7152 = vpack.c.b16 %v7120, %v7118
    %v7153 = vpack.c.b16 %v7121, %v7119
    %7186 = vmatprep.subr.bf16.mxu0 %v7123
    %7187 = vmatpush1.bf16.msra.mxu0 %v7122
    %7188 = vmatprep.subr.bf16.mxu0 %v7125
    %7189 = vmatpush1.bf16.msra.mxu0 %v7124
    %7190 = vmatprep.subr.bf16.mxu0 %v7127
    %7191 = vmatpush1.bf16.msra.mxu0 %v7126
    %7192 = vmatprep.subr.bf16.mxu0 %v7129
    %7193 = vmatpush1.bf16.msra.mxu0 %v7128
    %7194 = vmatprep.subr.bf16.mxu0 %v7131
    %7195 = vmatpush1.bf16.msra.mxu0 %v7130
    %7196 = vmatprep.subr.bf16.mxu0 %v7133
    %7197 = vmatpush1.bf16.msra.mxu0 %v7132
    %7198 = vmatprep.subr.bf16.mxu0 %v7135
    %7199 = vmatpush1.bf16.msra.mxu0 %v7134
    %7200 = vmatprep.subr.bf16.mxu0 %v7137
    %7201 = vmatpush1.bf16.msra.mxu0 %v7136
    %7202 = vmatprep.subr.bf16.mxu0 %v7139
    %7203 = vmatpush1.bf16.msra.mxu0 %v7138
    %7204 = vmatprep.subr.bf16.mxu0 %v7141
    %7205 = vmatpush1.bf16.msra.mxu0 %v7140
    %7206 = vmatprep.subr.bf16.mxu0 %v7143
    %7207 = vmatpush1.bf16.msra.mxu0 %v7142
    %7208 = vmatprep.subr.bf16.mxu0 %v7145
    %7209 = vmatpush1.bf16.msra.mxu0 %v7144
    %7210 = vmatprep.subr.bf16.mxu0 %v7147
    %7211 = vmatpush1.bf16.msra.mxu0 %v7146
    %7212 = vmatprep.subr.bf16.mxu0 %v7149
    %7213 = vmatpush1.bf16.msra.mxu0 %v7148
    %7214 = vmatprep.subr.bf16.mxu0 %v7151
    %7215 = vmatpush1.bf16.msra.mxu0 %v7150
    %7216 = vmatprep.subr.bf16.mxu0 %v7153
    %7217 = vmatpush1.bf16.msra.mxu0 %v7152
    %7218 = vmatprep.mubr.bf16.mxu0 %v7012
    %7219 = vmatmul.mubr.bf16.gmra.mrb[0].mxu0 %v7011
    %v7220 = vpop.f32.mrb[0].mxu0
    %v7221 = vadd.f32 %v7019, %v7220
    %v7222 = vpop.f32.mrb[0].mxu0
    %v7223 = vadd.f32 %v7023, %v7222
    %v7224 = vpop.f32.mrb[0].mxu0
    %v7225 = vpop.f32.mrb[0].mxu0
    %7226 = vdwg.mxu0
    %v7227 = vmax.f32 %v7221, 0.0
    %v7228 = vmax.f32 %v7223, 0.0
    %s7229 = scalar_lea.vmem %s11, 1280
    %v7230 = vld [vmem:[%s7229] sm:$0xf]
    %v7231 = vld [vmem:[%s7229 + $0x4] sm:$0xf]
    %v7232 = vld [vmem:[%s7229 + $0x8] sm:$0xf]
    %v7233 = vld [vmem:[%s7229 + $0xc] sm:$0xf]
    %v7234 = vld [vmem:[%s7229 + $0x10] sm:$0xf]
    %v7235 = vld [vmem:[%s7229 + $0x14] sm:$0xf]
    %v7236 = vld [vmem:[%s7229 + $0x18] sm:$0xf]
    %v7237 = vld [vmem:[%s7229 + $0x1c] sm:$0xf]
    %v7238 = vld [vmem:[%s7229 + $0x20] sm:$0xf]
    %v7239 = vld [vmem:[%s7229 + $0x24] sm:$0xf]
    %v7240 = vld [vmem:[%s7229 + $0x28] sm:$0xf]
    %v7241 = vld [vmem:[%s7229 + $0x2c] sm:$0xf]
    %v7242 = vld [vmem:[%s7229 + $0x30] sm:$0xf]
    %v7243 = vld [vmem:[%s7229 + $0x34] sm:$0xf]
    %v7244 = vld [vmem:[%s7229 + $0x38] sm:$0xf]
    %v7245 = vld [vmem:[%s7229 + $0x3c] sm:$0xf]
    %v7246 = vld [vmem:[%s7229 + $0x40] sm:$0xf]
    %v7247 = vld [vmem:[%s7229 + $0x44] sm:$0xf]
    %v7248 = vld [vmem:[%s7229 + $0x48] sm:$0xf]
    %v7249 = vld [vmem:[%s7229 + $0x4c] sm:$0xf]
    %v7250 = vld [vmem:[%s7229 + $0x50] sm:$0xf]
    %v7251 = vld [vmem:[%s7229 + $0x54] sm:$0xf]
    %v7252 = vld [vmem:[%s7229 + $0x58] sm:$0xf]
    %v7253 = vld [vmem:[%s7229 + $0x5c] sm:$0xf]
    %v7254 = vld [vmem:[%s7229 + $0x60] sm:$0xf]
    %v7255 = vld [vmem:[%s7229 + $0x64] sm:$0xf]
    %v7256 = vld [vmem:[%s7229 + $0x68] sm:$0xf]
    %v7257 = vld [vmem:[%s7229 + $0x6c] sm:$0xf]
    %v7258 = vld [vmem:[%s7229 + $0x70] sm:$0xf]
    %v7259 = vld [vmem:[%s7229 + $0x74] sm:$0xf]
    %v7260 = vld [vmem:[%s7229 + $0x78] sm:$0xf]
    %v7261 = vld [vmem:[%s7229 + $0x7c] sm:$0xf]
    %v7262 = vpack.c.bf16 %v7227, %v7227
    %v7263 = vpack.c.bf16 %v7228, %v7228
    %s7264 = scalar_lea.vmem %s12, 10
    %v7265 = vld [vmem:[%s7264] sm:$0x1]
    %v7267 = vlaneseq
    %v7268 = vshrl.u32 %v7267, 7
    %v7269 = vsub.s32 0, %v7268
    %v7270 = vrot.slane %v7265, %v7269
    %v7304 = vunpack.c.l.b16 %v7230
    %v7305 = vunpack.c.l.b16 %v7231
    %v7306 = vunpack.c.l.b16 %v7232
    %v7307 = vunpack.c.l.b16 %v7233
    %v7308 = vunpack.c.l.b16 %v7234
    %v7309 = vunpack.c.l.b16 %v7235
    %v7310 = vunpack.c.l.b16 %v7236
    %v7311 = vunpack.c.l.b16 %v7237
    %v7312 = vunpack.c.l.b16 %v7238
    %v7313 = vunpack.c.l.b16 %v7239
    %v7314 = vunpack.c.l.b16 %v7240
    %v7315 = vunpack.c.l.b16 %v7241
    %v7316 = vunpack.c.l.b16 %v7242
    %v7317 = vunpack.c.l.b16 %v7243
    %v7318 = vunpack.c.l.b16 %v7244
    %v7319 = vunpack.c.l.b16 %v7245
    %v7320 = vunpack.c.l.b16 %v7246
    %v7321 = vunpack.c.l.b16 %v7247
    %v7322 = vunpack.c.l.b16 %v7248
    %v7323 = vunpack.c.l.b16 %v7249
    %v7324 = vunpack.c.l.b16 %v7250
    %v7325 = vunpack.c.l.b16 %v7251
    %v7326 = vunpack.c.l.b16 %v7252
    %v7327 = vunpack.c.l.b16 %v7253
    %v7328 = vunpack.c.l.b16 %v7254
    %v7329 = vunpack.c.l.b16 %v7255
    %v7330 = vunpack.c.l.b16 %v7256
    %v7331 = vunpack.c.l.b16 %v7257
    %v7332 = vunpack.c.l.b16 %v7258
    %v7333 = vunpack.c.l.b16 %v7259
    %v7334 = vunpack.c.l.b16 %v7260
    %v7335 = vunpack.c.l.b16 %v7261
    %v7336 = vpack.c.b16 %v7305, %v7304
    %v7337 = vpack.c.b16 %v7307, %v7306
    %v7338 = vpack.c.b16 %v7309, %v7308
    %v7339 = vpack.c.b16 %v7311, %v7310
    %v7340 = vpack.c.b16 %v7313, %v7312
    %v7341 = vpack.c.b16 %v7315, %v7314
    %v7342 = vpack.c.b16 %v7317, %v7316
    %v7343 = vpack.c.b16 %v7319, %v7318
    %v7344 = vpack.c.b16 %v7321, %v7320
    %v7345 = vpack.c.b16 %v7323, %v7322
    %v7346 = vpack.c.b16 %v7325, %v7324
    %v7347 = vpack.c.b16 %v7327, %v7326
    %v7348 = vpack.c.b16 %v7329, %v7328
    %v7349 = vpack.c.b16 %v7331, %v7330
    %v7350 = vpack.c.b16 %v7333, %v7332
    %v7351 = vpack.c.b16 %v7335, %v7334
    %7368 = vmatprep.subr.bf16.mxu0 0
    %7369 = vmatpush1.bf16.msra.mxu0 %v7336
    %7370 = vmatprep.subr.bf16.mxu0 0
    %7371 = vmatpush1.bf16.msra.mxu0 %v7337
    %7372 = vmatprep.subr.bf16.mxu0 0
    %7373 = vmatpush1.bf16.msra.mxu0 %v7338
    %7374 = vmatprep.subr.bf16.mxu0 0
    %7375 = vmatpush1.bf16.msra.mxu0 %v7339
    %7376 = vmatprep.subr.bf16.mxu0 0
    %7377 = vmatpush1.bf16.msra.mxu0 %v7340
    %7378 = vmatprep.subr.bf16.mxu0 0
    %7379 = vmatpush1.bf16.msra.mxu0 %v7341
    %7380 = vmatprep.subr.bf16.mxu0 0
    %7381 = vmatpush1.bf16.msra.mxu0 %v7342
    %7382 = vmatprep.subr.bf16.mxu0 0
    %7383 = vmatpush1.bf16.msra.mxu0 %v7343
    %7384 = vmatprep.subr.bf16.mxu0 0
    %7385 = vmatpush1.bf16.msra.mxu0 %v7344
    %7386 = vmatprep.subr.bf16.mxu0 0
    %7387 = vmatpush1.bf16.msra.mxu0 %v7345
    %7388 = vmatprep.subr.bf16.mxu0 0
    %7389 = vmatpush1.bf16.msra.mxu0 %v7346
    %7390 = vmatprep.subr.bf16.mxu0 0
    %7391 = vmatpush1.bf16.msra.mxu0 %v7347
    %7392 = vmatprep.subr.bf16.mxu0 0
    %7393 = vmatpush1.bf16.msra.mxu0 %v7348
    %7394 = vmatprep.subr.bf16.mxu0 0
    %7395 = vmatpush1.bf16.msra.mxu0 %v7349
    %7396 = vmatprep.subr.bf16.mxu0 0
    %7397 = vmatpush1.bf16.msra.mxu0 %v7350
    %7398 = vmatprep.subr.bf16.mxu0 0
    %7399 = vmatpush1.bf16.msra.mxu0 %v7351
    %7400 = vmatprep.mubr.bf16.mxu0 %v7263
    %7401 = vmatmul.mubr.bf16.gmra.mrb[0].mxu0 %v7262
    %v7402 = vpop.f32.mrb[0].mxu0
    %v7403 = vadd.f32 %v7270, %v7402
    %v7404 = vpop.f32.mrb[0].mxu0
    %v7405 = vpop.f32.mrb[0].mxu0
    %v7406 = vpop.f32.mrb[0].mxu0
    %7407 = vdwg.mxu0
    %v7408 = vsub.f32 %v6891, %v7403
    %v7409 = vadd.f32 %v6892, %v7403
    %s7410 = scalar_lea.vmem %s7, 352
    %v7411 = vld [vmem:[%s7410] sm:$0xff]
    %v7412 = vld [vmem:[%s7410 + $0x8] sm:$0xff]
    %v7413 = vld [vmem:[%s7410 + $0x10] sm:$0xff]
    %v7414 = vld [vmem:[%s7410 + $0x18] sm:$0xff]
    %v7415 = vpack.c.bf16 %v7408, %v7408
    %s7416 = scalar_lea.vmem %s8, 22
    %v7417 = vld [vmem:[%s7416] sm:$0x3]
    %v7419 = vlaneseq
    %v7420 = vshrl.u32 %v7419, 7
    %v7421 = vsub.s32 0, %v7420
    %v7422 = vrot.slane %v7417, %v7421
    %v7423 = vlaneseq
    %v7424 = vshrl.u32 %v7423, 7
    %v7425 = vsub.s32 1, %v7424
    %v7426 = vrot.slane %v7417, %v7425
    %v7433 = vunpack.c.l.b16 %v7411
    %v7434 = vunpack.c.h.b16 %v7411
    %v7435 = vunpack.c.l.b16 %v7412
    %v7436 = vunpack.c.h.b16 %v7412
    %v7437 = vunpack.c.l.b16 %v7413
    %v7438 = vunpack.c.h.b16 %v7413
    %v7439 = vunpack.c.l.b16 %v7414
    %v7440 = vunpack.c.h.b16 %v7414
    %v7441 = vpack.c.b16 %v7435, %v7433
    %v7442 = vpack.c.b16 %v7436, %v7434
    %v7443 = vpack.c.b16 %v7439, %v7437
    %v7444 = vpack.c.b16 %v7440, %v7438
    %v7450 = vsel %vm638, %v7415, 0
    %7452 = vmatprep.subr.bf16.mxu0 %v7442
    %7453 = vmatpush1.bf16.msra.mxu0 %v7441
    %7454 = vmatprep.subr.bf16.mxu0 %v7444
    %7455 = vmatpush1.bf16.msra.mxu0 %v7443
    %7456 = vmatprep.subr.bf16.mxu0 0
    %7457 = vmatpush1.bf16.msra.mxu0 0
    %7458 = vmatprep.subr.bf16.mxu0 0
    %7459 = vmatpush1.bf16.msra.mxu0 0
    %7460 = vmatprep.subr.bf16.mxu0 0
    %7461 = vmatpush1.bf16.msra.mxu0 0
    %7462 = vmatprep.subr.bf16.mxu0 0
    %7463 = vmatpush1.bf16.msra.mxu0 0
    %7464 = vmatprep.subr.bf16.mxu0 0
    %7465 = vmatpush1.bf16.msra.mxu0 0
    %7466 = vmatprep.subr.bf16.mxu0 0
    %7467 = vmatpush1.bf16.msra.mxu0 0
    %7468 = vmatprep.subr.bf16.mxu0 0
    %7469 = vmatpush1.bf16.msra.mxu0 0
    %7470 = vmatprep.subr.bf16.mxu0 0
    %7471 = vmatpush1.bf16.msra.mxu0 0
    %7472 = vmatprep.subr.bf16.mxu0 0
    %7473 = vmatpush1.bf16.msra.mxu0 0
    %7474 = vmatprep.subr.bf16.mxu0 0
    %7475 = vmatpush1.bf16.msra.mxu0 0
    %7476 = vmatprep.subr.bf16.mxu0 0
    %7477 = vmatpush1.bf16.msra.mxu0 0
    %7478 = vmatprep.subr.bf16.mxu0 0
    %7479 = vmatpush1.bf16.msra.mxu0 0
    %7480 = vmatprep.subr.bf16.mxu0 0
    %7481 = vmatpush1.bf16.msra.mxu0 0
    %7482 = vmatprep.subr.bf16.mxu0 0
    %7483 = vmatpush1.bf16.msra.mxu0 0
    %7484 = vmatprep.mubr.bf16.mxu0 0
    %7485 = vmatmul.mubr.bf16.gmra.mrb[0].mxu0 %v7450
    %v7486 = vpop.f32.mrb[0].mxu0
    %v7487 = vadd.f32 %v7422, %v7486
    %v7488 = vpop.f32.mrb[0].mxu0
    %v7489 = vadd.f32 %v7426, %v7488
    %v7490 = vpop.f32.mrb[0].mxu0
    %v7491 = vpop.f32.mrb[0].mxu0
    %7492 = vdwg.mxu0
    %v7493 = vmax.f32 %v7487, 0.0
    %v7494 = vmax.f32 %v7489, 0.0
    %s7495 = scalar_lea.vmem %s9, 2816
    %v7496 = vld [vmem:[%s7495] sm:$0xff]
    %v7497 = vld [vmem:[%s7495 + $0x8] sm:$0xff]
    %v7498 = vld [vmem:[%s7495 + $0x10] sm:$0xff]
    %v7499 = vld [vmem:[%s7495 + $0x18] sm:$0xff]
    %v7500 = vld [vmem:[%s7495 + $0x20] sm:$0xff]
    %v7501 = vld [vmem:[%s7495 + $0x28] sm:$0xff]
    %v7502 = vld [vmem:[%s7495 + $0x30] sm:$0xff]
    %v7503 = vld [vmem:[%s7495 + $0x38] sm:$0xff]
    %v7504 = vld [vmem:[%s7495 + $0x40] sm:$0xff]
    %v7505 = vld [vmem:[%s7495 + $0x48] sm:$0xff]
    %v7506 = vld [vmem:[%s7495 + $0x50] sm:$0xff]
    %v7507 = vld [vmem:[%s7495 + $0x58] sm:$0xff]
    %v7508 = vld [vmem:[%s7495 + $0x60] sm:$0xff]
    %v7509 = vld [vmem:[%s7495 + $0x68] sm:$0xff]
    %v7510 = vld [vmem:[%s7495 + $0x70] sm:$0xff]
    %v7511 = vld [vmem:[%s7495 + $0x78] sm:$0xff]
    %v7512 = vld [vmem:[%s7495 + $0x80] sm:$0xff]
    %v7513 = vld [vmem:[%s7495 + $0x88] sm:$0xff]
    %v7514 = vld [vmem:[%s7495 + $0x90] sm:$0xff]
    %v7515 = vld [vmem:[%s7495 + $0x98] sm:$0xff]
    %v7516 = vld [vmem:[%s7495 + $0xa0] sm:$0xff]
    %v7517 = vld [vmem:[%s7495 + $0xa8] sm:$0xff]
    %v7518 = vld [vmem:[%s7495 + $0xb0] sm:$0xff]
    %v7519 = vld [vmem:[%s7495 + $0xb8] sm:$0xff]
    %v7520 = vld [vmem:[%s7495 + $0xc0] sm:$0xff]
    %v7521 = vld [vmem:[%s7495 + $0xc8] sm:$0xff]
    %v7522 = vld [vmem:[%s7495 + $0xd0] sm:$0xff]
    %v7523 = vld [vmem:[%s7495 + $0xd8] sm:$0xff]
    %v7524 = vld [vmem:[%s7495 + $0xe0] sm:$0xff]
    %v7525 = vld [vmem:[%s7495 + $0xe8] sm:$0xff]
    %v7526 = vld [vmem:[%s7495 + $0xf0] sm:$0xff]
    %v7527 = vld [vmem:[%s7495 + $0xf8] sm:$0xff]
    %v7528 = vpack.c.bf16 %v7493, %v7493
    %v7529 = vpack.c.bf16 %v7494, %v7494
    %s7530 = scalar_lea.vmem %s10, 22
    %v7531 = vld [vmem:[%s7530] sm:$0x3]
    %v7533 = vlaneseq
    %v7534 = vshrl.u32 %v7533, 7
    %v7535 = vsub.s32 0, %v7534
    %v7536 = vrot.slane %v7531, %v7535
    %v7537 = vlaneseq
    %v7538 = vshrl.u32 %v7537, 7
    %v7539 = vsub.s32 1, %v7538
    %v7540 = vrot.slane %v7531, %v7539
    %v7575 = vunpack.c.l.b16 %v7496
    %v7576 = vunpack.c.h.b16 %v7496
    %v7577 = vunpack.c.l.b16 %v7497
    %v7578 = vunpack.c.h.b16 %v7497
    %v7579 = vunpack.c.l.b16 %v7498
    %v7580 = vunpack.c.h.b16 %v7498
    %v7581 = vunpack.c.l.b16 %v7499
    %v7582 = vunpack.c.h.b16 %v7499
    %v7583 = vunpack.c.l.b16 %v7500
    %v7584 = vunpack.c.h.b16 %v7500
    %v7585 = vunpack.c.l.b16 %v7501
    %v7586 = vunpack.c.h.b16 %v7501
    %v7587 = vunpack.c.l.b16 %v7502
    %v7588 = vunpack.c.h.b16 %v7502
    %v7589 = vunpack.c.l.b16 %v7503
    %v7590 = vunpack.c.h.b16 %v7503
    %v7591 = vunpack.c.l.b16 %v7504
    %v7592 = vunpack.c.h.b16 %v7504
    %v7593 = vunpack.c.l.b16 %v7505
    %v7594 = vunpack.c.h.b16 %v7505
    %v7595 = vunpack.c.l.b16 %v7506
    %v7596 = vunpack.c.h.b16 %v7506
    %v7597 = vunpack.c.l.b16 %v7507
    %v7598 = vunpack.c.h.b16 %v7507
    %v7599 = vunpack.c.l.b16 %v7508
    %v7600 = vunpack.c.h.b16 %v7508
    %v7601 = vunpack.c.l.b16 %v7509
    %v7602 = vunpack.c.h.b16 %v7509
    %v7603 = vunpack.c.l.b16 %v7510
    %v7604 = vunpack.c.h.b16 %v7510
    %v7605 = vunpack.c.l.b16 %v7511
    %v7606 = vunpack.c.h.b16 %v7511
    %v7607 = vunpack.c.l.b16 %v7512
    %v7608 = vunpack.c.h.b16 %v7512
    %v7609 = vunpack.c.l.b16 %v7513
    %v7610 = vunpack.c.h.b16 %v7513
    %v7611 = vunpack.c.l.b16 %v7514
    %v7612 = vunpack.c.h.b16 %v7514
    %v7613 = vunpack.c.l.b16 %v7515
    %v7614 = vunpack.c.h.b16 %v7515
    %v7615 = vunpack.c.l.b16 %v7516
    %v7616 = vunpack.c.h.b16 %v7516
    %v7617 = vunpack.c.l.b16 %v7517
    %v7618 = vunpack.c.h.b16 %v7517
    %v7619 = vunpack.c.l.b16 %v7518
    %v7620 = vunpack.c.h.b16 %v7518
    %v7621 = vunpack.c.l.b16 %v7519
    %v7622 = vunpack.c.h.b16 %v7519
    %v7623 = vunpack.c.l.b16 %v7520
    %v7624 = vunpack.c.h.b16 %v7520
    %v7625 = vunpack.c.l.b16 %v7521
    %v7626 = vunpack.c.h.b16 %v7521
    %v7627 = vunpack.c.l.b16 %v7522
    %v7628 = vunpack.c.h.b16 %v7522
    %v7629 = vunpack.c.l.b16 %v7523
    %v7630 = vunpack.c.h.b16 %v7523
    %v7631 = vunpack.c.l.b16 %v7524
    %v7632 = vunpack.c.h.b16 %v7524
    %v7633 = vunpack.c.l.b16 %v7525
    %v7634 = vunpack.c.h.b16 %v7525
    %v7635 = vunpack.c.l.b16 %v7526
    %v7636 = vunpack.c.h.b16 %v7526
    %v7637 = vunpack.c.l.b16 %v7527
    %v7638 = vunpack.c.h.b16 %v7527
    %v7639 = vpack.c.b16 %v7577, %v7575
    %v7640 = vpack.c.b16 %v7578, %v7576
    %v7641 = vpack.c.b16 %v7581, %v7579
    %v7642 = vpack.c.b16 %v7582, %v7580
    %v7643 = vpack.c.b16 %v7585, %v7583
    %v7644 = vpack.c.b16 %v7586, %v7584
    %v7645 = vpack.c.b16 %v7589, %v7587
    %v7646 = vpack.c.b16 %v7590, %v7588
    %v7647 = vpack.c.b16 %v7593, %v7591
    %v7648 = vpack.c.b16 %v7594, %v7592
    %v7649 = vpack.c.b16 %v7597, %v7595
    %v7650 = vpack.c.b16 %v7598, %v7596
    %v7651 = vpack.c.b16 %v7601, %v7599
    %v7652 = vpack.c.b16 %v7602, %v7600
    %v7653 = vpack.c.b16 %v7605, %v7603
    %v7654 = vpack.c.b16 %v7606, %v7604
    %v7655 = vpack.c.b16 %v7609, %v7607
    %v7656 = vpack.c.b16 %v7610, %v7608
    %v7657 = vpack.c.b16 %v7613, %v7611
    %v7658 = vpack.c.b16 %v7614, %v7612
    %v7659 = vpack.c.b16 %v7617, %v7615
    %v7660 = vpack.c.b16 %v7618, %v7616
    %v7661 = vpack.c.b16 %v7621, %v7619
    %v7662 = vpack.c.b16 %v7622, %v7620
    %v7663 = vpack.c.b16 %v7625, %v7623
    %v7664 = vpack.c.b16 %v7626, %v7624
    %v7665 = vpack.c.b16 %v7629, %v7627
    %v7666 = vpack.c.b16 %v7630, %v7628
    %v7667 = vpack.c.b16 %v7633, %v7631
    %v7668 = vpack.c.b16 %v7634, %v7632
    %v7669 = vpack.c.b16 %v7637, %v7635
    %v7670 = vpack.c.b16 %v7638, %v7636
    %7703 = vmatprep.subr.bf16.mxu0 %v7640
    %7704 = vmatpush1.bf16.msra.mxu0 %v7639
    %7705 = vmatprep.subr.bf16.mxu0 %v7642
    %7706 = vmatpush1.bf16.msra.mxu0 %v7641
    %7707 = vmatprep.subr.bf16.mxu0 %v7644
    %7708 = vmatpush1.bf16.msra.mxu0 %v7643
    %7709 = vmatprep.subr.bf16.mxu0 %v7646
    %7710 = vmatpush1.bf16.msra.mxu0 %v7645
    %7711 = vmatprep.subr.bf16.mxu0 %v7648
    %7712 = vmatpush1.bf16.msra.mxu0 %v7647
    %7713 = vmatprep.subr.bf16.mxu0 %v7650
    %7714 = vmatpush1.bf16.msra.mxu0 %v7649
    %7715 = vmatprep.subr.bf16.mxu0 %v7652
    %7716 = vmatpush1.bf16.msra.mxu0 %v7651
    %7717 = vmatprep.subr.bf16.mxu0 %v7654
    %7718 = vmatpush1.bf16.msra.mxu0 %v7653
    %7719 = vmatprep.subr.bf16.mxu0 %v7656
    %7720 = vmatpush1.bf16.msra.mxu0 %v7655
    %7721 = vmatprep.subr.bf16.mxu0 %v7658
    %7722 = vmatpush1.bf16.msra.mxu0 %v7657
    %7723 = vmatprep.subr.bf16.mxu0 %v7660
    %7724 = vmatpush1.bf16.msra.mxu0 %v7659
    %7725 = vmatprep.subr.bf16.mxu0 %v7662
    %7726 = vmatpush1.bf16.msra.mxu0 %v7661
    %7727 = vmatprep.subr.bf16.mxu0 %v7664
    %7728 = vmatpush1.bf16.msra.mxu0 %v7663
    %7729 = vmatprep.subr.bf16.mxu0 %v7666
    %7730 = vmatpush1.bf16.msra.mxu0 %v7665
    %7731 = vmatprep.subr.bf16.mxu0 %v7668
    %7732 = vmatpush1.bf16.msra.mxu0 %v7667
    %7733 = vmatprep.subr.bf16.mxu0 %v7670
    %7734 = vmatpush1.bf16.msra.mxu0 %v7669
    %7735 = vmatprep.mubr.bf16.mxu0 %v7529
    %7736 = vmatmul.mubr.bf16.gmra.mrb[0].mxu0 %v7528
    %v7737 = vpop.f32.mrb[0].mxu0
    %v7738 = vadd.f32 %v7536, %v7737
    %v7739 = vpop.f32.mrb[0].mxu0
    %v7740 = vadd.f32 %v7540, %v7739
    %v7741 = vpop.f32.mrb[0].mxu0
    %v7742 = vpop.f32.mrb[0].mxu0
    %7743 = vdwg.mxu0
    %v7744 = vmax.f32 %v7738, 0.0
    %v7745 = vmax.f32 %v7740, 0.0
    %s7746 = scalar_lea.vmem %s11, 1408
    %v7747 = vld [vmem:[%s7746] sm:$0xf]
    %v7748 = vld [vmem:[%s7746 + $0x4] sm:$0xf]
    %v7749 = vld [vmem:[%s7746 + $0x8] sm:$0xf]
    %v7750 = vld [vmem:[%s7746 + $0xc] sm:$0xf]
    %v7751 = vld [vmem:[%s7746 + $0x10] sm:$0xf]
    %v7752 = vld [vmem:[%s7746 + $0x14] sm:$0xf]
    %v7753 = vld [vmem:[%s7746 + $0x18] sm:$0xf]
    %v7754 = vld [vmem:[%s7746 + $0x1c] sm:$0xf]
    %v7755 = vld [vmem:[%s7746 + $0x20] sm:$0xf]
    %v7756 = vld [vmem:[%s7746 + $0x24] sm:$0xf]
    %v7757 = vld [vmem:[%s7746 + $0x28] sm:$0xf]
    %v7758 = vld [vmem:[%s7746 + $0x2c] sm:$0xf]
    %v7759 = vld [vmem:[%s7746 + $0x30] sm:$0xf]
    %v7760 = vld [vmem:[%s7746 + $0x34] sm:$0xf]
    %v7761 = vld [vmem:[%s7746 + $0x38] sm:$0xf]
    %v7762 = vld [vmem:[%s7746 + $0x3c] sm:$0xf]
    %v7763 = vld [vmem:[%s7746 + $0x40] sm:$0xf]
    %v7764 = vld [vmem:[%s7746 + $0x44] sm:$0xf]
    %v7765 = vld [vmem:[%s7746 + $0x48] sm:$0xf]
    %v7766 = vld [vmem:[%s7746 + $0x4c] sm:$0xf]
    %v7767 = vld [vmem:[%s7746 + $0x50] sm:$0xf]
    %v7768 = vld [vmem:[%s7746 + $0x54] sm:$0xf]
    %v7769 = vld [vmem:[%s7746 + $0x58] sm:$0xf]
    %v7770 = vld [vmem:[%s7746 + $0x5c] sm:$0xf]
    %v7771 = vld [vmem:[%s7746 + $0x60] sm:$0xf]
    %v7772 = vld [vmem:[%s7746 + $0x64] sm:$0xf]
    %v7773 = vld [vmem:[%s7746 + $0x68] sm:$0xf]
    %v7774 = vld [vmem:[%s7746 + $0x6c] sm:$0xf]
    %v7775 = vld [vmem:[%s7746 + $0x70] sm:$0xf]
    %v7776 = vld [vmem:[%s7746 + $0x74] sm:$0xf]
    %v7777 = vld [vmem:[%s7746 + $0x78] sm:$0xf]
    %v7778 = vld [vmem:[%s7746 + $0x7c] sm:$0xf]
    %v7779 = vpack.c.bf16 %v7744, %v7744
    %v7780 = vpack.c.bf16 %v7745, %v7745
    %s7781 = scalar_lea.vmem %s12, 11
    %v7782 = vld [vmem:[%s7781] sm:$0x1]
    %v7784 = vlaneseq
    %v7785 = vshrl.u32 %v7784, 7
    %v7786 = vsub.s32 0, %v7785
    %v7787 = vrot.slane %v7782, %v7786
    %v7821 = vunpack.c.l.b16 %v7747
    %v7822 = vunpack.c.l.b16 %v7748
    %v7823 = vunpack.c.l.b16 %v7749
    %v7824 = vunpack.c.l.b16 %v7750
    %v7825 = vunpack.c.l.b16 %v7751
    %v7826 = vunpack.c.l.b16 %v7752
    %v7827 = vunpack.c.l.b16 %v7753
    %v7828 = vunpack.c.l.b16 %v7754
    %v7829 = vunpack.c.l.b16 %v7755
    %v7830 = vunpack.c.l.b16 %v7756
    %v7831 = vunpack.c.l.b16 %v7757
    %v7832 = vunpack.c.l.b16 %v7758
    %v7833 = vunpack.c.l.b16 %v7759
    %v7834 = vunpack.c.l.b16 %v7760
    %v7835 = vunpack.c.l.b16 %v7761
    %v7836 = vunpack.c.l.b16 %v7762
    %v7837 = vunpack.c.l.b16 %v7763
    %v7838 = vunpack.c.l.b16 %v7764
    %v7839 = vunpack.c.l.b16 %v7765
    %v7840 = vunpack.c.l.b16 %v7766
    %v7841 = vunpack.c.l.b16 %v7767
    %v7842 = vunpack.c.l.b16 %v7768
    %v7843 = vunpack.c.l.b16 %v7769
    %v7844 = vunpack.c.l.b16 %v7770
    %v7845 = vunpack.c.l.b16 %v7771
    %v7846 = vunpack.c.l.b16 %v7772
    %v7847 = vunpack.c.l.b16 %v7773
    %v7848 = vunpack.c.l.b16 %v7774
    %v7849 = vunpack.c.l.b16 %v7775
    %v7850 = vunpack.c.l.b16 %v7776
    %v7851 = vunpack.c.l.b16 %v7777
    %v7852 = vunpack.c.l.b16 %v7778
    %v7853 = vpack.c.b16 %v7822, %v7821
    %v7854 = vpack.c.b16 %v7824, %v7823
    %v7855 = vpack.c.b16 %v7826, %v7825
    %v7856 = vpack.c.b16 %v7828, %v7827
    %v7857 = vpack.c.b16 %v7830, %v7829
    %v7858 = vpack.c.b16 %v7832, %v7831
    %v7859 = vpack.c.b16 %v7834, %v7833
    %v7860 = vpack.c.b16 %v7836, %v7835
    %v7861 = vpack.c.b16 %v7838, %v7837
    %v7862 = vpack.c.b16 %v7840, %v7839
    %v7863 = vpack.c.b16 %v7842, %v7841
    %v7864 = vpack.c.b16 %v7844, %v7843
    %v7865 = vpack.c.b16 %v7846, %v7845
    %v7866 = vpack.c.b16 %v7848, %v7847
    %v7867 = vpack.c.b16 %v7850, %v7849
    %v7868 = vpack.c.b16 %v7852, %v7851
    %7885 = vmatprep.subr.bf16.mxu0 0
    %7886 = vmatpush1.bf16.msra.mxu0 %v7853
    %7887 = vmatprep.subr.bf16.mxu0 0
    %7888 = vmatpush1.bf16.msra.mxu0 %v7854
    %7889 = vmatprep.subr.bf16.mxu0 0
    %7890 = vmatpush1.bf16.msra.mxu0 %v7855
    %7891 = vmatprep.subr.bf16.mxu0 0
    %7892 = vmatpush1.bf16.msra.mxu0 %v7856
    %7893 = vmatprep.subr.bf16.mxu0 0
    %7894 = vmatpush1.bf16.msra.mxu0 %v7857
    %7895 = vmatprep.subr.bf16.mxu0 0
    %7896 = vmatpush1.bf16.msra.mxu0 %v7858
    %7897 = vmatprep.subr.bf16.mxu0 0
    %7898 = vmatpush1.bf16.msra.mxu0 %v7859
    %7899 = vmatprep.subr.bf16.mxu0 0
    %7900 = vmatpush1.bf16.msra.mxu0 %v7860
    %7901 = vmatprep.subr.bf16.mxu0 0
    %7902 = vmatpush1.bf16.msra.mxu0 %v7861
    %7903 = vmatprep.subr.bf16.mxu0 0
    %7904 = vmatpush1.bf16.msra.mxu0 %v7862
    %7905 = vmatprep.subr.bf16.mxu0 0
    %7906 = vmatpush1.bf16.msra.mxu0 %v7863
    %7907 = vmatprep.subr.bf16.mxu0 0
    %7908 = vmatpush1.bf16.msra.mxu0 %v7864
    %7909 = vmatprep.subr.bf16.mxu0 0
    %7910 = vmatpush1.bf16.msra.mxu0 %v7865
    %7911 = vmatprep.subr.bf16.mxu0 0
    %7912 = vmatpush1.bf16.msra.mxu0 %v7866
    %7913 = vmatprep.subr.bf16.mxu0 0
    %7914 = vmatpush1.bf16.msra.mxu0 %v7867
    %7915 = vmatprep.subr.bf16.mxu0 0
    %7916 = vmatpush1.bf16.msra.mxu0 %v7868
    %7917 = vmatprep.mubr.bf16.mxu0 %v7780
    %7918 = vmatmul.mubr.bf16.gmra.mrb[0].mxu0 %v7779
    %v7919 = vpop.f32.mrb[0].mxu0
    %v7920 = vadd.f32 %v7787, %v7919
    %v7921 = vpop.f32.mrb[0].mxu0
    %v7922 = vpop.f32.mrb[0].mxu0
    %v7923 = vpop.f32.mrb[0].mxu0
    %7924 = vdwg.mxu0
    %v7925 = vsub.f32 %v7408, %v7920
    %v7926 = vadd.f32 %v7409, %v7920
    %v7927 = vsub.f32 %v3268, %v5335
    %v7929 = vsel %vm638, %v7927, 0
    %7931 = vmatprep.subr.mxu0 0.0
    %7932 = vmatpush1.msra.mxu0 %v71
    %7933 = vmatprep.subr.mxu0 0.0
    %7934 = vmatpush1.msra.mxu0 %v72
    %7935 = vmatprep.subr.mxu0 0.0
    %7936 = vmatpush1.msra.mxu0 %v73
    %7937 = vmatprep.subr.mxu0 0.0
    %7938 = vmatpush1.msra.mxu0 %v74
    %7939 = vmatprep.subr.mxu0 0.0
    %7940 = vmatpush1.msra.mxu0 0.0
    %7941 = vmatprep.subr.mxu0 0.0
    %7942 = vmatpush1.msra.mxu0 0.0
    %7943 = vmatprep.subr.mxu0 0.0
    %7944 = vmatpush1.msra.mxu0 0.0
    %7945 = vmatprep.subr.mxu0 0.0
    %7946 = vmatpush1.msra.mxu0 0.0
    %7947 = vmatprep.subr.mxu0 0.0
    %7948 = vmatpush1.msra.mxu0 0.0
    %7949 = vmatprep.subr.mxu0 0.0
    %7950 = vmatpush1.msra.mxu0 0.0
    %7951 = vmatprep.subr.mxu0 0.0
    %7952 = vmatpush1.msra.mxu0 0.0
    %7953 = vmatprep.subr.mxu0 0.0
    %7954 = vmatpush1.msra.mxu0 0.0
    %7955 = vmatprep.subr.mxu0 0.0
    %7956 = vmatpush1.msra.mxu0 0.0
    %7957 = vmatprep.subr.mxu0 0.0
    %7958 = vmatpush1.msra.mxu0 0.0
    %7959 = vmatprep.subr.mxu0 0.0
    %7960 = vmatpush1.msra.mxu0 0.0
    %7961 = vmatprep.subr.mxu0 0.0
    %7962 = vmatpush1.msra.mxu0 0.0
    %7963 = vmatprep.subr.mxu0 0.0
    %7964 = vmatpush1.msra.mxu0 0.0
    %7965 = vmatprep.subr.mxu0 0.0
    %7966 = vmatpush1.msra.mxu0 0.0
    %7967 = vmatprep.subr.mxu0 0.0
    %7968 = vmatpush1.msra.mxu0 0.0
    %7969 = vmatprep.subr.mxu0 0.0
    %7970 = vmatpush1.msra.mxu0 0.0
    %7971 = vmatprep.subr.mxu0 0.0
    %7972 = vmatpush1.msra.mxu0 0.0
    %7973 = vmatprep.subr.mxu0 0.0
    %7974 = vmatpush1.msra.mxu0 0.0
    %7975 = vmatprep.subr.mxu0 0.0
    %7976 = vmatpush1.msra.mxu0 0.0
    %7977 = vmatprep.subr.mxu0 0.0
    %7978 = vmatpush1.msra.mxu0 0.0
    %7979 = vmatprep.subr.mxu0 0.0
    %7980 = vmatpush1.msra.mxu0 0.0
    %7981 = vmatprep.subr.mxu0 0.0
    %7982 = vmatpush1.msra.mxu0 0.0
    %7983 = vmatprep.subr.mxu0 0.0
    %7984 = vmatpush1.msra.mxu0 0.0
    %7985 = vmatprep.subr.mxu0 0.0
    %7986 = vmatpush1.msra.mxu0 0.0
    %7987 = vmatprep.subr.mxu0 0.0
    %7988 = vmatpush1.msra.mxu0 0.0
    %7989 = vmatprep.subr.mxu0 0.0
    %7990 = vmatpush1.msra.mxu0 0.0
    %7991 = vmatprep.subr.mxu0 0.0
    %7992 = vmatpush1.msra.mxu0 0.0
    %7993 = vmatprep.subr.mxu0 0.0
    %7994 = vmatpush1.msra.mxu0 0.0
    %7995 = vmatprep.mubr.f32.mxu0 0.0
    %7996 = vmatmul.mubr.f32.gmra.mrb[0].mxu0 %v7929
    %v7997 = vpop.f32.mrb[0].mxu0
    %v7998 = vadd.f32 0.0, %v7997
    %v7999 = vpop.f32.mrb[0].mxu0
    %8000 = vdwg.mxu0
    %v8001 = vsub.f32 %v5858, %v7925
    %v8003 = vsel %vm638, %v8001, 0
    %8005 = vmatprep.subr.mxu0 0.0
    %8006 = vmatpush1.msra.mxu0 %v71
    %8007 = vmatprep.subr.mxu0 0.0
    %8008 = vmatpush1.msra.mxu0 %v72
    %8009 = vmatprep.subr.mxu0 0.0
    %8010 = vmatpush1.msra.mxu0 %v73
    %8011 = vmatprep.subr.mxu0 0.0
    %8012 = vmatpush1.msra.mxu0 %v74
    %8013 = vmatprep.subr.mxu0 0.0
    %8014 = vmatpush1.msra.mxu0 0.0
    %8015 = vmatprep.subr.mxu0 0.0
    %8016 = vmatpush1.msra.mxu0 0.0
    %8017 = vmatprep.subr.mxu0 0.0
    %8018 = vmatpush1.msra.mxu0 0.0
    %8019 = vmatprep.subr.mxu0 0.0
    %8020 = vmatpush1.msra.mxu0 0.0
    %8021 = vmatprep.subr.mxu0 0.0
    %8022 = vmatpush1.msra.mxu0 0.0
    %8023 = vmatprep.subr.mxu0 0.0
    %8024 = vmatpush1.msra.mxu0 0.0
    %8025 = vmatprep.subr.mxu0 0.0
    %8026 = vmatpush1.msra.mxu0 0.0
    %8027 = vmatprep.subr.mxu0 0.0
    %8028 = vmatpush1.msra.mxu0 0.0
    %8029 = vmatprep.subr.mxu0 0.0
    %8030 = vmatpush1.msra.mxu0 0.0
    %8031 = vmatprep.subr.mxu0 0.0
    %8032 = vmatpush1.msra.mxu0 0.0
    %8033 = vmatprep.subr.mxu0 0.0
    %8034 = vmatpush1.msra.mxu0 0.0
    %8035 = vmatprep.subr.mxu0 0.0
    %8036 = vmatpush1.msra.mxu0 0.0
    %8037 = vmatprep.subr.mxu0 0.0
    %8038 = vmatpush1.msra.mxu0 0.0
    %8039 = vmatprep.subr.mxu0 0.0
    %8040 = vmatpush1.msra.mxu0 0.0
    %8041 = vmatprep.subr.mxu0 0.0
    %8042 = vmatpush1.msra.mxu0 0.0
    %8043 = vmatprep.subr.mxu0 0.0
    %8044 = vmatpush1.msra.mxu0 0.0
    %8045 = vmatprep.subr.mxu0 0.0
    %8046 = vmatpush1.msra.mxu0 0.0
    %8047 = vmatprep.subr.mxu0 0.0
    %8048 = vmatpush1.msra.mxu0 0.0
    %8049 = vmatprep.subr.mxu0 0.0
    %8050 = vmatpush1.msra.mxu0 0.0
    %8051 = vmatprep.subr.mxu0 0.0
    %8052 = vmatpush1.msra.mxu0 0.0
    %8053 = vmatprep.subr.mxu0 0.0
    %8054 = vmatpush1.msra.mxu0 0.0
    %8055 = vmatprep.subr.mxu0 0.0
    %8056 = vmatpush1.msra.mxu0 0.0
    %8057 = vmatprep.subr.mxu0 0.0
    %8058 = vmatpush1.msra.mxu0 0.0
    %8059 = vmatprep.subr.mxu0 0.0
    %8060 = vmatpush1.msra.mxu0 0.0
    %8061 = vmatprep.subr.mxu0 0.0
    %8062 = vmatpush1.msra.mxu0 0.0
    %8063 = vmatprep.subr.mxu0 0.0
    %8064 = vmatpush1.msra.mxu0 0.0
    %8065 = vmatprep.subr.mxu0 0.0
    %8066 = vmatpush1.msra.mxu0 0.0
    %8067 = vmatprep.subr.mxu0 0.0
    %8068 = vmatpush1.msra.mxu0 0.0
    %8069 = vmatprep.mubr.f32.mxu0 0.0
    %8070 = vmatmul.mubr.f32.gmra.mrb[0].mxu0 %v8003
    %v8071 = vpop.f32.mrb[0].mxu0
    %v8072 = vadd.f32 0.0, %v8071
    %v8073 = vpop.f32.mrb[0].mxu0
    %8074 = vdwg.mxu0
    %v8075 = vadd.f32 %v2663, %v5336
    %v8076 = vadd.f32 %v8075, %v7926
    %v8077 = vmul.f32 %v8076, 0.041666668
    %v8078 = vadd.f32 %v2737, %v7998
    %v8079 = vadd.f32 %v8078, %v8072
    %v8080 = vmul.f32 %v8079, 0.2
    %8082 = vrot.lane.b32.xlu0 %v8077, 96
    %v8083 = vpop.permute.xlu0 %8082
    %vm8085 = vcmask 60416
    %8086 = vst.msk [vmem:[#allocation2] sm:$0xf] %vm8085, %v8083
    %v8087 = vld [vmem:[%s14] sm:$0xf]
    %v8088 = vpack.c.bf16 %v8077, %v8077
    %v8089 = vld [vmem:[%s15] sm:$0x1]
    %v8091 = vlaneseq
    %v8092 = vshrl.u32 %v8091, 7
    %v8093 = vsub.s32 0, %v8092
    %v8094 = vrot.slane %v8089, %v8093
    %8097 = vrot.lane.b32.xlu0 %v8088, 96
    %v8098 = vpop.permute.xlu0 %8097
    %vm8099 = vcmask 64512
    %v8101 = vsel %vm8099, %v8098, 0
    %vm8103 = vcmask 1043456
    %v8105 = vsel %vm8103, %v8087, 0
    %8107 = vmatprep.subr.bf16.mxu0 0
    %8108 = vmatpush1.bf16.msra.mxu0 %v8105
    %8109 = vmatprep.subr.bf16.mxu0 0
    %8110 = vmatpush1.bf16.msra.mxu0 0
    %8111 = vmatprep.subr.bf16.mxu0 0
    %8112 = vmatpush1.bf16.msra.mxu0 0
    %8113 = vmatprep.subr.bf16.mxu0 0
    %8114 = vmatpush1.bf16.msra.mxu0 0
    %8115 = vmatprep.subr.bf16.mxu0 0
    %8116 = vmatpush1.bf16.msra.mxu0 0
    %8117 = vmatprep.subr.bf16.mxu0 0
    %8118 = vmatpush1.bf16.msra.mxu0 0
    %8119 = vmatprep.subr.bf16.mxu0 0
    %8120 = vmatpush1.bf16.msra.mxu0 0
    %8121 = vmatprep.subr.bf16.mxu0 0
    %8122 = vmatpush1.bf16.msra.mxu0 0
    %8123 = vmatprep.subr.bf16.mxu0 0
    %8124 = vmatpush1.bf16.msra.mxu0 0
    %8125 = vmatprep.subr.bf16.mxu0 0
    %8126 = vmatpush1.bf16.msra.mxu0 0
    %8127 = vmatprep.subr.bf16.mxu0 0
    %8128 = vmatpush1.bf16.msra.mxu0 0
    %8129 = vmatprep.subr.bf16.mxu0 0
    %8130 = vmatpush1.bf16.msra.mxu0 0
    %8131 = vmatprep.subr.bf16.mxu0 0
    %8132 = vmatpush1.bf16.msra.mxu0 0
    %8133 = vmatprep.subr.bf16.mxu0 0
    %8134 = vmatpush1.bf16.msra.mxu0 0
    %8135 = vmatprep.subr.bf16.mxu0 0
    %8136 = vmatpush1.bf16.msra.mxu0 0
    %8137 = vmatprep.subr.bf16.mxu0 0
    %8138 = vmatpush1.bf16.msra.mxu0 0
    %8139 = vmatprep.mubr.bf16.mxu0 0
    %8140 = vmatmul.mubr.bf16.gmra.mrb[0].mxu0 %v8101
    %v8141 = vpop.f32.mrb[0].mxu0
    %v8142 = vadd.f32 %v8094, %v8141
    %v8143 = vpop.f32.mrb[0].mxu0
    %v8144 = vpop.f32.mrb[0].mxu0
    %v8145 = vpop.f32.mrb[0].mxu0
    %8146 = vdwg.mxu0
    %v8147 = vmax.f32 %v8142, 0.0
    %v8148 = vld [vmem:[%s16] sm:$0xf]
    %v8149 = vld [vmem:[%s16 + $0x4] sm:$0xf]
    %v8150 = vld [vmem:[%s16 + $0x8] sm:$0xf]
    %v8151 = vld [vmem:[%s16 + $0xc] sm:$0xf]
    %v8152 = vld [vmem:[%s16 + $0x10] sm:$0xf]
    %v8153 = vld [vmem:[%s16 + $0x14] sm:$0xf]
    %v8154 = vld [vmem:[%s16 + $0x18] sm:$0xf]
    %v8155 = vld [vmem:[%s16 + $0x1c] sm:$0xf]
    %v8156 = vld [vmem:[%s16 + $0x20] sm:$0xf]
    %v8157 = vld [vmem:[%s16 + $0x24] sm:$0xf]
    %v8158 = vld [vmem:[%s16 + $0x28] sm:$0xf]
    %v8159 = vld [vmem:[%s16 + $0x2c] sm:$0xf]
    %v8160 = vld [vmem:[%s16 + $0x30] sm:$0xf]
    %v8161 = vld [vmem:[%s16 + $0x34] sm:$0xf]
    %v8162 = vld [vmem:[%s16 + $0x38] sm:$0xf]
    %v8163 = vld [vmem:[%s16 + $0x3c] sm:$0xf]
    %v8164 = vpack.c.bf16 %v8147, %v8147
    %v8165 = vld [vmem:[%s17] sm:$0x1]
    %v8167 = vlaneseq
    %v8168 = vshrl.u32 %v8167, 7
    %v8169 = vsub.s32 0, %v8168
    %v8170 = vrot.slane %v8165, %v8169
    %v8188 = vunpack.c.l.b16 %v8148
    %v8189 = vunpack.c.l.b16 %v8149
    %v8190 = vunpack.c.l.b16 %v8150
    %v8191 = vunpack.c.l.b16 %v8151
    %v8192 = vunpack.c.l.b16 %v8152
    %v8193 = vunpack.c.l.b16 %v8153
    %v8194 = vunpack.c.l.b16 %v8154
    %v8195 = vunpack.c.l.b16 %v8155
    %v8196 = vunpack.c.l.b16 %v8156
    %v8197 = vunpack.c.l.b16 %v8157
    %v8198 = vunpack.c.l.b16 %v8158
    %v8199 = vunpack.c.l.b16 %v8159
    %v8200 = vunpack.c.l.b16 %v8160
    %v8201 = vunpack.c.l.b16 %v8161
    %v8202 = vunpack.c.l.b16 %v8162
    %v8203 = vunpack.c.l.b16 %v8163
    %v8204 = vpack.c.b16 %v8189, %v8188
    %v8205 = vpack.c.b16 %v8191, %v8190
    %v8206 = vpack.c.b16 %v8193, %v8192
    %v8207 = vpack.c.b16 %v8195, %v8194
    %v8208 = vpack.c.b16 %v8197, %v8196
    %v8209 = vpack.c.b16 %v8199, %v8198
    %v8210 = vpack.c.b16 %v8201, %v8200
    %v8211 = vpack.c.b16 %v8203, %v8202
    %8220 = vmatprep.subr.bf16.mxu0 0
    %8221 = vmatpush1.bf16.msra.mxu0 %v8204
    %8222 = vmatprep.subr.bf16.mxu0 0
    %8223 = vmatpush1.bf16.msra.mxu0 %v8205
    %8224 = vmatprep.subr.bf16.mxu0 0
    %8225 = vmatpush1.bf16.msra.mxu0 %v8206
    %8226 = vmatprep.subr.bf16.mxu0 0
    %8227 = vmatpush1.bf16.msra.mxu0 %v8207
    %8228 = vmatprep.subr.bf16.mxu0 0
    %8229 = vmatpush1.bf16.msra.mxu0 %v8208
    %8230 = vmatprep.subr.bf16.mxu0 0
    %8231 = vmatpush1.bf16.msra.mxu0 %v8209
    %8232 = vmatprep.subr.bf16.mxu0 0
    %8233 = vmatpush1.bf16.msra.mxu0 %v8210
    %8234 = vmatprep.subr.bf16.mxu0 0
    %8235 = vmatpush1.bf16.msra.mxu0 %v8211
    %8236 = vmatprep.subr.bf16.mxu0 0
    %8237 = vmatpush1.bf16.msra.mxu0 0
    %8238 = vmatprep.subr.bf16.mxu0 0
    %8239 = vmatpush1.bf16.msra.mxu0 0
    %8240 = vmatprep.subr.bf16.mxu0 0
    %8241 = vmatpush1.bf16.msra.mxu0 0
    %8242 = vmatprep.subr.bf16.mxu0 0
    %8243 = vmatpush1.bf16.msra.mxu0 0
    %8244 = vmatprep.subr.bf16.mxu0 0
    %8245 = vmatpush1.bf16.msra.mxu0 0
    %8246 = vmatprep.subr.bf16.mxu0 0
    %8247 = vmatpush1.bf16.msra.mxu0 0
    %8248 = vmatprep.subr.bf16.mxu0 0
    %8249 = vmatpush1.bf16.msra.mxu0 0
    %8250 = vmatprep.subr.bf16.mxu0 0
    %8251 = vmatpush1.bf16.msra.mxu0 0
    %8252 = vmatprep.mubr.bf16.mxu0 0
    %8253 = vmatmul.mubr.bf16.gmra.mrb[0].mxu0 %v8164
    %v8254 = vpop.f32.mrb[0].mxu0
    %v8255 = vadd.f32 %v8170, %v8254
    %v8256 = vpop.f32.mrb[0].mxu0
    %v8257 = vpop.f32.mrb[0].mxu0
    %v8258 = vpop.f32.mrb[0].mxu0
    %8259 = vdwg.mxu0
    %v8260 = vmax.f32 %v8255, 0.0
    %v8261 = vld [vmem:[%s18] sm:$0xf]
    %v8262 = vld [vmem:[%s18 + $0x4] sm:$0xf]
    %v8263 = vld [vmem:[%s18 + $0x8] sm:$0xf]
    %v8264 = vld [vmem:[%s18 + $0xc] sm:$0xf]
    %v8265 = vld [vmem:[%s18 + $0x10] sm:$0xf]
    %v8266 = vld [vmem:[%s18 + $0x14] sm:$0xf]
    %v8267 = vld [vmem:[%s18 + $0x18] sm:$0xf]
    %v8268 = vld [vmem:[%s18 + $0x1c] sm:$0xf]
    %v8269 = vld [vmem:[%s18 + $0x20] sm:$0xf]
    %v8270 = vld [vmem:[%s18 + $0x24] sm:$0xf]
    %v8271 = vld [vmem:[%s18 + $0x28] sm:$0xf]
    %v8272 = vld [vmem:[%s18 + $0x2c] sm:$0xf]
    %v8273 = vld [vmem:[%s18 + $0x30] sm:$0xf]
    %v8274 = vld [vmem:[%s18 + $0x34] sm:$0xf]
    %v8275 = vld [vmem:[%s18 + $0x38] sm:$0xf]
    %v8276 = vld [vmem:[%s18 + $0x3c] sm:$0xf]
    %v8277 = vpack.c.bf16 %v8260, %v8260
    %v8278 = vld [vmem:[%s19] sm:$0x1]
    %v8280 = vlaneseq
    %v8281 = vshrl.u32 %v8280, 7
    %v8282 = vsub.s32 0, %v8281
    %v8283 = vrot.slane %v8278, %v8282
    %v8301 = vunpack.c.l.b16 %v8261
    %v8302 = vunpack.c.l.b16 %v8262
    %v8303 = vunpack.c.l.b16 %v8263
    %v8304 = vunpack.c.l.b16 %v8264
    %v8305 = vunpack.c.l.b16 %v8265
    %v8306 = vunpack.c.l.b16 %v8266
    %v8307 = vunpack.c.l.b16 %v8267
    %v8308 = vunpack.c.l.b16 %v8268
    %v8309 = vunpack.c.l.b16 %v8269
    %v8310 = vunpack.c.l.b16 %v8270
    %v8311 = vunpack.c.l.b16 %v8271
    %v8312 = vunpack.c.l.b16 %v8272
    %v8313 = vunpack.c.l.b16 %v8273
    %v8314 = vunpack.c.l.b16 %v8274
    %v8315 = vunpack.c.l.b16 %v8275
    %v8316 = vunpack.c.l.b16 %v8276
    %v8317 = vpack.c.b16 %v8302, %v8301
    %v8318 = vpack.c.b16 %v8304, %v8303
    %v8319 = vpack.c.b16 %v8306, %v8305
    %v8320 = vpack.c.b16 %v8308, %v8307
    %v8321 = vpack.c.b16 %v8310, %v8309
    %v8322 = vpack.c.b16 %v8312, %v8311
    %v8323 = vpack.c.b16 %v8314, %v8313
    %v8324 = vpack.c.b16 %v8316, %v8315
    %8333 = vmatprep.subr.bf16.mxu0 0
    %8334 = vmatpush1.bf16.msra.mxu0 %v8317
    %8335 = vmatprep.subr.bf16.mxu0 0
    %8336 = vmatpush1.bf16.msra.mxu0 %v8318
    %8337 = vmatprep.subr.bf16.mxu0 0
    %8338 = vmatpush1.bf16.msra.mxu0 %v8319
    %8339 = vmatprep.subr.bf16.mxu0 0
    %8340 = vmatpush1.bf16.msra.mxu0 %v8320
    %8341 = vmatprep.subr.bf16.mxu0 0
    %8342 = vmatpush1.bf16.msra.mxu0 %v8321
    %8343 = vmatprep.subr.bf16.mxu0 0
    %8344 = vmatpush1.bf16.msra.mxu0 %v8322
    %8345 = vmatprep.subr.bf16.mxu0 0
    %8346 = vmatpush1.bf16.msra.mxu0 %v8323
    %8347 = vmatprep.subr.bf16.mxu0 0
    %8348 = vmatpush1.bf16.msra.mxu0 %v8324
    %8349 = vmatprep.subr.bf16.mxu0 0
    %8350 = vmatpush1.bf16.msra.mxu0 0
    %8351 = vmatprep.subr.bf16.mxu0 0
    %8352 = vmatpush1.bf16.msra.mxu0 0
    %8353 = vmatprep.subr.bf16.mxu0 0
    %8354 = vmatpush1.bf16.msra.mxu0 0
    %8355 = vmatprep.subr.bf16.mxu0 0
    %8356 = vmatpush1.bf16.msra.mxu0 0
    %8357 = vmatprep.subr.bf16.mxu0 0
    %8358 = vmatpush1.bf16.msra.mxu0 0
    %8359 = vmatprep.subr.bf16.mxu0 0
    %8360 = vmatpush1.bf16.msra.mxu0 0
    %8361 = vmatprep.subr.bf16.mxu0 0
    %8362 = vmatpush1.bf16.msra.mxu0 0
    %8363 = vmatprep.subr.bf16.mxu0 0
    %8364 = vmatpush1.bf16.msra.mxu0 0
    %8365 = vmatprep.mubr.bf16.mxu0 0
    %8366 = vmatmul.mubr.bf16.gmra.mrb[0].mxu0 %v8277
    %v8367 = vpop.f32.mrb[0].mxu0
    %v8368 = vadd.f32 %v8283, %v8367
    %v8369 = vpop.f32.mrb[0].mxu0
    %v8370 = vpop.f32.mrb[0].mxu0
    %v8371 = vpop.f32.mrb[0].mxu0
    %8372 = vdwg.mxu0
    %v8373 = vsub.f32 %v70, %v8080
    %v8374 = vsub.f32 %v8373, %v8368
    %vm8375 = vcmask 125952
    %8376 = vst.msk [vmem:[#allocation4] sm:$0xf] %vm8375, %v8374
    // Predicated region
    $region82: #{treedrnet_forward.1} parent=1 // pred_check
      _
    $region83: #{treedrnet_forward.1} parent=1 // pred_check_branch
      %8378 = sbr.rel (0) target = $region85
    $region84: #{treedrnet_forward.1} parent=1 // pred_region
      %s8380 = ssub.s32 64, 64
      %8381 = vsyncadd [#allocation3], %s8380
      %s8383 = sshll.u32 [#allocation2], 4
      %s8384 = int_to_ptr.vmem [resolvable:$true] %s8383
      %8386 = dma.vmem_to_hbm [thread:$0]  %s8384, 64, %s20, [#allocation3]
    $region85: #{treedrnet_forward.1} parent=1 // pred_fallthru
      _
    // Predicated region
    $region86: #{treedrnet_forward.1} parent=1 // pred_check
      _
    $region87: #{treedrnet_forward.1} parent=1 // pred_check_branch
      %8388 = sbr.rel (0) target = $region89
    $region88: #{treedrnet_forward.1} parent=1 // pred_region
      %s8390 = ssub.s32 64, 64
      %8391 = vsyncadd [#allocation5], %s8390
      %s8393 = sshll.u32 [#allocation4], 4
      %s8394 = int_to_ptr.vmem [resolvable:$true] %s8393
      %8396 = dma.vmem_to_hbm [thread:$0]  %s8394, 64, %s21, [#allocation5]
    $region89: #{treedrnet_forward.1} parent=1 // pred_fallthru
      _
    // Predicated region
    $region90: #{treedrnet_forward.1} parent=1 // pred_check
      _
    $region91: #{treedrnet_forward.1} parent=1 // pred_check_branch
      %8398 = sbr.rel (0) target = $region93
    $region92: #{treedrnet_forward.1} parent=1 // pred_region
      %8399 = dma.done [#allocation3], 64
    $region93: #{treedrnet_forward.1} parent=1 // pred_fallthru
      _
    // Predicated region
    $region94: #{treedrnet_forward.1} parent=1 // pred_check
      _
    $region95: #{treedrnet_forward.1} parent=1 // pred_check_branch
      %8401 = sbr.rel (0) target = $region97
    $region96: #{treedrnet_forward.1} parent=1 // pred_region
      %8402 = dma.done [#allocation5], 64
    $region97: #{treedrnet_forward.1} parent=1 // pred_fallthru
      _
    %8403 = vsyncpa [#allocation3], 1
    %8404 = vsyncpa [#allocation5], 1

</llo_original>
